<compile_context>
chip_gen: v5e
topology: v5e:2x2
jax: 0.10.0
libtpu: 0.0.40
codegen_flags: <defaults>
</compile_context>

<pallas_src>
import functools

import jax
import jax.numpy as jnp
from jax.experimental import pallas as pl
from jax.experimental.pallas import tpu as pltpu


# ---------------------------------------------------------------------------
# Wrapper-side layout helpers (pure XLA glue, cheap at these sizes).
# ---------------------------------------------------------------------------
def _pad_hw(x, pad):
    """Zero-pad H and W of an NHWC tensor."""
    if pad == 0:
        return x
    return jnp.pad(x, ((0, 0), (pad, pad), (pad, pad), (0, 0)))


def _space_to_depth_rows(xp, stride):
    """Phase-split a padded NHWC tensor so a stride-s conv only needs
    unit-stride slices inside the kernel.

    Returns (xs, Hs, Ws) with xs of shape (N, stride*stride*Hs, Ws, C) and
        xs[n, ((r % s)*s + (c % s))*Hs + r//s, c//s, :] == xp[n, r, c, :].
    """
    if stride == 1:
        return xp, xp.shape[1], xp.shape[2]
    N, Hp, Wp, C = xp.shape
    Hs = -(-Hp // stride)
    Ws = -(-Wp // stride)
    xe = jnp.pad(xp, ((0, 0), (0, Hs * stride - Hp), (0, Ws * stride - Wp), (0, 0)))
    xe = xe.reshape(N, Hs, stride, Ws, stride, C)
    xe = jnp.transpose(xe, (0, 2, 4, 1, 3, 5))      # (N, r-phase, c-phase, Hs, Ws, C)
    return xe.reshape(N, stride * stride * Hs, Ws, C), Hs, Ws


# ---------------------------------------------------------------------------
# In-kernel building blocks
# ---------------------------------------------------------------------------
def _im2col_taps(x_ref, pm_ref, *, KH, KW, stride, Hs, Ho, Wo, Cin, off=0):
    """Fill the (Ho, Wo, KH*KW*Cin) bf16 patch tensor in VMEM scratch.

    All reads are unit-stride ref slices (stride-2 inputs were phase-split by
    the wrapper).  Each tap is cast to bf16 at write time; the (Ho*Wo, Ktot)
    reshape happens once, outside this loop.
    """
    for kh in range(KH):
        for kw in range(KW):
            if stride == 1:
                r0, c0 = off + kh, off + kw
            else:
                ph = (kh % stride) * stride + (kw % stride)
                r0, c0 = ph * Hs + kh // stride, kw // stride
            t = kh * KW + kw
            patch = x_ref[0, r0:r0 + Ho, c0:c0 + Wo, :]          # (Ho, Wo, Cin)
            pm_ref[:, :, t * Cin:(t + 1) * Cin] = patch.astype(jnp.bfloat16)


def _conv_from_scratch(pm_ref, w_ref, b_ref, Ho, Wo, Ktot):
    """relu(im2col-matmul + folded-BN bias): ONE bf16 MXU dot, f32 accumulate."""
    pm = pm_ref[...].reshape(Ho * Wo, Ktot)                      # single relayout
    acc = jnp.dot(pm, w_ref[...], preferred_element_type=jnp.float32)
    return jnp.maximum(acc + b_ref[...], 0.0)


def _dense_bias_relu(x2d, w_ref, b_ref):
    """1x1 BasicConv (conv + folded BN + ReLU) on an (M, Cin) f32 value."""
    acc = jnp.dot(x2d.astype(jnp.bfloat16), w_ref[...],
                  preferred_element_type=jnp.float32)
    return jnp.maximum(acc + b_ref[...], 0.0)


def _upsample_nearest_int(x, rh, rw):
    """(H, W, C) -> (H*rh, W*rw, C) nearest neighbour, integer ratios only."""
    H, W, C = x.shape
    if rh > 1:
        x = jnp.broadcast_to(x[:, None, :, :], (H, rh, W, C)).reshape(H * rh, W, C)
        H = H * rh
    if rw > 1:
        x = jnp.broadcast_to(x[:, :, None, :], (H, W, rw, C)).reshape(H, W * rw, C)
    return x


# ---------------------------------------------------------------------------
# Stride-2 encoder BasicConv (one pallas_call each)
# ---------------------------------------------------------------------------
def _enc_s2_kernel(x_ref, w_ref, b_ref, o_ref, pm_ref, *, K, Hs, Ho, Wo, Cin):
    _im2col_taps(x_ref, pm_ref, KH=K, KW=K, stride=2, Hs=Hs,
                 Ho=Ho, Wo=Wo, Cin=Cin)
    o_ref[0] = _conv_from_scratch(pm_ref, w_ref, b_ref, Ho, Wo, K * K * Cin)


def basic_conv_s2(xp, cp):
    """Stride-2 BasicConv = Conv2d(bias=False)+folded BN+ReLU as one MXU matmul.
    xp: (N, Hp, Wp, Cin) NHWC f32, already spatially padded."""
    N, Hp, Wp, Cin = xp.shape
    K = cp["k"]
    Cout = cp["b"].shape[-1]
    Ho = (Hp - K) // 2 + 1
    Wo = (Wp - K) // 2 + 1
    xs, Hs, Ws = _space_to_depth_rows(xp, 2)

    kern = functools.partial(_enc_s2_kernel, K=K, Hs=Hs, Ho=Ho, Wo=Wo, Cin=Cin)
    out = pl.pallas_call(
        kern,
        out_shape=jax.ShapeDtypeStruct((N, Ho * Wo, Cout), jnp.float32),
        grid=(N,),
        in_specs=[
            pl.BlockSpec((1, 4 * Hs, Ws, Cin), lambda n: (n, 0, 0, 0)),
            pl.BlockSpec((K * K * Cin, Cout), lambda n: (0, 0)),
            pl.BlockSpec((1, Cout), lambda n: (0, 0)),
        ],
        out_specs=pl.BlockSpec((1, Ho * Wo, Cout), lambda n: (n, 0, 0)),
        scratch_shapes=[pltpu.VMEM((Ho, Wo, K * K * Cin), jnp.bfloat16)],
        compiler_params=pltpu.CompilerParams(dimension_semantics=("parallel",)),
    )(xs, cp["w2d"], cp["b"])
    return out.reshape(N, Ho, Wo, Cout)


# ---------------------------------------------------------------------------
# Fused kernel: stride-1 encoder tail + toplayer + ALL decoder levels
# ---------------------------------------------------------------------------
def _fused_tail_kernel(*refs, L, is_smooth, enc_hw, enc_cin, lat_hw, lat_cin, Cout):
    """All intermediates (conved[-1], deconved[i]) stay in VMEM/vregs."""
    n_wb = 2 * (2 + L + (L if is_smooth else 0))
    acts = refs[:L]
    wb = refs[L:L + n_wb]
    outs = refs[L + n_wb:L + n_wb + L + 1]
    scr = refs[L + n_wb + L + 1:]
    w_enc, b_enc, w_top, b_top = wb[0], wb[1], wb[2], wb[3]
    lat_wb = [(wb[4 + 2 * i], wb[5 + 2 * i]) for i in range(L)]
    sm_wb = ([(wb[4 + 2 * L + 2 * i], wb[5 + 2 * L + 2 * i]) for i in range(L)]
             if is_smooth else None)
    pm_enc, pm_lat = scr[0], scr[1:]

    # --- encoder tail: 3x3 / stride 1 / pad 0 on the interior of the pad-1
    #     act[0] block (shared with lateral level 0's padded input) ---
    He, We = enc_hw
    _im2col_taps(acts[0], pm_enc, KH=3, KW=3, stride=1, Hs=0,
                 Ho=He, Wo=We, Cin=enc_cin, off=1)
    c_last = _conv_from_scratch(pm_enc, w_enc, b_enc, He, We, 9 * enc_cin)

    # --- toplayer (1x1 BasicConv) -> deconved[0] (also smoothed[0]) ---
    d2 = _dense_bias_relu(c_last, w_top, b_top)                  # (He*We, Cout)
    outs[0][0] = d2
    d3 = d2.reshape(He, We, Cout)
    Hc, Wc = He, We

    # --- decoder levels: lateral conv + upsample-add (+ smooth) ---
    for i in range(L):
        Ht, Wt = lat_hw[i]
        Cin_i = lat_cin[i]
        _im2col_taps(acts[i], pm_lat[i], KH=3, KW=3, stride=1, Hs=0,
                     Ho=Ht, Wo=Wt, Cin=Cin_i)
        lat2 = _conv_from_scratch(pm_lat[i], lat_wb[i][0], lat_wb[i][1],
                                  Ht, Wt, 9 * Cin_i)
        up = _upsample_nearest_int(d3, Ht // Hc, Wt // Wc)       # in-kernel upsample
        d2 = lat2 + up.reshape(Ht * Wt, Cout)                    # relu(BN(conv)) + up
        if is_smooth:
            outs[i + 1][0] = _dense_bias_relu(d2, sm_wb[i][0], sm_wb[i][1])
        else:
            outs[i + 1][0] = d2
        if i + 1 < L:
            d3 = d2.reshape(Ht, Wt, Cout)
            Hc, Wc = Ht, Wt


def fused_decoder_tail(acts, enc_p, top_p, lat_ps, sm_ps, *, is_smooth):
    """acts[i] = padded(conved[L-1-i], pad=1), decoder order; acts[0] also feeds
    the last (stride-1, pad-0) encoder conv via its interior."""
    N = acts[0].shape[0]
    L = len(acts)
    Cout = top_p["b"].shape[-1]

    lat_hw, lat_cin = [], []
    for a in acts:
        _, Hp, Wp, Cin = a.shape
        lat_hw.append((Hp - 2, Wp - 2))
        lat_cin.append(Cin)
    enc_cin = lat_cin[0]
    He, We = lat_hw[0][0] - 2, lat_hw[0][1] - 2

    # In-kernel nearest upsample uses integer repeat ratios (always true for the
    # TUM pyramid built here).
    # TODO(synk): non-integer nearest ratios (gather path) are not implemented.
    hw = [(He, We)] + lat_hw
    for (hs, ws), (ht, wt) in zip(hw[:-1], hw[1:]):
        assert ht % hs == 0 and wt % ws == 0, "non-integer upsample ratio"

    kern = functools.partial(
        _fused_tail_kernel, L=L, is_smooth=is_smooth, enc_hw=(He, We),
        enc_cin=enc_cin, lat_hw=tuple(lat_hw), lat_cin=tuple(lat_cin), Cout=Cout)

    in_specs = [pl.BlockSpec((1,) + a.shape[1:], lambda n: (n, 0, 0, 0))
                for a in acts]
    args = list(acts)
    param_seq = [enc_p, top_p] + list(lat_ps) + (list(sm_ps) if is_smooth else [])
    for p in param_seq:
        in_specs.append(pl.BlockSpec(p["w2d"].shape, lambda n: (0, 0)))
        in_specs.append(pl.BlockSpec(p["b"].shape, lambda n: (0, 0)))
        args.extend([p["w2d"], p["b"]])

    out_shape = [jax.ShapeDtypeStruct((N, He * We, Cout), jnp.float32)]
    out_specs = [pl.BlockSpec((1, He * We, Cout), lambda n: (n, 0, 0))]
    for (Ht, Wt) in lat_hw:
        out_shape.append(jax.ShapeDtypeStruct((N, Ht * Wt, Cout), jnp.float32))
        out_specs.append(pl.BlockSpec((1, Ht * Wt, Cout), lambda n: (n, 0, 0)))

    scratch = [pltpu.VMEM((He, We, 9 * enc_cin), jnp.bfloat16)]
    for (Ht, Wt), Cin in zip(lat_hw, lat_cin):
        scratch.append(pltpu.VMEM((Ht, Wt, 9 * Cin), jnp.bfloat16))

    outs = pl.pallas_call(
        kern,
        out_shape=tuple(out_shape),
        grid=(N,),
        in_specs=in_specs,
        out_specs=tuple(out_specs),
        scratch_shapes=scratch,
        compiler_params=pltpu.CompilerParams(dimension_semantics=("parallel",)),
    )(*args)

    feats = [outs[0].reshape(N, He, We, Cout)]
    for o, (Ht, Wt) in zip(outs[1:], lat_hw):
        feats.append(o.reshape(N, Ht, Wt, Cout))
    return feats


# ---------------------------------------------------------------------------
# Deterministic parameter construction (inference-mode BN folded into weights)
# ---------------------------------------------------------------------------
def _init_basic_conv(key, cin, cout, k):
    kw_key, ks_key, kb_key = jax.random.split(key, 3)
    fan_in = k * k * cin
    w = jax.random.normal(kw_key, (k, k, cin, cout), jnp.float32) / jnp.sqrt(fan_in)
    scale = 1.0 + 0.1 * jax.random.normal(ks_key, (cout,), jnp.float32)
    bias = 0.1 * jax.random.normal(kb_key, (cout,), jnp.float32)
    # Fold the BatchNorm scale into the conv weights; keep only the bias add.
    # (When porting real BN stats: bias = beta - mean*gamma/sqrt(var+eps).)
    w = w * scale[None, None, None, :]
    w2d = w.reshape(k * k * cin, cout).astype(jnp.bfloat16)      # MXU operand dtype
    return {"w2d": w2d, "b": bias.reshape(1, cout).astype(jnp.float32), "k": k}


def build_tum_params(key, first_level=False, input_planes=8, side_channel=8,
                     scales=4, is_smooth=True):
    assert scales >= 3
    planes = 2 * input_planes
    in1 = input_planes + side_channel if not first_level else input_planes
    keys = iter(jax.random.split(key, 64))

    def bc(cin, cout, k, stride, pad):
        return (_init_basic_conv(next(keys), cin, cout, k), stride, pad)

    layers = [bc(in1, planes, 3, 2, 1)]
    for i in range(scales - 2):
        if i != scales - 3:
            layers.append(bc(planes, planes, 3, 2, 1))
        else:
            layers.append(bc(planes, planes, 3, 1, 0))

    toplayer = bc(planes, planes, 1, 1, 0)
    latlayer = [bc(planes, planes, 3, 1, 1) for _ in range(scales - 2)]
    latlayer.append(bc(in1, planes, 3, 1, 1))
    smooth = [bc(planes, planes, 1, 1, 0) for _ in range(scales - 1)] if is_smooth else None

    return {"layers": layers, "toplayer": toplayer, "latlayer": latlayer,
            "smooth": smooth, "first_level": first_level, "is_smooth": is_smooth}


# ---------------------------------------------------------------------------
# TUM forward (mirrors the PyTorch module's forward exactly)
# ---------------------------------------------------------------------------
def tum_forward(params, x_nchw, y_nchw):
    x = jnp.transpose(x_nchw, (0, 2, 3, 1))
    y = jnp.transpose(y_nchw, (0, 2, 3, 1))
    if not params["first_level"]:
        x = jnp.concatenate([x, y], axis=-1)

    layers = params["layers"]
    L = len(layers)

    # Encoder: stride-2 convs get one pallas_call each (wrapper phase-split);
    # the final stride-1 conv is fused into the decoder kernel below.  Each
    # padded feature is built once and reused by the matching lateral conv.
    conved = [x]
    padded = {}
    cur = x
    for li, (cp, s, pad) in enumerate(layers[:-1]):
        assert s == 2 and pad == 1
        xp = _pad_hw(cur, pad)
        padded[li] = xp
        cur = basic_conv_s2(xp, cp)
        conved.append(cur)
    assert layers[-1][1] == 1 and layers[-1][2] == 0
    padded[L - 1] = _pad_hw(conved[L - 1], 1)   # shared by encoder tail & lateral 0

    acts = [padded[L - 1 - i] for i in range(L)]           # decoder-order inputs
    lat_ps = [p for (p, _, _) in params["latlayer"]]
    sm_ps = ([p for (p, _, _) in params["smooth"]] if params["is_smooth"] else None)

    feats = fused_decoder_tail(acts, layers[-1][0], params["toplayer"][0],
                               lat_ps, sm_ps, is_smooth=params["is_smooth"])
    return [jnp.transpose(o, (0, 3, 1, 2)) for o in feats]   # back to NCHW


if __name__ == "__main__":
    key = jax.random.PRNGKey(0)
    kx, ky, kp = jax.random.split(key, 3)

    # Small config consistent with the module: first_level=False exercises the
    # concat path; scales=4 so the stride-2 chain fits a 16x16 input.
    N, input_planes, side_channel, H, W = 2, 8, 8, 16, 16
    x = jax.random.normal(kx, (N, input_planes, H, W), jnp.float32)
    y = jax.random.normal(ky, (N, side_channel, H, W), jnp.float32)

    params = build_tum_params(kp, first_level=False, input_planes=input_planes,
                              side_channel=side_channel, scales=4, is_smooth=True)

    fwd = jax.jit(lambda a, b: tum_forward(params, a, b))
    outs = fwd(x, y)
    for o in outs:
        jax.block_until_ready(o)

    expected = [(N, 16, 2, 2), (N, 16, 4, 4), (N, 16, 8, 8), (N, 16, 16, 16)]
    assert [tuple(o.shape) for o in outs] == expected, [o.shape for o in outs]
    print("KERNEL_OK")
</pallas_src>

<mosaic_0001>
module attributes {stable_mosaic.version = 11 : i64} {
  func.func @_enc_s2_kernel(%arg0: i32, %arg1: memref<1x36x9x16xf32, #tpu.memory_space<vmem>>, %arg2: memref<144x16xbf16, #tpu.memory_space<vmem>>, %arg3: memref<1x16xf32, #tpu.memory_space<vmem>>, %arg4: memref<1x64x16xf32, #tpu.memory_space<vmem>>, %arg5: memref<8x8x144xbf16, #tpu.memory_space<vmem>>) attributes {dimension_semantics = [#tpu.dimension_semantics<parallel>], iteration_bounds = array<i64: 2>, scalar_prefetch = 0 : i64, scratch_operands = 1 : i64, tpu.core_type = #tpu.core_type<tc>, window_params = [{transform_indices = @transform_0, window_bounds = array<i64: 1, 36, 9, 16>}, {pipeline_mode = #tpu.pipeline_mode<synchronous>, transform_indices = @transform_1, window_bounds = array<i64: 144, 16>}, {pipeline_mode = #tpu.pipeline_mode<synchronous>, transform_indices = @transform_2, window_bounds = array<i64: 1, 16>}, {transform_indices = @transform_3, window_bounds = array<i64: 1, 64, 16>}]} {
    %c0 = arith.constant 0 : index
    %c0_0 = arith.constant 0 : index
    %c0_1 = arith.constant 0 : index
    %c0_2 = arith.constant 0 : index
    %0 = vector.load %arg1[%c0, %c0_0, %c0_1, %c0_2] : memref<1x36x9x16xf32, #tpu.memory_space<vmem>>, vector<1x8x8x16xf32>
    %1 = vector.shape_cast %0 : vector<1x8x8x16xf32> to vector<8x8x16xf32>
    %2 = arith.truncf %1 : vector<8x8x16xf32> to vector<8x8x16xbf16>
    %c0_3 = arith.constant 0 : index
    %c0_4 = arith.constant 0 : index
    %c0_5 = arith.constant 0 : index
    %3 = vector.load %arg5[%c0_3, %c0_4, %c0_5] : memref<8x8x144xbf16, #tpu.memory_space<vmem>>, vector<8x8x16xbf16>
    tpu.vector_store %arg5[%c0_3, %c0_4, %c0_5], %2 {strides = array<i32>} : memref<8x8x144xbf16, #tpu.memory_space<vmem>>, vector<8x8x16xbf16>,
    %c0_6 = arith.constant 0 : index
    %c9 = arith.constant 9 : index
    %c0_7 = arith.constant 0 : index
    %c0_8 = arith.constant 0 : index
    %4 = vector.load %arg1[%c0_6, %c9, %c0_7, %c0_8] : memref<1x36x9x16xf32, #tpu.memory_space<vmem>>, vector<1x8x8x16xf32>
    %5 = vector.shape_cast %4 : vector<1x8x8x16xf32> to vector<8x8x16xf32>
    %6 = arith.truncf %5 : vector<8x8x16xf32> to vector<8x8x16xbf16>
    %c0_9 = arith.constant 0 : index
    %c0_10 = arith.constant 0 : index
    %c16 = arith.constant 16 : index
    %7 = vector.load %arg5[%c0_9, %c0_10, %c16] : memref<8x8x144xbf16, #tpu.memory_space<vmem>>, vector<8x8x16xbf16>
    tpu.vector_store %arg5[%c0_9, %c0_10, %c16], %6 {strides = array<i32>} : memref<8x8x144xbf16, #tpu.memory_space<vmem>>, vector<8x8x16xbf16>,
    %c0_11 = arith.constant 0 : index
    %c0_12 = arith.constant 0 : index
    %c1 = arith.constant 1 : index
    %c0_13 = arith.constant 0 : index
    %8 = vector.load %arg1[%c0_11, %c0_12, %c1, %c0_13] : memref<1x36x9x16xf32, #tpu.memory_space<vmem>>, vector<1x8x8x16xf32>
    %9 = vector.shape_cast %8 : vector<1x8x8x16xf32> to vector<8x8x16xf32>
    %10 = arith.truncf %9 : vector<8x8x16xf32> to vector<8x8x16xbf16>
    %c0_14 = arith.constant 0 : index
    %c0_15 = arith.constant 0 : index
    %c32 = arith.constant 32 : index
    %11 = vector.load %arg5[%c0_14, %c0_15, %c32] : memref<8x8x144xbf16, #tpu.memory_space<vmem>>, vector<8x8x16xbf16>
    tpu.vector_store %arg5[%c0_14, %c0_15, %c32], %10 {strides = array<i32>} : memref<8x8x144xbf16, #tpu.memory_space<vmem>>, vector<8x8x16xbf16>,
    %c0_16 = arith.constant 0 : index
    %c18 = arith.constant 18 : index
    %c0_17 = arith.constant 0 : index
    %c0_18 = arith.constant 0 : index
    %12 = vector.load %arg1[%c0_16, %c18, %c0_17, %c0_18] : memref<1x36x9x16xf32, #tpu.memory_space<vmem>>, vector<1x8x8x16xf32>
    %13 = vector.shape_cast %12 : vector<1x8x8x16xf32> to vector<8x8x16xf32>
    %14 = arith.truncf %13 : vector<8x8x16xf32> to vector<8x8x16xbf16>
    %c0_19 = arith.constant 0 : index
    %c0_20 = arith.constant 0 : index
    %c48 = arith.constant 48 : index
    %15 = vector.load %arg5[%c0_19, %c0_20, %c48] : memref<8x8x144xbf16, #tpu.memory_space<vmem>>, vector<8x8x16xbf16>
    tpu.vector_store %arg5[%c0_19, %c0_20, %c48], %14 {strides = array<i32>} : memref<8x8x144xbf16, #tpu.memory_space<vmem>>, vector<8x8x16xbf16>,
    %c0_21 = arith.constant 0 : index
    %c27 = arith.constant 27 : index
    %c0_22 = arith.constant 0 : index
    %c0_23 = arith.constant 0 : index
    %16 = vector.load %arg1[%c0_21, %c27, %c0_22, %c0_23] : memref<1x36x9x16xf32, #tpu.memory_space<vmem>>, vector<1x8x8x16xf32>
    %17 = vector.shape_cast %16 : vector<1x8x8x16xf32> to vector<8x8x16xf32>
    %18 = arith.truncf %17 : vector<8x8x16xf32> to vector<8x8x16xbf16>
    %c0_24 = arith.constant 0 : index
    %c0_25 = arith.constant 0 : index
    %c64 = arith.constant 64 : index
    %19 = vector.load %arg5[%c0_24, %c0_25, %c64] : memref<8x8x144xbf16, #tpu.memory_space<vmem>>, vector<8x8x16xbf16>
    tpu.vector_store %arg5[%c0_24, %c0_25, %c64], %18 {strides = array<i32>} : memref<8x8x144xbf16, #tpu.memory_space<vmem>>, vector<8x8x16xbf16>,
    %c0_26 = arith.constant 0 : index
    %c18_27 = arith.constant 18 : index
    %c1_28 = arith.constant 1 : index
    %c0_29 = arith.constant 0 : index
    %20 = vector.load %arg1[%c0_26, %c18_27, %c1_28, %c0_29] : memref<1x36x9x16xf32, #tpu.memory_space<vmem>>, vector<1x8x8x16xf32>
    %21 = vector.shape_cast %20 : vector<1x8x8x16xf32> to vector<8x8x16xf32>
    %22 = arith.truncf %21 : vector<8x8x16xf32> to vector<8x8x16xbf16>
    %c0_30 = arith.constant 0 : index
    %c0_31 = arith.constant 0 : index
    %c80 = arith.constant 80 : index
    %23 = vector.load %arg5[%c0_30, %c0_31, %c80] : memref<8x8x144xbf16, #tpu.memory_space<vmem>>, vector<8x8x16xbf16>
    tpu.vector_store %arg5[%c0_30, %c0_31, %c80], %22 {strides = array<i32>} : memref<8x8x144xbf16, #tpu.memory_space<vmem>>, vector<8x8x16xbf16>,
    %c0_32 = arith.constant 0 : index
    %c1_33 = arith.constant 1 : index
    %c0_34 = arith.constant 0 : index
    %c0_35 = arith.constant 0 : index
    %24 = vector.load %arg1[%c0_32, %c1_33, %c0_34, %c0_35] : memref<1x36x9x16xf32, #tpu.memory_space<vmem>>, vector<1x8x8x16xf32>
    %25 = vector.shape_cast %24 : vector<1x8x8x16xf32> to vector<8x8x16xf32>
    %26 = arith.truncf %25 : vector<8x8x16xf32> to vector<8x8x16xbf16>
    %c0_36 = arith.constant 0 : index
    %c0_37 = arith.constant 0 : index
    %c96 = arith.constant 96 : index
    %27 = vector.load %arg5[%c0_36, %c0_37, %c96] : memref<8x8x144xbf16, #tpu.memory_space<vmem>>, vector<8x8x16xbf16>
    tpu.vector_store %arg5[%c0_36, %c0_37, %c96], %26 {strides = array<i32>} : memref<8x8x144xbf16, #tpu.memory_space<vmem>>, vector<8x8x16xbf16>,
    %c0_38 = arith.constant 0 : index
    %c10 = arith.constant 10 : index
    %c0_39 = arith.constant 0 : index
    %c0_40 = arith.constant 0 : index
    %28 = vector.load %arg1[%c0_38, %c10, %c0_39, %c0_40] : memref<1x36x9x16xf32, #tpu.memory_space<vmem>>, vector<1x8x8x16xf32>
    %29 = vector.shape_cast %28 : vector<1x8x8x16xf32> to vector<8x8x16xf32>
    %30 = arith.truncf %29 : vector<8x8x16xf32> to vector<8x8x16xbf16>
    %c0_41 = arith.constant 0 : index
    %c0_42 = arith.constant 0 : index
    %c112 = arith.constant 112 : index
    %31 = vector.load %arg5[%c0_41, %c0_42, %c112] : memref<8x8x144xbf16, #tpu.memory_space<vmem>>, vector<8x8x16xbf16>
    tpu.vector_store %arg5[%c0_41, %c0_42, %c112], %30 {strides = array<i32>} : memref<8x8x144xbf16, #tpu.memory_space<vmem>>, vector<8x8x16xbf16>,
    %c0_43 = arith.constant 0 : index
    %c1_44 = arith.constant 1 : index
    %c1_45 = arith.constant 1 : index
    %c0_46 = arith.constant 0 : index
    %32 = vector.load %arg1[%c0_43, %c1_44, %c1_45, %c0_46] : memref<1x36x9x16xf32, #tpu.memory_space<vmem>>, vector<1x8x8x16xf32>
    %33 = vector.shape_cast %32 : vector<1x8x8x16xf32> to vector<8x8x16xf32>
    %34 = arith.truncf %33 : vector<8x8x16xf32> to vector<8x8x16xbf16>
    %c0_47 = arith.constant 0 : index
    %c0_48 = arith.constant 0 : index
    %c128 = arith.constant 128 : index
    %35 = vector.load %arg5[%c0_47, %c0_48, %c128] : memref<8x8x144xbf16, #tpu.memory_space<vmem>>, vector<8x8x16xbf16>
    tpu.vector_store %arg5[%c0_47, %c0_48, %c128], %34 {strides = array<i32>} : memref<8x8x144xbf16, #tpu.memory_space<vmem>>, vector<8x8x16xbf16>,
    %c0_49 = arith.constant 0 : index
    %c0_50 = arith.constant 0 : index
    %c0_51 = arith.constant 0 : index
    %36 = vector.load %arg5[%c0_49, %c0_50, %c0_51] : memref<8x8x144xbf16, #tpu.memory_space<vmem>>, vector<8x8x144xbf16>
    %37 = vector.shape_cast %36 : vector<8x8x144xbf16> to vector<64x144xbf16>
    %c0_52 = arith.constant 0 : index
    %c0_53 = arith.constant 0 : index
    %38 = vector.load %arg2[%c0_52, %c0_53] : memref<144x16xbf16, #tpu.memory_space<vmem>>, vector<144x16xbf16>
    %cst = arith.constant dense<0.000000e+00> : vector<64x16xf32>
    %39 = tpu.matmul %37, %38, %cst {dimension_numbers = #tpu.dot_dimension_numbers<[1], [0], [0], [1], [0, 0, 1, 1], [], []>} : vector<64x144xbf16>, vector<144x16xbf16>, vector<64x16xf32> -> vector<64x16xf32>
    %c0_54 = arith.constant 0 : index
    %c0_55 = arith.constant 0 : index
    %40 = vector.load %arg3[%c0_54, %c0_55] : memref<1x16xf32, #tpu.memory_space<vmem>>, vector<1x16xf32>
    %41 = vector.broadcast %40 : vector<1x16xf32> to vector<64x16xf32>
    %42 = arith.addf %39, %41 : vector<64x16xf32>
    %cst_56 = arith.constant 0.000000e+00 : f32
    %43 = vector.broadcast %cst_56 : f32 to vector<64x16xf32>
    %44 = arith.maximumf %42, %43 : vector<64x16xf32>
    %c0_57 = arith.constant 0 : index
    %c0_58 = arith.constant 0 : index
    %c0_59 = arith.constant 0 : index
    %45 = vector.load %arg4[%c0_57, %c0_58, %c0_59] : memref<1x64x16xf32, #tpu.memory_space<vmem>>, vector<1x64x16xf32>
    %46 = vector.shape_cast %45 : vector<1x64x16xf32> to vector<64x16xf32>
    %47 = vector.shape_cast %44 : vector<64x16xf32> to vector<1x64x16xf32>
    tpu.vector_store %arg4[%c0_57, %c0_58, %c0_59], %47 {strides = array<i32>} : memref<1x64x16xf32, #tpu.memory_space<vmem>>, vector<1x64x16xf32>,
    return
  }
  func.func @transform_0(%arg0: i32) -> (i32, i32, i32, i32) {
    %c0_i32 = arith.constant 0 : i32
    %c0_i32_0 = arith.constant 0 : i32
    %c0_i32_1 = arith.constant 0 : i32
    %c0_i32_2 = arith.constant 0 : i32
    return %arg0, %c0_i32, %c0_i32_0, %c0_i32_1 : i32, i32, i32, i32
  }
  func.func @transform_1(%arg0: i32) -> (i32, i32) {
    %c0_i32 = arith.constant 0 : i32
    %c0_i32_0 = arith.constant 0 : i32
    %c0_i32_1 = arith.constant 0 : i32
    return %c0_i32, %c0_i32_0 : i32, i32
  }
  func.func @transform_2(%arg0: i32) -> (i32, i32) {
    %c0_i32 = arith.constant 0 : i32
    %c0_i32_0 = arith.constant 0 : i32
    %c0_i32_1 = arith.constant 0 : i32
    return %c0_i32, %c0_i32_0 : i32, i32
  }
  func.func @transform_3(%arg0: i32) -> (i32, i32, i32) {
    %c0_i32 = arith.constant 0 : i32
    %c0_i32_0 = arith.constant 0 : i32
    %c0_i32_1 = arith.constant 0 : i32
    return %arg0, %c0_i32, %c0_i32_0 : i32, i32, i32
  }
}

module attributes {stable_mosaic.version = 11 : i64} {
  func.func @_enc_s2_kernel(%arg0: i32, %arg1: memref<1x20x5x16xf32, #tpu.memory_space<vmem>>, %arg2: memref<144x16xbf16, #tpu.memory_space<vmem>>, %arg3: memref<1x16xf32, #tpu.memory_space<vmem>>, %arg4: memref<1x16x16xf32, #tpu.memory_space<vmem>>, %arg5: memref<4x4x144xbf16, #tpu.memory_space<vmem>>) attributes {dimension_semantics = [#tpu.dimension_semantics<parallel>], iteration_bounds = array<i64: 2>, scalar_prefetch = 0 : i64, scratch_operands = 1 : i64, tpu.core_type = #tpu.core_type<tc>, window_params = [{transform_indices = @transform_0, window_bounds = array<i64: 1, 20, 5, 16>}, {pipeline_mode = #tpu.pipeline_mode<synchronous>, transform_indices = @transform_1, window_bounds = array<i64: 144, 16>}, {pipeline_mode = #tpu.pipeline_mode<synchronous>, transform_indices = @transform_2, window_bounds = array<i64: 1, 16>}, {transform_indices = @transform_3, window_bounds = array<i64: 1, 16, 16>}]} {
    %c0 = arith.constant 0 : index
    %c0_0 = arith.constant 0 : index
    %c0_1 = arith.constant 0 : index
    %c0_2 = arith.constant 0 : index
    %0 = vector.load %arg1[%c0, %c0_0, %c0_1, %c0_2] : memref<1x20x5x16xf32, #tpu.memory_space<vmem>>, vector<1x4x4x16xf32>
    %1 = vector.shape_cast %0 : vector<1x4x4x16xf32> to vector<4x4x16xf32>
    %2 = arith.truncf %1 : vector<4x4x16xf32> to vector<4x4x16xbf16>
    %c0_3 = arith.constant 0 : index
    %c0_4 = arith.constant 0 : index
    %c0_5 = arith.constant 0 : index
    %3 = vector.load %arg5[%c0_3, %c0_4, %c0_5] : memref<4x4x144xbf16, #tpu.memory_space<vmem>>, vector<4x4x16xbf16>
    tpu.vector_store %arg5[%c0_3, %c0_4, %c0_5], %2 {strides = array<i32>} : memref<4x4x144xbf16, #tpu.memory_space<vmem>>, vector<4x4x16xbf16>,
    %c0_6 = arith.constant 0 : index
    %c5 = arith.constant 5 : index
    %c0_7 = arith.constant 0 : index
    %c0_8 = arith.constant 0 : index
    %4 = vector.load %arg1[%c0_6, %c5, %c0_7, %c0_8] : memref<1x20x5x16xf32, #tpu.memory_space<vmem>>, vector<1x4x4x16xf32>
    %5 = vector.shape_cast %4 : vector<1x4x4x16xf32> to vector<4x4x16xf32>
    %6 = arith.truncf %5 : vector<4x4x16xf32> to vector<4x4x16xbf16>
    %c0_9 = arith.constant 0 : index
    %c0_10 = arith.constant 0 : index
    %c16 = arith.constant 16 : index
    %7 = vector.load %arg5[%c0_9, %c0_10, %c16] : memref<4x4x144xbf16, #tpu.memory_space<vmem>>, vector<4x4x16xbf16>
    tpu.vector_store %arg5[%c0_9, %c0_10, %c16], %6 {strides = array<i32>} : memref<4x4x144xbf16, #tpu.memory_space<vmem>>, vector<4x4x16xbf16>,
    %c0_11 = arith.constant 0 : index
    %c0_12 = arith.constant 0 : index
    %c1 = arith.constant 1 : index
    %c0_13 = arith.constant 0 : index
    %8 = vector.load %arg1[%c0_11, %c0_12, %c1, %c0_13] : memref<1x20x5x16xf32, #tpu.memory_space<vmem>>, vector<1x4x4x16xf32>
    %9 = vector.shape_cast %8 : vector<1x4x4x16xf32> to vector<4x4x16xf32>
    %10 = arith.truncf %9 : vector<4x4x16xf32> to vector<4x4x16xbf16>
    %c0_14 = arith.constant 0 : index
    %c0_15 = arith.constant 0 : index
    %c32 = arith.constant 32 : index
    %11 = vector.load %arg5[%c0_14, %c0_15, %c32] : memref<4x4x144xbf16, #tpu.memory_space<vmem>>, vector<4x4x16xbf16>
    tpu.vector_store %arg5[%c0_14, %c0_15, %c32], %10 {strides = array<i32>} : memref<4x4x144xbf16, #tpu.memory_space<vmem>>, vector<4x4x16xbf16>,
    %c0_16 = arith.constant 0 : index
    %c10 = arith.constant 10 : index
    %c0_17 = arith.constant 0 : index
    %c0_18 = arith.constant 0 : index
    %12 = vector.load %arg1[%c0_16, %c10, %c0_17, %c0_18] : memref<1x20x5x16xf32, #tpu.memory_space<vmem>>, vector<1x4x4x16xf32>
    %13 = vector.shape_cast %12 : vector<1x4x4x16xf32> to vector<4x4x16xf32>
    %14 = arith.truncf %13 : vector<4x4x16xf32> to vector<4x4x16xbf16>
    %c0_19 = arith.constant 0 : index
    %c0_20 = arith.constant 0 : index
    %c48 = arith.constant 48 : index
    %15 = vector.load %arg5[%c0_19, %c0_20, %c48] : memref<4x4x144xbf16, #tpu.memory_space<vmem>>, vector<4x4x16xbf16>
    tpu.vector_store %arg5[%c0_19, %c0_20, %c48], %14 {strides = array<i32>} : memref<4x4x144xbf16, #tpu.memory_space<vmem>>, vector<4x4x16xbf16>,
    %c0_21 = arith.constant 0 : index
    %c15 = arith.constant 15 : index
    %c0_22 = arith.constant 0 : index
    %c0_23 = arith.constant 0 : index
    %16 = vector.load %arg1[%c0_21, %c15, %c0_22, %c0_23] : memref<1x20x5x16xf32, #tpu.memory_space<vmem>>, vector<1x4x4x16xf32>
    %17 = vector.shape_cast %16 : vector<1x4x4x16xf32> to vector<4x4x16xf32>
    %18 = arith.truncf %17 : vector<4x4x16xf32> to vector<4x4x16xbf16>
    %c0_24 = arith.constant 0 : index
    %c0_25 = arith.constant 0 : index
    %c64 = arith.constant 64 : index
    %19 = vector.load %arg5[%c0_24, %c0_25, %c64] : memref<4x4x144xbf16, #tpu.memory_space<vmem>>, vector<4x4x16xbf16>
    tpu.vector_store %arg5[%c0_24, %c0_25, %c64], %18 {strides = array<i32>} : memref<4x4x144xbf16, #tpu.memory_space<vmem>>, vector<4x4x16xbf16>,
    %c0_26 = arith.constant 0 : index
    %c10_27 = arith.constant 10 : index
    %c1_28 = arith.constant 1 : index
    %c0_29 = arith.constant 0 : index
    %20 = vector.load %arg1[%c0_26, %c10_27, %c1_28, %c0_29] : memref<1x20x5x16xf32, #tpu.memory_space<vmem>>, vector<1x4x4x16xf32>
    %21 = vector.shape_cast %20 : vector<1x4x4x16xf32> to vector<4x4x16xf32>
    %22 = arith.truncf %21 : vector<4x4x16xf32> to vector<4x4x16xbf16>
    %c0_30 = arith.constant 0 : index
    %c0_31 = arith.constant 0 : index
    %c80 = arith.constant 80 : index
    %23 = vector.load %arg5[%c0_30, %c0_31, %c80] : memref<4x4x144xbf16, #tpu.memory_space<vmem>>, vector<4x4x16xbf16>
    tpu.vector_store %arg5[%c0_30, %c0_31, %c80], %22 {strides = array<i32>} : memref<4x4x144xbf16, #tpu.memory_space<vmem>>, vector<4x4x16xbf16>,
    %c0_32 = arith.constant 0 : index
    %c1_33 = arith.constant 1 : index
    %c0_34 = arith.constant 0 : index
    %c0_35 = arith.constant 0 : index
    %24 = vector.load %arg1[%c0_32, %c1_33, %c0_34, %c0_35] : memref<1x20x5x16xf32, #tpu.memory_space<vmem>>, vector<1x4x4x16xf32>
    %25 = vector.shape_cast %24 : vector<1x4x4x16xf32> to vector<4x4x16xf32>
    %26 = arith.truncf %25 : vector<4x4x16xf32> to vector<4x4x16xbf16>
    %c0_36 = arith.constant 0 : index
    %c0_37 = arith.constant 0 : index
    %c96 = arith.constant 96 : index
    %27 = vector.load %arg5[%c0_36, %c0_37, %c96] : memref<4x4x144xbf16, #tpu.memory_space<vmem>>, vector<4x4x16xbf16>
    tpu.vector_store %arg5[%c0_36, %c0_37, %c96], %26 {strides = array<i32>} : memref<4x4x144xbf16, #tpu.memory_space<vmem>>, vector<4x4x16xbf16>,
    %c0_38 = arith.constant 0 : index
    %c6 = arith.constant 6 : index
    %c0_39 = arith.constant 0 : index
    %c0_40 = arith.constant 0 : index
    %28 = vector.load %arg1[%c0_38, %c6, %c0_39, %c0_40] : memref<1x20x5x16xf32, #tpu.memory_space<vmem>>, vector<1x4x4x16xf32>
    %29 = vector.shape_cast %28 : vector<1x4x4x16xf32> to vector<4x4x16xf32>
    %30 = arith.truncf %29 : vector<4x4x16xf32> to vector<4x4x16xbf16>
    %c0_41 = arith.constant 0 : index
    %c0_42 = arith.constant 0 : index
    %c112 = arith.constant 112 : index
    %31 = vector.load %arg5[%c0_41, %c0_42, %c112] : memref<4x4x144xbf16, #tpu.memory_space<vmem>>, vector<4x4x16xbf16>
    tpu.vector_store %arg5[%c0_41, %c0_42, %c112], %30 {strides = array<i32>} : memref<4x4x144xbf16, #tpu.memory_space<vmem>>, vector<4x4x16xbf16>,
    %c0_43 = arith.constant 0 : index
    %c1_44 = arith.constant 1 : index
    %c1_45 = arith.constant 1 : index
    %c0_46 = arith.constant 0 : index
    %32 = vector.load %arg1[%c0_43, %c1_44, %c1_45, %c0_46] : memref<1x20x5x16xf32, #tpu.memory_space<vmem>>, vector<1x4x4x16xf32>
    %33 = vector.shape_cast %32 : vector<1x4x4x16xf32> to vector<4x4x16xf32>
    %34 = arith.truncf %33 : vector<4x4x16xf32> to vector<4x4x16xbf16>
    %c0_47 = arith.constant 0 : index
    %c0_48 = arith.constant 0 : index
    %c128 = arith.constant 128 : index
    %35 = vector.load %arg5[%c0_47, %c0_48, %c128] : memref<4x4x144xbf16, #tpu.memory_space<vmem>>, vector<4x4x16xbf16>
    tpu.vector_store %arg5[%c0_47, %c0_48, %c128], %34 {strides = array<i32>} : memref<4x4x144xbf16, #tpu.memory_space<vmem>>, vector<4x4x16xbf16>,
    %c0_49 = arith.constant 0 : index
    %c0_50 = arith.constant 0 : index
    %c0_51 = arith.constant 0 : index
    %36 = vector.load %arg5[%c0_49, %c0_50, %c0_51] : memref<4x4x144xbf16, #tpu.memory_space<vmem>>, vector<4x4x144xbf16>
    %37 = vector.shape_cast %36 : vector<4x4x144xbf16> to vector<16x144xbf16>
    %c0_52 = arith.constant 0 : index
    %c0_53 = arith.constant 0 : index
    %38 = vector.load %arg2[%c0_52, %c0_53] : memref<144x16xbf16, #tpu.memory_space<vmem>>, vector<144x16xbf16>
    %cst = arith.constant dense<0.000000e+00> : vector<16x16xf32>
    %39 = tpu.matmul %37, %38, %cst {dimension_numbers = #tpu.dot_dimension_numbers<[1], [0], [0], [1], [0, 0, 1, 1], [], []>} : vector<16x144xbf16>, vector<144x16xbf16>, vector<16x16xf32> -> vector<16x16xf32>
    %c0_54 = arith.constant 0 : index
    %c0_55 = arith.constant 0 : index
    %40 = vector.load %arg3[%c0_54, %c0_55] : memref<1x16xf32, #tpu.memory_space<vmem>>, vector<1x16xf32>
    %41 = vector.broadcast %40 : vector<1x16xf32> to vector<16x16xf32>
    %42 = arith.addf %39, %41 : vector<16x16xf32>
    %cst_56 = arith.constant 0.000000e+00 : f32
    %43 = vector.broadcast %cst_56 : f32 to vector<16x16xf32>
    %44 = arith.maximumf %42, %43 : vector<16x16xf32>
    %c0_57 = arith.constant 0 : index
    %c0_58 = arith.constant 0 : index
    %c0_59 = arith.constant 0 : index
    %45 = vector.load %arg4[%c0_57, %c0_58, %c0_59] : memref<1x16x16xf32, #tpu.memory_space<vmem>>, vector<1x16x16xf32>
    %46 = vector.shape_cast %45 : vector<1x16x16xf32> to vector<16x16xf32>
    %47 = vector.shape_cast %44 : vector<16x16xf32> to vector<1x16x16xf32>
    tpu.vector_store %arg4[%c0_57, %c0_58, %c0_59], %47 {strides = array<i32>} : memref<1x16x16xf32, #tpu.memory_space<vmem>>, vector<1x16x16xf32>,
    return
  }
  func.func @transform_0(%arg0: i32) -> (i32, i32, i32, i32) {
    %c0_i32 = arith.constant 0 : i32
    %c0_i32_0 = arith.constant 0 : i32
    %c0_i32_1 = arith.constant 0 : i32
    %c0_i32_2 = arith.constant 0 : i32
    return %arg0, %c0_i32, %c0_i32_0, %c0_i32_1 : i32, i32, i32, i32
  }
  func.func @transform_1(%arg0: i32) -> (i32, i32) {
    %c0_i32 = arith.constant 0 : i32
    %c0_i32_0 = arith.constant 0 : i32
    %c0_i32_1 = arith.constant 0 : i32
    return %c0_i32, %c0_i32_0 : i32, i32
  }
  func.func @transform_2(%arg0: i32) -> (i32, i32) {
    %c0_i32 = arith.constant 0 : i32
    %c0_i32_0 = arith.constant 0 : i32
    %c0_i32_1 = arith.constant 0 : i32
    return %c0_i32, %c0_i32_0 : i32, i32
  }
  func.func @transform_3(%arg0: i32) -> (i32, i32, i32) {
    %c0_i32 = arith.constant 0 : i32
    %c0_i32_0 = arith.constant 0 : i32
    %c0_i32_1 = arith.constant 0 : i32
    return %arg0, %c0_i32, %c0_i32_0 : i32, i32, i32
  }
}

module attributes {stable_mosaic.version = 11 : i64} {
  func.func @_fused_tail_kernel(%arg0: i32, %arg1: memref<1x6x6x16xf32, #tpu.memory_space<vmem>>, %arg2: memref<1x10x10x16xf32, #tpu.memory_space<vmem>>, %arg3: memref<1x18x18x16xf32, #tpu.memory_space<vmem>>, %arg4: memref<144x16xbf16, #tpu.memory_space<vmem>>, %arg5: memref<1x16xf32, #tpu.memory_space<vmem>>, %arg6: memref<16x16xbf16, #tpu.memory_space<vmem>>, %arg7: memref<1x16xf32, #tpu.memory_space<vmem>>, %arg8: memref<144x16xbf16, #tpu.memory_space<vmem>>, %arg9: memref<1x16xf32, #tpu.memory_space<vmem>>, %arg10: memref<144x16xbf16, #tpu.memory_space<vmem>>, %arg11: memref<1x16xf32, #tpu.memory_space<vmem>>, %arg12: memref<144x16xbf16, #tpu.memory_space<vmem>>, %arg13: memref<1x16xf32, #tpu.memory_space<vmem>>, %arg14: memref<16x16xbf16, #tpu.memory_space<vmem>>, %arg15: memref<1x16xf32, #tpu.memory_space<vmem>>, %arg16: memref<16x16xbf16, #tpu.memory_space<vmem>>, %arg17: memref<1x16xf32, #tpu.memory_space<vmem>>, %arg18: memref<16x16xbf16, #tpu.memory_space<vmem>>, %arg19: memref<1x16xf32, #tpu.memory_space<vmem>>, %arg20: memref<1x4x16xf32, #tpu.memory_space<vmem>>, %arg21: memref<1x16x16xf32, #tpu.memory_space<vmem>>, %arg22: memref<1x64x16xf32, #tpu.memory_space<vmem>>, %arg23: memref<1x256x16xf32, #tpu.memory_space<vmem>>, %arg24: memref<2x2x144xbf16, #tpu.memory_space<vmem>>, %arg25: memref<4x4x144xbf16, #tpu.memory_space<vmem>>, %arg26: memref<8x8x144xbf16, #tpu.memory_space<vmem>>, %arg27: memref<16x16x144xbf16, #tpu.memory_space<vmem>>) attributes {dimension_semantics = [#tpu.dimension_semantics<parallel>], iteration_bounds = array<i64: 2>, scalar_prefetch = 0 : i64, scratch_operands = 4 : i64, tpu.core_type = #tpu.core_type<tc>, window_params = [{transform_indices = @transform_0, window_bounds = array<i64: 1, 6, 6, 16>}, {transform_indices = @transform_1, window_bounds = array<i64: 1, 10, 10, 16>}, {transform_indices = @transform_2, window_bounds = array<i64: 1, 18, 18, 16>}, {pipeline_mode = #tpu.pipeline_mode<synchronous>, transform_indices = @transform_3, window_bounds = array<i64: 144, 16>}, {pipeline_mode = #tpu.pipeline_mode<synchronous>, transform_indices = @transform_4, window_bounds = array<i64: 1, 16>}, {pipeline_mode = #tpu.pipeline_mode<synchronous>, transform_indices = @transform_5, window_bounds = array<i64: 16, 16>}, {pipeline_mode = #tpu.pipeline_mode<synchronous>, transform_indices = @transform_6, window_bounds = array<i64: 1, 16>}, {pipeline_mode = #tpu.pipeline_mode<synchronous>, transform_indices = @transform_7, window_bounds = array<i64: 144, 16>}, {pipeline_mode = #tpu.pipeline_mode<synchronous>, transform_indices = @transform_8, window_bounds = array<i64: 1, 16>}, {pipeline_mode = #tpu.pipeline_mode<synchronous>, transform_indices = @transform_9, window_bounds = array<i64: 144, 16>}, {pipeline_mode = #tpu.pipeline_mode<synchronous>, transform_indices = @transform_10, window_bounds = array<i64: 1, 16>}, {pipeline_mode = #tpu.pipeline_mode<synchronous>, transform_indices = @transform_11, window_bounds = array<i64: 144, 16>}, {pipeline_mode = #tpu.pipeline_mode<synchronous>, transform_indices = @transform_12, window_bounds = array<i64: 1, 16>}, {pipeline_mode = #tpu.pipeline_mode<synchronous>, transform_indices = @transform_13, window_bounds = array<i64: 16, 16>}, {pipeline_mode = #tpu.pipeline_mode<synchronous>, transform_indices = @transform_14, window_bounds = array<i64: 1, 16>}, {pipeline_mode = #tpu.pipeline_mode<synchronous>, transform_indices = @transform_15, window_bounds = array<i64: 16, 16>}, {pipeline_mode = #tpu.pipeline_mode<synchronous>, transform_indices = @transform_16, window_bounds = array<i64: 1, 16>}, {pipeline_mode = #tpu.pipeline_mode<synchronous>, transform_indices = @transform_17, window_bounds = array<i64: 16, 16>}, {pipeline_mode = #tpu.pipeline_mode<synchronous>, transform_indices = @transform_18, window_bounds = array<i64: 1, 16>}, {transform_indices = @transform_19, window_bounds = array<i64: 1, 4, 16>}, {transform_indices = @transform_20, window_bounds = array<i64: 1, 16, 16>}, {transform_indices = @transform_21, window_bounds = array<i64: 1, 64, 16>}, {transform_indices = @transform_22, window_bounds = array<i64: 1, 256, 16>}]} {
    %c0 = arith.constant 0 : index
    %c1 = arith.constant 1 : index
    %c1_0 = arith.constant 1 : index
    %c0_1 = arith.constant 0 : index
    %0 = vector.load %arg1[%c0, %c1, %c1_0, %c0_1] : memref<1x6x6x16xf32, #tpu.memory_space<vmem>>, vector<1x2x2x16xf32>
    %1 = vector.shape_cast %0 : vector<1x2x2x16xf32> to vector<2x2x16xf32>
    %2 = arith.truncf %1 : vector<2x2x16xf32> to vector<2x2x16xbf16>
    %c0_2 = arith.constant 0 : index
    %c0_3 = arith.constant 0 : index
    %c0_4 = arith.constant 0 : index
    %3 = vector.load %arg24[%c0_2, %c0_3, %c0_4] : memref<2x2x144xbf16, #tpu.memory_space<vmem>>, vector<2x2x16xbf16>
    tpu.vector_store %arg24[%c0_2, %c0_3, %c0_4], %2 {strides = array<i32>} : memref<2x2x144xbf16, #tpu.memory_space<vmem>>, vector<2x2x16xbf16>,
    %c0_5 = arith.constant 0 : index
    %c1_6 = arith.constant 1 : index
    %c2 = arith.constant 2 : index
    %c0_7 = arith.constant 0 : index
    %4 = vector.load %arg1[%c0_5, %c1_6, %c2, %c0_7] : memref<1x6x6x16xf32, #tpu.memory_space<vmem>>, vector<1x2x2x16xf32>
    %5 = vector.shape_cast %4 : vector<1x2x2x16xf32> to vector<2x2x16xf32>
    %6 = arith.truncf %5 : vector<2x2x16xf32> to vector<2x2x16xbf16>
    %c0_8 = arith.constant 0 : index
    %c0_9 = arith.constant 0 : index
    %c16 = arith.constant 16 : index
    %7 = vector.load %arg24[%c0_8, %c0_9, %c16] : memref<2x2x144xbf16, #tpu.memory_space<vmem>>, vector<2x2x16xbf16>
    tpu.vector_store %arg24[%c0_8, %c0_9, %c16], %6 {strides = array<i32>} : memref<2x2x144xbf16, #tpu.memory_space<vmem>>, vector<2x2x16xbf16>,
    %c0_10 = arith.constant 0 : index
    %c1_11 = arith.constant 1 : index
    %c3 = arith.constant 3 : index
    %c0_12 = arith.constant 0 : index
    %8 = vector.load %arg1[%c0_10, %c1_11, %c3, %c0_12] : memref<1x6x6x16xf32, #tpu.memory_space<vmem>>, vector<1x2x2x16xf32>
    %9 = vector.shape_cast %8 : vector<1x2x2x16xf32> to vector<2x2x16xf32>
    %10 = arith.truncf %9 : vector<2x2x16xf32> to vector<2x2x16xbf16>
    %c0_13 = arith.constant 0 : index
    %c0_14 = arith.constant 0 : index
    %c32 = arith.constant 32 : index
    %11 = vector.load %arg24[%c0_13, %c0_14, %c32] : memref<2x2x144xbf16, #tpu.memory_space<vmem>>, vector<2x2x16xbf16>
    tpu.vector_store %arg24[%c0_13, %c0_14, %c32], %10 {strides = array<i32>} : memref<2x2x144xbf16, #tpu.memory_space<vmem>>, vector<2x2x16xbf16>,
    %c0_15 = arith.constant 0 : index
    %c2_16 = arith.constant 2 : index
    %c1_17 = arith.constant 1 : index
    %c0_18 = arith.constant 0 : index
    %12 = vector.load %arg1[%c0_15, %c2_16, %c1_17, %c0_18] : memref<1x6x6x16xf32, #tpu.memory_space<vmem>>, vector<1x2x2x16xf32>
    %13 = vector.shape_cast %12 : vector<1x2x2x16xf32> to vector<2x2x16xf32>
    %14 = arith.truncf %13 : vector<2x2x16xf32> to vector<2x2x16xbf16>
    %c0_19 = arith.constant 0 : index
    %c0_20 = arith.constant 0 : index
    %c48 = arith.constant 48 : index
    %15 = vector.load %arg24[%c0_19, %c0_20, %c48] : memref<2x2x144xbf16, #tpu.memory_space<vmem>>, vector<2x2x16xbf16>
    tpu.vector_store %arg24[%c0_19, %c0_20, %c48], %14 {strides = array<i32>} : memref<2x2x144xbf16, #tpu.memory_space<vmem>>, vector<2x2x16xbf16>,
    %c0_21 = arith.constant 0 : index
    %c2_22 = arith.constant 2 : index
    %c2_23 = arith.constant 2 : index
    %c0_24 = arith.constant 0 : index
    %16 = vector.load %arg1[%c0_21, %c2_22, %c2_23, %c0_24] : memref<1x6x6x16xf32, #tpu.memory_space<vmem>>, vector<1x2x2x16xf32>
    %17 = vector.shape_cast %16 : vector<1x2x2x16xf32> to vector<2x2x16xf32>
    %18 = arith.truncf %17 : vector<2x2x16xf32> to vector<2x2x16xbf16>
    %c0_25 = arith.constant 0 : index
    %c0_26 = arith.constant 0 : index
    %c64 = arith.constant 64 : index
    %19 = vector.load %arg24[%c0_25, %c0_26, %c64] : memref<2x2x144xbf16, #tpu.memory_space<vmem>>, vector<2x2x16xbf16>
    tpu.vector_store %arg24[%c0_25, %c0_26, %c64], %18 {strides = array<i32>} : memref<2x2x144xbf16, #tpu.memory_space<vmem>>, vector<2x2x16xbf16>,
    %c0_27 = arith.constant 0 : index
    %c2_28 = arith.constant 2 : index
    %c3_29 = arith.constant 3 : index
    %c0_30 = arith.constant 0 : index
    %20 = vector.load %arg1[%c0_27, %c2_28, %c3_29, %c0_30] : memref<1x6x6x16xf32, #tpu.memory_space<vmem>>, vector<1x2x2x16xf32>
    %21 = vector.shape_cast %20 : vector<1x2x2x16xf32> to vector<2x2x16xf32>
    %22 = arith.truncf %21 : vector<2x2x16xf32> to vector<2x2x16xbf16>
    %c0_31 = arith.constant 0 : index
    %c0_32 = arith.constant 0 : index
    %c80 = arith.constant 80 : index
    %23 = vector.load %arg24[%c0_31, %c0_32, %c80] : memref<2x2x144xbf16, #tpu.memory_space<vmem>>, vector<2x2x16xbf16>
    tpu.vector_store %arg24[%c0_31, %c0_32, %c80], %22 {strides = array<i32>} : memref<2x2x144xbf16, #tpu.memory_space<vmem>>, vector<2x2x16xbf16>,
    %c0_33 = arith.constant 0 : index
    %c3_34 = arith.constant 3 : index
    %c1_35 = arith.constant 1 : index
    %c0_36 = arith.constant 0 : index
    %24 = vector.load %arg1[%c0_33, %c3_34, %c1_35, %c0_36] : memref<1x6x6x16xf32, #tpu.memory_space<vmem>>, vector<1x2x2x16xf32>
    %25 = vector.shape_cast %24 : vector<1x2x2x16xf32> to vector<2x2x16xf32>
    %26 = arith.truncf %25 : vector<2x2x16xf32> to vector<2x2x16xbf16>
    %c0_37 = arith.constant 0 : index
    %c0_38 = arith.constant 0 : index
    %c96 = arith.constant 96 : index
    %27 = vector.load %arg24[%c0_37, %c0_38, %c96] : memref<2x2x144xbf16, #tpu.memory_space<vmem>>, vector<2x2x16xbf16>
    tpu.vector_store %arg24[%c0_37, %c0_38, %c96], %26 {strides = array<i32>} : memref<2x2x144xbf16, #tpu.memory_space<vmem>>, vector<2x2x16xbf16>,
    %c0_39 = arith.constant 0 : index
    %c3_40 = arith.constant 3 : index
    %c2_41 = arith.constant 2 : index
    %c0_42 = arith.constant 0 : index
    %28 = vector.load %arg1[%c0_39, %c3_40, %c2_41, %c0_42] : memref<1x6x6x16xf32, #tpu.memory_space<vmem>>, vector<1x2x2x16xf32>
    %29 = vector.shape_cast %28 : vector<1x2x2x16xf32> to vector<2x2x16xf32>
    %30 = arith.truncf %29 : vector<2x2x16xf32> to vector<2x2x16xbf16>
    %c0_43 = arith.constant 0 : index
    %c0_44 = arith.constant 0 : index
    %c112 = arith.constant 112 : index
    %31 = vector.load %arg24[%c0_43, %c0_44, %c112] : memref<2x2x144xbf16, #tpu.memory_space<vmem>>, vector<2x2x16xbf16>
    tpu.vector_store %arg24[%c0_43, %c0_44, %c112], %30 {strides = array<i32>} : memref<2x2x144xbf16, #tpu.memory_space<vmem>>, vector<2x2x16xbf16>,
    %c0_45 = arith.constant 0 : index
    %c3_46 = arith.constant 3 : index
    %c3_47 = arith.constant 3 : index
    %c0_48 = arith.constant 0 : index
    %32 = vector.load %arg1[%c0_45, %c3_46, %c3_47, %c0_48] : memref<1x6x6x16xf32, #tpu.memory_space<vmem>>, vector<1x2x2x16xf32>
    %33 = vector.shape_cast %32 : vector<1x2x2x16xf32> to vector<2x2x16xf32>
    %34 = arith.truncf %33 : vector<2x2x16xf32> to vector<2x2x16xbf16>
    %c0_49 = arith.constant 0 : index
    %c0_50 = arith.constant 0 : index
    %c128 = arith.constant 128 : index
    %35 = vector.load %arg24[%c0_49, %c0_50, %c128] : memref<2x2x144xbf16, #tpu.memory_space<vmem>>, vector<2x2x16xbf16>
    tpu.vector_store %arg24[%c0_49, %c0_50, %c128], %34 {strides = array<i32>} : memref<2x2x144xbf16, #tpu.memory_space<vmem>>, vector<2x2x16xbf16>,
    %c0_51 = arith.constant 0 : index
    %c0_52 = arith.constant 0 : index
    %c0_53 = arith.constant 0 : index
    %36 = vector.load %arg24[%c0_51, %c0_52, %c0_53] : memref<2x2x144xbf16, #tpu.memory_space<vmem>>, vector<2x2x144xbf16>
    %37 = vector.shape_cast %36 : vector<2x2x144xbf16> to vector<4x144xbf16>
    %c0_54 = arith.constant 0 : index
    %c0_55 = arith.constant 0 : index
    %38 = vector.load %arg4[%c0_54, %c0_55] : memref<144x16xbf16, #tpu.memory_space<vmem>>, vector<144x16xbf16>
    %cst = arith.constant dense<0.000000e+00> : vector<4x16xf32>
    %39 = tpu.matmul %37, %38, %cst {dimension_numbers = #tpu.dot_dimension_numbers<[1], [0], [0], [1], [0, 0, 1, 1], [], []>} : vector<4x144xbf16>, vector<144x16xbf16>, vector<4x16xf32> -> vector<4x16xf32>
    %c0_56 = arith.constant 0 : index
    %c0_57 = arith.constant 0 : index
    %40 = vector.load %arg5[%c0_56, %c0_57] : memref<1x16xf32, #tpu.memory_space<vmem>>, vector<1x16xf32>
    %41 = vector.broadcast %40 : vector<1x16xf32> to vector<4x16xf32>
    %42 = arith.addf %39, %41 : vector<4x16xf32>
    %cst_58 = arith.constant 0.000000e+00 : f32
    %43 = vector.broadcast %cst_58 : f32 to vector<4x16xf32>
    %44 = arith.maximumf %42, %43 : vector<4x16xf32>
    %45 = arith.truncf %44 : vector<4x16xf32> to vector<4x16xbf16>
    %c0_59 = arith.constant 0 : index
    %c0_60 = arith.constant 0 : index
    %46 = vector.load %arg6[%c0_59, %c0_60] : memref<16x16xbf16, #tpu.memory_space<vmem>>, vector<16x16xbf16>
    %cst_61 = arith.constant dense<0.000000e+00> : vector<4x16xf32>
    %47 = tpu.matmul %45, %46, %cst_61 {dimension_numbers = #tpu.dot_dimension_numbers<[1], [0], [0], [1], [0, 0, 1, 1], [], []>} : vector<4x16xbf16>, vector<16x16xbf16>, vector<4x16xf32> -> vector<4x16xf32>
    %c0_62 = arith.constant 0 : index
    %c0_63 = arith.constant 0 : index
    %48 = vector.load %arg7[%c0_62, %c0_63] : memref<1x16xf32, #tpu.memory_space<vmem>>, vector<1x16xf32>
    %49 = vector.broadcast %48 : vector<1x16xf32> to vector<4x16xf32>
    %50 = arith.addf %47, %49 : vector<4x16xf32>
    %cst_64 = arith.constant 0.000000e+00 : f32
    %51 = vector.broadcast %cst_64 : f32 to vector<4x16xf32>
    %52 = arith.maximumf %50, %51 : vector<4x16xf32>
    %c0_65 = arith.constant 0 : index
    %c0_66 = arith.constant 0 : index
    %c0_67 = arith.constant 0 : index
    %53 = vector.load %arg20[%c0_65, %c0_66, %c0_67] : memref<1x4x16xf32, #tpu.memory_space<vmem>>, vector<1x4x16xf32>
    %54 = vector.shape_cast %53 : vector<1x4x16xf32> to vector<4x16xf32>
    %55 = vector.shape_cast %52 : vector<4x16xf32> to vector<1x4x16xf32>
    tpu.vector_store %arg20[%c0_65, %c0_66, %c0_67], %55 {strides = array<i32>} : memref<1x4x16xf32, #tpu.memory_space<vmem>>, vector<1x4x16xf32>,
    %56 = vector.shape_cast %52 : vector<4x16xf32> to vector<2x2x16xf32>
    %c0_68 = arith.constant 0 : index
    %c0_69 = arith.constant 0 : index
    %c0_70 = arith.constant 0 : index
    %c0_71 = arith.constant 0 : index
    %57 = vector.load %arg1[%c0_68, %c0_69, %c0_70, %c0_71] : memref<1x6x6x16xf32, #tpu.memory_space<vmem>>, vector<1x4x4x16xf32>
    %58 = vector.shape_cast %57 : vector<1x4x4x16xf32> to vector<4x4x16xf32>
    %59 = arith.truncf %58 : vector<4x4x16xf32> to vector<4x4x16xbf16>
    %c0_72 = arith.constant 0 : index
    %c0_73 = arith.constant 0 : index
    %c0_74 = arith.constant 0 : index
    %60 = vector.load %arg25[%c0_72, %c0_73, %c0_74] : memref<4x4x144xbf16, #tpu.memory_space<vmem>>, vector<4x4x16xbf16>
    tpu.vector_store %arg25[%c0_72, %c0_73, %c0_74], %59 {strides = array<i32>} : memref<4x4x144xbf16, #tpu.memory_space<vmem>>, vector<4x4x16xbf16>,
    %c0_75 = arith.constant 0 : index
    %c0_76 = arith.constant 0 : index
    %c1_77 = arith.constant 1 : index
    %c0_78 = arith.constant 0 : index
    %61 = vector.load %arg1[%c0_75, %c0_76, %c1_77, %c0_78] : memref<1x6x6x16xf32, #tpu.memory_space<vmem>>, vector<1x4x4x16xf32>
    %62 = vector.shape_cast %61 : vector<1x4x4x16xf32> to vector<4x4x16xf32>
    %63 = arith.truncf %62 : vector<4x4x16xf32> to vector<4x4x16xbf16>
    %c0_79 = arith.constant 0 : index
    %c0_80 = arith.constant 0 : index
    %c16_81 = arith.constant 16 : index
    %64 = vector.load %arg25[%c0_79, %c0_80, %c16_81] : memref<4x4x144xbf16, #tpu.memory_space<vmem>>, vector<4x4x16xbf16>
    tpu.vector_store %arg25[%c0_79, %c0_80, %c16_81], %63 {strides = array<i32>} : memref<4x4x144xbf16, #tpu.memory_space<vmem>>, vector<4x4x16xbf16>,
    %c0_82 = arith.constant 0 : index
    %c0_83 = arith.constant 0 : index
    %c2_84 = arith.constant 2 : index
    %c0_85 = arith.constant 0 : index
    %65 = vector.load %arg1[%c0_82, %c0_83, %c2_84, %c0_85] : memref<1x6x6x16xf32, #tpu.memory_space<vmem>>, vector<1x4x4x16xf32>
    %66 = vector.shape_cast %65 : vector<1x4x4x16xf32> to vector<4x4x16xf32>
    %67 = arith.truncf %66 : vector<4x4x16xf32> to vector<4x4x16xbf16>
    %c0_86 = arith.constant 0 : index
    %c0_87 = arith.constant 0 : index
    %c32_88 = arith.constant 32 : index
    %68 = vector.load %arg25[%c0_86, %c0_87, %c32_88] : memref<4x4x144xbf16, #tpu.memory_space<vmem>>, vector<4x4x16xbf16>
    tpu.vector_store %arg25[%c0_86, %c0_87, %c32_88], %67 {strides = array<i32>} : memref<4x4x144xbf16, #tpu.memory_space<vmem>>, vector<4x4x16xbf16>,
    %c0_89 = arith.constant 0 : index
    %c1_90 = arith.constant 1 : index
    %c0_91 = arith.constant 0 : index
    %c0_92 = arith.constant 0 : index
    %69 = vector.load %arg1[%c0_89, %c1_90, %c0_91, %c0_92] : memref<1x6x6x16xf32, #tpu.memory_space<vmem>>, vector<1x4x4x16xf32>
    %70 = vector.shape_cast %69 : vector<1x4x4x16xf32> to vector<4x4x16xf32>
    %71 = arith.truncf %70 : vector<4x4x16xf32> to vector<4x4x16xbf16>
    %c0_93 = arith.constant 0 : index
    %c0_94 = arith.constant 0 : index
    %c48_95 = arith.constant 48 : index
    %72 = vector.load %arg25[%c0_93, %c0_94, %c48_95] : memref<4x4x144xbf16, #tpu.memory_space<vmem>>, vector<4x4x16xbf16>
    tpu.vector_store %arg25[%c0_93, %c0_94, %c48_95], %71 {strides = array<i32>} : memref<4x4x144xbf16, #tpu.memory_space<vmem>>, vector<4x4x16xbf16>,
    %c0_96 = arith.constant 0 : index
    %c1_97 = arith.constant 1 : index
    %c1_98 = arith.constant 1 : index
    %c0_99 = arith.constant 0 : index
    %73 = vector.load %arg1[%c0_96, %c1_97, %c1_98, %c0_99] : memref<1x6x6x16xf32, #tpu.memory_space<vmem>>, vector<1x4x4x16xf32>
    %74 = vector.shape_cast %73 : vector<1x4x4x16xf32> to vector<4x4x16xf32>
    %75 = arith.truncf %74 : vector<4x4x16xf32> to vector<4x4x16xbf16>
    %c0_100 = arith.constant 0 : index
    %c0_101 = arith.constant 0 : index
    %c64_102 = arith.constant 64 : index
    %76 = vector.load %arg25[%c0_100, %c0_101, %c64_102] : memref<4x4x144xbf16, #tpu.memory_space<vmem>>, vector<4x4x16xbf16>
    tpu.vector_store %arg25[%c0_100, %c0_101, %c64_102], %75 {strides = array<i32>} : memref<4x4x144xbf16, #tpu.memory_space<vmem>>, vector<4x4x16xbf16>,
    %c0_103 = arith.constant 0 : index
    %c1_104 = arith.constant 1 : index
    %c2_105 = arith.constant 2 : index
    %c0_106 = arith.constant 0 : index
    %77 = vector.load %arg1[%c0_103, %c1_104, %c2_105, %c0_106] : memref<1x6x6x16xf32, #tpu.memory_space<vmem>>, vector<1x4x4x16xf32>
    %78 = vector.shape_cast %77 : vector<1x4x4x16xf32> to vector<4x4x16xf32>
    %79 = arith.truncf %78 : vector<4x4x16xf32> to vector<4x4x16xbf16>
    %c0_107 = arith.constant 0 : index
    %c0_108 = arith.constant 0 : index
    %c80_109 = arith.constant 80 : index
    %80 = vector.load %arg25[%c0_107, %c0_108, %c80_109] : memref<4x4x144xbf16, #tpu.memory_space<vmem>>, vector<4x4x16xbf16>
    tpu.vector_store %arg25[%c0_107, %c0_108, %c80_109], %79 {strides = array<i32>} : memref<4x4x144xbf16, #tpu.memory_space<vmem>>, vector<4x4x16xbf16>,
    %c0_110 = arith.constant 0 : index
    %c2_111 = arith.constant 2 : index
    %c0_112 = arith.constant 0 : index
    %c0_113 = arith.constant 0 : index
    %81 = vector.load %arg1[%c0_110, %c2_111, %c0_112, %c0_113] : memref<1x6x6x16xf32, #tpu.memory_space<vmem>>, vector<1x4x4x16xf32>
    %82 = vector.shape_cast %81 : vector<1x4x4x16xf32> to vector<4x4x16xf32>
    %83 = arith.truncf %82 : vector<4x4x16xf32> to vector<4x4x16xbf16>
    %c0_114 = arith.constant 0 : index
    %c0_115 = arith.constant 0 : index
    %c96_116 = arith.constant 96 : index
    %84 = vector.load %arg25[%c0_114, %c0_115, %c96_116] : memref<4x4x144xbf16, #tpu.memory_space<vmem>>, vector<4x4x16xbf16>
    tpu.vector_store %arg25[%c0_114, %c0_115, %c96_116], %83 {strides = array<i32>} : memref<4x4x144xbf16, #tpu.memory_space<vmem>>, vector<4x4x16xbf16>,
    %c0_117 = arith.constant 0 : index
    %c2_118 = arith.constant 2 : index
    %c1_119 = arith.constant 1 : index
    %c0_120 = arith.constant 0 : index
    %85 = vector.load %arg1[%c0_117, %c2_118, %c1_119, %c0_120] : memref<1x6x6x16xf32, #tpu.memory_space<vmem>>, vector<1x4x4x16xf32>
    %86 = vector.shape_cast %85 : vector<1x4x4x16xf32> to vector<4x4x16xf32>
    %87 = arith.truncf %86 : vector<4x4x16xf32> to vector<4x4x16xbf16>
    %c0_121 = arith.constant 0 : index
    %c0_122 = arith.constant 0 : index
    %c112_123 = arith.constant 112 : index
    %88 = vector.load %arg25[%c0_121, %c0_122, %c112_123] : memref<4x4x144xbf16, #tpu.memory_space<vmem>>, vector<4x4x16xbf16>
    tpu.vector_store %arg25[%c0_121, %c0_122, %c112_123], %87 {strides = array<i32>} : memref<4x4x144xbf16, #tpu.memory_space<vmem>>, vector<4x4x16xbf16>,
    %c0_124 = arith.constant 0 : index
    %c2_125 = arith.constant 2 : index
    %c2_126 = arith.constant 2 : index
    %c0_127 = arith.constant 0 : index
    %89 = vector.load %arg1[%c0_124, %c2_125, %c2_126, %c0_127] : memref<1x6x6x16xf32, #tpu.memory_space<vmem>>, vector<1x4x4x16xf32>
    %90 = vector.shape_cast %89 : vector<1x4x4x16xf32> to vector<4x4x16xf32>
    %91 = arith.truncf %90 : vector<4x4x16xf32> to vector<4x4x16xbf16>
    %c0_128 = arith.constant 0 : index
    %c0_129 = arith.constant 0 : index
    %c128_130 = arith.constant 128 : index
    %92 = vector.load %arg25[%c0_128, %c0_129, %c128_130] : memref<4x4x144xbf16, #tpu.memory_space<vmem>>, vector<4x4x16xbf16>
    tpu.vector_store %arg25[%c0_128, %c0_129, %c128_130], %91 {strides = array<i32>} : memref<4x4x144xbf16, #tpu.memory_space<vmem>>, vector<4x4x16xbf16>,
    %c0_131 = arith.constant 0 : index
    %c0_132 = arith.constant 0 : index
    %c0_133 = arith.constant 0 : index
    %93 = vector.load %arg25[%c0_131, %c0_132, %c0_133] : memref<4x4x144xbf16, #tpu.memory_space<vmem>>, vector<4x4x144xbf16>
    %94 = vector.shape_cast %93 : vector<4x4x144xbf16> to vector<16x144xbf16>
    %c0_134 = arith.constant 0 : index
    %c0_135 = arith.constant 0 : index
    %95 = vector.load %arg8[%c0_134, %c0_135] : memref<144x16xbf16, #tpu.memory_space<vmem>>, vector<144x16xbf16>
    %cst_136 = arith.constant dense<0.000000e+00> : vector<16x16xf32>
    %96 = tpu.matmul %94, %95, %cst_136 {dimension_numbers = #tpu.dot_dimension_numbers<[1], [0], [0], [1], [0, 0, 1, 1], [], []>} : vector<16x144xbf16>, vector<144x16xbf16>, vector<16x16xf32> -> vector<16x16xf32>
    %c0_137 = arith.constant 0 : index
    %c0_138 = arith.constant 0 : index
    %97 = vector.load %arg9[%c0_137, %c0_138] : memref<1x16xf32, #tpu.memory_space<vmem>>, vector<1x16xf32>
    %98 = vector.broadcast %97 : vector<1x16xf32> to vector<16x16xf32>
    %99 = arith.addf %96, %98 : vector<16x16xf32>
    %cst_139 = arith.constant 0.000000e+00 : f32
    %100 = vector.broadcast %cst_139 : f32 to vector<16x16xf32>
    %101 = arith.maximumf %99, %100 : vector<16x16xf32>
    %102 = vector.shape_cast %56 : vector<2x2x16xf32> to vector<2x1x2x16xf32>
    %103 = vector.shape_cast %102 : vector<2x1x2x16xf32> to vector<2x1x2x16xf32>
    %104 = vector.broadcast %103 : vector<2x1x2x16xf32> to vector<2x2x2x16xf32>
    %105 = vector.shape_cast %104 : vector<2x2x2x16xf32> to vector<4x2x16xf32>
    %106 = vector.shape_cast %105 : vector<4x2x16xf32> to vector<4x2x1x16xf32>
    %107 = vector.shape_cast %106 : vector<4x2x1x16xf32> to vector<4x2x1x16xf32>
    %108 = vector.broadcast %107 : vector<4x2x1x16xf32> to vector<4x2x2x16xf32>
    %109 = vector.shape_cast %108 : vector<4x2x2x16xf32> to vector<4x4x16xf32>
    %110 = vector.shape_cast %109 : vector<4x4x16xf32> to vector<16x16xf32>
    %111 = arith.addf %101, %110 : vector<16x16xf32>
    %112 = arith.truncf %111 : vector<16x16xf32> to vector<16x16xbf16>
    %c0_140 = arith.constant 0 : index
    %c0_141 = arith.constant 0 : index
    %113 = vector.load %arg14[%c0_140, %c0_141] : memref<16x16xbf16, #tpu.memory_space<vmem>>, vector<16x16xbf16>
    %cst_142 = arith.constant dense<0.000000e+00> : vector<16x16xf32>
    %114 = tpu.matmul %112, %113, %cst_142 {dimension_numbers = #tpu.dot_dimension_numbers<[1], [0], [0], [1], [0, 0, 1, 1], [], []>} : vector<16x16xbf16>, vector<16x16xbf16>, vector<16x16xf32> -> vector<16x16xf32>
    %c0_143 = arith.constant 0 : index
    %c0_144 = arith.constant 0 : index
    %115 = vector.load %arg15[%c0_143, %c0_144] : memref<1x16xf32, #tpu.memory_space<vmem>>, vector<1x16xf32>
    %116 = vector.broadcast %115 : vector<1x16xf32> to vector<16x16xf32>
    %117 = arith.addf %114, %116 : vector<16x16xf32>
    %cst_145 = arith.constant 0.000000e+00 : f32
    %118 = vector.broadcast %cst_145 : f32 to vector<16x16xf32>
    %119 = arith.maximumf %117, %118 : vector<16x16xf32>
    %c0_146 = arith.constant 0 : index
    %c0_147 = arith.constant 0 : index
    %c0_148 = arith.constant 0 : index
    %120 = vector.load %arg21[%c0_146, %c0_147, %c0_148] : memref<1x16x16xf32, #tpu.memory_space<vmem>>, vector<1x16x16xf32>
    %121 = vector.shape_cast %120 : vector<1x16x16xf32> to vector<16x16xf32>
    %122 = vector.shape_cast %119 : vector<16x16xf32> to vector<1x16x16xf32>
    tpu.vector_store %arg21[%c0_146, %c0_147, %c0_148], %122 {strides = array<i32>} : memref<1x16x16xf32, #tpu.memory_space<vmem>>, vector<1x16x16xf32>,
    %123 = vector.shape_cast %111 : vector<16x16xf32> to vector<4x4x16xf32>
    %c0_149 = arith.constant 0 : index
    %c0_150 = arith.constant 0 : index
    %c0_151 = arith.constant 0 : index
    %c0_152 = arith.constant 0 : index
    %124 = vector.load %arg2[%c0_149, %c0_150, %c0_151, %c0_152] : memref<1x10x10x16xf32, #tpu.memory_space<vmem>>, vector<1x8x8x16xf32>
    %125 = vector.shape_cast %124 : vector<1x8x8x16xf32> to vector<8x8x16xf32>
    %126 = arith.truncf %125 : vector<8x8x16xf32> to vector<8x8x16xbf16>
    %c0_153 = arith.constant 0 : index
    %c0_154 = arith.constant 0 : index
    %c0_155 = arith.constant 0 : index
    %127 = vector.load %arg26[%c0_153, %c0_154, %c0_155] : memref<8x8x144xbf16, #tpu.memory_space<vmem>>, vector<8x8x16xbf16>
    tpu.vector_store %arg26[%c0_153, %c0_154, %c0_155], %126 {strides = array<i32>} : memref<8x8x144xbf16, #tpu.memory_space<vmem>>, vector<8x8x16xbf16>,
    %c0_156 = arith.constant 0 : index
    %c0_157 = arith.constant 0 : index
    %c1_158 = arith.constant 1 : index
    %c0_159 = arith.constant 0 : index
    %128 = vector.load %arg2[%c0_156, %c0_157, %c1_158, %c0_159] : memref<1x10x10x16xf32, #tpu.memory_space<vmem>>, vector<1x8x8x16xf32>
    %129 = vector.shape_cast %128 : vector<1x8x8x16xf32> to vector<8x8x16xf32>
    %130 = arith.truncf %129 : vector<8x8x16xf32> to vector<8x8x16xbf16>
    %c0_160 = arith.constant 0 : index
    %c0_161 = arith.constant 0 : index
    %c16_162 = arith.constant 16 : index
    %131 = vector.load %arg26[%c0_160, %c0_161, %c16_162] : memref<8x8x144xbf16, #tpu.memory_space<vmem>>, vector<8x8x16xbf16>
    tpu.vector_store %arg26[%c0_160, %c0_161, %c16_162], %130 {strides = array<i32>} : memref<8x8x144xbf16, #tpu.memory_space<vmem>>, vector<8x8x16xbf16>,
    %c0_163 = arith.constant 0 : index
    %c0_164 = arith.constant 0 : index
    %c2_165 = arith.constant 2 : index
    %c0_166 = arith.constant 0 : index
    %132 = vector.load %arg2[%c0_163, %c0_164, %c2_165, %c0_166] : memref<1x10x10x16xf32, #tpu.memory_space<vmem>>, vector<1x8x8x16xf32>
    %133 = vector.shape_cast %132 : vector<1x8x8x16xf32> to vector<8x8x16xf32>
    %134 = arith.truncf %133 : vector<8x8x16xf32> to vector<8x8x16xbf16>
    %c0_167 = arith.constant 0 : index
    %c0_168 = arith.constant 0 : index
    %c32_169 = arith.constant 32 : index
    %135 = vector.load %arg26[%c0_167, %c0_168, %c32_169] : memref<8x8x144xbf16, #tpu.memory_space<vmem>>, vector<8x8x16xbf16>
    tpu.vector_store %arg26[%c0_167, %c0_168, %c32_169], %134 {strides = array<i32>} : memref<8x8x144xbf16, #tpu.memory_space<vmem>>, vector<8x8x16xbf16>,
    %c0_170 = arith.constant 0 : index
    %c1_171 = arith.constant 1 : index
    %c0_172 = arith.constant 0 : index
    %c0_173 = arith.constant 0 : index
    %136 = vector.load %arg2[%c0_170, %c1_171, %c0_172, %c0_173] : memref<1x10x10x16xf32, #tpu.memory_space<vmem>>, vector<1x8x8x16xf32>
    %137 = vector.shape_cast %136 : vector<1x8x8x16xf32> to vector<8x8x16xf32>
    %138 = arith.truncf %137 : vector<8x8x16xf32> to vector<8x8x16xbf16>
    %c0_174 = arith.constant 0 : index
    %c0_175 = arith.constant 0 : index
    %c48_176 = arith.constant 48 : index
    %139 = vector.load %arg26[%c0_174, %c0_175, %c48_176] : memref<8x8x144xbf16, #tpu.memory_space<vmem>>, vector<8x8x16xbf16>
    tpu.vector_store %arg26[%c0_174, %c0_175, %c48_176], %138 {strides = array<i32>} : memref<8x8x144xbf16, #tpu.memory_space<vmem>>, vector<8x8x16xbf16>,
    %c0_177 = arith.constant 0 : index
    %c1_178 = arith.constant 1 : index
    %c1_179 = arith.constant 1 : index
    %c0_180 = arith.constant 0 : index
    %140 = vector.load %arg2[%c0_177, %c1_178, %c1_179, %c0_180] : memref<1x10x10x16xf32, #tpu.memory_space<vmem>>, vector<1x8x8x16xf32>
    %141 = vector.shape_cast %140 : vector<1x8x8x16xf32> to vector<8x8x16xf32>
    %142 = arith.truncf %141 : vector<8x8x16xf32> to vector<8x8x16xbf16>
    %c0_181 = arith.constant 0 : index
    %c0_182 = arith.constant 0 : index
    %c64_183 = arith.constant 64 : index
    %143 = vector.load %arg26[%c0_181, %c0_182, %c64_183] : memref<8x8x144xbf16, #tpu.memory_space<vmem>>, vector<8x8x16xbf16>
    tpu.vector_store %arg26[%c0_181, %c0_182, %c64_183], %142 {strides = array<i32>} : memref<8x8x144xbf16, #tpu.memory_space<vmem>>, vector<8x8x16xbf16>,
    %c0_184 = arith.constant 0 : index
    %c1_185 = arith.constant 1 : index
    %c2_186 = arith.constant 2 : index
    %c0_187 = arith.constant 0 : index
    %144 = vector.load %arg2[%c0_184, %c1_185, %c2_186, %c0_187] : memref<1x10x10x16xf32, #tpu.memory_space<vmem>>, vector<1x8x8x16xf32>
    %145 = vector.shape_cast %144 : vector<1x8x8x16xf32> to vector<8x8x16xf32>
    %146 = arith.truncf %145 : vector<8x8x16xf32> to vector<8x8x16xbf16>
    %c0_188 = arith.constant 0 : index
    %c0_189 = arith.constant 0 : index
    %c80_190 = arith.constant 80 : index
    %147 = vector.load %arg26[%c0_188, %c0_189, %c80_190] : memref<8x8x144xbf16, #tpu.memory_space<vmem>>, vector<8x8x16xbf16>
    tpu.vector_store %arg26[%c0_188, %c0_189, %c80_190], %146 {strides = array<i32>} : memref<8x8x144xbf16, #tpu.memory_space<vmem>>, vector<8x8x16xbf16>,
    %c0_191 = arith.constant 0 : index
    %c2_192 = arith.constant 2 : index
    %c0_193 = arith.constant 0 : index
    %c0_194 = arith.constant 0 : index
    %148 = vector.load %arg2[%c0_191, %c2_192, %c0_193, %c0_194] : memref<1x10x10x16xf32, #tpu.memory_space<vmem>>, vector<1x8x8x16xf32>
    %149 = vector.shape_cast %148 : vector<1x8x8x16xf32> to vector<8x8x16xf32>
    %150 = arith.truncf %149 : vector<8x8x16xf32> to vector<8x8x16xbf16>
    %c0_195 = arith.constant 0 : index
    %c0_196 = arith.constant 0 : index
    %c96_197 = arith.constant 96 : index
    %151 = vector.load %arg26[%c0_195, %c0_196, %c96_197] : memref<8x8x144xbf16, #tpu.memory_space<vmem>>, vector<8x8x16xbf16>
    tpu.vector_store %arg26[%c0_195, %c0_196, %c96_197], %150 {strides = array<i32>} : memref<8x8x144xbf16, #tpu.memory_space<vmem>>, vector<8x8x16xbf16>,
    %c0_198 = arith.constant 0 : index
    %c2_199 = arith.constant 2 : index
    %c1_200 = arith.constant 1 : index
    %c0_201 = arith.constant 0 : index
    %152 = vector.load %arg2[%c0_198, %c2_199, %c1_200, %c0_201] : memref<1x10x10x16xf32, #tpu.memory_space<vmem>>, vector<1x8x8x16xf32>
    %153 = vector.shape_cast %152 : vector<1x8x8x16xf32> to vector<8x8x16xf32>
    %154 = arith.truncf %153 : vector<8x8x16xf32> to vector<8x8x16xbf16>
    %c0_202 = arith.constant 0 : index
    %c0_203 = arith.constant 0 : index
    %c112_204 = arith.constant 112 : index
    %155 = vector.load %arg26[%c0_202, %c0_203, %c112_204] : memref<8x8x144xbf16, #tpu.memory_space<vmem>>, vector<8x8x16xbf16>
    tpu.vector_store %arg26[%c0_202, %c0_203, %c112_204], %154 {strides = array<i32>} : memref<8x8x144xbf16, #tpu.memory_space<vmem>>, vector<8x8x16xbf16>,
    %c0_205 = arith.constant 0 : index
    %c2_206 = arith.constant 2 : index
    %c2_207 = arith.constant 2 : index
    %c0_208 = arith.constant 0 : index
    %156 = vector.load %arg2[%c0_205, %c2_206, %c2_207, %c0_208] : memref<1x10x10x16xf32, #tpu.memory_space<vmem>>, vector<1x8x8x16xf32>
    %157 = vector.shape_cast %156 : vector<1x8x8x16xf32> to vector<8x8x16xf32>
    %158 = arith.truncf %157 : vector<8x8x16xf32> to vector<8x8x16xbf16>
    %c0_209 = arith.constant 0 : index
    %c0_210 = arith.constant 0 : index
    %c128_211 = arith.constant 128 : index
    %159 = vector.load %arg26[%c0_209, %c0_210, %c128_211] : memref<8x8x144xbf16, #tpu.memory_space<vmem>>, vector<8x8x16xbf16>
    tpu.vector_store %arg26[%c0_209, %c0_210, %c128_211], %158 {strides = array<i32>} : memref<8x8x144xbf16, #tpu.memory_space<vmem>>, vector<8x8x16xbf16>,
    %c0_212 = arith.constant 0 : index
    %c0_213 = arith.constant 0 : index
    %c0_214 = arith.constant 0 : index
    %160 = vector.load %arg26[%c0_212, %c0_213, %c0_214] : memref<8x8x144xbf16, #tpu.memory_space<vmem>>, vector<8x8x144xbf16>
    %161 = vector.shape_cast %160 : vector<8x8x144xbf16> to vector<64x144xbf16>
    %c0_215 = arith.constant 0 : index
    %c0_216 = arith.constant 0 : index
    %162 = vector.load %arg10[%c0_215, %c0_216] : memref<144x16xbf16, #tpu.memory_space<vmem>>, vector<144x16xbf16>
    %cst_217 = arith.constant dense<0.000000e+00> : vector<64x16xf32>
    %163 = tpu.matmul %161, %162, %cst_217 {dimension_numbers = #tpu.dot_dimension_numbers<[1], [0], [0], [1], [0, 0, 1, 1], [], []>} : vector<64x144xbf16>, vector<144x16xbf16>, vector<64x16xf32> -> vector<64x16xf32>
    %c0_218 = arith.constant 0 : index
    %c0_219 = arith.constant 0 : index
    %164 = vector.load %arg11[%c0_218, %c0_219] : memref<1x16xf32, #tpu.memory_space<vmem>>, vector<1x16xf32>
    %165 = vector.broadcast %164 : vector<1x16xf32> to vector<64x16xf32>
    %166 = arith.addf %163, %165 : vector<64x16xf32>
    %cst_220 = arith.constant 0.000000e+00 : f32
    %167 = vector.broadcast %cst_220 : f32 to vector<64x16xf32>
    %168 = arith.maximumf %166, %167 : vector<64x16xf32>
    %169 = vector.shape_cast %123 : vector<4x4x16xf32> to vector<4x1x4x16xf32>
    %170 = vector.shape_cast %169 : vector<4x1x4x16xf32> to vector<4x1x4x16xf32>
    %171 = vector.broadcast %170 : vector<4x1x4x16xf32> to vector<4x2x4x16xf32>
    %172 = vector.shape_cast %171 : vector<4x2x4x16xf32> to vector<8x4x16xf32>
    %173 = vector.shape_cast %172 : vector<8x4x16xf32> to vector<8x4x1x16xf32>
    %174 = vector.shape_cast %173 : vector<8x4x1x16xf32> to vector<8x4x1x16xf32>
    %175 = vector.broadcast %174 : vector<8x4x1x16xf32> to vector<8x4x2x16xf32>
    %176 = vector.shape_cast %175 : vector<8x4x2x16xf32> to vector<8x8x16xf32>
    %177 = vector.shape_cast %176 : vector<8x8x16xf32> to vector<64x16xf32>
    %178 = arith.addf %168, %177 : vector<64x16xf32>
    %179 = arith.truncf %178 : vector<64x16xf32> to vector<64x16xbf16>
    %c0_221 = arith.constant 0 : index
    %c0_222 = arith.constant 0 : index
    %180 = vector.load %arg16[%c0_221, %c0_222] : memref<16x16xbf16, #tpu.memory_space<vmem>>, vector<16x16xbf16>
    %cst_223 = arith.constant dense<0.000000e+00> : vector<64x16xf32>
    %181 = tpu.matmul %179, %180, %cst_223 {dimension_numbers = #tpu.dot_dimension_numbers<[1], [0], [0], [1], [0, 0, 1, 1], [], []>} : vector<64x16xbf16>, vector<16x16xbf16>, vector<64x16xf32> -> vector<64x16xf32>
    %c0_224 = arith.constant 0 : index
    %c0_225 = arith.constant 0 : index
    %182 = vector.load %arg17[%c0_224, %c0_225] : memref<1x16xf32, #tpu.memory_space<vmem>>, vector<1x16xf32>
    %183 = vector.broadcast %182 : vector<1x16xf32> to vector<64x16xf32>
    %184 = arith.addf %181, %183 : vector<64x16xf32>
    %cst_226 = arith.constant 0.000000e+00 : f32
    %185 = vector.broadcast %cst_226 : f32 to vector<64x16xf32>
    %186 = arith.maximumf %184, %185 : vector<64x16xf32>
    %c0_227 = arith.constant 0 : index
    %c0_228 = arith.constant 0 : index
    %c0_229 = arith.constant 0 : index
    %187 = vector.load %arg22[%c0_227, %c0_228, %c0_229] : memref<1x64x16xf32, #tpu.memory_space<vmem>>, vector<1x64x16xf32>
    %188 = vector.shape_cast %187 : vector<1x64x16xf32> to vector<64x16xf32>
    %189 = vector.shape_cast %186 : vector<64x16xf32> to vector<1x64x16xf32>
    tpu.vector_store %arg22[%c0_227, %c0_228, %c0_229], %189 {strides = array<i32>} : memref<1x64x16xf32, #tpu.memory_space<vmem>>, vector<1x64x16xf32>,
    %190 = vector.shape_cast %178 : vector<64x16xf32> to vector<8x8x16xf32>
    %c0_230 = arith.constant 0 : index
    %c0_231 = arith.constant 0 : index
    %c0_232 = arith.constant 0 : index
    %c0_233 = arith.constant 0 : index
    %191 = vector.load %arg3[%c0_230, %c0_231, %c0_232, %c0_233] : memref<1x18x18x16xf32, #tpu.memory_space<vmem>>, vector<1x16x16x16xf32>
    %192 = vector.shape_cast %191 : vector<1x16x16x16xf32> to vector<16x16x16xf32>
    %193 = arith.truncf %192 : vector<16x16x16xf32> to vector<16x16x16xbf16>
    %c0_234 = arith.constant 0 : index
    %c0_235 = arith.constant 0 : index
    %c0_236 = arith.constant 0 : index
    %194 = vector.load %arg27[%c0_234, %c0_235, %c0_236] : memref<16x16x144xbf16, #tpu.memory_space<vmem>>, vector<16x16x16xbf16>
    tpu.vector_store %arg27[%c0_234, %c0_235, %c0_236], %193 {strides = array<i32>} : memref<16x16x144xbf16, #tpu.memory_space<vmem>>, vector<16x16x16xbf16>,
    %c0_237 = arith.constant 0 : index
    %c0_238 = arith.constant 0 : index
    %c1_239 = arith.constant 1 : index
    %c0_240 = arith.constant 0 : index
    %195 = vector.load %arg3[%c0_237, %c0_238, %c1_239, %c0_240] : memref<1x18x18x16xf32, #tpu.memory_space<vmem>>, vector<1x16x16x16xf32>
    %196 = vector.shape_cast %195 : vector<1x16x16x16xf32> to vector<16x16x16xf32>
    %197 = arith.truncf %196 : vector<16x16x16xf32> to vector<16x16x16xbf16>
    %c0_241 = arith.constant 0 : index
    %c0_242 = arith.constant 0 : index
    %c16_243 = arith.constant 16 : index
    %198 = vector.load %arg27[%c0_241, %c0_242, %c16_243] : memref<16x16x144xbf16, #tpu.memory_space<vmem>>, vector<16x16x16xbf16>
    tpu.vector_store %arg27[%c0_241, %c0_242, %c16_243], %197 {strides = array<i32>} : memref<16x16x144xbf16, #tpu.memory_space<vmem>>, vector<16x16x16xbf16>,
    %c0_244 = arith.constant 0 : index
    %c0_245 = arith.constant 0 : index
    %c2_246 = arith.constant 2 : index
    %c0_247 = arith.constant 0 : index
    %199 = vector.load %arg3[%c0_244, %c0_245, %c2_246, %c0_247] : memref<1x18x18x16xf32, #tpu.memory_space<vmem>>, vector<1x16x16x16xf32>
    %200 = vector.shape_cast %199 : vector<1x16x16x16xf32> to vector<16x16x16xf32>
    %201 = arith.truncf %200 : vector<16x16x16xf32> to vector<16x16x16xbf16>
    %c0_248 = arith.constant 0 : index
    %c0_249 = arith.constant 0 : index
    %c32_250 = arith.constant 32 : index
    %202 = vector.load %arg27[%c0_248, %c0_249, %c32_250] : memref<16x16x144xbf16, #tpu.memory_space<vmem>>, vector<16x16x16xbf16>
    tpu.vector_store %arg27[%c0_248, %c0_249, %c32_250], %201 {strides = array<i32>} : memref<16x16x144xbf16, #tpu.memory_space<vmem>>, vector<16x16x16xbf16>,
    %c0_251 = arith.constant 0 : index
    %c1_252 = arith.constant 1 : index
    %c0_253 = arith.constant 0 : index
    %c0_254 = arith.constant 0 : index
    %203 = vector.load %arg3[%c0_251, %c1_252, %c0_253, %c0_254] : memref<1x18x18x16xf32, #tpu.memory_space<vmem>>, vector<1x16x16x16xf32>
    %204 = vector.shape_cast %203 : vector<1x16x16x16xf32> to vector<16x16x16xf32>
    %205 = arith.truncf %204 : vector<16x16x16xf32> to vector<16x16x16xbf16>
    %c0_255 = arith.constant 0 : index
    %c0_256 = arith.constant 0 : index
    %c48_257 = arith.constant 48 : index
    %206 = vector.load %arg27[%c0_255, %c0_256, %c48_257] : memref<16x16x144xbf16, #tpu.memory_space<vmem>>, vector<16x16x16xbf16>
    tpu.vector_store %arg27[%c0_255, %c0_256, %c48_257], %205 {strides = array<i32>} : memref<16x16x144xbf16, #tpu.memory_space<vmem>>, vector<16x16x16xbf16>,
    %c0_258 = arith.constant 0 : index
    %c1_259 = arith.constant 1 : index
    %c1_260 = arith.constant 1 : index
    %c0_261 = arith.constant 0 : index
    %207 = vector.load %arg3[%c0_258, %c1_259, %c1_260, %c0_261] : memref<1x18x18x16xf32, #tpu.memory_space<vmem>>, vector<1x16x16x16xf32>
    %208 = vector.shape_cast %207 : vector<1x16x16x16xf32> to vector<16x16x16xf32>
    %209 = arith.truncf %208 : vector<16x16x16xf32> to vector<16x16x16xbf16>
    %c0_262 = arith.constant 0 : index
    %c0_263 = arith.constant 0 : index
    %c64_264 = arith.constant 64 : index
    %210 = vector.load %arg27[%c0_262, %c0_263, %c64_264] : memref<16x16x144xbf16, #tpu.memory_space<vmem>>, vector<16x16x16xbf16>
    tpu.vector_store %arg27[%c0_262, %c0_263, %c64_264], %209 {strides = array<i32>} : memref<16x16x144xbf16, #tpu.memory_space<vmem>>, vector<16x16x16xbf16>,
    %c0_265 = arith.constant 0 : index
    %c1_266 = arith.constant 1 : index
    %c2_267 = arith.constant 2 : index
    %c0_268 = arith.constant 0 : index
    %211 = vector.load %arg3[%c0_265, %c1_266, %c2_267, %c0_268] : memref<1x18x18x16xf32, #tpu.memory_space<vmem>>, vector<1x16x16x16xf32>
    %212 = vector.shape_cast %211 : vector<1x16x16x16xf32> to vector<16x16x16xf32>
    %213 = arith.truncf %212 : vector<16x16x16xf32> to vector<16x16x16xbf16>
    %c0_269 = arith.constant 0 : index
    %c0_270 = arith.constant 0 : index
    %c80_271 = arith.constant 80 : index
    %214 = vector.load %arg27[%c0_269, %c0_270, %c80_271] : memref<16x16x144xbf16, #tpu.memory_space<vmem>>, vector<16x16x16xbf16>
    tpu.vector_store %arg27[%c0_269, %c0_270, %c80_271], %213 {strides = array<i32>} : memref<16x16x144xbf16, #tpu.memory_space<vmem>>, vector<16x16x16xbf16>,
    %c0_272 = arith.constant 0 : index
    %c2_273 = arith.constant 2 : index
    %c0_274 = arith.constant 0 : index
    %c0_275 = arith.constant 0 : index
    %215 = vector.load %arg3[%c0_272, %c2_273, %c0_274, %c0_275] : memref<1x18x18x16xf32, #tpu.memory_space<vmem>>, vector<1x16x16x16xf32>
    %216 = vector.shape_cast %215 : vector<1x16x16x16xf32> to vector<16x16x16xf32>
    %217 = arith.truncf %216 : vector<16x16x16xf32> to vector<16x16x16xbf16>
    %c0_276 = arith.constant 0 : index
    %c0_277 = arith.constant 0 : index
    %c96_278 = arith.constant 96 : index
    %218 = vector.load %arg27[%c0_276, %c0_277, %c96_278] : memref<16x16x144xbf16, #tpu.memory_space<vmem>>, vector<16x16x16xbf16>
    tpu.vector_store %arg27[%c0_276, %c0_277, %c96_278], %217 {strides = array<i32>} : memref<16x16x144xbf16, #tpu.memory_space<vmem>>, vector<16x16x16xbf16>,
    %c0_279 = arith.constant 0 : index
    %c2_280 = arith.constant 2 : index
    %c1_281 = arith.constant 1 : index
    %c0_282 = arith.constant 0 : index
    %219 = vector.load %arg3[%c0_279, %c2_280, %c1_281, %c0_282] : memref<1x18x18x16xf32, #tpu.memory_space<vmem>>, vector<1x16x16x16xf32>
    %220 = vector.shape_cast %219 : vector<1x16x16x16xf32> to vector<16x16x16xf32>
    %221 = arith.truncf %220 : vector<16x16x16xf32> to vector<16x16x16xbf16>
    %c0_283 = arith.constant 0 : index
    %c0_284 = arith.constant 0 : index
    %c112_285 = arith.constant 112 : index
    %222 = vector.load %arg27[%c0_283, %c0_284, %c112_285] : memref<16x16x144xbf16, #tpu.memory_space<vmem>>, vector<16x16x16xbf16>
    tpu.vector_store %arg27[%c0_283, %c0_284, %c112_285], %221 {strides = array<i32>} : memref<16x16x144xbf16, #tpu.memory_space<vmem>>, vector<16x16x16xbf16>,
    %c0_286 = arith.constant 0 : index
    %c2_287 = arith.constant 2 : index
    %c2_288 = arith.constant 2 : index
    %c0_289 = arith.constant 0 : index
    %223 = vector.load %arg3[%c0_286, %c2_287, %c2_288, %c0_289] : memref<1x18x18x16xf32, #tpu.memory_space<vmem>>, vector<1x16x16x16xf32>
    %224 = vector.shape_cast %223 : vector<1x16x16x16xf32> to vector<16x16x16xf32>
    %225 = arith.truncf %224 : vector<16x16x16xf32> to vector<16x16x16xbf16>
    %c0_290 = arith.constant 0 : index
    %c0_291 = arith.constant 0 : index
    %c128_292 = arith.constant 128 : index
    %226 = vector.load %arg27[%c0_290, %c0_291, %c128_292] : memref<16x16x144xbf16, #tpu.memory_space<vmem>>, vector<16x16x16xbf16>
    tpu.vector_store %arg27[%c0_290, %c0_291, %c128_292], %225 {strides = array<i32>} : memref<16x16x144xbf16, #tpu.memory_space<vmem>>, vector<16x16x16xbf16>,
    %c0_293 = arith.constant 0 : index
    %c0_294 = arith.constant 0 : index
    %c0_295 = arith.constant 0 : index
    %227 = vector.load %arg27[%c0_293, %c0_294, %c0_295] : memref<16x16x144xbf16, #tpu.memory_space<vmem>>, vector<16x16x144xbf16>
    %228 = vector.shape_cast %227 : vector<16x16x144xbf16> to vector<256x144xbf16>
    %c0_296 = arith.constant 0 : index
    %c0_297 = arith.constant 0 : index
    %229 = vector.load %arg12[%c0_296, %c0_297] : memref<144x16xbf16, #tpu.memory_space<vmem>>, vector<144x16xbf16>
    %cst_298 = arith.constant dense<0.000000e+00> : vector<256x16xf32>
    %230 = tpu.matmul %228, %229, %cst_298 {dimension_numbers = #tpu.dot_dimension_numbers<[1], [0], [0], [1], [0, 0, 1, 1], [], []>} : vector<256x144xbf16>, vector<144x16xbf16>, vector<256x16xf32> -> vector<256x16xf32>
    %c0_299 = arith.constant 0 : index
    %c0_300 = arith.constant 0 : index
    %231 = vector.load %arg13[%c0_299, %c0_300] : memref<1x16xf32, #tpu.memory_space<vmem>>, vector<1x16xf32>
    %232 = vector.broadcast %231 : vector<1x16xf32> to vector<256x16xf32>
    %233 = arith.addf %230, %232 : vector<256x16xf32>
    %cst_301 = arith.constant 0.000000e+00 : f32
    %234 = vector.broadcast %cst_301 : f32 to vector<256x16xf32>
    %235 = arith.maximumf %233, %234 : vector<256x16xf32>
    %236 = vector.shape_cast %190 : vector<8x8x16xf32> to vector<8x1x8x16xf32>
    %237 = vector.shape_cast %236 : vector<8x1x8x16xf32> to vector<8x1x8x16xf32>
    %238 = vector.broadcast %237 : vector<8x1x8x16xf32> to vector<8x2x8x16xf32>
    %239 = vector.shape_cast %238 : vector<8x2x8x16xf32> to vector<16x8x16xf32>
    %240 = vector.shape_cast %239 : vector<16x8x16xf32> to vector<16x8x1x16xf32>
    %241 = vector.shape_cast %240 : vector<16x8x1x16xf32> to vector<16x8x1x16xf32>
    %242 = vector.broadcast %241 : vector<16x8x1x16xf32> to vector<16x8x2x16xf32>
    %243 = vector.shape_cast %242 : vector<16x8x2x16xf32> to vector<16x16x16xf32>
    %244 = vector.shape_cast %243 : vector<16x16x16xf32> to vector<256x16xf32>
    %245 = arith.addf %235, %244 : vector<256x16xf32>
    %246 = arith.truncf %245 : vector<256x16xf32> to vector<256x16xbf16>
    %c0_302 = arith.constant 0 : index
    %c0_303 = arith.constant 0 : index
    %247 = vector.load %arg18[%c0_302, %c0_303] : memref<16x16xbf16, #tpu.memory_space<vmem>>, vector<16x16xbf16>
    %cst_304 = arith.constant dense<0.000000e+00> : vector<256x16xf32>
    %248 = tpu.matmul %246, %247, %cst_304 {dimension_numbers = #tpu.dot_dimension_numbers<[1], [0], [0], [1], [0, 0, 1, 1], [], []>} : vector<256x16xbf16>, vector<16x16xbf16>, vector<256x16xf32> -> vector<256x16xf32>
    %c0_305 = arith.constant 0 : index
    %c0_306 = arith.constant 0 : index
    %249 = vector.load %arg19[%c0_305, %c0_306] : memref<1x16xf32, #tpu.memory_space<vmem>>, vector<1x16xf32>
    %250 = vector.broadcast %249 : vector<1x16xf32> to vector<256x16xf32>
    %251 = arith.addf %248, %250 : vector<256x16xf32>
    %cst_307 = arith.constant 0.000000e+00 : f32
    %252 = vector.broadcast %cst_307 : f32 to vector<256x16xf32>
    %253 = arith.maximumf %251, %252 : vector<256x16xf32>
    %c0_308 = arith.constant 0 : index
    %c0_309 = arith.constant 0 : index
    %c0_310 = arith.constant 0 : index
    %254 = vector.load %arg23[%c0_308, %c0_309, %c0_310] : memref<1x256x16xf32, #tpu.memory_space<vmem>>, vector<1x256x16xf32>
    %255 = vector.shape_cast %254 : vector<1x256x16xf32> to vector<256x16xf32>
    %256 = vector.shape_cast %253 : vector<256x16xf32> to vector<1x256x16xf32>
    tpu.vector_store %arg23[%c0_308, %c0_309, %c0_310], %256 {strides = array<i32>} : memref<1x256x16xf32, #tpu.memory_space<vmem>>, vector<1x256x16xf32>,
    return
  }
  func.func @transform_0(%arg0: i32) -> (i32, i32, i32, i32) {
    %c0_i32 = arith.constant 0 : i32
    %c0_i32_0 = arith.constant 0 : i32
    %c0_i32_1 = arith.constant 0 : i32
    %c0_i32_2 = arith.constant 0 : i32
    return %arg0, %c0_i32, %c0_i32_0, %c0_i32_1 : i32, i32, i32, i32
  }
  func.func @transform_1(%arg0: i32) -> (i32, i32, i32, i32) {
    %c0_i32 = arith.constant 0 : i32
    %c0_i32_0 = arith.constant 0 : i32
    %c0_i32_1 = arith.constant 0 : i32
    %c0_i32_2 = arith.constant 0 : i32
    return %arg0, %c0_i32, %c0_i32_0, %c0_i32_1 : i32, i32, i32, i32
  }
  func.func @transform_2(%arg0: i32) -> (i32, i32, i32, i32) {
    %c0_i32 = arith.constant 0 : i32
    %c0_i32_0 = arith.constant 0 : i32
    %c0_i32_1 = arith.constant 0 : i32
    %c0_i32_2 = arith.constant 0 : i32
    return %arg0, %c0_i32, %c0_i32_0, %c0_i32_1 : i32, i32, i32, i32
  }
  func.func @transform_3(%arg0: i32) -> (i32, i32) {
    %c0_i32 = arith.constant 0 : i32
    %c0_i32_0 = arith.constant 0 : i32
    %c0_i32_1 = arith.constant 0 : i32
    return %c0_i32, %c0_i32_0 : i32, i32
  }
  func.func @transform_4(%arg0: i32) -> (i32, i32) {
    %c0_i32 = arith.constant 0 : i32
    %c0_i32_0 = arith.constant 0 : i32
    %c0_i32_1 = arith.constant 0 : i32
    return %c0_i32, %c0_i32_0 : i32, i32
  }
  func.func @transform_5(%arg0: i32) -> (i32, i32) {
    %c0_i32 = arith.constant 0 : i32
    %c0_i32_0 = arith.constant 0 : i32
    %c0_i32_1 = arith.constant 0 : i32
    return %c0_i32, %c0_i32_0 : i32, i32
  }
  func.func @transform_6(%arg0: i32) -> (i32, i32) {
    %c0_i32 = arith.constant 0 : i32
    %c0_i32_0 = arith.constant 0 : i32
    %c0_i32_1 = arith.constant 0 : i32
    return %c0_i32, %c0_i32_0 : i32, i32
  }
  func.func @transform_7(%arg0: i32) -> (i32, i32) {
    %c0_i32 = arith.constant 0 : i32
    %c0_i32_0 = arith.constant 0 : i32
    %c0_i32_1 = arith.constant 0 : i32
    return %c0_i32, %c0_i32_0 : i32, i32
  }
  func.func @transform_8(%arg0: i32) -> (i32, i32) {
    %c0_i32 = arith.constant 0 : i32
    %c0_i32_0 = arith.constant 0 : i32
    %c0_i32_1 = arith.constant 0 : i32
    return %c0_i32, %c0_i32_0 : i32, i32
  }
  func.func @transform_9(%arg0: i32) -> (i32, i32) {
    %c0_i32 = arith.constant 0 : i32
    %c0_i32_0 = arith.constant 0 : i32
    %c0_i32_1 = arith.constant 0 : i32
    return %c0_i32, %c0_i32_0 : i32, i32
  }
  func.func @transform_10(%arg0: i32) -> (i32, i32) {
    %c0_i32 = arith.constant 0 : i32
    %c0_i32_0 = arith.constant 0 : i32
    %c0_i32_1 = arith.constant 0 : i32
    return %c0_i32, %c0_i32_0 : i32, i32
  }
  func.func @transform_11(%arg0: i32) -> (i32, i32) {
    %c0_i32 = arith.constant 0 : i32
    %c0_i32_0 = arith.constant 0 : i32
    %c0_i32_1 = arith.constant 0 : i32
    return %c0_i32, %c0_i32_0 : i32, i32
  }
  func.func @transform_12(%arg0: i32) -> (i32, i32) {
    %c0_i32 = arith.constant 0 : i32
    %c0_i32_0 = arith.constant 0 : i32
    %c0_i32_1 = arith.constant 0 : i32
    return %c0_i32, %c0_i32_0 : i32, i32
  }
  func.func @transform_13(%arg0: i32) -> (i32, i32) {
    %c0_i32 = arith.constant 0 : i32
    %c0_i32_0 = arith.constant 0 : i32
    %c0_i32_1 = arith.constant 0 : i32
    return %c0_i32, %c0_i32_0 : i32, i32
  }
  func.func @transform_14(%arg0: i32) -> (i32, i32) {
    %c0_i32 = arith.constant 0 : i32
    %c0_i32_0 = arith.constant 0 : i32
    %c0_i32_1 = arith.constant 0 : i32
    return %c0_i32, %c0_i32_0 : i32, i32
  }
  func.func @transform_15(%arg0: i32) -> (i32, i32) {
    %c0_i32 = arith.constant 0 : i32
    %c0_i32_0 = arith.constant 0 : i32
    %c0_i32_1 = arith.constant 0 : i32
    return %c0_i32, %c0_i32_0 : i32, i32
  }
  func.func @transform_16(%arg0: i32) -> (i32, i32) {
    %c0_i32 = arith.constant 0 : i32
    %c0_i32_0 = arith.constant 0 : i32
    %c0_i32_1 = arith.constant 0 : i32
    return %c0_i32, %c0_i32_0 : i32, i32
  }
  func.func @transform_17(%arg0: i32) -> (i32, i32) {
    %c0_i32 = arith.constant 0 : i32
    %c0_i32_0 = arith.constant 0 : i32
    %c0_i32_1 = arith.constant 0 : i32
    return %c0_i32, %c0_i32_0 : i32, i32
  }
  func.func @transform_18(%arg0: i32) -> (i32, i32) {
    %c0_i32 = arith.constant 0 : i32
    %c0_i32_0 = arith.constant 0 : i32
    %c0_i32_1 = arith.constant 0 : i32
    return %c0_i32, %c0_i32_0 : i32, i32
  }
  func.func @transform_19(%arg0: i32) -> (i32, i32, i32) {
    %c0_i32 = arith.constant 0 : i32
    %c0_i32_0 = arith.constant 0 : i32
    %c0_i32_1 = arith.constant 0 : i32
    return %arg0, %c0_i32, %c0_i32_0 : i32, i32, i32
  }
  func.func @transform_20(%arg0: i32) -> (i32, i32, i32) {
    %c0_i32 = arith.constant 0 : i32
    %c0_i32_0 = arith.constant 0 : i32
    %c0_i32_1 = arith.constant 0 : i32
    return %arg0, %c0_i32, %c0_i32_0 : i32, i32, i32
  }
  func.func @transform_21(%arg0: i32) -> (i32, i32, i32) {
    %c0_i32 = arith.constant 0 : i32
    %c0_i32_0 = arith.constant 0 : i32
    %c0_i32_1 = arith.constant 0 : i32
    return %arg0, %c0_i32, %c0_i32_0 : i32, i32, i32
  }
  func.func @transform_22(%arg0: i32) -> (i32, i32, i32) {
    %c0_i32 = arith.constant 0 : i32
    %c0_i32_0 = arith.constant 0 : i32
    %c0_i32_1 = arith.constant 0 : i32
    return %arg0, %c0_i32, %c0_i32_0 : i32, i32, i32
  }
}

</mosaic_0001>

<llo_original>
// kernel: _lambda_.3
$region0: #{_lambda_.3}
  #allocation0 [shape = 'u32[]', space=smem, size = 0x4, offset = 0x4, fixed_abs, tag = 'smem constant byte address 0x4 - core index']
  #allocation1 [shape = 'u32[72,128]{1,0:T(1,128)}', space=vmem, size = 0x9000, scoped, tag = 'internal scratch']
  #allocation2 [shape = 'bf16[8,8,144]{2,1,0:T(8,128)(2,1)}', space=vmem, size = 0x8000, scoped, tag = 'scratch operand']
  %s0 = inlined_call_operand.vmem [shape: f32[2,36,9,16], index: 0, kind: input, shape index: {}]
  %s1 = inlined_call_operand.vmem [shape: bf16[144,16], index: 1, kind: input, shape index: {}]
  %s2 = inlined_call_operand.vmem [shape: f32[1,16], index: 2, kind: input, shape index: {}]
  %s3 = inlined_call_operand.vmem [shape: f32[2,64,16], index: 3, kind: output, shape index: {}]
  %s4 = sld [smem:[#allocation0]]
  $region45: #{_lambda_.3} parent=0
    _
  %s6 = ssub.s32 1, %s4
  %s7 = scalar_select 0, %s6, %s4
  loop: start=0, step=1, limit=4
  $region2: #{_lambda_.3} parent=0 // loop_pre_header
    _
  $region3: #{_lambda_.3} parent=0 // loop_header
    %s9 = sphi 0, %s13
    %p10 = scmp.ge.s32.totalorder %s9, 4
    %s19 = sphi 0, %s21
    %s22 = sphi 0, %s19
    %s23 = sphi 0, %s22
    %s39 = sphi 0, %s23
    %s43 = sphi 0, %s43
    %s45 = sphi 0, %s43
    %s46 = sphi 0, %s45
    %s60 = sphi 0, %s46
    %s64 = sphi 0, %s64
    %s66 = sphi 0, %s64
    %s67 = sphi 0, %s66
    %s81 = sphi 0, %s67
    %s87 = sphi 0, %s89
    %s90 = sphi 0, %s87
    %s91 = sphi 0, %s90
    %s107 = sphi 0, %s91
  $region4: #{_lambda_.3} parent=0 // loop_header_branch
    %12 = sbr.rel (%p10) target = $region8
  $region5: #{_lambda_.3} parent=0 // loop_body
    %s14 = ssub.s32 %s9, 1
    %s15 = ssub.s32 %s9, 2
    %s16 = sadd.s32 %s9, 1
    %s17 = ssub.s32 %s9, %s16
    %p18 = scmp.eq.s32.totalorder %s17, 0
    %s20 = sadd.s32 %s19, 1
    %s21 = scalar_select %p18, %s19, %s20
    %p24 = pneg %p18
    %p25 = scmp.eq.s32.totalorder %s9, 1
    %p26 = por %p24, %p25
    %p27 = scmp.ne.s32.totalorder %s19, %s22
    %p28 = scmp.eq.s32.totalorder %s9, 0
    %p29 = por %p27, %p28
    %p30 = scmp.ne.s32.totalorder %s19, %s22
    %p31 = scmp.eq.s32.totalorder %s14, 1
    %p32 = por %p30, %p31
    %p33 = scmp.ne.s32.totalorder %s22, %s23
    %p34 = scmp.eq.s32.totalorder %s14, 0
    %p35 = por %p33, %p34
    %p36 = scmp.ne.s32.totalorder %s22, %s23
    %p37 = scmp.eq.s32.totalorder %s15, 1
    %p38 = por %p36, %p37
    %p40 = scmp.ne.s32.totalorder %s23, %s39
    %p41 = scmp.eq.s32.totalorder %s15, 0
    %p42 = por %p40, %p41
    %s44 = sadd.s32 %s43, 1
    %p47 = scmp.eq.s32.totalorder %s9, 1
    %p48 = scmp.ne.s32.totalorder %s43, %s45
    %p49 = scmp.eq.s32.totalorder %s9, 0
    %p50 = por %p48, %p49
    %p51 = scmp.ne.s32.totalorder %s43, %s45
    %p52 = scmp.eq.s32.totalorder %s14, 1
    %p53 = por %p51, %p52
    %p54 = scmp.ne.s32.totalorder %s45, %s46
    %p55 = scmp.eq.s32.totalorder %s14, 0
    %p56 = por %p54, %p55
    %p57 = scmp.ne.s32.totalorder %s45, %s46
    %p58 = scmp.eq.s32.totalorder %s15, 1
    %p59 = por %p57, %p58
    %p61 = scmp.ne.s32.totalorder %s46, %s60
    %p62 = scmp.eq.s32.totalorder %s15, 0
    %p63 = por %p61, %p62
    %s65 = sadd.s32 %s64, 1
    %p68 = scmp.eq.s32.totalorder %s9, 1
    %p69 = scmp.ne.s32.totalorder %s64, %s66
    %p70 = scmp.eq.s32.totalorder %s9, 0
    %p71 = por %p69, %p70
    %p72 = scmp.ne.s32.totalorder %s64, %s66
    %p73 = scmp.eq.s32.totalorder %s14, 1
    %p74 = por %p72, %p73
    %p75 = scmp.ne.s32.totalorder %s66, %s67
    %p76 = scmp.eq.s32.totalorder %s14, 0
    %p77 = por %p75, %p76
    %p78 = scmp.ne.s32.totalorder %s66, %s67
    %p79 = scmp.eq.s32.totalorder %s15, 1
    %p80 = por %p78, %p79
    %p82 = scmp.ne.s32.totalorder %s67, %s81
    %p83 = scmp.eq.s32.totalorder %s15, 0
    %p84 = por %p82, %p83
    %s85 = ssub.s32 %s9, %s16
    %p86 = scmp.eq.s32.totalorder %s85, 0
    %s88 = sadd.s32 %s87, 1
    %s89 = scalar_select %p86, %s87, %s88
    %p92 = pneg %p86
    %p93 = scmp.eq.s32.totalorder %s9, 1
    %p94 = por %p92, %p93
    %p95 = scmp.ne.s32.totalorder %s87, %s90
    %p96 = scmp.eq.s32.totalorder %s9, 0
    %p97 = por %p95, %p96
    %p98 = scmp.ne.s32.totalorder %s87, %s90
    %p99 = scmp.eq.s32.totalorder %s14, 1
    %p100 = por %p98, %p99
    %p101 = scmp.ne.s32.totalorder %s90, %s91
    %p102 = scmp.eq.s32.totalorder %s14, 0
    %p103 = por %p101, %p102
    %p104 = scmp.ne.s32.totalorder %s90, %s91
    %p105 = scmp.eq.s32.totalorder %s15, 1
    %p106 = por %p104, %p105
    %p108 = scmp.ne.s32.totalorder %s91, %s107
    %p109 = scmp.eq.s32.totalorder %s15, 0
    %p110 = por %p108, %p109
    %p111 = scmp.le.s32.totalorder 1, %s9
    %p112 = scmp.lt.s32.totalorder %s9, 3
    %p113 = pnand %p111, %p112
    %p114 = pneg %p113
    // Predicated region
    $region9: #{_lambda_.3} parent=5 // pred_check
      _
    $region10: #{_lambda_.3} parent=5 // pred_check_branch
      %116 = sbr.rel (%p113) target = $region12
    $region11: #{_lambda_.3} parent=5 // pred_region
      %s117 = ssub.s32 %s9, 1
      // Predicated region
      $region13: #{_lambda_.3} parent=11 // pred_check
        %p118 = pneg %p56
      $region14: #{_lambda_.3} parent=11 // pred_check_branch
        %120 = sbr.rel (%p118) target = $region16
      $region15: #{_lambda_.3} parent=11 // pred_region
        _
      $region16: #{_lambda_.3} parent=11 // pred_fallthru
        _
      // Predicated region
      $region17: #{_lambda_.3} parent=11 // pred_check
        %p121 = pneg %p77
      $region18: #{_lambda_.3} parent=11 // pred_check_branch
        %123 = sbr.rel (%p121) target = $region20
      $region19: #{_lambda_.3} parent=11 // pred_region
        _
      $region20: #{_lambda_.3} parent=11 // pred_fallthru
        _
    $region12: #{_lambda_.3} parent=5 // pred_fallthru
      _
    %p124 = scmp.lt.s32.totalorder %s9, 2
    // Predicated region
    $region21: #{_lambda_.3} parent=5 // pred_check
      %p125 = pneg %p124
    $region22: #{_lambda_.3} parent=5 // pred_check_branch
      %127 = sbr.rel (%p125) target = $region24
    $region23: #{_lambda_.3} parent=5 // pred_region
      // Predicated region
      $region25: #{_lambda_.3} parent=23 // pred_check
        %p128 = pneg %p29
      $region26: #{_lambda_.3} parent=23 // pred_check_branch
        %130 = sbr.rel (%p128) target = $region28
      $region27: #{_lambda_.3} parent=23 // pred_region
        %p131 = scmp.lt.s32.totalorder %s9, 1
        %s132 = scalar_select %p131, %s9, 1
        %s133 = smul.addr %s132, 72
        %s134 = smul.addr %s133, 8
        %s135 = scalar_lea.vmem %s0, %s134
      $region28: #{_lambda_.3} parent=23 // pred_fallthru
        _
    $region24: #{_lambda_.3} parent=5 // pred_fallthru
      _
    %p136 = scmp.le.s32.totalorder 1, %s9
    %p137 = scmp.lt.s32.totalorder %s9, 3
    %p138 = pnand %p136, %p137
    %p139 = pneg %p138
    // Predicated region
    $region29: #{_lambda_.3} parent=5 // pred_check
      _
    $region30: #{_lambda_.3} parent=5 // pred_check_branch
      %141 = sbr.rel (%p138) target = $region32
    $region31: #{_lambda_.3} parent=5 // pred_region
      %s142 = ssub.s32 %s9, 1
      %p143 = scmp.lt.s32.totalorder %s14, 1
      %s144 = scalar_select %p143, %s14, 1
      %s145 = smul.addr %s144, 72
      %s146 = smul.addr %s145, 8
      %s147 = scalar_lea.vmem %s0, %s146
      %p148 = pneg %p35
      %p149 = pneg %p32
      %p150 = pneg %p56
      %p151 = pneg %p53
      %p152 = pneg %p77
      %p153 = pneg %p74
      %p154 = pneg %p103
      %p155 = pneg %p100
      %p156 = scmp.lt.s32.totalorder %s14, 1
      %s157 = scalar_select %p156, %s14, 1
      %s158 = smul.addr %s157, 8
      %s159 = smul.addr %s158, 8
      %s160 = scalar_lea.vmem %s3, %s159
      %p161 = scmp.lt.s32.totalorder %s14, 1
      %s162 = scalar_select %p161, %s14, 1
      %s163 = smul.addr %s162, 72
      %s164 = smul.addr %s163, 8
      %s165 = scalar_lea.vmem %s0, %s164
      %p166 = scmp.lt.s32.totalorder %s14, 1
      %s167 = scalar_select %p166, %s14, 1
      %s168 = smul.addr %s167, 8
      %s169 = smul.addr %s168, 8
      %s170 = scalar_lea.vmem %s3, %s169
      %v172 = vld [vmem:[%s165] sm:$0xff]
      %v173 = vld [vmem:[%s165 + $0x10] sm:$0xff]
      %v174 = vld [vmem:[%s165 + $0x20] sm:$0xff]
      %v175 = vld [vmem:[%s165 + $0x30] sm:$0xff]
      %v176 = vld [vmem:[%s165 + $0x40] sm:$0xff]
      %v177 = vld [vmem:[%s165 + $0x50] sm:$0xff]
      %v178 = vld [vmem:[%s165 + $0x60] sm:$0xff]
      %v179 = vld [vmem:[%s165 + $0x70] sm:$0xff]
      %v180 = vpack.c.bf16 %v172, %v172
      %v181 = vpack.c.bf16 %v173, %v173
      %v182 = vpack.c.bf16 %v174, %v174
      %v183 = vpack.c.bf16 %v175, %v175
      %v184 = vpack.c.bf16 %v176, %v176
      %v185 = vpack.c.bf16 %v177, %v177
      %v186 = vpack.c.bf16 %v178, %v178
      %v187 = vpack.c.bf16 %v179, %v179
      %vm188 = vcmask 125952
      %189 = vst.msk [vmem:[#allocation2] sm:$0xf] %vm188, %v180
      %190 = vst.msk [vmem:[#allocation2 + $0x8] sm:$0xf] %vm188, %v181
      %191 = vst.msk [vmem:[#allocation2 + $0x10] sm:$0xf] %vm188, %v182
      %192 = vst.msk [vmem:[#allocation2 + $0x18] sm:$0xf] %vm188, %v183
      %193 = vst.msk [vmem:[#allocation2 + $0x20] sm:$0xf] %vm188, %v184
      %194 = vst.msk [vmem:[#allocation2 + $0x28] sm:$0xf] %vm188, %v185
      %195 = vst.msk [vmem:[#allocation2 + $0x30] sm:$0xf] %vm188, %v186
      %196 = vst.msk [vmem:[#allocation2 + $0x38] sm:$0xf] %vm188, %v187
      %s197 = scalar_lea.vmem %s165, 144
      %v198 = vld [vmem:[%s197] sm:$0xff]
      %v199 = vld [vmem:[%s197 + $0x10] sm:$0xff]
      %v200 = vld [vmem:[%s197 + $0x20] sm:$0xff]
      %v201 = vld [vmem:[%s197 + $0x30] sm:$0xff]
      %v202 = vld [vmem:[%s197 + $0x40] sm:$0xff]
      %v203 = vld [vmem:[%s197 + $0x50] sm:$0xff]
      %v204 = vld [vmem:[%s197 + $0x60] sm:$0xff]
      %v205 = vld [vmem:[%s197 + $0x70] sm:$0xff]
      %v206 = vpack.c.bf16 %v198, %v198
      %v207 = vpack.c.bf16 %v199, %v199
      %v208 = vpack.c.bf16 %v200, %v200
      %v209 = vpack.c.bf16 %v201, %v201
      %v210 = vpack.c.bf16 %v202, %v202
      %v211 = vpack.c.bf16 %v203, %v203
      %v212 = vpack.c.bf16 %v204, %v204
      %v213 = vpack.c.bf16 %v205, %v205
      %222 = vrot.lane.b32.xlu0 %v206, 16
      %v223 = vpop.permute.xlu0 %222
      %224 = vrot.lane.b32.xlu0 %v207, 16
      %v225 = vpop.permute.xlu0 %224
      %226 = vrot.lane.b32.xlu0 %v208, 16
      %v227 = vpop.permute.xlu0 %226
      %228 = vrot.lane.b32.xlu0 %v209, 16
      %v229 = vpop.permute.xlu0 %228
      %230 = vrot.lane.b32.xlu0 %v210, 16
      %v231 = vpop.permute.xlu0 %230
      %232 = vrot.lane.b32.xlu0 %v211, 16
      %v233 = vpop.permute.xlu0 %232
      %234 = vrot.lane.b32.xlu0 %v212, 16
      %v235 = vpop.permute.xlu0 %234
      %236 = vrot.lane.b32.xlu0 %v213, 16
      %v237 = vpop.permute.xlu0 %236
      %vm246 = vcmask 257152
      %247 = vst.msk [vmem:[#allocation2] sm:$0xf] %vm246, %v223
      %248 = vst.msk [vmem:[#allocation2 + $0x8] sm:$0xf] %vm246, %v225
      %249 = vst.msk [vmem:[#allocation2 + $0x10] sm:$0xf] %vm246, %v227
      %250 = vst.msk [vmem:[#allocation2 + $0x18] sm:$0xf] %vm246, %v229
      %251 = vst.msk [vmem:[#allocation2 + $0x20] sm:$0xf] %vm246, %v231
      %252 = vst.msk [vmem:[#allocation2 + $0x28] sm:$0xf] %vm246, %v233
      %253 = vst.msk [vmem:[#allocation2 + $0x30] sm:$0xf] %vm246, %v235
      %254 = vst.msk [vmem:[#allocation2 + $0x38] sm:$0xf] %vm246, %v237
      %v255 = vld [vmem:[%s165 + $0x1] sm:$0xff]
      %v256 = vld [vmem:[%s165 + $0x11] sm:$0xff]
      %v257 = vld [vmem:[%s165 + $0x21] sm:$0xff]
      %v258 = vld [vmem:[%s165 + $0x31] sm:$0xff]
      %v259 = vld [vmem:[%s165 + $0x41] sm:$0xff]
      %v260 = vld [vmem:[%s165 + $0x51] sm:$0xff]
      %v261 = vld [vmem:[%s165 + $0x61] sm:$0xff]
      %v262 = vld [vmem:[%s165 + $0x71] sm:$0xff]
      %v263 = vpack.c.bf16 %v255, %v255
      %v264 = vpack.c.bf16 %v256, %v256
      %v265 = vpack.c.bf16 %v257, %v257
      %v266 = vpack.c.bf16 %v258, %v258
      %v267 = vpack.c.bf16 %v259, %v259
      %v268 = vpack.c.bf16 %v260, %v260
      %v269 = vpack.c.bf16 %v261, %v261
      %v270 = vpack.c.bf16 %v262, %v262
      %279 = vrot.lane.b32.xlu0 %v263, 32
      %v280 = vpop.permute.xlu0 %279
      %281 = vrot.lane.b32.xlu0 %v264, 32
      %v282 = vpop.permute.xlu0 %281
      %283 = vrot.lane.b32.xlu0 %v265, 32
      %v284 = vpop.permute.xlu0 %283
      %285 = vrot.lane.b32.xlu0 %v266, 32
      %v286 = vpop.permute.xlu0 %285
      %287 = vrot.lane.b32.xlu0 %v267, 32
      %v288 = vpop.permute.xlu0 %287
      %289 = vrot.lane.b32.xlu0 %v268, 32
      %v290 = vpop.permute.xlu0 %289
      %291 = vrot.lane.b32.xlu0 %v269, 32
      %v292 = vpop.permute.xlu0 %291
      %293 = vrot.lane.b32.xlu0 %v270, 32
      %v294 = vpop.permute.xlu0 %293
      %vm303 = vcmask 388352
      %304 = vst.msk [vmem:[#allocation2] sm:$0xf] %vm303, %v280
      %305 = vst.msk [vmem:[#allocation2 + $0x8] sm:$0xf] %vm303, %v282
      %306 = vst.msk [vmem:[#allocation2 + $0x10] sm:$0xf] %vm303, %v284
      %307 = vst.msk [vmem:[#allocation2 + $0x18] sm:$0xf] %vm303, %v286
      %308 = vst.msk [vmem:[#allocation2 + $0x20] sm:$0xf] %vm303, %v288
      %309 = vst.msk [vmem:[#allocation2 + $0x28] sm:$0xf] %vm303, %v290
      %310 = vst.msk [vmem:[#allocation2 + $0x30] sm:$0xf] %vm303, %v292
      %311 = vst.msk [vmem:[#allocation2 + $0x38] sm:$0xf] %vm303, %v294
      %s312 = scalar_lea.vmem %s165, 288
      %v313 = vld [vmem:[%s312] sm:$0xff]
      %v314 = vld [vmem:[%s312 + $0x10] sm:$0xff]
      %v315 = vld [vmem:[%s312 + $0x20] sm:$0xff]
      %v316 = vld [vmem:[%s312 + $0x30] sm:$0xff]
      %v317 = vld [vmem:[%s312 + $0x40] sm:$0xff]
      %v318 = vld [vmem:[%s312 + $0x50] sm:$0xff]
      %v319 = vld [vmem:[%s312 + $0x60] sm:$0xff]
      %v320 = vld [vmem:[%s312 + $0x70] sm:$0xff]
      %v321 = vpack.c.bf16 %v313, %v313
      %v322 = vpack.c.bf16 %v314, %v314
      %v323 = vpack.c.bf16 %v315, %v315
      %v324 = vpack.c.bf16 %v316, %v316
      %v325 = vpack.c.bf16 %v317, %v317
      %v326 = vpack.c.bf16 %v318, %v318
      %v327 = vpack.c.bf16 %v319, %v319
      %v328 = vpack.c.bf16 %v320, %v320
      %337 = vrot.lane.b32.xlu0 %v321, 48
      %v338 = vpop.permute.xlu0 %337
      %339 = vrot.lane.b32.xlu0 %v322, 48
      %v340 = vpop.permute.xlu0 %339
      %341 = vrot.lane.b32.xlu0 %v323, 48
      %v342 = vpop.permute.xlu0 %341
      %343 = vrot.lane.b32.xlu0 %v324, 48
      %v344 = vpop.permute.xlu0 %343
      %345 = vrot.lane.b32.xlu0 %v325, 48
      %v346 = vpop.permute.xlu0 %345
      %347 = vrot.lane.b32.xlu0 %v326, 48
      %v348 = vpop.permute.xlu0 %347
      %349 = vrot.lane.b32.xlu0 %v327, 48
      %v350 = vpop.permute.xlu0 %349
      %351 = vrot.lane.b32.xlu0 %v328, 48
      %v352 = vpop.permute.xlu0 %351
      %vm361 = vcmask 519552
      %362 = vst.msk [vmem:[#allocation2] sm:$0xf] %vm361, %v338
      %363 = vst.msk [vmem:[#allocation2 + $0x8] sm:$0xf] %vm361, %v340
      %364 = vst.msk [vmem:[#allocation2 + $0x10] sm:$0xf] %vm361, %v342
      %365 = vst.msk [vmem:[#allocation2 + $0x18] sm:$0xf] %vm361, %v344
      %366 = vst.msk [vmem:[#allocation2 + $0x20] sm:$0xf] %vm361, %v346
      %367 = vst.msk [vmem:[#allocation2 + $0x28] sm:$0xf] %vm361, %v348
      %368 = vst.msk [vmem:[#allocation2 + $0x30] sm:$0xf] %vm361, %v350
      %369 = vst.msk [vmem:[#allocation2 + $0x38] sm:$0xf] %vm361, %v352
      %s370 = scalar_lea.vmem %s165, 432
      %v371 = vld [vmem:[%s370] sm:$0xff]
      %v372 = vld [vmem:[%s370 + $0x10] sm:$0xff]
      %v373 = vld [vmem:[%s370 + $0x20] sm:$0xff]
      %v374 = vld [vmem:[%s370 + $0x30] sm:$0xff]
      %v375 = vld [vmem:[%s370 + $0x40] sm:$0xff]
      %v376 = vld [vmem:[%s370 + $0x50] sm:$0xff]
      %v377 = vld [vmem:[%s370 + $0x60] sm:$0xff]
      %v378 = vld [vmem:[%s370 + $0x70] sm:$0xff]
      %v379 = vpack.c.bf16 %v371, %v371
      %v380 = vpack.c.bf16 %v372, %v372
      %v381 = vpack.c.bf16 %v373, %v373
      %v382 = vpack.c.bf16 %v374, %v374
      %v383 = vpack.c.bf16 %v375, %v375
      %v384 = vpack.c.bf16 %v376, %v376
      %v385 = vpack.c.bf16 %v377, %v377
      %v386 = vpack.c.bf16 %v378, %v378
      %395 = vrot.lane.b32.xlu0 %v379, 64
      %v396 = vpop.permute.xlu0 %395
      %397 = vrot.lane.b32.xlu0 %v380, 64
      %v398 = vpop.permute.xlu0 %397
      %399 = vrot.lane.b32.xlu0 %v381, 64
      %v400 = vpop.permute.xlu0 %399
      %401 = vrot.lane.b32.xlu0 %v382, 64
      %v402 = vpop.permute.xlu0 %401
      %403 = vrot.lane.b32.xlu0 %v383, 64
      %v404 = vpop.permute.xlu0 %403
      %405 = vrot.lane.b32.xlu0 %v384, 64
      %v406 = vpop.permute.xlu0 %405
      %407 = vrot.lane.b32.xlu0 %v385, 64
      %v408 = vpop.permute.xlu0 %407
      %409 = vrot.lane.b32.xlu0 %v386, 64
      %v410 = vpop.permute.xlu0 %409
      %vm419 = vcmask 650752
      %420 = vst.msk [vmem:[#allocation2] sm:$0xf] %vm419, %v396
      %421 = vst.msk [vmem:[#allocation2 + $0x8] sm:$0xf] %vm419, %v398
      %422 = vst.msk [vmem:[#allocation2 + $0x10] sm:$0xf] %vm419, %v400
      %423 = vst.msk [vmem:[#allocation2 + $0x18] sm:$0xf] %vm419, %v402
      %424 = vst.msk [vmem:[#allocation2 + $0x20] sm:$0xf] %vm419, %v404
      %425 = vst.msk [vmem:[#allocation2 + $0x28] sm:$0xf] %vm419, %v406
      %426 = vst.msk [vmem:[#allocation2 + $0x30] sm:$0xf] %vm419, %v408
      %427 = vst.msk [vmem:[#allocation2 + $0x38] sm:$0xf] %vm419, %v410
      %v428 = vld [vmem:[%s312 + $0x1] sm:$0xff]
      %v429 = vld [vmem:[%s312 + $0x11] sm:$0xff]
      %v430 = vld [vmem:[%s312 + $0x21] sm:$0xff]
      %v431 = vld [vmem:[%s312 + $0x31] sm:$0xff]
      %v432 = vld [vmem:[%s312 + $0x41] sm:$0xff]
      %v433 = vld [vmem:[%s312 + $0x51] sm:$0xff]
      %v434 = vld [vmem:[%s312 + $0x61] sm:$0xff]
      %v435 = vld [vmem:[%s312 + $0x71] sm:$0xff]
      %v436 = vpack.c.bf16 %v428, %v428
      %v437 = vpack.c.bf16 %v429, %v429
      %v438 = vpack.c.bf16 %v430, %v430
      %v439 = vpack.c.bf16 %v431, %v431
      %v440 = vpack.c.bf16 %v432, %v432
      %v441 = vpack.c.bf16 %v433, %v433
      %v442 = vpack.c.bf16 %v434, %v434
      %v443 = vpack.c.bf16 %v435, %v435
      %452 = vrot.lane.b32.xlu0 %v436, 80
      %v453 = vpop.permute.xlu0 %452
      %454 = vrot.lane.b32.xlu0 %v437, 80
      %v455 = vpop.permute.xlu0 %454
      %456 = vrot.lane.b32.xlu0 %v438, 80
      %v457 = vpop.permute.xlu0 %456
      %458 = vrot.lane.b32.xlu0 %v439, 80
      %v459 = vpop.permute.xlu0 %458
      %460 = vrot.lane.b32.xlu0 %v440, 80
      %v461 = vpop.permute.xlu0 %460
      %462 = vrot.lane.b32.xlu0 %v441, 80
      %v463 = vpop.permute.xlu0 %462
      %464 = vrot.lane.b32.xlu0 %v442, 80
      %v465 = vpop.permute.xlu0 %464
      %466 = vrot.lane.b32.xlu0 %v443, 80
      %v467 = vpop.permute.xlu0 %466
      %vm476 = vcmask 781952
      %477 = vst.msk [vmem:[#allocation2] sm:$0xf] %vm476, %v453
      %478 = vst.msk [vmem:[#allocation2 + $0x8] sm:$0xf] %vm476, %v455
      %479 = vst.msk [vmem:[#allocation2 + $0x10] sm:$0xf] %vm476, %v457
      %480 = vst.msk [vmem:[#allocation2 + $0x18] sm:$0xf] %vm476, %v459
      %481 = vst.msk [vmem:[#allocation2 + $0x20] sm:$0xf] %vm476, %v461
      %482 = vst.msk [vmem:[#allocation2 + $0x28] sm:$0xf] %vm476, %v463
      %483 = vst.msk [vmem:[#allocation2 + $0x30] sm:$0xf] %vm476, %v465
      %484 = vst.msk [vmem:[#allocation2 + $0x38] sm:$0xf] %vm476, %v467
      %s485 = scalar_lea.vmem %s165, 16
      %v486 = vld [vmem:[%s485] sm:$0xff]
      %v487 = vld [vmem:[%s485 + $0x10] sm:$0xff]
      %v488 = vld [vmem:[%s485 + $0x20] sm:$0xff]
      %v489 = vld [vmem:[%s485 + $0x30] sm:$0xff]
      %v490 = vld [vmem:[%s485 + $0x40] sm:$0xff]
      %v491 = vld [vmem:[%s485 + $0x50] sm:$0xff]
      %v492 = vld [vmem:[%s485 + $0x60] sm:$0xff]
      %v493 = vld [vmem:[%s485 + $0x70] sm:$0xff]
      %v494 = vpack.c.bf16 %v486, %v486
      %v495 = vpack.c.bf16 %v487, %v487
      %v496 = vpack.c.bf16 %v488, %v488
      %v497 = vpack.c.bf16 %v489, %v489
      %v498 = vpack.c.bf16 %v490, %v490
      %v499 = vpack.c.bf16 %v491, %v491
      %v500 = vpack.c.bf16 %v492, %v492
      %v501 = vpack.c.bf16 %v493, %v493
      %510 = vrot.lane.b32.xlu0 %v494, 96
      %v511 = vpop.permute.xlu0 %510
      %512 = vrot.lane.b32.xlu0 %v495, 96
      %v513 = vpop.permute.xlu0 %512
      %514 = vrot.lane.b32.xlu0 %v496, 96
      %v515 = vpop.permute.xlu0 %514
      %516 = vrot.lane.b32.xlu0 %v497, 96
      %v517 = vpop.permute.xlu0 %516
      %518 = vrot.lane.b32.xlu0 %v498, 96
      %v519 = vpop.permute.xlu0 %518
      %520 = vrot.lane.b32.xlu0 %v499, 96
      %v521 = vpop.permute.xlu0 %520
      %522 = vrot.lane.b32.xlu0 %v500, 96
      %v523 = vpop.permute.xlu0 %522
      %524 = vrot.lane.b32.xlu0 %v501, 96
      %v525 = vpop.permute.xlu0 %524
      %vm534 = vcmask 913152
      %535 = vst.msk [vmem:[#allocation2] sm:$0xf] %vm534, %v511
      %536 = vst.msk [vmem:[#allocation2 + $0x8] sm:$0xf] %vm534, %v513
      %537 = vst.msk [vmem:[#allocation2 + $0x10] sm:$0xf] %vm534, %v515
      %538 = vst.msk [vmem:[#allocation2 + $0x18] sm:$0xf] %vm534, %v517
      %539 = vst.msk [vmem:[#allocation2 + $0x20] sm:$0xf] %vm534, %v519
      %540 = vst.msk [vmem:[#allocation2 + $0x28] sm:$0xf] %vm534, %v521
      %541 = vst.msk [vmem:[#allocation2 + $0x30] sm:$0xf] %vm534, %v523
      %542 = vst.msk [vmem:[#allocation2 + $0x38] sm:$0xf] %vm534, %v525
      %s543 = scalar_lea.vmem %s165, 160
      %v544 = vld [vmem:[%s543] sm:$0xff]
      %v545 = vld [vmem:[%s543 + $0x10] sm:$0xff]
      %v546 = vld [vmem:[%s543 + $0x20] sm:$0xff]
      %v547 = vld [vmem:[%s543 + $0x30] sm:$0xff]
      %v548 = vld [vmem:[%s543 + $0x40] sm:$0xff]
      %v549 = vld [vmem:[%s543 + $0x50] sm:$0xff]
      %v550 = vld [vmem:[%s543 + $0x60] sm:$0xff]
      %v551 = vld [vmem:[%s543 + $0x70] sm:$0xff]
      %v552 = vpack.c.bf16 %v544, %v544
      %v553 = vpack.c.bf16 %v545, %v545
      %v554 = vpack.c.bf16 %v546, %v546
      %v555 = vpack.c.bf16 %v547, %v547
      %v556 = vpack.c.bf16 %v548, %v548
      %v557 = vpack.c.bf16 %v549, %v549
      %v558 = vpack.c.bf16 %v550, %v550
      %v559 = vpack.c.bf16 %v551, %v551
      %568 = vrot.lane.b32.xlu0 %v552, 112
      %v569 = vpop.permute.xlu0 %568
      %570 = vrot.lane.b32.xlu0 %v553, 112
      %v571 = vpop.permute.xlu0 %570
      %572 = vrot.lane.b32.xlu0 %v554, 112
      %v573 = vpop.permute.xlu0 %572
      %574 = vrot.lane.b32.xlu0 %v555, 112
      %v575 = vpop.permute.xlu0 %574
      %576 = vrot.lane.b32.xlu0 %v556, 112
      %v577 = vpop.permute.xlu0 %576
      %578 = vrot.lane.b32.xlu0 %v557, 112
      %v579 = vpop.permute.xlu0 %578
      %580 = vrot.lane.b32.xlu0 %v558, 112
      %v581 = vpop.permute.xlu0 %580
      %582 = vrot.lane.b32.xlu0 %v559, 112
      %v583 = vpop.permute.xlu0 %582
      %vm592 = vcmask 1044352
      %593 = vst.msk [vmem:[#allocation2] sm:$0xf] %vm592, %v569
      %594 = vst.msk [vmem:[#allocation2 + $0x8] sm:$0xf] %vm592, %v571
      %595 = vst.msk [vmem:[#allocation2 + $0x10] sm:$0xf] %vm592, %v573
      %596 = vst.msk [vmem:[#allocation2 + $0x18] sm:$0xf] %vm592, %v575
      %597 = vst.msk [vmem:[#allocation2 + $0x20] sm:$0xf] %vm592, %v577
      %598 = vst.msk [vmem:[#allocation2 + $0x28] sm:$0xf] %vm592, %v579
      %599 = vst.msk [vmem:[#allocation2 + $0x30] sm:$0xf] %vm592, %v581
      %600 = vst.msk [vmem:[#allocation2 + $0x38] sm:$0xf] %vm592, %v583
      %v601 = vld [vmem:[%s485 + $0x1] sm:$0xff]
      %v602 = vld [vmem:[%s485 + $0x11] sm:$0xff]
      %v603 = vld [vmem:[%s485 + $0x21] sm:$0xff]
      %v604 = vld [vmem:[%s485 + $0x31] sm:$0xff]
      %v605 = vld [vmem:[%s485 + $0x41] sm:$0xff]
      %v606 = vld [vmem:[%s485 + $0x51] sm:$0xff]
      %v607 = vld [vmem:[%s485 + $0x61] sm:$0xff]
      %v608 = vld [vmem:[%s485 + $0x71] sm:$0xff]
      %v609 = vpack.c.bf16 %v601, %v601
      %v610 = vpack.c.bf16 %v602, %v602
      %v611 = vpack.c.bf16 %v603, %v603
      %v612 = vpack.c.bf16 %v604, %v604
      %v613 = vpack.c.bf16 %v605, %v605
      %v614 = vpack.c.bf16 %v606, %v606
      %v615 = vpack.c.bf16 %v607, %v607
      %v616 = vpack.c.bf16 %v608, %v608
      %617 = vst.msk [vmem:[#allocation2 + $0x4] sm:$0xf] %vm188, %v609
      %618 = vst.msk [vmem:[#allocation2 + $0xc] sm:$0xf] %vm188, %v610
      %619 = vst.msk [vmem:[#allocation2 + $0x14] sm:$0xf] %vm188, %v611
      %620 = vst.msk [vmem:[#allocation2 + $0x1c] sm:$0xf] %vm188, %v612
      %621 = vst.msk [vmem:[#allocation2 + $0x24] sm:$0xf] %vm188, %v613
      %622 = vst.msk [vmem:[#allocation2 + $0x2c] sm:$0xf] %vm188, %v614
      %623 = vst.msk [vmem:[#allocation2 + $0x34] sm:$0xf] %vm188, %v615
      %624 = vst.msk [vmem:[#allocation2 + $0x3c] sm:$0xf] %vm188, %v616
      %v625 = vld [vmem:[#allocation2] sm:$0xff]
      %v626 = vld [vmem:[#allocation2 + $0x8] sm:$0xff]
      %v627 = vld [vmem:[#allocation2 + $0x10] sm:$0xff]
      %v628 = vld [vmem:[#allocation2 + $0x18] sm:$0xff]
      %v629 = vld [vmem:[#allocation2 + $0x20] sm:$0xff]
      %v630 = vld [vmem:[#allocation2 + $0x28] sm:$0xff]
      %v631 = vld [vmem:[#allocation2 + $0x30] sm:$0xff]
      %v632 = vld [vmem:[#allocation2 + $0x38] sm:$0xff]
      %v633 = vld [vmem:[%s1] sm:$0xf]
      %v634 = vld [vmem:[%s1 + $0x4] sm:$0xf]
      %v635 = vld [vmem:[%s1 + $0x8] sm:$0xf]
      %v636 = vld [vmem:[%s1 + $0xc] sm:$0xf]
      %v637 = vld [vmem:[%s1 + $0x10] sm:$0xf]
      %v638 = vld [vmem:[%s1 + $0x14] sm:$0xf]
      %v639 = vld [vmem:[%s1 + $0x18] sm:$0xf]
      %v640 = vld [vmem:[%s1 + $0x1c] sm:$0xf]
      %v641 = vld [vmem:[%s1 + $0x20] sm:$0xf]
      %v642 = vld [vmem:[%s1 + $0x24] sm:$0xf]
      %v643 = vld [vmem:[%s1 + $0x28] sm:$0xf]
      %v644 = vld [vmem:[%s1 + $0x2c] sm:$0xf]
      %v645 = vld [vmem:[%s1 + $0x30] sm:$0xf]
      %v646 = vld [vmem:[%s1 + $0x34] sm:$0xf]
      %v647 = vld [vmem:[%s1 + $0x38] sm:$0xf]
      %v648 = vld [vmem:[%s1 + $0x3c] sm:$0xf]
      %v649 = vld [vmem:[%s1 + $0x40] sm:$0xf]
      %v650 = vld [vmem:[%s1 + $0x44] sm:$0xf]
      %v651 = vld [vmem:[%s2] sm:$0x1]
      %v653 = vperm.slane %v651, 0
      %v663 = vunpack.c.l.b16 %v625
      %v664 = vunpack.c.h.b16 %v625
      %v665 = vunpack.c.l.b16 %v626
      %v666 = vunpack.c.h.b16 %v626
      %v667 = vunpack.c.l.b16 %v627
      %v668 = vunpack.c.h.b16 %v627
      %v669 = vunpack.c.l.b16 %v628
      %v670 = vunpack.c.h.b16 %v628
      %v671 = vunpack.c.l.b16 %v629
      %v672 = vunpack.c.h.b16 %v629
      %v673 = vunpack.c.l.b16 %v630
      %v674 = vunpack.c.h.b16 %v630
      %v675 = vunpack.c.l.b16 %v631
      %v676 = vunpack.c.h.b16 %v631
      %v677 = vunpack.c.l.b16 %v632
      %v678 = vunpack.c.h.b16 %v632
      %v679 = vpack.c.b16 %v665, %v663
      %v680 = vpack.c.b16 %v666, %v664
      %v681 = vpack.c.b16 %v669, %v667
      %v682 = vpack.c.b16 %v670, %v668
      %v683 = vpack.c.b16 %v673, %v671
      %v684 = vpack.c.b16 %v674, %v672
      %v685 = vpack.c.b16 %v677, %v675
      %v686 = vpack.c.b16 %v678, %v676
      %v709 = vunpack.c.l.b16 %v633
      %v710 = vunpack.c.l.b16 %v634
      %v711 = vunpack.c.l.b16 %v635
      %v712 = vunpack.c.l.b16 %v636
      %v713 = vunpack.c.l.b16 %v637
      %v714 = vunpack.c.l.b16 %v638
      %v715 = vunpack.c.l.b16 %v639
      %v716 = vunpack.c.l.b16 %v640
      %v717 = vunpack.c.l.b16 %v641
      %v718 = vunpack.c.l.b16 %v642
      %v719 = vunpack.c.l.b16 %v643
      %v720 = vunpack.c.l.b16 %v644
      %v721 = vunpack.c.l.b16 %v645
      %v722 = vunpack.c.l.b16 %v646
      %v723 = vunpack.c.l.b16 %v647
      %v724 = vunpack.c.l.b16 %v648
      %v725 = vunpack.c.l.b16 %v649
      %v726 = vunpack.c.l.b16 %v650
      %v727 = vpack.c.b16 %v710, %v709
      %v728 = vpack.c.b16 %v712, %v711
      %v729 = vpack.c.b16 %v714, %v713
      %v730 = vpack.c.b16 %v716, %v715
      %v731 = vpack.c.b16 %v718, %v717
      %v732 = vpack.c.b16 %v720, %v719
      %v733 = vpack.c.b16 %v722, %v721
      %v734 = vpack.c.b16 %v724, %v723
      %v735 = vpack.c.b16 %v726, %v725
      %vm745 = vcmask 130048
      %v747 = vsel %vm745, %v680, 0
      %v750 = vsel %vm745, %v682, 0
      %v753 = vsel %vm745, %v684, 0
      %v756 = vsel %vm745, %v686, 0
      %758 = vmatpush.bf16.msra.mxu0 %v734
      %759 = vmatpush.bf16.msra.mxu0 %v733
      %760 = vmatpush.bf16.msra.mxu0 %v732
      %761 = vmatpush.bf16.msra.mxu0 %v731
      %762 = vmatpush.bf16.msra.mxu0 %v730
      %763 = vmatpush.bf16.msra.mxu0 %v729
      %764 = vmatpush.bf16.msra.mxu0 %v728
      %765 = vmatpush.bf16.msra.mxu0 %v727
      %766 = vmatmul.bf16.gmra.mxu0 %v679
      %v767 = vpop.f32.mrf.mxu0
      %v768 = vadd.f32 %v653, %v767
      %v769 = vpop.f32.mrf.mxu0
      %v770 = vadd.f32 %v653, %v769
      %771 = vmatmul.bf16.gmra.mxu0 %v681
      %v772 = vpop.f32.mrf.mxu0
      %v773 = vadd.f32 %v653, %v772
      %v774 = vpop.f32.mrf.mxu0
      %v775 = vadd.f32 %v653, %v774
      %776 = vmatmul.bf16.gmra.mxu0 %v683
      %v777 = vpop.f32.mrf.mxu0
      %v778 = vadd.f32 %v653, %v777
      %v779 = vpop.f32.mrf.mxu0
      %v780 = vadd.f32 %v653, %v779
      %781 = vmatmul.bf16.gmra.mxu0 %v685
      %v782 = vpop.f32.mrf.mxu0
      %v783 = vadd.f32 %v653, %v782
      %v784 = vpop.f32.mrf.mxu0
      %v785 = vadd.f32 %v653, %v784
      %786 = vdwg.mxu0
      %787 = vmatpush.bf16.msra.mxu0 0
      %788 = vmatpush.bf16.msra.mxu0 0
      %789 = vmatpush.bf16.msra.mxu0 0
      %790 = vmatpush.bf16.msra.mxu0 0
      %791 = vmatpush.bf16.msra.mxu0 0
      %792 = vmatpush.bf16.msra.mxu0 0
      %793 = vmatpush.bf16.msra.mxu0 0
      %794 = vmatpush.bf16.msra.mxu0 %v735
      %795 = vmatmul.bf16.gmra.mxu0 %v747
      %v796 = vpop.f32.mrf.mxu0
      %v797 = vadd.f32 %v768, %v796
      %v798 = vpop.f32.mrf.mxu0
      %v799 = vadd.f32 %v770, %v798
      %800 = vmatmul.bf16.gmra.mxu0 %v750
      %v801 = vpop.f32.mrf.mxu0
      %v802 = vadd.f32 %v773, %v801
      %v803 = vpop.f32.mrf.mxu0
      %v804 = vadd.f32 %v775, %v803
      %805 = vmatmul.bf16.gmra.mxu0 %v753
      %v806 = vpop.f32.mrf.mxu0
      %v807 = vadd.f32 %v778, %v806
      %v808 = vpop.f32.mrf.mxu0
      %v809 = vadd.f32 %v780, %v808
      %810 = vmatmul.bf16.gmra.mxu0 %v756
      %v811 = vpop.f32.mrf.mxu0
      %v812 = vadd.f32 %v783, %v811
      %v813 = vpop.f32.mrf.mxu0
      %v814 = vadd.f32 %v785, %v813
      %815 = vdwg.mxu0
      %v816 = vmax.f32 %v797, 0.0
      %v817 = vmax.f32 %v799, 0.0
      %v818 = vmax.f32 %v802, 0.0
      %v819 = vmax.f32 %v804, 0.0
      %v820 = vmax.f32 %v807, 0.0
      %v821 = vmax.f32 %v809, 0.0
      %v822 = vmax.f32 %v812, 0.0
      %v823 = vmax.f32 %v814, 0.0
      %824 = vst.msk [vmem:[%s170] sm:$0xff] %vm745, %v816
      %825 = vst.msk [vmem:[%s170 + $0x8] sm:$0xff] %vm745, %v817
      %826 = vst.msk [vmem:[%s170 + $0x10] sm:$0xff] %vm745, %v818
      %827 = vst.msk [vmem:[%s170 + $0x18] sm:$0xff] %vm745, %v819
      %828 = vst.msk [vmem:[%s170 + $0x20] sm:$0xff] %vm745, %v820
      %829 = vst.msk [vmem:[%s170 + $0x28] sm:$0xff] %vm745, %v821
      %830 = vst.msk [vmem:[%s170 + $0x30] sm:$0xff] %vm745, %v822
      %831 = vst.msk [vmem:[%s170 + $0x38] sm:$0xff] %vm745, %v823
      %p832 = scmp.lt.s32.totalorder %s14, 1
      %s833 = scalar_select %p832, %s14, 1
      %s834 = smul.addr %s833, 8
      %s835 = smul.addr %s834, 8
      %s836 = scalar_lea.vmem %s3, %s835
      // Predicated region
      $region33: #{_lambda_.3} parent=31 // pred_check
        %p837 = pneg %p100
      $region34: #{_lambda_.3} parent=31 // pred_check_branch
        %839 = sbr.rel (%p837) target = $region36
      $region35: #{_lambda_.3} parent=31 // pred_region
        _
      $region36: #{_lambda_.3} parent=31 // pred_fallthru
        _
    $region32: #{_lambda_.3} parent=5 // pred_fallthru
      _
    %p840 = scmp.le.s32.totalorder 2, %s9
    // Predicated region
    $region37: #{_lambda_.3} parent=5 // pred_check
      %p841 = pneg %p840
    $region38: #{_lambda_.3} parent=5 // pred_check_branch
      %843 = sbr.rel (%p841) target = $region40
    $region39: #{_lambda_.3} parent=5 // pred_region
      %s844 = ssub.s32 %s9, 2
      // Predicated region
      $region41: #{_lambda_.3} parent=39 // pred_check
        %p845 = pneg %p106
      $region42: #{_lambda_.3} parent=39 // pred_check_branch
        %847 = sbr.rel (%p845) target = $region44
      $region43: #{_lambda_.3} parent=39 // pred_region
        %p848 = scmp.lt.s32.totalorder %s15, 1
        %s849 = scalar_select %p848, %s15, 1
        %s850 = smul.addr %s849, 8
        %s851 = smul.addr %s850, 8
        %s852 = scalar_lea.vmem %s3, %s851
      $region44: #{_lambda_.3} parent=39 // pred_fallthru
        _
    $region40: #{_lambda_.3} parent=5 // pred_fallthru
      _
  $region6: #{_lambda_.3} parent=0 // loop_footer
    %s13 = sadd.s32 1, %s9
  $region7: #{_lambda_.3} parent=0 // loop_footer_branch
    %8 = sbr.rel target = $region3
  $region8: #{_lambda_.3} parent=0 // loop_exit
    _

// kernel: _lambda_.4
$region0: #{_lambda_.4}
  #allocation0 [shape = 'u32[]', space=smem, size = 0x4, offset = 0x4, fixed_abs, tag = 'smem constant byte address 0x4 - core index']
  #allocation1 [shape = 'u32[72,128]{1,0:T(1,128)}', space=vmem, size = 0x9000, scoped, tag = 'internal scratch']
  #allocation2 [shape = 'bf16[4,4,144]{2,1,0:T(4,128)(2,1)}', space=vmem, size = 0x2000, scoped, tag = 'scratch operand']
  %s0 = inlined_call_operand.vmem [shape: f32[2,20,5,16], index: 0, kind: input, shape index: {}]
  %s1 = inlined_call_operand.vmem [shape: bf16[144,16], index: 1, kind: input, shape index: {}]
  %s2 = inlined_call_operand.vmem [shape: f32[1,16], index: 2, kind: input, shape index: {}]
  %s3 = inlined_call_operand.vmem [shape: f32[2,16,16], index: 3, kind: output, shape index: {}]
  %s4 = sld [smem:[#allocation0]]
  $region45: #{_lambda_.4} parent=0
    _
  %s6 = ssub.s32 1, %s4
  %s7 = scalar_select 0, %s6, %s4
  loop: start=0, step=1, limit=4
  $region2: #{_lambda_.4} parent=0 // loop_pre_header
    _
  $region3: #{_lambda_.4} parent=0 // loop_header
    %s9 = sphi 0, %s13
    %p10 = scmp.ge.s32.totalorder %s9, 4
    %s19 = sphi 0, %s21
    %s22 = sphi 0, %s19
    %s23 = sphi 0, %s22
    %s39 = sphi 0, %s23
    %s43 = sphi 0, %s43
    %s45 = sphi 0, %s43
    %s46 = sphi 0, %s45
    %s60 = sphi 0, %s46
    %s64 = sphi 0, %s64
    %s66 = sphi 0, %s64
    %s67 = sphi 0, %s66
    %s81 = sphi 0, %s67
    %s87 = sphi 0, %s89
    %s90 = sphi 0, %s87
    %s91 = sphi 0, %s90
    %s107 = sphi 0, %s91
  $region4: #{_lambda_.4} parent=0 // loop_header_branch
    %12 = sbr.rel (%p10) target = $region8
  $region5: #{_lambda_.4} parent=0 // loop_body
    %s14 = ssub.s32 %s9, 1
    %s15 = ssub.s32 %s9, 2
    %s16 = sadd.s32 %s9, 1
    %s17 = ssub.s32 %s9, %s16
    %p18 = scmp.eq.s32.totalorder %s17, 0
    %s20 = sadd.s32 %s19, 1
    %s21 = scalar_select %p18, %s19, %s20
    %p24 = pneg %p18
    %p25 = scmp.eq.s32.totalorder %s9, 1
    %p26 = por %p24, %p25
    %p27 = scmp.ne.s32.totalorder %s19, %s22
    %p28 = scmp.eq.s32.totalorder %s9, 0
    %p29 = por %p27, %p28
    %p30 = scmp.ne.s32.totalorder %s19, %s22
    %p31 = scmp.eq.s32.totalorder %s14, 1
    %p32 = por %p30, %p31
    %p33 = scmp.ne.s32.totalorder %s22, %s23
    %p34 = scmp.eq.s32.totalorder %s14, 0
    %p35 = por %p33, %p34
    %p36 = scmp.ne.s32.totalorder %s22, %s23
    %p37 = scmp.eq.s32.totalorder %s15, 1
    %p38 = por %p36, %p37
    %p40 = scmp.ne.s32.totalorder %s23, %s39
    %p41 = scmp.eq.s32.totalorder %s15, 0
    %p42 = por %p40, %p41
    %s44 = sadd.s32 %s43, 1
    %p47 = scmp.eq.s32.totalorder %s9, 1
    %p48 = scmp.ne.s32.totalorder %s43, %s45
    %p49 = scmp.eq.s32.totalorder %s9, 0
    %p50 = por %p48, %p49
    %p51 = scmp.ne.s32.totalorder %s43, %s45
    %p52 = scmp.eq.s32.totalorder %s14, 1
    %p53 = por %p51, %p52
    %p54 = scmp.ne.s32.totalorder %s45, %s46
    %p55 = scmp.eq.s32.totalorder %s14, 0
    %p56 = por %p54, %p55
    %p57 = scmp.ne.s32.totalorder %s45, %s46
    %p58 = scmp.eq.s32.totalorder %s15, 1
    %p59 = por %p57, %p58
    %p61 = scmp.ne.s32.totalorder %s46, %s60
    %p62 = scmp.eq.s32.totalorder %s15, 0
    %p63 = por %p61, %p62
    %s65 = sadd.s32 %s64, 1
    %p68 = scmp.eq.s32.totalorder %s9, 1
    %p69 = scmp.ne.s32.totalorder %s64, %s66
    %p70 = scmp.eq.s32.totalorder %s9, 0
    %p71 = por %p69, %p70
    %p72 = scmp.ne.s32.totalorder %s64, %s66
    %p73 = scmp.eq.s32.totalorder %s14, 1
    %p74 = por %p72, %p73
    %p75 = scmp.ne.s32.totalorder %s66, %s67
    %p76 = scmp.eq.s32.totalorder %s14, 0
    %p77 = por %p75, %p76
    %p78 = scmp.ne.s32.totalorder %s66, %s67
    %p79 = scmp.eq.s32.totalorder %s15, 1
    %p80 = por %p78, %p79
    %p82 = scmp.ne.s32.totalorder %s67, %s81
    %p83 = scmp.eq.s32.totalorder %s15, 0
    %p84 = por %p82, %p83
    %s85 = ssub.s32 %s9, %s16
    %p86 = scmp.eq.s32.totalorder %s85, 0
    %s88 = sadd.s32 %s87, 1
    %s89 = scalar_select %p86, %s87, %s88
    %p92 = pneg %p86
    %p93 = scmp.eq.s32.totalorder %s9, 1
    %p94 = por %p92, %p93
    %p95 = scmp.ne.s32.totalorder %s87, %s90
    %p96 = scmp.eq.s32.totalorder %s9, 0
    %p97 = por %p95, %p96
    %p98 = scmp.ne.s32.totalorder %s87, %s90
    %p99 = scmp.eq.s32.totalorder %s14, 1
    %p100 = por %p98, %p99
    %p101 = scmp.ne.s32.totalorder %s90, %s91
    %p102 = scmp.eq.s32.totalorder %s14, 0
    %p103 = por %p101, %p102
    %p104 = scmp.ne.s32.totalorder %s90, %s91
    %p105 = scmp.eq.s32.totalorder %s15, 1
    %p106 = por %p104, %p105
    %p108 = scmp.ne.s32.totalorder %s91, %s107
    %p109 = scmp.eq.s32.totalorder %s15, 0
    %p110 = por %p108, %p109
    %p111 = scmp.le.s32.totalorder 1, %s9
    %p112 = scmp.lt.s32.totalorder %s9, 3
    %p113 = pnand %p111, %p112
    %p114 = pneg %p113
    // Predicated region
    $region9: #{_lambda_.4} parent=5 // pred_check
      _
    $region10: #{_lambda_.4} parent=5 // pred_check_branch
      %116 = sbr.rel (%p113) target = $region12
    $region11: #{_lambda_.4} parent=5 // pred_region
      %s117 = ssub.s32 %s9, 1
      // Predicated region
      $region13: #{_lambda_.4} parent=11 // pred_check
        %p118 = pneg %p56
      $region14: #{_lambda_.4} parent=11 // pred_check_branch
        %120 = sbr.rel (%p118) target = $region16
      $region15: #{_lambda_.4} parent=11 // pred_region
        _
      $region16: #{_lambda_.4} parent=11 // pred_fallthru
        _
      // Predicated region
      $region17: #{_lambda_.4} parent=11 // pred_check
        %p121 = pneg %p77
      $region18: #{_lambda_.4} parent=11 // pred_check_branch
        %123 = sbr.rel (%p121) target = $region20
      $region19: #{_lambda_.4} parent=11 // pred_region
        _
      $region20: #{_lambda_.4} parent=11 // pred_fallthru
        _
    $region12: #{_lambda_.4} parent=5 // pred_fallthru
      _
    %p124 = scmp.lt.s32.totalorder %s9, 2
    // Predicated region
    $region21: #{_lambda_.4} parent=5 // pred_check
      %p125 = pneg %p124
    $region22: #{_lambda_.4} parent=5 // pred_check_branch
      %127 = sbr.rel (%p125) target = $region24
    $region23: #{_lambda_.4} parent=5 // pred_region
      // Predicated region
      $region25: #{_lambda_.4} parent=23 // pred_check
        %p128 = pneg %p29
      $region26: #{_lambda_.4} parent=23 // pred_check_branch
        %130 = sbr.rel (%p128) target = $region28
      $region27: #{_lambda_.4} parent=23 // pred_region
        %p131 = scmp.lt.s32.totalorder %s9, 1
        %s132 = scalar_select %p131, %s9, 1
        %s133 = smul.addr %s132, 20
        %s134 = smul.addr %s133, 8
        %s135 = scalar_lea.vmem %s0, %s134
      $region28: #{_lambda_.4} parent=23 // pred_fallthru
        _
    $region24: #{_lambda_.4} parent=5 // pred_fallthru
      _
    %p136 = scmp.le.s32.totalorder 1, %s9
    %p137 = scmp.lt.s32.totalorder %s9, 3
    %p138 = pnand %p136, %p137
    %p139 = pneg %p138
    // Predicated region
    $region29: #{_lambda_.4} parent=5 // pred_check
      _
    $region30: #{_lambda_.4} parent=5 // pred_check_branch
      %141 = sbr.rel (%p138) target = $region32
    $region31: #{_lambda_.4} parent=5 // pred_region
      %s142 = ssub.s32 %s9, 1
      %p143 = scmp.lt.s32.totalorder %s14, 1
      %s144 = scalar_select %p143, %s14, 1
      %s145 = smul.addr %s144, 20
      %s146 = smul.addr %s145, 8
      %s147 = scalar_lea.vmem %s0, %s146
      %p148 = pneg %p35
      %p149 = pneg %p32
      %p150 = pneg %p56
      %p151 = pneg %p53
      %p152 = pneg %p77
      %p153 = pneg %p74
      %p154 = pneg %p103
      %p155 = pneg %p100
      %p156 = scmp.lt.s32.totalorder %s14, 1
      %s157 = scalar_select %p156, %s14, 1
      %s158 = smul.addr %s157, 2
      %s159 = smul.addr %s158, 8
      %s160 = scalar_lea.vmem %s3, %s159
      %p161 = scmp.lt.s32.totalorder %s14, 1
      %s162 = scalar_select %p161, %s14, 1
      %s163 = smul.addr %s162, 20
      %s164 = smul.addr %s163, 8
      %s165 = scalar_lea.vmem %s0, %s164
      %p166 = scmp.lt.s32.totalorder %s14, 1
      %s167 = scalar_select %p166, %s14, 1
      %s168 = smul.addr %s167, 2
      %s169 = smul.addr %s168, 8
      %s170 = scalar_lea.vmem %s3, %s169
      %v172 = vld [vmem:[%s165] sm:$0xf]
      %v173 = vld [vmem:[%s165 + $0x8] sm:$0xf]
      %v174 = vld [vmem:[%s165 + $0x10] sm:$0xf]
      %v175 = vld [vmem:[%s165 + $0x18] sm:$0xf]
      %v176 = vpack.c.bf16 %v172, %v172
      %v177 = vpack.c.bf16 %v173, %v173
      %v178 = vpack.c.bf16 %v174, %v174
      %v179 = vpack.c.bf16 %v175, %v175
      %vm180 = vcmask 123904
      %181 = vst.msk [vmem:[#allocation2] sm:$0x3] %vm180, %v176
      %182 = vst.msk [vmem:[#allocation2 + $0x4] sm:$0x3] %vm180, %v177
      %183 = vst.msk [vmem:[#allocation2 + $0x8] sm:$0x3] %vm180, %v178
      %184 = vst.msk [vmem:[#allocation2 + $0xc] sm:$0x3] %vm180, %v179
      %s185 = scalar_lea.vmem %s165, 40
      %v186 = vld [vmem:[%s185] sm:$0xf]
      %v187 = vld [vmem:[%s185 + $0x8] sm:$0xf]
      %v188 = vld [vmem:[%s185 + $0x10] sm:$0xf]
      %v189 = vld [vmem:[%s185 + $0x18] sm:$0xf]
      %v190 = vpack.c.bf16 %v186, %v186
      %v191 = vpack.c.bf16 %v187, %v187
      %v192 = vpack.c.bf16 %v188, %v188
      %v193 = vpack.c.bf16 %v189, %v189
      %v198 = vrot.slane %v190, 2
      %v199 = vrot.slane %v191, 2
      %v200 = vrot.slane %v192, 2
      %v201 = vrot.slane %v193, 2
      %vm202 = vcmask 1041408
      %v205 = vsel %vm202, %v190, %v198
      %v209 = vsel %vm202, %v191, %v199
      %v213 = vsel %vm202, %v192, %v200
      %v217 = vsel %vm202, %v193, %v201
      %219 = vrot.lane.b32.xlu0 %v205, 16
      %v220 = vpop.permute.xlu0 %219
      %221 = vrot.lane.b32.xlu0 %v209, 16
      %v222 = vpop.permute.xlu0 %221
      %223 = vrot.lane.b32.xlu0 %v213, 16
      %v224 = vpop.permute.xlu0 %223
      %225 = vrot.lane.b32.xlu0 %v217, 16
      %v226 = vpop.permute.xlu0 %225
      %vm231 = vcmask 255104
      %232 = vst.msk [vmem:[#allocation2] sm:$0x3] %vm231, %v220
      %233 = vst.msk [vmem:[#allocation2 + $0x4] sm:$0x3] %vm231, %v222
      %234 = vst.msk [vmem:[#allocation2 + $0x8] sm:$0x3] %vm231, %v224
      %235 = vst.msk [vmem:[#allocation2 + $0xc] sm:$0x3] %vm231, %v226
      %v236 = vld [vmem:[%s165 + $0x1] sm:$0xf]
      %v237 = vld [vmem:[%s165 + $0x9] sm:$0xf]
      %v238 = vld [vmem:[%s165 + $0x11] sm:$0xf]
      %v239 = vld [vmem:[%s165 + $0x19] sm:$0xf]
      %v240 = vpack.c.bf16 %v236, %v236
      %v241 = vpack.c.bf16 %v237, %v237
      %v242 = vpack.c.bf16 %v238, %v238
      %v243 = vpack.c.bf16 %v239, %v239
      %v248 = vrot.slane %v240, 2
      %v249 = vrot.slane %v241, 2
      %v250 = vrot.slane %v242, 2
      %v251 = vrot.slane %v243, 2
      %v254 = vsel %vm202, %v240, %v248
      %v258 = vsel %vm202, %v241, %v249
      %v262 = vsel %vm202, %v242, %v250
      %v266 = vsel %vm202, %v243, %v251
      %268 = vrot.lane.b32.xlu0 %v254, 32
      %v269 = vpop.permute.xlu0 %268
      %270 = vrot.lane.b32.xlu0 %v258, 32
      %v271 = vpop.permute.xlu0 %270
      %272 = vrot.lane.b32.xlu0 %v262, 32
      %v273 = vpop.permute.xlu0 %272
      %274 = vrot.lane.b32.xlu0 %v266, 32
      %v275 = vpop.permute.xlu0 %274
      %vm280 = vcmask 386304
      %281 = vst.msk [vmem:[#allocation2] sm:$0x3] %vm280, %v269
      %282 = vst.msk [vmem:[#allocation2 + $0x4] sm:$0x3] %vm280, %v271
      %283 = vst.msk [vmem:[#allocation2 + $0x8] sm:$0x3] %vm280, %v273
      %284 = vst.msk [vmem:[#allocation2 + $0xc] sm:$0x3] %vm280, %v275
      %s285 = scalar_lea.vmem %s165, 80
      %v286 = vld [vmem:[%s285] sm:$0xf]
      %v287 = vld [vmem:[%s285 + $0x8] sm:$0xf]
      %v288 = vld [vmem:[%s285 + $0x10] sm:$0xf]
      %v289 = vld [vmem:[%s285 + $0x18] sm:$0xf]
      %v290 = vpack.c.bf16 %v286, %v286
      %v291 = vpack.c.bf16 %v287, %v287
      %v292 = vpack.c.bf16 %v288, %v288
      %v293 = vpack.c.bf16 %v289, %v289
      %v298 = vrot.slane %v290, 2
      %v299 = vrot.slane %v291, 2
      %v300 = vrot.slane %v292, 2
      %v301 = vrot.slane %v293, 2
      %v304 = vsel %vm202, %v290, %v298
      %v308 = vsel %vm202, %v291, %v299
      %v312 = vsel %vm202, %v292, %v300
      %v316 = vsel %vm202, %v293, %v301
      %318 = vrot.lane.b32.xlu0 %v304, 48
      %v319 = vpop.permute.xlu0 %318
      %320 = vrot.lane.b32.xlu0 %v308, 48
      %v321 = vpop.permute.xlu0 %320
      %322 = vrot.lane.b32.xlu0 %v312, 48
      %v323 = vpop.permute.xlu0 %322
      %324 = vrot.lane.b32.xlu0 %v316, 48
      %v325 = vpop.permute.xlu0 %324
      %vm330 = vcmask 517504
      %331 = vst.msk [vmem:[#allocation2] sm:$0x3] %vm330, %v319
      %332 = vst.msk [vmem:[#allocation2 + $0x4] sm:$0x3] %vm330, %v321
      %333 = vst.msk [vmem:[#allocation2 + $0x8] sm:$0x3] %vm330, %v323
      %334 = vst.msk [vmem:[#allocation2 + $0xc] sm:$0x3] %vm330, %v325
      %s335 = scalar_lea.vmem %s165, 120
      %v336 = vld [vmem:[%s335] sm:$0xf]
      %v337 = vld [vmem:[%s335 + $0x8] sm:$0xf]
      %v338 = vld [vmem:[%s335 + $0x10] sm:$0xf]
      %v339 = vld [vmem:[%s335 + $0x18] sm:$0xf]
      %v340 = vpack.c.bf16 %v336, %v336
      %v341 = vpack.c.bf16 %v337, %v337
      %v342 = vpack.c.bf16 %v338, %v338
      %v343 = vpack.c.bf16 %v339, %v339
      %v348 = vrot.slane %v340, 2
      %v349 = vrot.slane %v341, 2
      %v350 = vrot.slane %v342, 2
      %v351 = vrot.slane %v343, 2
      %v354 = vsel %vm202, %v340, %v348
      %v358 = vsel %vm202, %v341, %v349
      %v362 = vsel %vm202, %v342, %v350
      %v366 = vsel %vm202, %v343, %v351
      %368 = vrot.lane.b32.xlu0 %v354, 64
      %v369 = vpop.permute.xlu0 %368
      %370 = vrot.lane.b32.xlu0 %v358, 64
      %v371 = vpop.permute.xlu0 %370
      %372 = vrot.lane.b32.xlu0 %v362, 64
      %v373 = vpop.permute.xlu0 %372
      %374 = vrot.lane.b32.xlu0 %v366, 64
      %v375 = vpop.permute.xlu0 %374
      %vm380 = vcmask 648704
      %381 = vst.msk [vmem:[#allocation2] sm:$0x3] %vm380, %v369
      %382 = vst.msk [vmem:[#allocation2 + $0x4] sm:$0x3] %vm380, %v371
      %383 = vst.msk [vmem:[#allocation2 + $0x8] sm:$0x3] %vm380, %v373
      %384 = vst.msk [vmem:[#allocation2 + $0xc] sm:$0x3] %vm380, %v375
      %v385 = vld [vmem:[%s285 + $0x1] sm:$0xf]
      %v386 = vld [vmem:[%s285 + $0x9] sm:$0xf]
      %v387 = vld [vmem:[%s285 + $0x11] sm:$0xf]
      %v388 = vld [vmem:[%s285 + $0x19] sm:$0xf]
      %v389 = vpack.c.bf16 %v385, %v385
      %v390 = vpack.c.bf16 %v386, %v386
      %v391 = vpack.c.bf16 %v387, %v387
      %v392 = vpack.c.bf16 %v388, %v388
      %v397 = vrot.slane %v389, 2
      %v398 = vrot.slane %v390, 2
      %v399 = vrot.slane %v391, 2
      %v400 = vrot.slane %v392, 2
      %v403 = vsel %vm202, %v389, %v397
      %v407 = vsel %vm202, %v390, %v398
      %v411 = vsel %vm202, %v391, %v399
      %v415 = vsel %vm202, %v392, %v400
      %417 = vrot.lane.b32.xlu0 %v403, 80
      %v418 = vpop.permute.xlu0 %417
      %419 = vrot.lane.b32.xlu0 %v407, 80
      %v420 = vpop.permute.xlu0 %419
      %421 = vrot.lane.b32.xlu0 %v411, 80
      %v422 = vpop.permute.xlu0 %421
      %423 = vrot.lane.b32.xlu0 %v415, 80
      %v424 = vpop.permute.xlu0 %423
      %vm429 = vcmask 779904
      %430 = vst.msk [vmem:[#allocation2] sm:$0x3] %vm429, %v418
      %431 = vst.msk [vmem:[#allocation2 + $0x4] sm:$0x3] %vm429, %v420
      %432 = vst.msk [vmem:[#allocation2 + $0x8] sm:$0x3] %vm429, %v422
      %433 = vst.msk [vmem:[#allocation2 + $0xc] sm:$0x3] %vm429, %v424
      %s434 = scalar_lea.vmem %s165, 8
      %v435 = vld [vmem:[%s434] sm:$0xf]
      %v436 = vld [vmem:[%s434 + $0x8] sm:$0xf]
      %v437 = vld [vmem:[%s434 + $0x10] sm:$0xf]
      %v438 = vld [vmem:[%s434 + $0x18] sm:$0xf]
      %v439 = vpack.c.bf16 %v435, %v435
      %v440 = vpack.c.bf16 %v436, %v436
      %v441 = vpack.c.bf16 %v437, %v437
      %v442 = vpack.c.bf16 %v438, %v438
      %v447 = vrot.slane %v439, 2
      %v448 = vrot.slane %v440, 2
      %v449 = vrot.slane %v441, 2
      %v450 = vrot.slane %v442, 2
      %v453 = vsel %vm202, %v439, %v447
      %v457 = vsel %vm202, %v440, %v448
      %v461 = vsel %vm202, %v441, %v449
      %v465 = vsel %vm202, %v442, %v450
      %467 = vrot.lane.b32.xlu0 %v453, 96
      %v468 = vpop.permute.xlu0 %467
      %469 = vrot.lane.b32.xlu0 %v457, 96
      %v470 = vpop.permute.xlu0 %469
      %471 = vrot.lane.b32.xlu0 %v461, 96
      %v472 = vpop.permute.xlu0 %471
      %473 = vrot.lane.b32.xlu0 %v465, 96
      %v474 = vpop.permute.xlu0 %473
      %vm479 = vcmask 911104
      %480 = vst.msk [vmem:[#allocation2] sm:$0x3] %vm479, %v468
      %481 = vst.msk [vmem:[#allocation2 + $0x4] sm:$0x3] %vm479, %v470
      %482 = vst.msk [vmem:[#allocation2 + $0x8] sm:$0x3] %vm479, %v472
      %483 = vst.msk [vmem:[#allocation2 + $0xc] sm:$0x3] %vm479, %v474
      %s484 = scalar_lea.vmem %s165, 48
      %v485 = vld [vmem:[%s484] sm:$0xf]
      %v486 = vld [vmem:[%s484 + $0x8] sm:$0xf]
      %v487 = vld [vmem:[%s484 + $0x10] sm:$0xf]
      %v488 = vld [vmem:[%s484 + $0x18] sm:$0xf]
      %v489 = vpack.c.bf16 %v485, %v485
      %v490 = vpack.c.bf16 %v486, %v486
      %v491 = vpack.c.bf16 %v487, %v487
      %v492 = vpack.c.bf16 %v488, %v488
      %v497 = vrot.slane %v489, 2
      %v498 = vrot.slane %v490, 2
      %v499 = vrot.slane %v491, 2
      %v500 = vrot.slane %v492, 2
      %v503 = vsel %vm202, %v489, %v497
      %v507 = vsel %vm202, %v490, %v498
      %v511 = vsel %vm202, %v491, %v499
      %v515 = vsel %vm202, %v492, %v500
      %517 = vrot.lane.b32.xlu0 %v503, 112
      %v518 = vpop.permute.xlu0 %517
      %519 = vrot.lane.b32.xlu0 %v507, 112
      %v520 = vpop.permute.xlu0 %519
      %521 = vrot.lane.b32.xlu0 %v511, 112
      %v522 = vpop.permute.xlu0 %521
      %523 = vrot.lane.b32.xlu0 %v515, 112
      %v524 = vpop.permute.xlu0 %523
      %vm529 = vcmask 1042304
      %530 = vst.msk [vmem:[#allocation2] sm:$0x3] %vm529, %v518
      %531 = vst.msk [vmem:[#allocation2 + $0x4] sm:$0x3] %vm529, %v520
      %532 = vst.msk [vmem:[#allocation2 + $0x8] sm:$0x3] %vm529, %v522
      %533 = vst.msk [vmem:[#allocation2 + $0xc] sm:$0x3] %vm529, %v524
      %v534 = vld [vmem:[%s434 + $0x1] sm:$0xf]
      %v535 = vld [vmem:[%s434 + $0x9] sm:$0xf]
      %v536 = vld [vmem:[%s434 + $0x11] sm:$0xf]
      %v537 = vld [vmem:[%s434 + $0x19] sm:$0xf]
      %v538 = vpack.c.bf16 %v534, %v534
      %v539 = vpack.c.bf16 %v535, %v535
      %v540 = vpack.c.bf16 %v536, %v536
      %v541 = vpack.c.bf16 %v537, %v537
      %542 = vst.msk [vmem:[#allocation2 + $0x2] sm:$0x3] %vm180, %v538
      %543 = vst.msk [vmem:[#allocation2 + $0x6] sm:$0x3] %vm180, %v539
      %544 = vst.msk [vmem:[#allocation2 + $0xa] sm:$0x3] %vm180, %v540
      %545 = vst.msk [vmem:[#allocation2 + $0xe] sm:$0x3] %vm180, %v541
      %v546 = vld [vmem:[#allocation2] sm:$0xf]
      %v547 = vld [vmem:[#allocation2 + $0x4] sm:$0xf]
      %v548 = vld [vmem:[#allocation2 + $0x8] sm:$0xf]
      %v549 = vld [vmem:[#allocation2 + $0xc] sm:$0xf]
      %v550 = vld [vmem:[%s1] sm:$0xf]
      %v551 = vld [vmem:[%s1 + $0x4] sm:$0xf]
      %v552 = vld [vmem:[%s1 + $0x8] sm:$0xf]
      %v553 = vld [vmem:[%s1 + $0xc] sm:$0xf]
      %v554 = vld [vmem:[%s1 + $0x10] sm:$0xf]
      %v555 = vld [vmem:[%s1 + $0x14] sm:$0xf]
      %v556 = vld [vmem:[%s1 + $0x18] sm:$0xf]
      %v557 = vld [vmem:[%s1 + $0x1c] sm:$0xf]
      %v558 = vld [vmem:[%s1 + $0x20] sm:$0xf]
      %v559 = vld [vmem:[%s1 + $0x24] sm:$0xf]
      %v560 = vld [vmem:[%s1 + $0x28] sm:$0xf]
      %v561 = vld [vmem:[%s1 + $0x2c] sm:$0xf]
      %v562 = vld [vmem:[%s1 + $0x30] sm:$0xf]
      %v563 = vld [vmem:[%s1 + $0x34] sm:$0xf]
      %v564 = vld [vmem:[%s1 + $0x38] sm:$0xf]
      %v565 = vld [vmem:[%s1 + $0x3c] sm:$0xf]
      %v566 = vld [vmem:[%s1 + $0x40] sm:$0xf]
      %v567 = vld [vmem:[%s1 + $0x44] sm:$0xf]
      %v568 = vld [vmem:[%s2] sm:$0x1]
      %v570 = vperm.slane %v568, 0
      %573 = vst [vmem:[#allocation1] ss:$4 sm:$0xff] %v546
      %s575 = scalar_lea.vmem [#allocation1], 1
      %576 = vst [vmem:[%s575] ss:$4 sm:$0xff] %v547
      %s578 = scalar_lea.vmem [#allocation1], 2
      %579 = vst [vmem:[%s578] ss:$4 sm:$0xff] %v548
      %s581 = scalar_lea.vmem [#allocation1], 3
      %582 = vst [vmem:[%s581] ss:$4 sm:$0xff] %v549
      %v583 = vld.sshfl [vmem:[#allocation1] sm:$0xff pattern:$0x73625140]
      %v584 = vld.sshfl [vmem:[#allocation1 + $0x8] sm:$0xff pattern:$0x73625140]
      %v604 = vunpack.c.l.b16 %v550
      %v605 = vunpack.c.l.b16 %v551
      %v606 = vunpack.c.l.b16 %v552
      %v607 = vunpack.c.l.b16 %v553
      %v608 = vunpack.c.l.b16 %v554
      %v609 = vunpack.c.l.b16 %v555
      %v610 = vunpack.c.l.b16 %v556
      %v611 = vunpack.c.l.b16 %v557
      %v612 = vunpack.c.l.b16 %v558
      %v613 = vunpack.c.l.b16 %v559
      %v614 = vunpack.c.l.b16 %v560
      %v615 = vunpack.c.l.b16 %v561
      %v616 = vunpack.c.l.b16 %v562
      %v617 = vunpack.c.l.b16 %v563
      %v618 = vunpack.c.l.b16 %v564
      %v619 = vunpack.c.l.b16 %v565
      %v620 = vunpack.c.l.b16 %v566
      %v621 = vunpack.c.l.b16 %v567
      %v622 = vpack.c.b16 %v605, %v604
      %v623 = vpack.c.b16 %v607, %v606
      %v624 = vpack.c.b16 %v609, %v608
      %v625 = vpack.c.b16 %v611, %v610
      %v626 = vpack.c.b16 %v613, %v612
      %v627 = vpack.c.b16 %v615, %v614
      %v628 = vpack.c.b16 %v617, %v616
      %v629 = vpack.c.b16 %v619, %v618
      %v630 = vpack.c.b16 %v621, %v620
      %vm640 = vcmask 130048
      %v641 = vsel %vm640, %v584, 0
      %643 = vmatpush.bf16.msra.mxu0 %v629
      %644 = vmatpush.bf16.msra.mxu0 %v628
      %645 = vmatpush.bf16.msra.mxu0 %v627
      %646 = vmatpush.bf16.msra.mxu0 %v626
      %647 = vmatpush.bf16.msra.mxu0 %v625
      %648 = vmatpush.bf16.msra.mxu0 %v624
      %649 = vmatpush.bf16.msra.mxu0 %v623
      %650 = vmatpush.bf16.msra.mxu0 %v622
      %651 = vmatmul.bf16.gmra.mxu0 %v583
      %v652 = vpop.f32.mrf.mxu0
      %v653 = vadd.f32 %v570, %v652
      %v654 = vpop.f32.mrf.mxu0
      %v655 = vadd.f32 %v570, %v654
      %656 = vdwg.mxu0
      %657 = vmatpush.bf16.msra.mxu0 0
      %658 = vmatpush.bf16.msra.mxu0 0
      %659 = vmatpush.bf16.msra.mxu0 0
      %660 = vmatpush.bf16.msra.mxu0 0
      %661 = vmatpush.bf16.msra.mxu0 0
      %662 = vmatpush.bf16.msra.mxu0 0
      %663 = vmatpush.bf16.msra.mxu0 0
      %664 = vmatpush.bf16.msra.mxu0 %v630
      %665 = vmatmul.bf16.gmra.mxu0 %v641
      %v666 = vpop.f32.mrf.mxu0
      %v667 = vadd.f32 %v653, %v666
      %v668 = vpop.f32.mrf.mxu0
      %v669 = vadd.f32 %v655, %v668
      %670 = vdwg.mxu0
      %v671 = vmax.f32 %v667, 0.0
      %v672 = vmax.f32 %v669, 0.0
      %673 = vst.msk [vmem:[%s170] sm:$0xff] %vm640, %v671
      %674 = vst.msk [vmem:[%s170 + $0x8] sm:$0xff] %vm640, %v672
      %p675 = scmp.lt.s32.totalorder %s14, 1
      %s676 = scalar_select %p675, %s14, 1
      %s677 = smul.addr %s676, 2
      %s678 = smul.addr %s677, 8
      %s679 = scalar_lea.vmem %s3, %s678
      // Predicated region
      $region33: #{_lambda_.4} parent=31 // pred_check
        %p680 = pneg %p100
      $region34: #{_lambda_.4} parent=31 // pred_check_branch
        %682 = sbr.rel (%p680) target = $region36
      $region35: #{_lambda_.4} parent=31 // pred_region
        _
      $region36: #{_lambda_.4} parent=31 // pred_fallthru
        _
    $region32: #{_lambda_.4} parent=5 // pred_fallthru
      _
    %p683 = scmp.le.s32.totalorder 2, %s9
    // Predicated region
    $region37: #{_lambda_.4} parent=5 // pred_check
      %p684 = pneg %p683
    $region38: #{_lambda_.4} parent=5 // pred_check_branch
      %686 = sbr.rel (%p684) target = $region40
    $region39: #{_lambda_.4} parent=5 // pred_region
      %s687 = ssub.s32 %s9, 2
      // Predicated region
      $region41: #{_lambda_.4} parent=39 // pred_check
        %p688 = pneg %p106
      $region42: #{_lambda_.4} parent=39 // pred_check_branch
        %690 = sbr.rel (%p688) target = $region44
      $region43: #{_lambda_.4} parent=39 // pred_region
        %p691 = scmp.lt.s32.totalorder %s15, 1
        %s692 = scalar_select %p691, %s15, 1
        %s693 = smul.addr %s692, 2
        %s694 = smul.addr %s693, 8
        %s695 = scalar_lea.vmem %s3, %s694
      $region44: #{_lambda_.4} parent=39 // pred_fallthru
        _
    $region40: #{_lambda_.4} parent=5 // pred_fallthru
      _
  $region6: #{_lambda_.4} parent=0 // loop_footer
    %s13 = sadd.s32 1, %s9
  $region7: #{_lambda_.4} parent=0 // loop_footer_branch
    %8 = sbr.rel target = $region3
  $region8: #{_lambda_.4} parent=0 // loop_exit
    _

// kernel: _lambda_.5
$region0: #{_lambda_.5}
  #allocation0 [shape = 'u32[]', space=smem, size = 0x4, offset = 0x4, fixed_abs, tag = 'smem constant byte address 0x4 - core index']
  #allocation1 [shape = 'u32[72,128]{1,0:T(1,128)}', space=vmem, size = 0x9000, scoped, tag = 'internal scratch']
  #allocation2 [shape = 'bf16[2,2,144]{2,1,0:T(2,128)(2,1)}', space=vmem, size = 0x800, scoped, tag = 'scratch operand']
  #allocation3 [shape = 'bf16[4,4,144]{2,1,0:T(4,128)(2,1)}', space=vmem, size = 0x2000, scoped, tag = 'scratch operand']
  #allocation4 [shape = 'bf16[8,8,144]{2,1,0:T(8,128)(2,1)}', space=vmem, size = 0x8000, scoped, tag = 'scratch operand']
  #allocation5 [shape = 'bf16[16,16,144]{2,1,0:T(8,128)(2,1)}', space=vmem, size = 0x20000, scoped, tag = 'scratch operand']
  %s0 = inlined_call_operand.vmem [shape: f32[2,6,6,16], index: 0, kind: input, shape index: {}]
  %s1 = inlined_call_operand.vmem [shape: f32[2,10,10,16], index: 1, kind: input, shape index: {}]
  %s2 = inlined_call_operand.vmem [shape: f32[2,18,18,16], index: 2, kind: input, shape index: {}]
  %s3 = inlined_call_operand.vmem [shape: bf16[144,16], index: 3, kind: input, shape index: {}]
  %s4 = inlined_call_operand.vmem [shape: f32[1,16], index: 4, kind: input, shape index: {}]
  %s5 = inlined_call_operand.vmem [shape: bf16[16,16], index: 5, kind: input, shape index: {}]
  %s6 = inlined_call_operand.vmem [shape: f32[1,16], index: 6, kind: input, shape index: {}]
  %s7 = inlined_call_operand.vmem [shape: bf16[144,16], index: 7, kind: input, shape index: {}]
  %s8 = inlined_call_operand.vmem [shape: f32[1,16], index: 8, kind: input, shape index: {}]
  %s9 = inlined_call_operand.vmem [shape: bf16[144,16], index: 9, kind: input, shape index: {}]
  %s10 = inlined_call_operand.vmem [shape: f32[1,16], index: 10, kind: input, shape index: {}]
  %s11 = inlined_call_operand.vmem [shape: bf16[144,16], index: 11, kind: input, shape index: {}]
  %s12 = inlined_call_operand.vmem [shape: f32[1,16], index: 12, kind: input, shape index: {}]
  %s13 = inlined_call_operand.vmem [shape: bf16[16,16], index: 13, kind: input, shape index: {}]
  %s14 = inlined_call_operand.vmem [shape: f32[1,16], index: 14, kind: input, shape index: {}]
  %s15 = inlined_call_operand.vmem [shape: bf16[16,16], index: 15, kind: input, shape index: {}]
  %s16 = inlined_call_operand.vmem [shape: f32[1,16], index: 16, kind: input, shape index: {}]
  %s17 = inlined_call_operand.vmem [shape: bf16[16,16], index: 17, kind: input, shape index: {}]
  %s18 = inlined_call_operand.vmem [shape: f32[1,16], index: 18, kind: input, shape index: {}]
  %s19 = inlined_call_operand.hbm [shape: f32[2,4,16], index: 19, kind: output, shape index: {0}]
  %s20 = inlined_call_operand.hbm [shape: f32[2,16,16], index: 20, kind: output, shape index: {1}]
  %s21 = inlined_call_operand.hbm [shape: f32[2,64,16], index: 21, kind: output, shape index: {2}]
  %s22 = inlined_call_operand.vmem [shape: f32[2,256,16], index: 22, kind: output, shape index: {3}]
  %23 = xla_tuple %s19, %s20, %s21, %s22
  %s24 = sld [smem:[#allocation0]]
  $region133: #{_lambda_.5} parent=0
    _
  %s26 = ssub.s32 1, %s24
  %s27 = scalar_select 0, %s26, %s24
  $region1: #{_lambda_.5} parent=0
    #allocation6 [shape = 'u8[4096]{0}', space=vmem, size = 0x1000, scoped, tag = 'output window, operand 0']
    #allocation7 [shape = 's32[2]{0}', space=sflag, size = 0x8, scoped, tag = 'scoped memory for _lambda_.5']
    #allocation8 [shape = 'u8[16384]{0}', space=vmem, size = 0x4000, scoped, tag = 'output window, operand 1']
    #allocation9 [shape = 's32[2]{0}', space=sflag, size = 0x8, scoped, tag = 'scoped memory for _lambda_.5']
    #allocation10 [shape = 'u8[65536]{0}', space=vmem, size = 0x10000, scoped, tag = 'output window, operand 2']
    %28 = vsyncpa [#allocation7], 0
    %s29 = scalar_lea.sflag [#allocation7], 1
    %30 = vsyncpa %s29, 0
    %31 = vsyncpa [#allocation9], 0
    %s32 = scalar_lea.sflag [#allocation9], 1
    %33 = vsyncpa %s32, 0
    loop: start=0, step=1, limit=4
    $region2: #{_lambda_.5} parent=1 // loop_pre_header
      _
    $region3: #{_lambda_.5} parent=1 // loop_header
      %s35 = sphi 0, %s39
      %p36 = scmp.ge.s32.totalorder %s35, 4
      %s45 = sphi 0, %s47
      %s48 = sphi 0, %s45
      %s49 = sphi 0, %s48
      %s65 = sphi 0, %s49
      %s71 = sphi 0, %s73
      %s74 = sphi 0, %s71
      %s75 = sphi 0, %s74
      %s91 = sphi 0, %s75
      %s97 = sphi 0, %s99
      %s100 = sphi 0, %s97
      %s101 = sphi 0, %s100
      %s117 = sphi 0, %s101
      %s121 = sphi 0, %s121
      %s123 = sphi 0, %s121
      %s124 = sphi 0, %s123
      %s138 = sphi 0, %s124
      %s142 = sphi 0, %s142
      %s144 = sphi 0, %s142
      %s145 = sphi 0, %s144
      %s159 = sphi 0, %s145
      %s163 = sphi 0, %s163
      %s165 = sphi 0, %s163
      %s166 = sphi 0, %s165
      %s180 = sphi 0, %s166
      %s184 = sphi 0, %s184
      %s186 = sphi 0, %s184
      %s187 = sphi 0, %s186
      %s201 = sphi 0, %s187
      %s205 = sphi 0, %s205
      %s207 = sphi 0, %s205
      %s208 = sphi 0, %s207
      %s222 = sphi 0, %s208
      %s226 = sphi 0, %s226
      %s228 = sphi 0, %s226
      %s229 = sphi 0, %s228
      %s243 = sphi 0, %s229
      %s247 = sphi 0, %s247
      %s249 = sphi 0, %s247
      %s250 = sphi 0, %s249
      %s264 = sphi 0, %s250
      %s268 = sphi 0, %s268
      %s270 = sphi 0, %s268
      %s271 = sphi 0, %s270
      %s285 = sphi 0, %s271
      %s289 = sphi 0, %s289
      %s291 = sphi 0, %s289
      %s292 = sphi 0, %s291
      %s306 = sphi 0, %s292
      %s310 = sphi 0, %s310
      %s312 = sphi 0, %s310
      %s313 = sphi 0, %s312
      %s327 = sphi 0, %s313
      %s331 = sphi 0, %s331
      %s333 = sphi 0, %s331
      %s334 = sphi 0, %s333
      %s348 = sphi 0, %s334
      %s352 = sphi 0, %s352
      %s354 = sphi 0, %s352
      %s355 = sphi 0, %s354
      %s369 = sphi 0, %s355
      %s373 = sphi 0, %s373
      %s375 = sphi 0, %s373
      %s376 = sphi 0, %s375
      %s390 = sphi 0, %s376
      %s394 = sphi 0, %s394
      %s396 = sphi 0, %s394
      %s397 = sphi 0, %s396
      %s411 = sphi 0, %s397
      %s415 = sphi 0, %s415
      %s417 = sphi 0, %s415
      %s418 = sphi 0, %s417
      %s432 = sphi 0, %s418
      %s436 = sphi 0, %s436
      %s438 = sphi 0, %s436
      %s439 = sphi 0, %s438
      %s453 = sphi 0, %s439
      %s459 = sphi 0, %s461
      %s462 = sphi 0, %s459
      %s463 = sphi 0, %s462
      %s479 = sphi 0, %s463
      %s485 = sphi 0, %s487
      %s488 = sphi 0, %s485
      %s489 = sphi 0, %s488
      %s505 = sphi 0, %s489
      %s511 = sphi 0, %s513
      %s514 = sphi 0, %s511
      %s515 = sphi 0, %s514
      %s531 = sphi 0, %s515
      %s537 = sphi 0, %s539
      %s540 = sphi 0, %s537
      %s541 = sphi 0, %s540
      %s557 = sphi 0, %s541
    $region4: #{_lambda_.5} parent=1 // loop_header_branch
      %38 = sbr.rel (%p36) target = $region8
    $region5: #{_lambda_.5} parent=1 // loop_body
      %s40 = ssub.s32 %s35, 1
      %s41 = ssub.s32 %s35, 2
      %s42 = sadd.s32 %s35, 1
      %s43 = ssub.s32 %s35, %s42
      %p44 = scmp.eq.s32.totalorder %s43, 0
      %s46 = sadd.s32 %s45, 1
      %s47 = scalar_select %p44, %s45, %s46
      %p50 = pneg %p44
      %p51 = scmp.eq.s32.totalorder %s35, 1
      %p52 = por %p50, %p51
      %p53 = scmp.ne.s32.totalorder %s45, %s48
      %p54 = scmp.eq.s32.totalorder %s35, 0
      %p55 = por %p53, %p54
      %p56 = scmp.ne.s32.totalorder %s45, %s48
      %p57 = scmp.eq.s32.totalorder %s40, 1
      %p58 = por %p56, %p57
      %p59 = scmp.ne.s32.totalorder %s48, %s49
      %p60 = scmp.eq.s32.totalorder %s40, 0
      %p61 = por %p59, %p60
      %p62 = scmp.ne.s32.totalorder %s48, %s49
      %p63 = scmp.eq.s32.totalorder %s41, 1
      %p64 = por %p62, %p63
      %p66 = scmp.ne.s32.totalorder %s49, %s65
      %p67 = scmp.eq.s32.totalorder %s41, 0
      %p68 = por %p66, %p67
      %s69 = ssub.s32 %s35, %s42
      %p70 = scmp.eq.s32.totalorder %s69, 0
      %s72 = sadd.s32 %s71, 1
      %s73 = scalar_select %p70, %s71, %s72
      %p76 = pneg %p70
      %p77 = scmp.eq.s32.totalorder %s35, 1
      %p78 = por %p76, %p77
      %p79 = scmp.ne.s32.totalorder %s71, %s74
      %p80 = scmp.eq.s32.totalorder %s35, 0
      %p81 = por %p79, %p80
      %p82 = scmp.ne.s32.totalorder %s71, %s74
      %p83 = scmp.eq.s32.totalorder %s40, 1
      %p84 = por %p82, %p83
      %p85 = scmp.ne.s32.totalorder %s74, %s75
      %p86 = scmp.eq.s32.totalorder %s40, 0
      %p87 = por %p85, %p86
      %p88 = scmp.ne.s32.totalorder %s74, %s75
      %p89 = scmp.eq.s32.totalorder %s41, 1
      %p90 = por %p88, %p89
      %p92 = scmp.ne.s32.totalorder %s75, %s91
      %p93 = scmp.eq.s32.totalorder %s41, 0
      %p94 = por %p92, %p93
      %s95 = ssub.s32 %s35, %s42
      %p96 = scmp.eq.s32.totalorder %s95, 0
      %s98 = sadd.s32 %s97, 1
      %s99 = scalar_select %p96, %s97, %s98
      %p102 = pneg %p96
      %p103 = scmp.eq.s32.totalorder %s35, 1
      %p104 = por %p102, %p103
      %p105 = scmp.ne.s32.totalorder %s97, %s100
      %p106 = scmp.eq.s32.totalorder %s35, 0
      %p107 = por %p105, %p106
      %p108 = scmp.ne.s32.totalorder %s97, %s100
      %p109 = scmp.eq.s32.totalorder %s40, 1
      %p110 = por %p108, %p109
      %p111 = scmp.ne.s32.totalorder %s100, %s101
      %p112 = scmp.eq.s32.totalorder %s40, 0
      %p113 = por %p111, %p112
      %p114 = scmp.ne.s32.totalorder %s100, %s101
      %p115 = scmp.eq.s32.totalorder %s41, 1
      %p116 = por %p114, %p115
      %p118 = scmp.ne.s32.totalorder %s101, %s117
      %p119 = scmp.eq.s32.totalorder %s41, 0
      %p120 = por %p118, %p119
      %s122 = sadd.s32 %s121, 1
      %p125 = scmp.eq.s32.totalorder %s35, 1
      %p126 = scmp.ne.s32.totalorder %s121, %s123
      %p127 = scmp.eq.s32.totalorder %s35, 0
      %p128 = por %p126, %p127
      %p129 = scmp.ne.s32.totalorder %s121, %s123
      %p130 = scmp.eq.s32.totalorder %s40, 1
      %p131 = por %p129, %p130
      %p132 = scmp.ne.s32.totalorder %s123, %s124
      %p133 = scmp.eq.s32.totalorder %s40, 0
      %p134 = por %p132, %p133
      %p135 = scmp.ne.s32.totalorder %s123, %s124
      %p136 = scmp.eq.s32.totalorder %s41, 1
      %p137 = por %p135, %p136
      %p139 = scmp.ne.s32.totalorder %s124, %s138
      %p140 = scmp.eq.s32.totalorder %s41, 0
      %p141 = por %p139, %p140
      %s143 = sadd.s32 %s142, 1
      %p146 = scmp.eq.s32.totalorder %s35, 1
      %p147 = scmp.ne.s32.totalorder %s142, %s144
      %p148 = scmp.eq.s32.totalorder %s35, 0
      %p149 = por %p147, %p148
      %p150 = scmp.ne.s32.totalorder %s142, %s144
      %p151 = scmp.eq.s32.totalorder %s40, 1
      %p152 = por %p150, %p151
      %p153 = scmp.ne.s32.totalorder %s144, %s145
      %p154 = scmp.eq.s32.totalorder %s40, 0
      %p155 = por %p153, %p154
      %p156 = scmp.ne.s32.totalorder %s144, %s145
      %p157 = scmp.eq.s32.totalorder %s41, 1
      %p158 = por %p156, %p157
      %p160 = scmp.ne.s32.totalorder %s145, %s159
      %p161 = scmp.eq.s32.totalorder %s41, 0
      %p162 = por %p160, %p161
      %s164 = sadd.s32 %s163, 1
      %p167 = scmp.eq.s32.totalorder %s35, 1
      %p168 = scmp.ne.s32.totalorder %s163, %s165
      %p169 = scmp.eq.s32.totalorder %s35, 0
      %p170 = por %p168, %p169
      %p171 = scmp.ne.s32.totalorder %s163, %s165
      %p172 = scmp.eq.s32.totalorder %s40, 1
      %p173 = por %p171, %p172
      %p174 = scmp.ne.s32.totalorder %s165, %s166
      %p175 = scmp.eq.s32.totalorder %s40, 0
      %p176 = por %p174, %p175
      %p177 = scmp.ne.s32.totalorder %s165, %s166
      %p178 = scmp.eq.s32.totalorder %s41, 1
      %p179 = por %p177, %p178
      %p181 = scmp.ne.s32.totalorder %s166, %s180
      %p182 = scmp.eq.s32.totalorder %s41, 0
      %p183 = por %p181, %p182
      %s185 = sadd.s32 %s184, 1
      %p188 = scmp.eq.s32.totalorder %s35, 1
      %p189 = scmp.ne.s32.totalorder %s184, %s186
      %p190 = scmp.eq.s32.totalorder %s35, 0
      %p191 = por %p189, %p190
      %p192 = scmp.ne.s32.totalorder %s184, %s186
      %p193 = scmp.eq.s32.totalorder %s40, 1
      %p194 = por %p192, %p193
      %p195 = scmp.ne.s32.totalorder %s186, %s187
      %p196 = scmp.eq.s32.totalorder %s40, 0
      %p197 = por %p195, %p196
      %p198 = scmp.ne.s32.totalorder %s186, %s187
      %p199 = scmp.eq.s32.totalorder %s41, 1
      %p200 = por %p198, %p199
      %p202 = scmp.ne.s32.totalorder %s187, %s201
      %p203 = scmp.eq.s32.totalorder %s41, 0
      %p204 = por %p202, %p203
      %s206 = sadd.s32 %s205, 1
      %p209 = scmp.eq.s32.totalorder %s35, 1
      %p210 = scmp.ne.s32.totalorder %s205, %s207
      %p211 = scmp.eq.s32.totalorder %s35, 0
      %p212 = por %p210, %p211
      %p213 = scmp.ne.s32.totalorder %s205, %s207
      %p214 = scmp.eq.s32.totalorder %s40, 1
      %p215 = por %p213, %p214
      %p216 = scmp.ne.s32.totalorder %s207, %s208
      %p217 = scmp.eq.s32.totalorder %s40, 0
      %p218 = por %p216, %p217
      %p219 = scmp.ne.s32.totalorder %s207, %s208
      %p220 = scmp.eq.s32.totalorder %s41, 1
      %p221 = por %p219, %p220
      %p223 = scmp.ne.s32.totalorder %s208, %s222
      %p224 = scmp.eq.s32.totalorder %s41, 0
      %p225 = por %p223, %p224
      %s227 = sadd.s32 %s226, 1
      %p230 = scmp.eq.s32.totalorder %s35, 1
      %p231 = scmp.ne.s32.totalorder %s226, %s228
      %p232 = scmp.eq.s32.totalorder %s35, 0
      %p233 = por %p231, %p232
      %p234 = scmp.ne.s32.totalorder %s226, %s228
      %p235 = scmp.eq.s32.totalorder %s40, 1
      %p236 = por %p234, %p235
      %p237 = scmp.ne.s32.totalorder %s228, %s229
      %p238 = scmp.eq.s32.totalorder %s40, 0
      %p239 = por %p237, %p238
      %p240 = scmp.ne.s32.totalorder %s228, %s229
      %p241 = scmp.eq.s32.totalorder %s41, 1
      %p242 = por %p240, %p241
      %p244 = scmp.ne.s32.totalorder %s229, %s243
      %p245 = scmp.eq.s32.totalorder %s41, 0
      %p246 = por %p244, %p245
      %s248 = sadd.s32 %s247, 1
      %p251 = scmp.eq.s32.totalorder %s35, 1
      %p252 = scmp.ne.s32.totalorder %s247, %s249
      %p253 = scmp.eq.s32.totalorder %s35, 0
      %p254 = por %p252, %p253
      %p255 = scmp.ne.s32.totalorder %s247, %s249
      %p256 = scmp.eq.s32.totalorder %s40, 1
      %p257 = por %p255, %p256
      %p258 = scmp.ne.s32.totalorder %s249, %s250
      %p259 = scmp.eq.s32.totalorder %s40, 0
      %p260 = por %p258, %p259
      %p261 = scmp.ne.s32.totalorder %s249, %s250
      %p262 = scmp.eq.s32.totalorder %s41, 1
      %p263 = por %p261, %p262
      %p265 = scmp.ne.s32.totalorder %s250, %s264
      %p266 = scmp.eq.s32.totalorder %s41, 0
      %p267 = por %p265, %p266
      %s269 = sadd.s32 %s268, 1
      %p272 = scmp.eq.s32.totalorder %s35, 1
      %p273 = scmp.ne.s32.totalorder %s268, %s270
      %p274 = scmp.eq.s32.totalorder %s35, 0
      %p275 = por %p273, %p274
      %p276 = scmp.ne.s32.totalorder %s268, %s270
      %p277 = scmp.eq.s32.totalorder %s40, 1
      %p278 = por %p276, %p277
      %p279 = scmp.ne.s32.totalorder %s270, %s271
      %p280 = scmp.eq.s32.totalorder %s40, 0
      %p281 = por %p279, %p280
      %p282 = scmp.ne.s32.totalorder %s270, %s271
      %p283 = scmp.eq.s32.totalorder %s41, 1
      %p284 = por %p282, %p283
      %p286 = scmp.ne.s32.totalorder %s271, %s285
      %p287 = scmp.eq.s32.totalorder %s41, 0
      %p288 = por %p286, %p287
      %s290 = sadd.s32 %s289, 1
      %p293 = scmp.eq.s32.totalorder %s35, 1
      %p294 = scmp.ne.s32.totalorder %s289, %s291
      %p295 = scmp.eq.s32.totalorder %s35, 0
      %p296 = por %p294, %p295
      %p297 = scmp.ne.s32.totalorder %s289, %s291
      %p298 = scmp.eq.s32.totalorder %s40, 1
      %p299 = por %p297, %p298
      %p300 = scmp.ne.s32.totalorder %s291, %s292
      %p301 = scmp.eq.s32.totalorder %s40, 0
      %p302 = por %p300, %p301
      %p303 = scmp.ne.s32.totalorder %s291, %s292
      %p304 = scmp.eq.s32.totalorder %s41, 1
      %p305 = por %p303, %p304
      %p307 = scmp.ne.s32.totalorder %s292, %s306
      %p308 = scmp.eq.s32.totalorder %s41, 0
      %p309 = por %p307, %p308
      %s311 = sadd.s32 %s310, 1
      %p314 = scmp.eq.s32.totalorder %s35, 1
      %p315 = scmp.ne.s32.totalorder %s310, %s312
      %p316 = scmp.eq.s32.totalorder %s35, 0
      %p317 = por %p315, %p316
      %p318 = scmp.ne.s32.totalorder %s310, %s312
      %p319 = scmp.eq.s32.totalorder %s40, 1
      %p320 = por %p318, %p319
      %p321 = scmp.ne.s32.totalorder %s312, %s313
      %p322 = scmp.eq.s32.totalorder %s40, 0
      %p323 = por %p321, %p322
      %p324 = scmp.ne.s32.totalorder %s312, %s313
      %p325 = scmp.eq.s32.totalorder %s41, 1
      %p326 = por %p324, %p325
      %p328 = scmp.ne.s32.totalorder %s313, %s327
      %p329 = scmp.eq.s32.totalorder %s41, 0
      %p330 = por %p328, %p329
      %s332 = sadd.s32 %s331, 1
      %p335 = scmp.eq.s32.totalorder %s35, 1
      %p336 = scmp.ne.s32.totalorder %s331, %s333
      %p337 = scmp.eq.s32.totalorder %s35, 0
      %p338 = por %p336, %p337
      %p339 = scmp.ne.s32.totalorder %s331, %s333
      %p340 = scmp.eq.s32.totalorder %s40, 1
      %p341 = por %p339, %p340
      %p342 = scmp.ne.s32.totalorder %s333, %s334
      %p343 = scmp.eq.s32.totalorder %s40, 0
      %p344 = por %p342, %p343
      %p345 = scmp.ne.s32.totalorder %s333, %s334
      %p346 = scmp.eq.s32.totalorder %s41, 1
      %p347 = por %p345, %p346
      %p349 = scmp.ne.s32.totalorder %s334, %s348
      %p350 = scmp.eq.s32.totalorder %s41, 0
      %p351 = por %p349, %p350
      %s353 = sadd.s32 %s352, 1
      %p356 = scmp.eq.s32.totalorder %s35, 1
      %p357 = scmp.ne.s32.totalorder %s352, %s354
      %p358 = scmp.eq.s32.totalorder %s35, 0
      %p359 = por %p357, %p358
      %p360 = scmp.ne.s32.totalorder %s352, %s354
      %p361 = scmp.eq.s32.totalorder %s40, 1
      %p362 = por %p360, %p361
      %p363 = scmp.ne.s32.totalorder %s354, %s355
      %p364 = scmp.eq.s32.totalorder %s40, 0
      %p365 = por %p363, %p364
      %p366 = scmp.ne.s32.totalorder %s354, %s355
      %p367 = scmp.eq.s32.totalorder %s41, 1
      %p368 = por %p366, %p367
      %p370 = scmp.ne.s32.totalorder %s355, %s369
      %p371 = scmp.eq.s32.totalorder %s41, 0
      %p372 = por %p370, %p371
      %s374 = sadd.s32 %s373, 1
      %p377 = scmp.eq.s32.totalorder %s35, 1
      %p378 = scmp.ne.s32.totalorder %s373, %s375
      %p379 = scmp.eq.s32.totalorder %s35, 0
      %p380 = por %p378, %p379
      %p381 = scmp.ne.s32.totalorder %s373, %s375
      %p382 = scmp.eq.s32.totalorder %s40, 1
      %p383 = por %p381, %p382
      %p384 = scmp.ne.s32.totalorder %s375, %s376
      %p385 = scmp.eq.s32.totalorder %s40, 0
      %p386 = por %p384, %p385
      %p387 = scmp.ne.s32.totalorder %s375, %s376
      %p388 = scmp.eq.s32.totalorder %s41, 1
      %p389 = por %p387, %p388
      %p391 = scmp.ne.s32.totalorder %s376, %s390
      %p392 = scmp.eq.s32.totalorder %s41, 0
      %p393 = por %p391, %p392
      %s395 = sadd.s32 %s394, 1
      %p398 = scmp.eq.s32.totalorder %s35, 1
      %p399 = scmp.ne.s32.totalorder %s394, %s396
      %p400 = scmp.eq.s32.totalorder %s35, 0
      %p401 = por %p399, %p400
      %p402 = scmp.ne.s32.totalorder %s394, %s396
      %p403 = scmp.eq.s32.totalorder %s40, 1
      %p404 = por %p402, %p403
      %p405 = scmp.ne.s32.totalorder %s396, %s397
      %p406 = scmp.eq.s32.totalorder %s40, 0
      %p407 = por %p405, %p406
      %p408 = scmp.ne.s32.totalorder %s396, %s397
      %p409 = scmp.eq.s32.totalorder %s41, 1
      %p410 = por %p408, %p409
      %p412 = scmp.ne.s32.totalorder %s397, %s411
      %p413 = scmp.eq.s32.totalorder %s41, 0
      %p414 = por %p412, %p413
      %s416 = sadd.s32 %s415, 1
      %p419 = scmp.eq.s32.totalorder %s35, 1
      %p420 = scmp.ne.s32.totalorder %s415, %s417
      %p421 = scmp.eq.s32.totalorder %s35, 0
      %p422 = por %p420, %p421
      %p423 = scmp.ne.s32.totalorder %s415, %s417
      %p424 = scmp.eq.s32.totalorder %s40, 1
      %p425 = por %p423, %p424
      %p426 = scmp.ne.s32.totalorder %s417, %s418
      %p427 = scmp.eq.s32.totalorder %s40, 0
      %p428 = por %p426, %p427
      %p429 = scmp.ne.s32.totalorder %s417, %s418
      %p430 = scmp.eq.s32.totalorder %s41, 1
      %p431 = por %p429, %p430
      %p433 = scmp.ne.s32.totalorder %s418, %s432
      %p434 = scmp.eq.s32.totalorder %s41, 0
      %p435 = por %p433, %p434
      %s437 = sadd.s32 %s436, 1
      %p440 = scmp.eq.s32.totalorder %s35, 1
      %p441 = scmp.ne.s32.totalorder %s436, %s438
      %p442 = scmp.eq.s32.totalorder %s35, 0
      %p443 = por %p441, %p442
      %p444 = scmp.ne.s32.totalorder %s436, %s438
      %p445 = scmp.eq.s32.totalorder %s40, 1
      %p446 = por %p444, %p445
      %p447 = scmp.ne.s32.totalorder %s438, %s439
      %p448 = scmp.eq.s32.totalorder %s40, 0
      %p449 = por %p447, %p448
      %p450 = scmp.ne.s32.totalorder %s438, %s439
      %p451 = scmp.eq.s32.totalorder %s41, 1
      %p452 = por %p450, %p451
      %p454 = scmp.ne.s32.totalorder %s439, %s453
      %p455 = scmp.eq.s32.totalorder %s41, 0
      %p456 = por %p454, %p455
      %s457 = ssub.s32 %s35, %s42
      %p458 = scmp.eq.s32.totalorder %s457, 0
      %s460 = sadd.s32 %s459, 1
      %s461 = scalar_select %p458, %s459, %s460
      %p464 = pneg %p458
      %p465 = scmp.eq.s32.totalorder %s35, 1
      %p466 = por %p464, %p465
      %p467 = scmp.ne.s32.totalorder %s459, %s462
      %p468 = scmp.eq.s32.totalorder %s35, 0
      %p469 = por %p467, %p468
      %p470 = scmp.ne.s32.totalorder %s459, %s462
      %p471 = scmp.eq.s32.totalorder %s40, 1
      %p472 = por %p470, %p471
      %p473 = scmp.ne.s32.totalorder %s462, %s463
      %p474 = scmp.eq.s32.totalorder %s40, 0
      %p475 = por %p473, %p474
      %p476 = scmp.ne.s32.totalorder %s462, %s463
      %p477 = scmp.eq.s32.totalorder %s41, 1
      %p478 = por %p476, %p477
      %p480 = scmp.ne.s32.totalorder %s463, %s479
      %p481 = scmp.eq.s32.totalorder %s41, 0
      %p482 = por %p480, %p481
      %s483 = ssub.s32 %s35, %s42
      %p484 = scmp.eq.s32.totalorder %s483, 0
      %s486 = sadd.s32 %s485, 1
      %s487 = scalar_select %p484, %s485, %s486
      %p490 = pneg %p484
      %p491 = scmp.eq.s32.totalorder %s35, 1
      %p492 = por %p490, %p491
      %p493 = scmp.ne.s32.totalorder %s485, %s488
      %p494 = scmp.eq.s32.totalorder %s35, 0
      %p495 = por %p493, %p494
      %p496 = scmp.ne.s32.totalorder %s485, %s488
      %p497 = scmp.eq.s32.totalorder %s40, 1
      %p498 = por %p496, %p497
      %p499 = scmp.ne.s32.totalorder %s488, %s489
      %p500 = scmp.eq.s32.totalorder %s40, 0
      %p501 = por %p499, %p500
      %p502 = scmp.ne.s32.totalorder %s488, %s489
      %p503 = scmp.eq.s32.totalorder %s41, 1
      %p504 = por %p502, %p503
      %p506 = scmp.ne.s32.totalorder %s489, %s505
      %p507 = scmp.eq.s32.totalorder %s41, 0
      %p508 = por %p506, %p507
      %s509 = ssub.s32 %s35, %s42
      %p510 = scmp.eq.s32.totalorder %s509, 0
      %s512 = sadd.s32 %s511, 1
      %s513 = scalar_select %p510, %s511, %s512
      %p516 = pneg %p510
      %p517 = scmp.eq.s32.totalorder %s35, 1
      %p518 = por %p516, %p517
      %p519 = scmp.ne.s32.totalorder %s511, %s514
      %p520 = scmp.eq.s32.totalorder %s35, 0
      %p521 = por %p519, %p520
      %p522 = scmp.ne.s32.totalorder %s511, %s514
      %p523 = scmp.eq.s32.totalorder %s40, 1
      %p524 = por %p522, %p523
      %p525 = scmp.ne.s32.totalorder %s514, %s515
      %p526 = scmp.eq.s32.totalorder %s40, 0
      %p527 = por %p525, %p526
      %p528 = scmp.ne.s32.totalorder %s514, %s515
      %p529 = scmp.eq.s32.totalorder %s41, 1
      %p530 = por %p528, %p529
      %p532 = scmp.ne.s32.totalorder %s515, %s531
      %p533 = scmp.eq.s32.totalorder %s41, 0
      %p534 = por %p532, %p533
      %s535 = ssub.s32 %s35, %s42
      %p536 = scmp.eq.s32.totalorder %s535, 0
      %s538 = sadd.s32 %s537, 1
      %s539 = scalar_select %p536, %s537, %s538
      %p542 = pneg %p536
      %p543 = scmp.eq.s32.totalorder %s35, 1
      %p544 = por %p542, %p543
      %p545 = scmp.ne.s32.totalorder %s537, %s540
      %p546 = scmp.eq.s32.totalorder %s35, 0
      %p547 = por %p545, %p546
      %p548 = scmp.ne.s32.totalorder %s537, %s540
      %p549 = scmp.eq.s32.totalorder %s40, 1
      %p550 = por %p548, %p549
      %p551 = scmp.ne.s32.totalorder %s540, %s541
      %p552 = scmp.eq.s32.totalorder %s40, 0
      %p553 = por %p551, %p552
      %p554 = scmp.ne.s32.totalorder %s540, %s541
      %p555 = scmp.eq.s32.totalorder %s41, 1
      %p556 = por %p554, %p555
      %p558 = scmp.ne.s32.totalorder %s541, %s557
      %p559 = scmp.eq.s32.totalorder %s41, 0
      %p560 = por %p558, %p559
      %p561 = scmp.le.s32.totalorder 1, %s35
      %p562 = scmp.lt.s32.totalorder %s35, 3
      %p563 = pnand %p561, %p562
      %p564 = pneg %p563
      // Predicated region
      $region9: #{_lambda_.5} parent=5 // pred_check
        _
      $region10: #{_lambda_.5} parent=5 // pred_check_branch
        %566 = sbr.rel (%p563) target = $region12
      $region11: #{_lambda_.5} parent=5 // pred_region
        %s567 = ssub.s32 %s35, 1
        // Predicated region
        $region13: #{_lambda_.5} parent=11 // pred_check
          %p568 = pneg %p134
        $region14: #{_lambda_.5} parent=11 // pred_check_branch
          %570 = sbr.rel (%p568) target = $region16
        $region15: #{_lambda_.5} parent=11 // pred_region
          _
        $region16: #{_lambda_.5} parent=11 // pred_fallthru
          _
        // Predicated region
        $region17: #{_lambda_.5} parent=11 // pred_check
          %p571 = pneg %p155
        $region18: #{_lambda_.5} parent=11 // pred_check_branch
          %573 = sbr.rel (%p571) target = $region20
        $region19: #{_lambda_.5} parent=11 // pred_region
          _
        $region20: #{_lambda_.5} parent=11 // pred_fallthru
          _
        // Predicated region
        $region21: #{_lambda_.5} parent=11 // pred_check
          %p574 = pneg %p176
        $region22: #{_lambda_.5} parent=11 // pred_check_branch
          %576 = sbr.rel (%p574) target = $region24
        $region23: #{_lambda_.5} parent=11 // pred_region
          _
        $region24: #{_lambda_.5} parent=11 // pred_fallthru
          _
        // Predicated region
        $region25: #{_lambda_.5} parent=11 // pred_check
          %p577 = pneg %p197
        $region26: #{_lambda_.5} parent=11 // pred_check_branch
          %579 = sbr.rel (%p577) target = $region28
        $region27: #{_lambda_.5} parent=11 // pred_region
          _
        $region28: #{_lambda_.5} parent=11 // pred_fallthru
          _
        // Predicated region
        $region29: #{_lambda_.5} parent=11 // pred_check
          %p580 = pneg %p218
        $region30: #{_lambda_.5} parent=11 // pred_check_branch
          %582 = sbr.rel (%p580) target = $region32
        $region31: #{_lambda_.5} parent=11 // pred_region
          _
        $region32: #{_lambda_.5} parent=11 // pred_fallthru
          _
        // Predicated region
        $region33: #{_lambda_.5} parent=11 // pred_check
          %p583 = pneg %p239
        $region34: #{_lambda_.5} parent=11 // pred_check_branch
          %585 = sbr.rel (%p583) target = $region36
        $region35: #{_lambda_.5} parent=11 // pred_region
          _
        $region36: #{_lambda_.5} parent=11 // pred_fallthru
          _
        // Predicated region
        $region37: #{_lambda_.5} parent=11 // pred_check
          %p586 = pneg %p260
        $region38: #{_lambda_.5} parent=11 // pred_check_branch
          %588 = sbr.rel (%p586) target = $region40
        $region39: #{_lambda_.5} parent=11 // pred_region
          _
        $region40: #{_lambda_.5} parent=11 // pred_fallthru
          _
        // Predicated region
        $region41: #{_lambda_.5} parent=11 // pred_check
          %p589 = pneg %p281
        $region42: #{_lambda_.5} parent=11 // pred_check_branch
          %591 = sbr.rel (%p589) target = $region44
        $region43: #{_lambda_.5} parent=11 // pred_region
          _
        $region44: #{_lambda_.5} parent=11 // pred_fallthru
          _
        // Predicated region
        $region45: #{_lambda_.5} parent=11 // pred_check
          %p592 = pneg %p302
        $region46: #{_lambda_.5} parent=11 // pred_check_branch
          %594 = sbr.rel (%p592) target = $region48
        $region47: #{_lambda_.5} parent=11 // pred_region
          _
        $region48: #{_lambda_.5} parent=11 // pred_fallthru
          _
        // Predicated region
        $region49: #{_lambda_.5} parent=11 // pred_check
          %p595 = pneg %p323
        $region50: #{_lambda_.5} parent=11 // pred_check_branch
          %597 = sbr.rel (%p595) target = $region52
        $region51: #{_lambda_.5} parent=11 // pred_region
          _
        $region52: #{_lambda_.5} parent=11 // pred_fallthru
          _
        // Predicated region
        $region53: #{_lambda_.5} parent=11 // pred_check
          %p598 = pneg %p344
        $region54: #{_lambda_.5} parent=11 // pred_check_branch
          %600 = sbr.rel (%p598) target = $region56
        $region55: #{_lambda_.5} parent=11 // pred_region
          _
        $region56: #{_lambda_.5} parent=11 // pred_fallthru
          _
        // Predicated region
        $region57: #{_lambda_.5} parent=11 // pred_check
          %p601 = pneg %p365
        $region58: #{_lambda_.5} parent=11 // pred_check_branch
          %603 = sbr.rel (%p601) target = $region60
        $region59: #{_lambda_.5} parent=11 // pred_region
          _
        $region60: #{_lambda_.5} parent=11 // pred_fallthru
          _
        // Predicated region
        $region61: #{_lambda_.5} parent=11 // pred_check
          %p604 = pneg %p386
        $region62: #{_lambda_.5} parent=11 // pred_check_branch
          %606 = sbr.rel (%p604) target = $region64
        $region63: #{_lambda_.5} parent=11 // pred_region
          _
        $region64: #{_lambda_.5} parent=11 // pred_fallthru
          _
        // Predicated region
        $region65: #{_lambda_.5} parent=11 // pred_check
          %p607 = pneg %p407
        $region66: #{_lambda_.5} parent=11 // pred_check_branch
          %609 = sbr.rel (%p607) target = $region68
        $region67: #{_lambda_.5} parent=11 // pred_region
          _
        $region68: #{_lambda_.5} parent=11 // pred_fallthru
          _
        // Predicated region
        $region69: #{_lambda_.5} parent=11 // pred_check
          %p610 = pneg %p428
        $region70: #{_lambda_.5} parent=11 // pred_check_branch
          %612 = sbr.rel (%p610) target = $region72
        $region71: #{_lambda_.5} parent=11 // pred_region
          _
        $region72: #{_lambda_.5} parent=11 // pred_fallthru
          _
        // Predicated region
        $region73: #{_lambda_.5} parent=11 // pred_check
          %p613 = pneg %p449
        $region74: #{_lambda_.5} parent=11 // pred_check_branch
          %615 = sbr.rel (%p613) target = $region76
        $region75: #{_lambda_.5} parent=11 // pred_region
          _
        $region76: #{_lambda_.5} parent=11 // pred_fallthru
          _
      $region12: #{_lambda_.5} parent=5 // pred_fallthru
        _
      %p616 = scmp.lt.s32.totalorder %s35, 2
      // Predicated region
      $region77: #{_lambda_.5} parent=5 // pred_check
        %p617 = pneg %p616
      $region78: #{_lambda_.5} parent=5 // pred_check_branch
        %619 = sbr.rel (%p617) target = $region80
      $region79: #{_lambda_.5} parent=5 // pred_region
        // Predicated region
        $region81: #{_lambda_.5} parent=79 // pred_check
          %p620 = pneg %p55
        $region82: #{_lambda_.5} parent=79 // pred_check_branch
          %622 = sbr.rel (%p620) target = $region84
        $region83: #{_lambda_.5} parent=79 // pred_region
          %p623 = scmp.lt.s32.totalorder %s35, 1
          %s624 = scalar_select %p623, %s35, 1
          %s625 = smul.addr %s624, 6
          %s626 = smul.addr %s625, 8
          %s627 = scalar_lea.vmem %s0, %s626
        $region84: #{_lambda_.5} parent=79 // pred_fallthru
          _
        // Predicated region
        $region85: #{_lambda_.5} parent=79 // pred_check
          %p628 = pneg %p81
        $region86: #{_lambda_.5} parent=79 // pred_check_branch
          %630 = sbr.rel (%p628) target = $region88
        $region87: #{_lambda_.5} parent=79 // pred_region
          %p631 = scmp.lt.s32.totalorder %s35, 1
          %s632 = scalar_select %p631, %s35, 1
          %s633 = smul.addr %s632, 20
          %s634 = smul.addr %s633, 8
          %s635 = scalar_lea.vmem %s1, %s634
        $region88: #{_lambda_.5} parent=79 // pred_fallthru
          _
        // Predicated region
        $region89: #{_lambda_.5} parent=79 // pred_check
          %p636 = pneg %p107
        $region90: #{_lambda_.5} parent=79 // pred_check_branch
          %638 = sbr.rel (%p636) target = $region92
        $region91: #{_lambda_.5} parent=79 // pred_region
          %p639 = scmp.lt.s32.totalorder %s35, 1
          %s640 = scalar_select %p639, %s35, 1
          %s641 = smul.addr %s640, 54
          %s642 = smul.addr %s641, 8
          %s643 = scalar_lea.vmem %s2, %s642
        $region92: #{_lambda_.5} parent=79 // pred_fallthru
          _
      $region80: #{_lambda_.5} parent=5 // pred_fallthru
        _
      %p644 = scmp.le.s32.totalorder 1, %s35
      %p645 = scmp.lt.s32.totalorder %s35, 3
      %p646 = pnand %p644, %p645
      %p647 = pneg %p646
      // Predicated region
      $region93: #{_lambda_.5} parent=5 // pred_check
        _
      $region94: #{_lambda_.5} parent=5 // pred_check_branch
        %649 = sbr.rel (%p646) target = $region96
      $region95: #{_lambda_.5} parent=5 // pred_region
        %s650 = ssub.s32 %s35, 1
        %p651 = scmp.lt.s32.totalorder %s40, 1
        %s652 = scalar_select %p651, %s40, 1
        %s653 = smul.addr %s652, 6
        %s654 = smul.addr %s653, 8
        %s655 = scalar_lea.vmem %s0, %s654
        %p656 = pneg %p61
        %p657 = pneg %p58
        %p658 = scmp.lt.s32.totalorder %s40, 1
        %s659 = scalar_select %p658, %s40, 1
        %s660 = smul.addr %s659, 20
        %s661 = smul.addr %s660, 8
        %s662 = scalar_lea.vmem %s1, %s661
        %p663 = pneg %p87
        %p664 = pneg %p84
        %p665 = scmp.lt.s32.totalorder %s40, 1
        %s666 = scalar_select %p665, %s40, 1
        %s667 = smul.addr %s666, 54
        %s668 = smul.addr %s667, 8
        %s669 = scalar_lea.vmem %s2, %s668
        %p670 = pneg %p113
        %p671 = pneg %p110
        %p672 = pneg %p134
        %p673 = pneg %p131
        %p674 = pneg %p155
        %p675 = pneg %p152
        %p676 = pneg %p176
        %p677 = pneg %p173
        %p678 = pneg %p197
        %p679 = pneg %p194
        %p680 = pneg %p218
        %p681 = pneg %p215
        %p682 = pneg %p239
        %p683 = pneg %p236
        %p684 = pneg %p260
        %p685 = pneg %p257
        %p686 = pneg %p281
        %p687 = pneg %p278
        %p688 = pneg %p302
        %p689 = pneg %p299
        %p690 = pneg %p323
        %p691 = pneg %p320
        %p692 = pneg %p344
        %p693 = pneg %p341
        %p694 = pneg %p365
        %p695 = pneg %p362
        %p696 = pneg %p386
        %p697 = pneg %p383
        %p698 = pneg %p407
        %p699 = pneg %p404
        %p700 = pneg %p428
        %p701 = pneg %p425
        %p702 = pneg %p449
        %p703 = pneg %p446
        %p704 = pneg %p475
        %p705 = pneg %p472
        %s706 = sand.u32 %s462, 1
        %s707 = scalar_lea.sflag [#allocation7], %s706
        %s708 = sand.u32 %s462, 1
        %s709 = smul.addr %s708, 4
        %s710 = scalar_lea.vmem [#allocation6], %s709
        %p711 = pneg %p501
        %p712 = pneg %p498
        %s713 = sand.u32 %s40, 1
        %s714 = scalar_lea.sflag [#allocation9], %s713
        %s715 = sand.u32 %s488, 1
        %s716 = smul.addr %s715, 16
        %s717 = scalar_lea.vmem [#allocation8], %s716
        %p718 = pneg %p527
        %p719 = pneg %p524
        %s720 = sand.u32 %s40, 1
        %s721 = scalar_lea.sflag [#allocation9], %s720
        %s722 = sand.u32 %s514, 1
        %s723 = smul.addr %s722, 64
        %s724 = scalar_lea.vmem [#allocation10], %s723
        %p725 = pneg %p553
        %p726 = pneg %p550
        %p727 = scmp.lt.s32.totalorder %s40, 1
        %s728 = scalar_select %p727, %s40, 1
        %s729 = smul.addr %s728, 32
        %s730 = smul.addr %s729, 8
        %s731 = scalar_lea.vmem %s22, %s730
        %p732 = scmp.lt.s32.totalorder %s40, 1
        %s733 = scalar_select %p732, %s40, 1
        %s734 = smul.addr %s733, 6
        %s735 = smul.addr %s734, 8
        %s736 = scalar_lea.vmem %s0, %s735
        %p737 = scmp.lt.s32.totalorder %s40, 1
        %s738 = scalar_select %p737, %s40, 1
        %s739 = smul.addr %s738, 20
        %s740 = smul.addr %s739, 8
        %s741 = scalar_lea.vmem %s1, %s740
        %p742 = scmp.lt.s32.totalorder %s40, 1
        %s743 = scalar_select %p742, %s40, 1
        %s744 = smul.addr %s743, 54
        %s745 = smul.addr %s744, 8
        %s746 = scalar_lea.vmem %s2, %s745
        %p747 = scmp.lt.s32.totalorder %s40, 1
        %s748 = scalar_select %p747, %s40, 1
        %s749 = smul.addr %s748, 32
        %s750 = smul.addr %s749, 8
        %s751 = scalar_lea.vmem %s22, %s750
        %s753 = scalar_lea.vmem %s736, 8
        %v754 = vld [vmem:[%s753 + $0x1] sm:$0x3]
        %v755 = vld [vmem:[%s753 + $0x9] sm:$0x3]
        %v756 = vpack.c.bf16 %v754, %v754
        %v757 = vpack.c.bf16 %v755, %v755
        %vm758 = vcmask 122880
        %759 = vst.msk [vmem:[#allocation2] sm:$0x1] %vm758, %v756
        %760 = vst.msk [vmem:[#allocation2 + $0x2] sm:$0x1] %vm758, %v757
        %v761 = vld [vmem:[%s753 + $0x2] sm:$0x3]
        %v762 = vld [vmem:[%s753 + $0xa] sm:$0x3]
        %v763 = vpack.c.bf16 %v761, %v761
        %v764 = vpack.c.bf16 %v762, %v762
        %v767 = vrot.slane %v763, 3
        %v768 = vrot.slane %v764, 3
        %vm769 = vcmask 1040384
        %v772 = vsel %vm769, %v763, %v767
        %v776 = vsel %vm769, %v764, %v768
        %778 = vrot.lane.b32.xlu0 %v772, 16
        %v779 = vpop.permute.xlu0 %778
        %780 = vrot.lane.b32.xlu0 %v776, 16
        %v781 = vpop.permute.xlu0 %780
        %vm784 = vcmask 254080
        %785 = vst.msk [vmem:[#allocation2] sm:$0x1] %vm784, %v779
        %786 = vst.msk [vmem:[#allocation2 + $0x2] sm:$0x1] %vm784, %v781
        %v787 = vld [vmem:[%s753 + $0x3] sm:$0x3]
        %v788 = vld [vmem:[%s753 + $0xb] sm:$0x3]
        %v789 = vpack.c.bf16 %v787, %v787
        %v790 = vpack.c.bf16 %v788, %v788
        %v793 = vrot.slane %v789, 3
        %v794 = vrot.slane %v790, 3
        %v797 = vsel %vm769, %v789, %v793
        %v801 = vsel %vm769, %v790, %v794
        %803 = vrot.lane.b32.xlu0 %v797, 32
        %v804 = vpop.permute.xlu0 %803
        %805 = vrot.lane.b32.xlu0 %v801, 32
        %v806 = vpop.permute.xlu0 %805
        %vm809 = vcmask 385280
        %810 = vst.msk [vmem:[#allocation2] sm:$0x1] %vm809, %v804
        %811 = vst.msk [vmem:[#allocation2 + $0x2] sm:$0x1] %vm809, %v806
        %s812 = scalar_lea.vmem %s736, 16
        %v813 = vld [vmem:[%s812 + $0x1] sm:$0x3]
        %v814 = vld [vmem:[%s812 + $0x9] sm:$0x3]
        %v815 = vpack.c.bf16 %v813, %v813
        %v816 = vpack.c.bf16 %v814, %v814
        %v819 = vrot.slane %v815, 3
        %v820 = vrot.slane %v816, 3
        %v823 = vsel %vm769, %v815, %v819
        %v827 = vsel %vm769, %v816, %v820
        %829 = vrot.lane.b32.xlu0 %v823, 48
        %v830 = vpop.permute.xlu0 %829
        %831 = vrot.lane.b32.xlu0 %v827, 48
        %v832 = vpop.permute.xlu0 %831
        %vm835 = vcmask 516480
        %836 = vst.msk [vmem:[#allocation2] sm:$0x1] %vm835, %v830
        %837 = vst.msk [vmem:[#allocation2 + $0x2] sm:$0x1] %vm835, %v832
        %v838 = vld [vmem:[%s812 + $0x2] sm:$0x3]
        %v839 = vld [vmem:[%s812 + $0xa] sm:$0x3]
        %v840 = vpack.c.bf16 %v838, %v838
        %v841 = vpack.c.bf16 %v839, %v839
        %v844 = vrot.slane %v840, 3
        %v845 = vrot.slane %v841, 3
        %v848 = vsel %vm769, %v840, %v844
        %v852 = vsel %vm769, %v841, %v845
        %854 = vrot.lane.b32.xlu0 %v848, 64
        %v855 = vpop.permute.xlu0 %854
        %856 = vrot.lane.b32.xlu0 %v852, 64
        %v857 = vpop.permute.xlu0 %856
        %vm860 = vcmask 647680
        %861 = vst.msk [vmem:[#allocation2] sm:$0x1] %vm860, %v855
        %862 = vst.msk [vmem:[#allocation2 + $0x2] sm:$0x1] %vm860, %v857
        %v863 = vld [vmem:[%s812 + $0x3] sm:$0x3]
        %v864 = vld [vmem:[%s812 + $0xb] sm:$0x3]
        %v865 = vpack.c.bf16 %v863, %v863
        %v866 = vpack.c.bf16 %v864, %v864
        %v869 = vrot.slane %v865, 3
        %v870 = vrot.slane %v866, 3
        %v873 = vsel %vm769, %v865, %v869
        %v877 = vsel %vm769, %v866, %v870
        %879 = vrot.lane.b32.xlu0 %v873, 80
        %v880 = vpop.permute.xlu0 %879
        %881 = vrot.lane.b32.xlu0 %v877, 80
        %v882 = vpop.permute.xlu0 %881
        %vm885 = vcmask 778880
        %886 = vst.msk [vmem:[#allocation2] sm:$0x1] %vm885, %v880
        %887 = vst.msk [vmem:[#allocation2 + $0x2] sm:$0x1] %vm885, %v882
        %s888 = scalar_lea.vmem %s736, 24
        %v889 = vld [vmem:[%s888 + $0x1] sm:$0x3]
        %v890 = vld [vmem:[%s888 + $0x9] sm:$0x3]
        %v891 = vpack.c.bf16 %v889, %v889
        %v892 = vpack.c.bf16 %v890, %v890
        %v895 = vrot.slane %v891, 3
        %v896 = vrot.slane %v892, 3
        %v899 = vsel %vm769, %v891, %v895
        %v903 = vsel %vm769, %v892, %v896
        %905 = vrot.lane.b32.xlu0 %v899, 96
        %v906 = vpop.permute.xlu0 %905
        %907 = vrot.lane.b32.xlu0 %v903, 96
        %v908 = vpop.permute.xlu0 %907
        %vm911 = vcmask 910080
        %912 = vst.msk [vmem:[#allocation2] sm:$0x1] %vm911, %v906
        %913 = vst.msk [vmem:[#allocation2 + $0x2] sm:$0x1] %vm911, %v908
        %v914 = vld [vmem:[%s888 + $0x2] sm:$0x3]
        %v915 = vld [vmem:[%s888 + $0xa] sm:$0x3]
        %v916 = vpack.c.bf16 %v914, %v914
        %v917 = vpack.c.bf16 %v915, %v915
        %v920 = vrot.slane %v916, 3
        %v921 = vrot.slane %v917, 3
        %v924 = vsel %vm769, %v916, %v920
        %v928 = vsel %vm769, %v917, %v921
        %930 = vrot.lane.b32.xlu0 %v924, 112
        %v931 = vpop.permute.xlu0 %930
        %932 = vrot.lane.b32.xlu0 %v928, 112
        %v933 = vpop.permute.xlu0 %932
        %vm936 = vcmask 1041280
        %937 = vst.msk [vmem:[#allocation2] sm:$0x1] %vm936, %v931
        %938 = vst.msk [vmem:[#allocation2 + $0x2] sm:$0x1] %vm936, %v933
        %v939 = vld [vmem:[%s888 + $0x3] sm:$0x3]
        %v940 = vld [vmem:[%s888 + $0xb] sm:$0x3]
        %v941 = vpack.c.bf16 %v939, %v939
        %v942 = vpack.c.bf16 %v940, %v940
        %943 = vst.msk [vmem:[#allocation2 + $0x1] sm:$0x1] %vm758, %v941
        %944 = vst.msk [vmem:[#allocation2 + $0x3] sm:$0x1] %vm758, %v942
        %v945 = vld [vmem:[#allocation2] sm:$0x3]
        %v946 = vld [vmem:[#allocation2 + $0x2] sm:$0x3]
        %v947 = vld [vmem:[%s3] sm:$0xf]
        %v948 = vld [vmem:[%s3 + $0x4] sm:$0xf]
        %v949 = vld [vmem:[%s3 + $0x8] sm:$0xf]
        %v950 = vld [vmem:[%s3 + $0xc] sm:$0xf]
        %v951 = vld [vmem:[%s3 + $0x10] sm:$0xf]
        %v952 = vld [vmem:[%s3 + $0x14] sm:$0xf]
        %v953 = vld [vmem:[%s3 + $0x18] sm:$0xf]
        %v954 = vld [vmem:[%s3 + $0x1c] sm:$0xf]
        %v955 = vld [vmem:[%s3 + $0x20] sm:$0xf]
        %v956 = vld [vmem:[%s3 + $0x24] sm:$0xf]
        %v957 = vld [vmem:[%s3 + $0x28] sm:$0xf]
        %v958 = vld [vmem:[%s3 + $0x2c] sm:$0xf]
        %v959 = vld [vmem:[%s3 + $0x30] sm:$0xf]
        %v960 = vld [vmem:[%s3 + $0x34] sm:$0xf]
        %v961 = vld [vmem:[%s3 + $0x38] sm:$0xf]
        %v962 = vld [vmem:[%s3 + $0x3c] sm:$0xf]
        %v963 = vld [vmem:[%s3 + $0x40] sm:$0xf]
        %v964 = vld [vmem:[%s3 + $0x44] sm:$0xf]
        %v965 = vld [vmem:[%s4] sm:$0x1]
        %v967 = vperm.slane %v965, 0
        %970 = vst [vmem:[#allocation1] ss:$9 sm:$0xff] %v945
        %s972 = scalar_lea.vmem [#allocation1], 1
        %973 = vst [vmem:[%s972] ss:$9 sm:$0xff] %v946
        %v974 = vld [vmem:[#allocation1] sm:$0xff]
        %v975 = vld [vmem:[#allocation1 + $0x9] sm:$0xff]
        %v995 = vunpack.c.l.b16 %v947
        %v996 = vunpack.c.l.b16 %v948
        %v997 = vunpack.c.l.b16 %v949
        %v998 = vunpack.c.l.b16 %v950
        %v999 = vunpack.c.l.b16 %v951
        %v1000 = vunpack.c.l.b16 %v952
        %v1001 = vunpack.c.l.b16 %v953
        %v1002 = vunpack.c.l.b16 %v954
        %v1003 = vunpack.c.l.b16 %v955
        %v1004 = vunpack.c.l.b16 %v956
        %v1005 = vunpack.c.l.b16 %v957
        %v1006 = vunpack.c.l.b16 %v958
        %v1007 = vunpack.c.l.b16 %v959
        %v1008 = vunpack.c.l.b16 %v960
        %v1009 = vunpack.c.l.b16 %v961
        %v1010 = vunpack.c.l.b16 %v962
        %v1011 = vunpack.c.l.b16 %v963
        %v1012 = vunpack.c.l.b16 %v964
        %v1013 = vpack.c.b16 %v996, %v995
        %v1014 = vpack.c.b16 %v998, %v997
        %v1015 = vpack.c.b16 %v1000, %v999
        %v1016 = vpack.c.b16 %v1002, %v1001
        %v1017 = vpack.c.b16 %v1004, %v1003
        %v1018 = vpack.c.b16 %v1006, %v1005
        %v1019 = vpack.c.b16 %v1008, %v1007
        %v1020 = vpack.c.b16 %v1010, %v1009
        %v1021 = vpack.c.b16 %v1012, %v1011
        %vm1031 = vcmask 130048
        %v1032 = vsel %vm1031, %v975, 0
        %1034 = vmatpush.bf16.msra.mxu0 %v1020
        %1035 = vmatpush.bf16.msra.mxu0 %v1019
        %1036 = vmatpush.bf16.msra.mxu0 %v1018
        %1037 = vmatpush.bf16.msra.mxu0 %v1017
        %1038 = vmatpush.bf16.msra.mxu0 %v1016
        %1039 = vmatpush.bf16.msra.mxu0 %v1015
        %1040 = vmatpush.bf16.msra.mxu0 %v1014
        %1041 = vmatpush.bf16.msra.mxu0 %v1013
        %1042 = vmatmul.bf16.gmra.mxu0 %v974
        %v1043 = vpop.f32.mrf.mxu0
        %v1044 = vadd.f32 %v967, %v1043
        %v1045 = vpop.f32.mrf.mxu0
        %1046 = vdwg.mxu0
        %1047 = vmatpush.bf16.msra.mxu0 0
        %1048 = vmatpush.bf16.msra.mxu0 0
        %1049 = vmatpush.bf16.msra.mxu0 0
        %1050 = vmatpush.bf16.msra.mxu0 0
        %1051 = vmatpush.bf16.msra.mxu0 0
        %1052 = vmatpush.bf16.msra.mxu0 0
        %1053 = vmatpush.bf16.msra.mxu0 0
        %1054 = vmatpush.bf16.msra.mxu0 %v1021
        %1055 = vmatmul.bf16.gmra.mxu0 %v1032
        %v1056 = vpop.f32.mrf.mxu0
        %v1057 = vadd.f32 %v1044, %v1056
        %v1058 = vpop.f32.mrf.mxu0
        %1059 = vdwg.mxu0
        %v1060 = vmax.f32 %v1057, 0.0
        %v1061 = vpack.c.bf16 %v1060, %v1060
        %v1062 = vld [vmem:[%s5] sm:$0xf]
        %v1063 = vld [vmem:[%s5 + $0x4] sm:$0xf]
        %v1064 = vld [vmem:[%s6] sm:$0x1]
        %v1066 = vperm.slane %v1064, 0
        %v1070 = vunpack.c.l.b16 %v1062
        %v1071 = vunpack.c.l.b16 %v1063
        %v1072 = vpack.c.b16 %v1071, %v1070
        %v1075 = vsel %vm1031, %v1061, 0
        %1077 = vmatpush.bf16.msra.mxu0 0
        %1078 = vmatpush.bf16.msra.mxu0 0
        %1079 = vmatpush.bf16.msra.mxu0 0
        %1080 = vmatpush.bf16.msra.mxu0 0
        %1081 = vmatpush.bf16.msra.mxu0 0
        %1082 = vmatpush.bf16.msra.mxu0 0
        %1083 = vmatpush.bf16.msra.mxu0 0
        %1084 = vmatpush.bf16.msra.mxu0 %v1072
        %1085 = vmatmul.bf16.gmra.mxu0 %v1075
        %v1086 = vpop.f32.mrf.mxu0
        %v1087 = vadd.f32 %v1066, %v1086
        %v1088 = vpop.f32.mrf.mxu0
        %1089 = vdwg.mxu0
        %v1090 = vmax.f32 %v1087, 0.0
        %vm1091 = vcmask 125952
        %1092 = vst.msk [vmem:[%s710] sm:$0xf] %vm1091, %v1090
        %v1093 = vld [vmem:[%s736] sm:$0xf]
        %v1094 = vld [vmem:[%s736 + $0x8] sm:$0xf]
        %v1095 = vld [vmem:[%s736 + $0x10] sm:$0xf]
        %v1096 = vld [vmem:[%s736 + $0x18] sm:$0xf]
        %v1097 = vpack.c.bf16 %v1093, %v1093
        %v1098 = vpack.c.bf16 %v1094, %v1094
        %v1099 = vpack.c.bf16 %v1095, %v1095
        %v1100 = vpack.c.bf16 %v1096, %v1096
        %vm1101 = vcmask 123904
        %1102 = vst.msk [vmem:[#allocation3] sm:$0x3] %vm1101, %v1097
        %1103 = vst.msk [vmem:[#allocation3 + $0x4] sm:$0x3] %vm1101, %v1098
        %1104 = vst.msk [vmem:[#allocation3 + $0x8] sm:$0x3] %vm1101, %v1099
        %1105 = vst.msk [vmem:[#allocation3 + $0xc] sm:$0x3] %vm1101, %v1100
        %v1106 = vld [vmem:[%s736 + $0x1] sm:$0xf]
        %v1107 = vld [vmem:[%s736 + $0x9] sm:$0xf]
        %v1108 = vld [vmem:[%s736 + $0x11] sm:$0xf]
        %v1109 = vld [vmem:[%s736 + $0x19] sm:$0xf]
        %v1110 = vpack.c.bf16 %v1106, %v1106
        %v1111 = vpack.c.bf16 %v1107, %v1107
        %v1112 = vpack.c.bf16 %v1108, %v1108
        %v1113 = vpack.c.bf16 %v1109, %v1109
        %v1118 = vrot.slane %v1110, 2
        %v1119 = vrot.slane %v1111, 2
        %v1120 = vrot.slane %v1112, 2
        %v1121 = vrot.slane %v1113, 2
        %vm1122 = vcmask 1041408
        %v1125 = vsel %vm1122, %v1110, %v1118
        %v1129 = vsel %vm1122, %v1111, %v1119
        %v1133 = vsel %vm1122, %v1112, %v1120
        %v1137 = vsel %vm1122, %v1113, %v1121
        %1139 = vrot.lane.b32.xlu0 %v1125, 16
        %v1140 = vpop.permute.xlu0 %1139
        %1141 = vrot.lane.b32.xlu0 %v1129, 16
        %v1142 = vpop.permute.xlu0 %1141
        %1143 = vrot.lane.b32.xlu0 %v1133, 16
        %v1144 = vpop.permute.xlu0 %1143
        %1145 = vrot.lane.b32.xlu0 %v1137, 16
        %v1146 = vpop.permute.xlu0 %1145
        %vm1151 = vcmask 255104
        %1152 = vst.msk [vmem:[#allocation3] sm:$0x3] %vm1151, %v1140
        %1153 = vst.msk [vmem:[#allocation3 + $0x4] sm:$0x3] %vm1151, %v1142
        %1154 = vst.msk [vmem:[#allocation3 + $0x8] sm:$0x3] %vm1151, %v1144
        %1155 = vst.msk [vmem:[#allocation3 + $0xc] sm:$0x3] %vm1151, %v1146
        %v1156 = vld [vmem:[%s736 + $0x2] sm:$0xf]
        %v1157 = vld [vmem:[%s736 + $0xa] sm:$0xf]
        %v1158 = vld [vmem:[%s736 + $0x12] sm:$0xf]
        %v1159 = vld [vmem:[%s736 + $0x1a] sm:$0xf]
        %v1160 = vpack.c.bf16 %v1156, %v1156
        %v1161 = vpack.c.bf16 %v1157, %v1157
        %v1162 = vpack.c.bf16 %v1158, %v1158
        %v1163 = vpack.c.bf16 %v1159, %v1159
        %v1168 = vrot.slane %v1160, 2
        %v1169 = vrot.slane %v1161, 2
        %v1170 = vrot.slane %v1162, 2
        %v1171 = vrot.slane %v1163, 2
        %v1174 = vsel %vm1122, %v1160, %v1168
        %v1178 = vsel %vm1122, %v1161, %v1169
        %v1182 = vsel %vm1122, %v1162, %v1170
        %v1186 = vsel %vm1122, %v1163, %v1171
        %1188 = vrot.lane.b32.xlu0 %v1174, 32
        %v1189 = vpop.permute.xlu0 %1188
        %1190 = vrot.lane.b32.xlu0 %v1178, 32
        %v1191 = vpop.permute.xlu0 %1190
        %1192 = vrot.lane.b32.xlu0 %v1182, 32
        %v1193 = vpop.permute.xlu0 %1192
        %1194 = vrot.lane.b32.xlu0 %v1186, 32
        %v1195 = vpop.permute.xlu0 %1194
        %vm1200 = vcmask 386304
        %1201 = vst.msk [vmem:[#allocation3] sm:$0x3] %vm1200, %v1189
        %1202 = vst.msk [vmem:[#allocation3 + $0x4] sm:$0x3] %vm1200, %v1191
        %1203 = vst.msk [vmem:[#allocation3 + $0x8] sm:$0x3] %vm1200, %v1193
        %1204 = vst.msk [vmem:[#allocation3 + $0xc] sm:$0x3] %vm1200, %v1195
        %v1205 = vld [vmem:[%s753] sm:$0xf]
        %v1206 = vld [vmem:[%s753 + $0x8] sm:$0xf]
        %v1207 = vld [vmem:[%s753 + $0x10] sm:$0xf]
        %v1208 = vld [vmem:[%s753 + $0x18] sm:$0xf]
        %v1209 = vpack.c.bf16 %v1205, %v1205
        %v1210 = vpack.c.bf16 %v1206, %v1206
        %v1211 = vpack.c.bf16 %v1207, %v1207
        %v1212 = vpack.c.bf16 %v1208, %v1208
        %v1217 = vrot.slane %v1209, 2
        %v1218 = vrot.slane %v1210, 2
        %v1219 = vrot.slane %v1211, 2
        %v1220 = vrot.slane %v1212, 2
        %v1223 = vsel %vm1122, %v1209, %v1217
        %v1227 = vsel %vm1122, %v1210, %v1218
        %v1231 = vsel %vm1122, %v1211, %v1219
        %v1235 = vsel %vm1122, %v1212, %v1220
        %1237 = vrot.lane.b32.xlu0 %v1223, 48
        %v1238 = vpop.permute.xlu0 %1237
        %1239 = vrot.lane.b32.xlu0 %v1227, 48
        %v1240 = vpop.permute.xlu0 %1239
        %1241 = vrot.lane.b32.xlu0 %v1231, 48
        %v1242 = vpop.permute.xlu0 %1241
        %1243 = vrot.lane.b32.xlu0 %v1235, 48
        %v1244 = vpop.permute.xlu0 %1243
        %vm1249 = vcmask 517504
        %1250 = vst.msk [vmem:[#allocation3] sm:$0x3] %vm1249, %v1238
        %1251 = vst.msk [vmem:[#allocation3 + $0x4] sm:$0x3] %vm1249, %v1240
        %1252 = vst.msk [vmem:[#allocation3 + $0x8] sm:$0x3] %vm1249, %v1242
        %1253 = vst.msk [vmem:[#allocation3 + $0xc] sm:$0x3] %vm1249, %v1244
        %v1254 = vld [vmem:[%s753 + $0x1] sm:$0xf]
        %v1255 = vld [vmem:[%s753 + $0x9] sm:$0xf]
        %v1256 = vld [vmem:[%s753 + $0x11] sm:$0xf]
        %v1257 = vld [vmem:[%s753 + $0x19] sm:$0xf]
        %v1258 = vpack.c.bf16 %v1254, %v1254
        %v1259 = vpack.c.bf16 %v1255, %v1255
        %v1260 = vpack.c.bf16 %v1256, %v1256
        %v1261 = vpack.c.bf16 %v1257, %v1257
        %v1266 = vrot.slane %v1258, 2
        %v1267 = vrot.slane %v1259, 2
        %v1268 = vrot.slane %v1260, 2
        %v1269 = vrot.slane %v1261, 2
        %v1272 = vsel %vm1122, %v1258, %v1266
        %v1276 = vsel %vm1122, %v1259, %v1267
        %v1280 = vsel %vm1122, %v1260, %v1268
        %v1284 = vsel %vm1122, %v1261, %v1269
        %1286 = vrot.lane.b32.xlu0 %v1272, 64
        %v1287 = vpop.permute.xlu0 %1286
        %1288 = vrot.lane.b32.xlu0 %v1276, 64
        %v1289 = vpop.permute.xlu0 %1288
        %1290 = vrot.lane.b32.xlu0 %v1280, 64
        %v1291 = vpop.permute.xlu0 %1290
        %1292 = vrot.lane.b32.xlu0 %v1284, 64
        %v1293 = vpop.permute.xlu0 %1292
        %vm1298 = vcmask 648704
        %1299 = vst.msk [vmem:[#allocation3] sm:$0x3] %vm1298, %v1287
        %1300 = vst.msk [vmem:[#allocation3 + $0x4] sm:$0x3] %vm1298, %v1289
        %1301 = vst.msk [vmem:[#allocation3 + $0x8] sm:$0x3] %vm1298, %v1291
        %1302 = vst.msk [vmem:[#allocation3 + $0xc] sm:$0x3] %vm1298, %v1293
        %v1303 = vld [vmem:[%s753 + $0x2] sm:$0xf]
        %v1304 = vld [vmem:[%s753 + $0xa] sm:$0xf]
        %v1305 = vld [vmem:[%s753 + $0x12] sm:$0xf]
        %v1306 = vld [vmem:[%s753 + $0x1a] sm:$0xf]
        %v1307 = vpack.c.bf16 %v1303, %v1303
        %v1308 = vpack.c.bf16 %v1304, %v1304
        %v1309 = vpack.c.bf16 %v1305, %v1305
        %v1310 = vpack.c.bf16 %v1306, %v1306
        %v1315 = vrot.slane %v1307, 2
        %v1316 = vrot.slane %v1308, 2
        %v1317 = vrot.slane %v1309, 2
        %v1318 = vrot.slane %v1310, 2
        %v1321 = vsel %vm1122, %v1307, %v1315
        %v1325 = vsel %vm1122, %v1308, %v1316
        %v1329 = vsel %vm1122, %v1309, %v1317
        %v1333 = vsel %vm1122, %v1310, %v1318
        %1335 = vrot.lane.b32.xlu0 %v1321, 80
        %v1336 = vpop.permute.xlu0 %1335
        %1337 = vrot.lane.b32.xlu0 %v1325, 80
        %v1338 = vpop.permute.xlu0 %1337
        %1339 = vrot.lane.b32.xlu0 %v1329, 80
        %v1340 = vpop.permute.xlu0 %1339
        %1341 = vrot.lane.b32.xlu0 %v1333, 80
        %v1342 = vpop.permute.xlu0 %1341
        %vm1347 = vcmask 779904
        %1348 = vst.msk [vmem:[#allocation3] sm:$0x3] %vm1347, %v1336
        %1349 = vst.msk [vmem:[#allocation3 + $0x4] sm:$0x3] %vm1347, %v1338
        %1350 = vst.msk [vmem:[#allocation3 + $0x8] sm:$0x3] %vm1347, %v1340
        %1351 = vst.msk [vmem:[#allocation3 + $0xc] sm:$0x3] %vm1347, %v1342
        %v1352 = vld [vmem:[%s812] sm:$0xf]
        %v1353 = vld [vmem:[%s812 + $0x8] sm:$0xf]
        %v1354 = vld [vmem:[%s812 + $0x10] sm:$0xf]
        %v1355 = vld [vmem:[%s812 + $0x18] sm:$0xf]
        %v1356 = vpack.c.bf16 %v1352, %v1352
        %v1357 = vpack.c.bf16 %v1353, %v1353
        %v1358 = vpack.c.bf16 %v1354, %v1354
        %v1359 = vpack.c.bf16 %v1355, %v1355
        %v1364 = vrot.slane %v1356, 2
        %v1365 = vrot.slane %v1357, 2
        %v1366 = vrot.slane %v1358, 2
        %v1367 = vrot.slane %v1359, 2
        %v1370 = vsel %vm1122, %v1356, %v1364
        %v1374 = vsel %vm1122, %v1357, %v1365
        %v1378 = vsel %vm1122, %v1358, %v1366
        %v1382 = vsel %vm1122, %v1359, %v1367
        %1384 = vrot.lane.b32.xlu0 %v1370, 96
        %v1385 = vpop.permute.xlu0 %1384
        %1386 = vrot.lane.b32.xlu0 %v1374, 96
        %v1387 = vpop.permute.xlu0 %1386
        %1388 = vrot.lane.b32.xlu0 %v1378, 96
        %v1389 = vpop.permute.xlu0 %1388
        %1390 = vrot.lane.b32.xlu0 %v1382, 96
        %v1391 = vpop.permute.xlu0 %1390
        %vm1396 = vcmask 911104
        %1397 = vst.msk [vmem:[#allocation3] sm:$0x3] %vm1396, %v1385
        %1398 = vst.msk [vmem:[#allocation3 + $0x4] sm:$0x3] %vm1396, %v1387
        %1399 = vst.msk [vmem:[#allocation3 + $0x8] sm:$0x3] %vm1396, %v1389
        %1400 = vst.msk [vmem:[#allocation3 + $0xc] sm:$0x3] %vm1396, %v1391
        %v1401 = vld [vmem:[%s812 + $0x1] sm:$0xf]
        %v1402 = vld [vmem:[%s812 + $0x9] sm:$0xf]
        %v1403 = vld [vmem:[%s812 + $0x11] sm:$0xf]
        %v1404 = vld [vmem:[%s812 + $0x19] sm:$0xf]
        %v1405 = vpack.c.bf16 %v1401, %v1401
        %v1406 = vpack.c.bf16 %v1402, %v1402
        %v1407 = vpack.c.bf16 %v1403, %v1403
        %v1408 = vpack.c.bf16 %v1404, %v1404
        %v1413 = vrot.slane %v1405, 2
        %v1414 = vrot.slane %v1406, 2
        %v1415 = vrot.slane %v1407, 2
        %v1416 = vrot.slane %v1408, 2
        %v1419 = vsel %vm1122, %v1405, %v1413
        %v1423 = vsel %vm1122, %v1406, %v1414
        %v1427 = vsel %vm1122, %v1407, %v1415
        %v1431 = vsel %vm1122, %v1408, %v1416
        %1433 = vrot.lane.b32.xlu0 %v1419, 112
        %v1434 = vpop.permute.xlu0 %1433
        %1435 = vrot.lane.b32.xlu0 %v1423, 112
        %v1436 = vpop.permute.xlu0 %1435
        %1437 = vrot.lane.b32.xlu0 %v1427, 112
        %v1438 = vpop.permute.xlu0 %1437
        %1439 = vrot.lane.b32.xlu0 %v1431, 112
        %v1440 = vpop.permute.xlu0 %1439
        %vm1445 = vcmask 1042304
        %1446 = vst.msk [vmem:[#allocation3] sm:$0x3] %vm1445, %v1434
        %1447 = vst.msk [vmem:[#allocation3 + $0x4] sm:$0x3] %vm1445, %v1436
        %1448 = vst.msk [vmem:[#allocation3 + $0x8] sm:$0x3] %vm1445, %v1438
        %1449 = vst.msk [vmem:[#allocation3 + $0xc] sm:$0x3] %vm1445, %v1440
        %v1450 = vld [vmem:[%s812 + $0x2] sm:$0xf]
        %v1451 = vld [vmem:[%s812 + $0xa] sm:$0xf]
        %v1452 = vld [vmem:[%s812 + $0x12] sm:$0xf]
        %v1453 = vld [vmem:[%s812 + $0x1a] sm:$0xf]
        %v1454 = vpack.c.bf16 %v1450, %v1450
        %v1455 = vpack.c.bf16 %v1451, %v1451
        %v1456 = vpack.c.bf16 %v1452, %v1452
        %v1457 = vpack.c.bf16 %v1453, %v1453
        %1458 = vst.msk [vmem:[#allocation3 + $0x2] sm:$0x3] %vm1101, %v1454
        %1459 = vst.msk [vmem:[#allocation3 + $0x6] sm:$0x3] %vm1101, %v1455
        %1460 = vst.msk [vmem:[#allocation3 + $0xa] sm:$0x3] %vm1101, %v1456
        %1461 = vst.msk [vmem:[#allocation3 + $0xe] sm:$0x3] %vm1101, %v1457
        %v1462 = vld [vmem:[#allocation3] sm:$0xf]
        %v1463 = vld [vmem:[#allocation3 + $0x4] sm:$0xf]
        %v1464 = vld [vmem:[#allocation3 + $0x8] sm:$0xf]
        %v1465 = vld [vmem:[#allocation3 + $0xc] sm:$0xf]
        %v1466 = vld [vmem:[%s7] sm:$0xf]
        %v1467 = vld [vmem:[%s7 + $0x4] sm:$0xf]
        %v1468 = vld [vmem:[%s7 + $0x8] sm:$0xf]
        %v1469 = vld [vmem:[%s7 + $0xc] sm:$0xf]
        %v1470 = vld [vmem:[%s7 + $0x10] sm:$0xf]
        %v1471 = vld [vmem:[%s7 + $0x14] sm:$0xf]
        %v1472 = vld [vmem:[%s7 + $0x18] sm:$0xf]
        %v1473 = vld [vmem:[%s7 + $0x1c] sm:$0xf]
        %v1474 = vld [vmem:[%s7 + $0x20] sm:$0xf]
        %v1475 = vld [vmem:[%s7 + $0x24] sm:$0xf]
        %v1476 = vld [vmem:[%s7 + $0x28] sm:$0xf]
        %v1477 = vld [vmem:[%s7 + $0x2c] sm:$0xf]
        %v1478 = vld [vmem:[%s7 + $0x30] sm:$0xf]
        %v1479 = vld [vmem:[%s7 + $0x34] sm:$0xf]
        %v1480 = vld [vmem:[%s7 + $0x38] sm:$0xf]
        %v1481 = vld [vmem:[%s7 + $0x3c] sm:$0xf]
        %v1482 = vld [vmem:[%s7 + $0x40] sm:$0xf]
        %v1483 = vld [vmem:[%s7 + $0x44] sm:$0xf]
        %v1484 = vld [vmem:[%s8] sm:$0x1]
        %v1486 = vperm.slane %v1484, 0
        %1489 = vst [vmem:[#allocation1] ss:$4 sm:$0xff] %v1462
        %s1491 = scalar_lea.vmem [#allocation1], 1
        %1492 = vst [vmem:[%s1491] ss:$4 sm:$0xff] %v1463
        %s1494 = scalar_lea.vmem [#allocation1], 2
        %1495 = vst [vmem:[%s1494] ss:$4 sm:$0xff] %v1464
        %s1497 = scalar_lea.vmem [#allocation1], 3
        %1498 = vst [vmem:[%s1497] ss:$4 sm:$0xff] %v1465
        %v1499 = vld.sshfl [vmem:[#allocation1] sm:$0xff pattern:$0x73625140]
        %v1500 = vld.sshfl [vmem:[#allocation1 + $0x8] sm:$0xff pattern:$0x73625140]
        %v1520 = vunpack.c.l.b16 %v1466
        %v1521 = vunpack.c.l.b16 %v1467
        %v1522 = vunpack.c.l.b16 %v1468
        %v1523 = vunpack.c.l.b16 %v1469
        %v1524 = vunpack.c.l.b16 %v1470
        %v1525 = vunpack.c.l.b16 %v1471
        %v1526 = vunpack.c.l.b16 %v1472
        %v1527 = vunpack.c.l.b16 %v1473
        %v1528 = vunpack.c.l.b16 %v1474
        %v1529 = vunpack.c.l.b16 %v1475
        %v1530 = vunpack.c.l.b16 %v1476
        %v1531 = vunpack.c.l.b16 %v1477
        %v1532 = vunpack.c.l.b16 %v1478
        %v1533 = vunpack.c.l.b16 %v1479
        %v1534 = vunpack.c.l.b16 %v1480
        %v1535 = vunpack.c.l.b16 %v1481
        %v1536 = vunpack.c.l.b16 %v1482
        %v1537 = vunpack.c.l.b16 %v1483
        %v1538 = vpack.c.b16 %v1521, %v1520
        %v1539 = vpack.c.b16 %v1523, %v1522
        %v1540 = vpack.c.b16 %v1525, %v1524
        %v1541 = vpack.c.b16 %v1527, %v1526
        %v1542 = vpack.c.b16 %v1529, %v1528
        %v1543 = vpack.c.b16 %v1531, %v1530
        %v1544 = vpack.c.b16 %v1533, %v1532
        %v1545 = vpack.c.b16 %v1535, %v1534
        %v1546 = vpack.c.b16 %v1537, %v1536
        %v1556 = vsel %vm1031, %v1500, 0
        %1558 = vmatpush.bf16.msra.mxu0 %v1545
        %1559 = vmatpush.bf16.msra.mxu0 %v1544
        %1560 = vmatpush.bf16.msra.mxu0 %v1543
        %1561 = vmatpush.bf16.msra.mxu0 %v1542
        %1562 = vmatpush.bf16.msra.mxu0 %v1541
        %1563 = vmatpush.bf16.msra.mxu0 %v1540
        %1564 = vmatpush.bf16.msra.mxu0 %v1539
        %1565 = vmatpush.bf16.msra.mxu0 %v1538
        %1566 = vmatmul.bf16.gmra.mxu0 %v1499
        %v1567 = vpop.f32.mrf.mxu0
        %v1568 = vadd.f32 %v1486, %v1567
        %v1569 = vpop.f32.mrf.mxu0
        %v1570 = vadd.f32 %v1486, %v1569
        %1571 = vdwg.mxu0
        %1572 = vmatpush.bf16.msra.mxu0 0
        %1573 = vmatpush.bf16.msra.mxu0 0
        %1574 = vmatpush.bf16.msra.mxu0 0
        %1575 = vmatpush.bf16.msra.mxu0 0
        %1576 = vmatpush.bf16.msra.mxu0 0
        %1577 = vmatpush.bf16.msra.mxu0 0
        %1578 = vmatpush.bf16.msra.mxu0 0
        %1579 = vmatpush.bf16.msra.mxu0 %v1546
        %1580 = vmatmul.bf16.gmra.mxu0 %v1556
        %v1581 = vpop.f32.mrf.mxu0
        %v1582 = vadd.f32 %v1568, %v1581
        %v1583 = vpop.f32.mrf.mxu0
        %v1584 = vadd.f32 %v1570, %v1583
        %1585 = vdwg.mxu0
        %v1586 = vmax.f32 %v1582, 0.0
        %v1587 = vmax.f32 %v1584, 0.0
        %v1589 = vrot.slane %v1090, 2
        %v1590 = vrot.slane %v1090, 1
        %v1591 = vrot.slane %v1090, 3
        %v1592 = vrot.slane %v1589, 1
        %v1593 = vrot.slane %v1589, 2
        %v1594 = vrot.slane %v1589, 3
        %v1595 = vsel %vm769, %v1090, %v1590
        %vm1596 = vcmask 1042434
        %v1597 = vsel %vm1596, %v1589, %v1591
        %v1598 = vsel %vm1122, %v1595, %v1597
        %vm1599 = vcmask 1041409
        %v1600 = vsel %vm1599, %v1090, %v1590
        %vm1601 = vcmask 1043459
        %v1602 = vsel %vm1601, %v1589, %v1591
        %vm1603 = vcmask 1042433
        %v1604 = vsel %vm1603, %v1600, %v1602
        %v1605 = vrot.slane %v1604, 1
        %v1606 = vsel %vm769, %v1589, %v1592
        %v1607 = vsel %vm1596, %v1593, %v1594
        %v1608 = vsel %vm1122, %v1606, %v1607
        %v1609 = vsel %vm1599, %v1589, %v1592
        %v1610 = vsel %vm1601, %v1593, %v1594
        %v1611 = vsel %vm1603, %v1609, %v1610
        %v1612 = vrot.slane %v1611, 1
        %v1613 = vperm.slane %v1598, 0
        %v1614 = vperm.slane %v1605, 0
        %v1615 = vperm.slane %v1608, 0
        %v1616 = vperm.slane %v1612, 0
        %1617 = vst [vmem:[#allocation1] ss:$4 sm:$0xff] %v1613
        %s1618 = scalar_lea.vmem [#allocation1], 1
        %1619 = vst [vmem:[%s1618] ss:$4 sm:$0xff] %v1614
        %s1620 = scalar_lea.vmem [#allocation1], 2
        %1621 = vst [vmem:[%s1620] ss:$4 sm:$0xff] %v1613
        %s1622 = scalar_lea.vmem [#allocation1], 3
        %1623 = vst [vmem:[%s1622] ss:$4 sm:$0xff] %v1614
        %s1624 = scalar_lea.vmem [#allocation1], 32
        %1625 = vst [vmem:[%s1624] ss:$4 sm:$0xff] %v1615
        %s1626 = scalar_lea.vmem [#allocation1], 33
        %1627 = vst [vmem:[%s1626] ss:$4 sm:$0xff] %v1616
        %s1628 = scalar_lea.vmem [#allocation1], 34
        %1629 = vst [vmem:[%s1628] ss:$4 sm:$0xff] %v1615
        %s1630 = scalar_lea.vmem [#allocation1], 35
        %1631 = vst [vmem:[%s1630] ss:$4 sm:$0xff] %v1616
        %v1632 = vld.sshfl [vmem:[#allocation1] sm:$0xff pattern:$0x73625140]
        %v1633 = vld.sshfl [vmem:[#allocation1 + $0x20] sm:$0xff pattern:$0x73625140]
        %v1636 = vadd.f32 %v1586, %v1632
        %v1637 = vadd.f32 %v1587, %v1633
        %v1638 = vpack.c.bf16 %v1637, %v1636
        %v1639 = vld [vmem:[%s13] sm:$0xf]
        %v1640 = vld [vmem:[%s13 + $0x4] sm:$0xf]
        %v1641 = vld [vmem:[%s14] sm:$0x1]
        %v1643 = vperm.slane %v1641, 0
        %v1647 = vunpack.c.l.b16 %v1639
        %v1648 = vunpack.c.l.b16 %v1640
        %v1649 = vpack.c.b16 %v1648, %v1647
        %v1652 = vsel %vm1031, %v1638, 0
        %1654 = vmatpush.bf16.msra.mxu0 0
        %1655 = vmatpush.bf16.msra.mxu0 0
        %1656 = vmatpush.bf16.msra.mxu0 0
        %1657 = vmatpush.bf16.msra.mxu0 0
        %1658 = vmatpush.bf16.msra.mxu0 0
        %1659 = vmatpush.bf16.msra.mxu0 0
        %1660 = vmatpush.bf16.msra.mxu0 0
        %1661 = vmatpush.bf16.msra.mxu0 %v1649
        %1662 = vmatmul.bf16.gmra.mxu0 %v1652
        %v1663 = vpop.f32.mrf.mxu0
        %v1664 = vadd.f32 %v1643, %v1663
        %v1665 = vpop.f32.mrf.mxu0
        %v1666 = vadd.f32 %v1643, %v1665
        %1667 = vdwg.mxu0
        %v1668 = vmax.f32 %v1664, 0.0
        %v1669 = vmax.f32 %v1666, 0.0
        %1670 = vst.msk [vmem:[%s717] sm:$0xff] %vm1031, %v1668
        %1671 = vst.msk [vmem:[%s717 + $0x8] sm:$0xff] %vm1031, %v1669
        %v1672 = vld [vmem:[%s741] sm:$0xff]
        %v1673 = vld [vmem:[%s741 + $0x10] sm:$0xff]
        %v1674 = vld [vmem:[%s741 + $0x20] sm:$0xff]
        %v1675 = vld [vmem:[%s741 + $0x30] sm:$0xff]
        %v1676 = vld [vmem:[%s741 + $0x40] sm:$0xff]
        %v1677 = vld [vmem:[%s741 + $0x50] sm:$0xff]
        %v1678 = vld [vmem:[%s741 + $0x60] sm:$0xff]
        %v1679 = vld [vmem:[%s741 + $0x70] sm:$0xff]
        %v1680 = vpack.c.bf16 %v1672, %v1672
        %v1681 = vpack.c.bf16 %v1673, %v1673
        %v1682 = vpack.c.bf16 %v1674, %v1674
        %v1683 = vpack.c.bf16 %v1675, %v1675
        %v1684 = vpack.c.bf16 %v1676, %v1676
        %v1685 = vpack.c.bf16 %v1677, %v1677
        %v1686 = vpack.c.bf16 %v1678, %v1678
        %v1687 = vpack.c.bf16 %v1679, %v1679
        %1688 = vst.msk [vmem:[#allocation4] sm:$0xf] %vm1091, %v1680
        %1689 = vst.msk [vmem:[#allocation4 + $0x8] sm:$0xf] %vm1091, %v1681
        %1690 = vst.msk [vmem:[#allocation4 + $0x10] sm:$0xf] %vm1091, %v1682
        %1691 = vst.msk [vmem:[#allocation4 + $0x18] sm:$0xf] %vm1091, %v1683
        %1692 = vst.msk [vmem:[#allocation4 + $0x20] sm:$0xf] %vm1091, %v1684
        %1693 = vst.msk [vmem:[#allocation4 + $0x28] sm:$0xf] %vm1091, %v1685
        %1694 = vst.msk [vmem:[#allocation4 + $0x30] sm:$0xf] %vm1091, %v1686
        %1695 = vst.msk [vmem:[#allocation4 + $0x38] sm:$0xf] %vm1091, %v1687
        %v1696 = vld [vmem:[%s741 + $0x1] sm:$0xff]
        %v1697 = vld [vmem:[%s741 + $0x11] sm:$0xff]
        %v1698 = vld [vmem:[%s741 + $0x21] sm:$0xff]
        %v1699 = vld [vmem:[%s741 + $0x31] sm:$0xff]
        %v1700 = vld [vmem:[%s741 + $0x41] sm:$0xff]
        %v1701 = vld [vmem:[%s741 + $0x51] sm:$0xff]
        %v1702 = vld [vmem:[%s741 + $0x61] sm:$0xff]
        %v1703 = vld [vmem:[%s741 + $0x71] sm:$0xff]
        %v1704 = vpack.c.bf16 %v1696, %v1696
        %v1705 = vpack.c.bf16 %v1697, %v1697
        %v1706 = vpack.c.bf16 %v1698, %v1698
        %v1707 = vpack.c.bf16 %v1699, %v1699
        %v1708 = vpack.c.bf16 %v1700, %v1700
        %v1709 = vpack.c.bf16 %v1701, %v1701
        %v1710 = vpack.c.bf16 %v1702, %v1702
        %v1711 = vpack.c.bf16 %v1703, %v1703
        %1720 = vrot.lane.b32.xlu0 %v1704, 16
        %v1721 = vpop.permute.xlu0 %1720
        %1722 = vrot.lane.b32.xlu0 %v1705, 16
        %v1723 = vpop.permute.xlu0 %1722
        %1724 = vrot.lane.b32.xlu0 %v1706, 16
        %v1725 = vpop.permute.xlu0 %1724
        %1726 = vrot.lane.b32.xlu0 %v1707, 16
        %v1727 = vpop.permute.xlu0 %1726
        %1728 = vrot.lane.b32.xlu0 %v1708, 16
        %v1729 = vpop.permute.xlu0 %1728
        %1730 = vrot.lane.b32.xlu0 %v1709, 16
        %v1731 = vpop.permute.xlu0 %1730
        %1732 = vrot.lane.b32.xlu0 %v1710, 16
        %v1733 = vpop.permute.xlu0 %1732
        %1734 = vrot.lane.b32.xlu0 %v1711, 16
        %v1735 = vpop.permute.xlu0 %1734
        %vm1744 = vcmask 257152
        %1745 = vst.msk [vmem:[#allocation4] sm:$0xf] %vm1744, %v1721
        %1746 = vst.msk [vmem:[#allocation4 + $0x8] sm:$0xf] %vm1744, %v1723
        %1747 = vst.msk [vmem:[#allocation4 + $0x10] sm:$0xf] %vm1744, %v1725
        %1748 = vst.msk [vmem:[#allocation4 + $0x18] sm:$0xf] %vm1744, %v1727
        %1749 = vst.msk [vmem:[#allocation4 + $0x20] sm:$0xf] %vm1744, %v1729
        %1750 = vst.msk [vmem:[#allocation4 + $0x28] sm:$0xf] %vm1744, %v1731
        %1751 = vst.msk [vmem:[#allocation4 + $0x30] sm:$0xf] %vm1744, %v1733
        %1752 = vst.msk [vmem:[#allocation4 + $0x38] sm:$0xf] %vm1744, %v1735
        %v1753 = vld [vmem:[%s741 + $0x2] sm:$0xff]
        %v1754 = vld [vmem:[%s741 + $0x12] sm:$0xff]
        %v1755 = vld [vmem:[%s741 + $0x22] sm:$0xff]
        %v1756 = vld [vmem:[%s741 + $0x32] sm:$0xff]
        %v1757 = vld [vmem:[%s741 + $0x42] sm:$0xff]
        %v1758 = vld [vmem:[%s741 + $0x52] sm:$0xff]
        %v1759 = vld [vmem:[%s741 + $0x62] sm:$0xff]
        %v1760 = vld [vmem:[%s741 + $0x72] sm:$0xff]
        %v1761 = vpack.c.bf16 %v1753, %v1753
        %v1762 = vpack.c.bf16 %v1754, %v1754
        %v1763 = vpack.c.bf16 %v1755, %v1755
        %v1764 = vpack.c.bf16 %v1756, %v1756
        %v1765 = vpack.c.bf16 %v1757, %v1757
        %v1766 = vpack.c.bf16 %v1758, %v1758
        %v1767 = vpack.c.bf16 %v1759, %v1759
        %v1768 = vpack.c.bf16 %v1760, %v1760
        %1777 = vrot.lane.b32.xlu0 %v1761, 32
        %v1778 = vpop.permute.xlu0 %1777
        %1779 = vrot.lane.b32.xlu0 %v1762, 32
        %v1780 = vpop.permute.xlu0 %1779
        %1781 = vrot.lane.b32.xlu0 %v1763, 32
        %v1782 = vpop.permute.xlu0 %1781
        %1783 = vrot.lane.b32.xlu0 %v1764, 32
        %v1784 = vpop.permute.xlu0 %1783
        %1785 = vrot.lane.b32.xlu0 %v1765, 32
        %v1786 = vpop.permute.xlu0 %1785
        %1787 = vrot.lane.b32.xlu0 %v1766, 32
        %v1788 = vpop.permute.xlu0 %1787
        %1789 = vrot.lane.b32.xlu0 %v1767, 32
        %v1790 = vpop.permute.xlu0 %1789
        %1791 = vrot.lane.b32.xlu0 %v1768, 32
        %v1792 = vpop.permute.xlu0 %1791
        %vm1801 = vcmask 388352
        %1802 = vst.msk [vmem:[#allocation4] sm:$0xf] %vm1801, %v1778
        %1803 = vst.msk [vmem:[#allocation4 + $0x8] sm:$0xf] %vm1801, %v1780
        %1804 = vst.msk [vmem:[#allocation4 + $0x10] sm:$0xf] %vm1801, %v1782
        %1805 = vst.msk [vmem:[#allocation4 + $0x18] sm:$0xf] %vm1801, %v1784
        %1806 = vst.msk [vmem:[#allocation4 + $0x20] sm:$0xf] %vm1801, %v1786
        %1807 = vst.msk [vmem:[#allocation4 + $0x28] sm:$0xf] %vm1801, %v1788
        %1808 = vst.msk [vmem:[#allocation4 + $0x30] sm:$0xf] %vm1801, %v1790
        %1809 = vst.msk [vmem:[#allocation4 + $0x38] sm:$0xf] %vm1801, %v1792
        %s1810 = scalar_lea.vmem %s741, 16
        %v1811 = vld [vmem:[%s1810] sm:$0xff]
        %v1812 = vld [vmem:[%s1810 + $0x10] sm:$0xff]
        %v1813 = vld [vmem:[%s1810 + $0x20] sm:$0xff]
        %v1814 = vld [vmem:[%s1810 + $0x30] sm:$0xff]
        %v1815 = vld [vmem:[%s1810 + $0x40] sm:$0xff]
        %v1816 = vld [vmem:[%s1810 + $0x50] sm:$0xff]
        %v1817 = vld [vmem:[%s1810 + $0x60] sm:$0xff]
        %v1818 = vld [vmem:[%s1810 + $0x70] sm:$0xff]
        %v1819 = vpack.c.bf16 %v1811, %v1811
        %v1820 = vpack.c.bf16 %v1812, %v1812
        %v1821 = vpack.c.bf16 %v1813, %v1813
        %v1822 = vpack.c.bf16 %v1814, %v1814
        %v1823 = vpack.c.bf16 %v1815, %v1815
        %v1824 = vpack.c.bf16 %v1816, %v1816
        %v1825 = vpack.c.bf16 %v1817, %v1817
        %v1826 = vpack.c.bf16 %v1818, %v1818
        %1835 = vrot.lane.b32.xlu0 %v1819, 48
        %v1836 = vpop.permute.xlu0 %1835
        %1837 = vrot.lane.b32.xlu0 %v1820, 48
        %v1838 = vpop.permute.xlu0 %1837
        %1839 = vrot.lane.b32.xlu0 %v1821, 48
        %v1840 = vpop.permute.xlu0 %1839
        %1841 = vrot.lane.b32.xlu0 %v1822, 48
        %v1842 = vpop.permute.xlu0 %1841
        %1843 = vrot.lane.b32.xlu0 %v1823, 48
        %v1844 = vpop.permute.xlu0 %1843
        %1845 = vrot.lane.b32.xlu0 %v1824, 48
        %v1846 = vpop.permute.xlu0 %1845
        %1847 = vrot.lane.b32.xlu0 %v1825, 48
        %v1848 = vpop.permute.xlu0 %1847
        %1849 = vrot.lane.b32.xlu0 %v1826, 48
        %v1850 = vpop.permute.xlu0 %1849
        %vm1859 = vcmask 519552
        %1860 = vst.msk [vmem:[#allocation4] sm:$0xf] %vm1859, %v1836
        %1861 = vst.msk [vmem:[#allocation4 + $0x8] sm:$0xf] %vm1859, %v1838
        %1862 = vst.msk [vmem:[#allocation4 + $0x10] sm:$0xf] %vm1859, %v1840
        %1863 = vst.msk [vmem:[#allocation4 + $0x18] sm:$0xf] %vm1859, %v1842
        %1864 = vst.msk [vmem:[#allocation4 + $0x20] sm:$0xf] %vm1859, %v1844
        %1865 = vst.msk [vmem:[#allocation4 + $0x28] sm:$0xf] %vm1859, %v1846
        %1866 = vst.msk [vmem:[#allocation4 + $0x30] sm:$0xf] %vm1859, %v1848
        %1867 = vst.msk [vmem:[#allocation4 + $0x38] sm:$0xf] %vm1859, %v1850
        %v1868 = vld [vmem:[%s1810 + $0x1] sm:$0xff]
        %v1869 = vld [vmem:[%s1810 + $0x11] sm:$0xff]
        %v1870 = vld [vmem:[%s1810 + $0x21] sm:$0xff]
        %v1871 = vld [vmem:[%s1810 + $0x31] sm:$0xff]
        %v1872 = vld [vmem:[%s1810 + $0x41] sm:$0xff]
        %v1873 = vld [vmem:[%s1810 + $0x51] sm:$0xff]
        %v1874 = vld [vmem:[%s1810 + $0x61] sm:$0xff]
        %v1875 = vld [vmem:[%s1810 + $0x71] sm:$0xff]
        %v1876 = vpack.c.bf16 %v1868, %v1868
        %v1877 = vpack.c.bf16 %v1869, %v1869
        %v1878 = vpack.c.bf16 %v1870, %v1870
        %v1879 = vpack.c.bf16 %v1871, %v1871
        %v1880 = vpack.c.bf16 %v1872, %v1872
        %v1881 = vpack.c.bf16 %v1873, %v1873
        %v1882 = vpack.c.bf16 %v1874, %v1874
        %v1883 = vpack.c.bf16 %v1875, %v1875
        %1892 = vrot.lane.b32.xlu0 %v1876, 64
        %v1893 = vpop.permute.xlu0 %1892
        %1894 = vrot.lane.b32.xlu0 %v1877, 64
        %v1895 = vpop.permute.xlu0 %1894
        %1896 = vrot.lane.b32.xlu0 %v1878, 64
        %v1897 = vpop.permute.xlu0 %1896
        %1898 = vrot.lane.b32.xlu0 %v1879, 64
        %v1899 = vpop.permute.xlu0 %1898
        %1900 = vrot.lane.b32.xlu0 %v1880, 64
        %v1901 = vpop.permute.xlu0 %1900
        %1902 = vrot.lane.b32.xlu0 %v1881, 64
        %v1903 = vpop.permute.xlu0 %1902
        %1904 = vrot.lane.b32.xlu0 %v1882, 64
        %v1905 = vpop.permute.xlu0 %1904
        %1906 = vrot.lane.b32.xlu0 %v1883, 64
        %v1907 = vpop.permute.xlu0 %1906
        %vm1916 = vcmask 650752
        %1917 = vst.msk [vmem:[#allocation4] sm:$0xf] %vm1916, %v1893
        %1918 = vst.msk [vmem:[#allocation4 + $0x8] sm:$0xf] %vm1916, %v1895
        %1919 = vst.msk [vmem:[#allocation4 + $0x10] sm:$0xf] %vm1916, %v1897
        %1920 = vst.msk [vmem:[#allocation4 + $0x18] sm:$0xf] %vm1916, %v1899
        %1921 = vst.msk [vmem:[#allocation4 + $0x20] sm:$0xf] %vm1916, %v1901
        %1922 = vst.msk [vmem:[#allocation4 + $0x28] sm:$0xf] %vm1916, %v1903
        %1923 = vst.msk [vmem:[#allocation4 + $0x30] sm:$0xf] %vm1916, %v1905
        %1924 = vst.msk [vmem:[#allocation4 + $0x38] sm:$0xf] %vm1916, %v1907
        %v1925 = vld [vmem:[%s1810 + $0x2] sm:$0xff]
        %v1926 = vld [vmem:[%s1810 + $0x12] sm:$0xff]
        %v1927 = vld [vmem:[%s1810 + $0x22] sm:$0xff]
        %v1928 = vld [vmem:[%s1810 + $0x32] sm:$0xff]
        %v1929 = vld [vmem:[%s1810 + $0x42] sm:$0xff]
        %v1930 = vld [vmem:[%s1810 + $0x52] sm:$0xff]
        %v1931 = vld [vmem:[%s1810 + $0x62] sm:$0xff]
        %v1932 = vld [vmem:[%s1810 + $0x72] sm:$0xff]
        %v1933 = vpack.c.bf16 %v1925, %v1925
        %v1934 = vpack.c.bf16 %v1926, %v1926
        %v1935 = vpack.c.bf16 %v1927, %v1927
        %v1936 = vpack.c.bf16 %v1928, %v1928
        %v1937 = vpack.c.bf16 %v1929, %v1929
        %v1938 = vpack.c.bf16 %v1930, %v1930
        %v1939 = vpack.c.bf16 %v1931, %v1931
        %v1940 = vpack.c.bf16 %v1932, %v1932
        %1949 = vrot.lane.b32.xlu0 %v1933, 80
        %v1950 = vpop.permute.xlu0 %1949
        %1951 = vrot.lane.b32.xlu0 %v1934, 80
        %v1952 = vpop.permute.xlu0 %1951
        %1953 = vrot.lane.b32.xlu0 %v1935, 80
        %v1954 = vpop.permute.xlu0 %1953
        %1955 = vrot.lane.b32.xlu0 %v1936, 80
        %v1956 = vpop.permute.xlu0 %1955
        %1957 = vrot.lane.b32.xlu0 %v1937, 80
        %v1958 = vpop.permute.xlu0 %1957
        %1959 = vrot.lane.b32.xlu0 %v1938, 80
        %v1960 = vpop.permute.xlu0 %1959
        %1961 = vrot.lane.b32.xlu0 %v1939, 80
        %v1962 = vpop.permute.xlu0 %1961
        %1963 = vrot.lane.b32.xlu0 %v1940, 80
        %v1964 = vpop.permute.xlu0 %1963
        %vm1973 = vcmask 781952
        %1974 = vst.msk [vmem:[#allocation4] sm:$0xf] %vm1973, %v1950
        %1975 = vst.msk [vmem:[#allocation4 + $0x8] sm:$0xf] %vm1973, %v1952
        %1976 = vst.msk [vmem:[#allocation4 + $0x10] sm:$0xf] %vm1973, %v1954
        %1977 = vst.msk [vmem:[#allocation4 + $0x18] sm:$0xf] %vm1973, %v1956
        %1978 = vst.msk [vmem:[#allocation4 + $0x20] sm:$0xf] %vm1973, %v1958
        %1979 = vst.msk [vmem:[#allocation4 + $0x28] sm:$0xf] %vm1973, %v1960
        %1980 = vst.msk [vmem:[#allocation4 + $0x30] sm:$0xf] %vm1973, %v1962
        %1981 = vst.msk [vmem:[#allocation4 + $0x38] sm:$0xf] %vm1973, %v1964
        %s1982 = scalar_lea.vmem %s741, 32
        %v1983 = vld [vmem:[%s1982] sm:$0xff]
        %v1984 = vld [vmem:[%s1982 + $0x10] sm:$0xff]
        %v1985 = vld [vmem:[%s1982 + $0x20] sm:$0xff]
        %v1986 = vld [vmem:[%s1982 + $0x30] sm:$0xff]
        %v1987 = vld [vmem:[%s1982 + $0x40] sm:$0xff]
        %v1988 = vld [vmem:[%s1982 + $0x50] sm:$0xff]
        %v1989 = vld [vmem:[%s1982 + $0x60] sm:$0xff]
        %v1990 = vld [vmem:[%s1982 + $0x70] sm:$0xff]
        %v1991 = vpack.c.bf16 %v1983, %v1983
        %v1992 = vpack.c.bf16 %v1984, %v1984
        %v1993 = vpack.c.bf16 %v1985, %v1985
        %v1994 = vpack.c.bf16 %v1986, %v1986
        %v1995 = vpack.c.bf16 %v1987, %v1987
        %v1996 = vpack.c.bf16 %v1988, %v1988
        %v1997 = vpack.c.bf16 %v1989, %v1989
        %v1998 = vpack.c.bf16 %v1990, %v1990
        %2007 = vrot.lane.b32.xlu0 %v1991, 96
        %v2008 = vpop.permute.xlu0 %2007
        %2009 = vrot.lane.b32.xlu0 %v1992, 96
        %v2010 = vpop.permute.xlu0 %2009
        %2011 = vrot.lane.b32.xlu0 %v1993, 96
        %v2012 = vpop.permute.xlu0 %2011
        %2013 = vrot.lane.b32.xlu0 %v1994, 96
        %v2014 = vpop.permute.xlu0 %2013
        %2015 = vrot.lane.b32.xlu0 %v1995, 96
        %v2016 = vpop.permute.xlu0 %2015
        %2017 = vrot.lane.b32.xlu0 %v1996, 96
        %v2018 = vpop.permute.xlu0 %2017
        %2019 = vrot.lane.b32.xlu0 %v1997, 96
        %v2020 = vpop.permute.xlu0 %2019
        %2021 = vrot.lane.b32.xlu0 %v1998, 96
        %v2022 = vpop.permute.xlu0 %2021
        %vm2031 = vcmask 913152
        %2032 = vst.msk [vmem:[#allocation4] sm:$0xf] %vm2031, %v2008
        %2033 = vst.msk [vmem:[#allocation4 + $0x8] sm:$0xf] %vm2031, %v2010
        %2034 = vst.msk [vmem:[#allocation4 + $0x10] sm:$0xf] %vm2031, %v2012
        %2035 = vst.msk [vmem:[#allocation4 + $0x18] sm:$0xf] %vm2031, %v2014
        %2036 = vst.msk [vmem:[#allocation4 + $0x20] sm:$0xf] %vm2031, %v2016
        %2037 = vst.msk [vmem:[#allocation4 + $0x28] sm:$0xf] %vm2031, %v2018
        %2038 = vst.msk [vmem:[#allocation4 + $0x30] sm:$0xf] %vm2031, %v2020
        %2039 = vst.msk [vmem:[#allocation4 + $0x38] sm:$0xf] %vm2031, %v2022
        %v2040 = vld [vmem:[%s1982 + $0x1] sm:$0xff]
        %v2041 = vld [vmem:[%s1982 + $0x11] sm:$0xff]
        %v2042 = vld [vmem:[%s1982 + $0x21] sm:$0xff]
        %v2043 = vld [vmem:[%s1982 + $0x31] sm:$0xff]
        %v2044 = vld [vmem:[%s1982 + $0x41] sm:$0xff]
        %v2045 = vld [vmem:[%s1982 + $0x51] sm:$0xff]
        %v2046 = vld [vmem:[%s1982 + $0x61] sm:$0xff]
        %v2047 = vld [vmem:[%s1982 + $0x71] sm:$0xff]
        %v2048 = vpack.c.bf16 %v2040, %v2040
        %v2049 = vpack.c.bf16 %v2041, %v2041
        %v2050 = vpack.c.bf16 %v2042, %v2042
        %v2051 = vpack.c.bf16 %v2043, %v2043
        %v2052 = vpack.c.bf16 %v2044, %v2044
        %v2053 = vpack.c.bf16 %v2045, %v2045
        %v2054 = vpack.c.bf16 %v2046, %v2046
        %v2055 = vpack.c.bf16 %v2047, %v2047
        %2064 = vrot.lane.b32.xlu0 %v2048, 112
        %v2065 = vpop.permute.xlu0 %2064
        %2066 = vrot.lane.b32.xlu0 %v2049, 112
        %v2067 = vpop.permute.xlu0 %2066
        %2068 = vrot.lane.b32.xlu0 %v2050, 112
        %v2069 = vpop.permute.xlu0 %2068
        %2070 = vrot.lane.b32.xlu0 %v2051, 112
        %v2071 = vpop.permute.xlu0 %2070
        %2072 = vrot.lane.b32.xlu0 %v2052, 112
        %v2073 = vpop.permute.xlu0 %2072
        %2074 = vrot.lane.b32.xlu0 %v2053, 112
        %v2075 = vpop.permute.xlu0 %2074
        %2076 = vrot.lane.b32.xlu0 %v2054, 112
        %v2077 = vpop.permute.xlu0 %2076
        %2078 = vrot.lane.b32.xlu0 %v2055, 112
        %v2079 = vpop.permute.xlu0 %2078
        %vm2088 = vcmask 1044352
        %2089 = vst.msk [vmem:[#allocation4] sm:$0xf] %vm2088, %v2065
        %2090 = vst.msk [vmem:[#allocation4 + $0x8] sm:$0xf] %vm2088, %v2067
        %2091 = vst.msk [vmem:[#allocation4 + $0x10] sm:$0xf] %vm2088, %v2069
        %2092 = vst.msk [vmem:[#allocation4 + $0x18] sm:$0xf] %vm2088, %v2071
        %2093 = vst.msk [vmem:[#allocation4 + $0x20] sm:$0xf] %vm2088, %v2073
        %2094 = vst.msk [vmem:[#allocation4 + $0x28] sm:$0xf] %vm2088, %v2075
        %2095 = vst.msk [vmem:[#allocation4 + $0x30] sm:$0xf] %vm2088, %v2077
        %2096 = vst.msk [vmem:[#allocation4 + $0x38] sm:$0xf] %vm2088, %v2079
        %v2097 = vld [vmem:[%s1982 + $0x2] sm:$0xff]
        %v2098 = vld [vmem:[%s1982 + $0x12] sm:$0xff]
        %v2099 = vld [vmem:[%s1982 + $0x22] sm:$0xff]
        %v2100 = vld [vmem:[%s1982 + $0x32] sm:$0xff]
        %v2101 = vld [vmem:[%s1982 + $0x42] sm:$0xff]
        %v2102 = vld [vmem:[%s1982 + $0x52] sm:$0xff]
        %v2103 = vld [vmem:[%s1982 + $0x62] sm:$0xff]
        %v2104 = vld [vmem:[%s1982 + $0x72] sm:$0xff]
        %v2105 = vpack.c.bf16 %v2097, %v2097
        %v2106 = vpack.c.bf16 %v2098, %v2098
        %v2107 = vpack.c.bf16 %v2099, %v2099
        %v2108 = vpack.c.bf16 %v2100, %v2100
        %v2109 = vpack.c.bf16 %v2101, %v2101
        %v2110 = vpack.c.bf16 %v2102, %v2102
        %v2111 = vpack.c.bf16 %v2103, %v2103
        %v2112 = vpack.c.bf16 %v2104, %v2104
        %2113 = vst.msk [vmem:[#allocation4 + $0x4] sm:$0xf] %vm1091, %v2105
        %2114 = vst.msk [vmem:[#allocation4 + $0xc] sm:$0xf] %vm1091, %v2106
        %2115 = vst.msk [vmem:[#allocation4 + $0x14] sm:$0xf] %vm1091, %v2107
        %2116 = vst.msk [vmem:[#allocation4 + $0x1c] sm:$0xf] %vm1091, %v2108
        %2117 = vst.msk [vmem:[#allocation4 + $0x24] sm:$0xf] %vm1091, %v2109
        %2118 = vst.msk [vmem:[#allocation4 + $0x2c] sm:$0xf] %vm1091, %v2110
        %2119 = vst.msk [vmem:[#allocation4 + $0x34] sm:$0xf] %vm1091, %v2111
        %2120 = vst.msk [vmem:[#allocation4 + $0x3c] sm:$0xf] %vm1091, %v2112
        %v2121 = vld [vmem:[#allocation4] sm:$0xff]
        %v2122 = vld [vmem:[#allocation4 + $0x8] sm:$0xff]
        %v2123 = vld [vmem:[#allocation4 + $0x10] sm:$0xff]
        %v2124 = vld [vmem:[#allocation4 + $0x18] sm:$0xff]
        %v2125 = vld [vmem:[#allocation4 + $0x20] sm:$0xff]
        %v2126 = vld [vmem:[#allocation4 + $0x28] sm:$0xff]
        %v2127 = vld [vmem:[#allocation4 + $0x30] sm:$0xff]
        %v2128 = vld [vmem:[#allocation4 + $0x38] sm:$0xff]
        %v2129 = vld [vmem:[%s9] sm:$0xf]
        %v2130 = vld [vmem:[%s9 + $0x4] sm:$0xf]
        %v2131 = vld [vmem:[%s9 + $0x8] sm:$0xf]
        %v2132 = vld [vmem:[%s9 + $0xc] sm:$0xf]
        %v2133 = vld [vmem:[%s9 + $0x10] sm:$0xf]
        %v2134 = vld [vmem:[%s9 + $0x14] sm:$0xf]
        %v2135 = vld [vmem:[%s9 + $0x18] sm:$0xf]
        %v2136 = vld [vmem:[%s9 + $0x1c] sm:$0xf]
        %v2137 = vld [vmem:[%s9 + $0x20] sm:$0xf]
        %v2138 = vld [vmem:[%s9 + $0x24] sm:$0xf]
        %v2139 = vld [vmem:[%s9 + $0x28] sm:$0xf]
        %v2140 = vld [vmem:[%s9 + $0x2c] sm:$0xf]
        %v2141 = vld [vmem:[%s9 + $0x30] sm:$0xf]
        %v2142 = vld [vmem:[%s9 + $0x34] sm:$0xf]
        %v2143 = vld [vmem:[%s9 + $0x38] sm:$0xf]
        %v2144 = vld [vmem:[%s9 + $0x3c] sm:$0xf]
        %v2145 = vld [vmem:[%s9 + $0x40] sm:$0xf]
        %v2146 = vld [vmem:[%s9 + $0x44] sm:$0xf]
        %v2147 = vld [vmem:[%s10] sm:$0x1]
        %v2149 = vperm.slane %v2147, 0
        %v2159 = vunpack.c.l.b16 %v2121
        %v2160 = vunpack.c.h.b16 %v2121
        %v2161 = vunpack.c.l.b16 %v2122
        %v2162 = vunpack.c.h.b16 %v2122
        %v2163 = vunpack.c.l.b16 %v2123
        %v2164 = vunpack.c.h.b16 %v2123
        %v2165 = vunpack.c.l.b16 %v2124
        %v2166 = vunpack.c.h.b16 %v2124
        %v2167 = vunpack.c.l.b16 %v2125
        %v2168 = vunpack.c.h.b16 %v2125
        %v2169 = vunpack.c.l.b16 %v2126
        %v2170 = vunpack.c.h.b16 %v2126
        %v2171 = vunpack.c.l.b16 %v2127
        %v2172 = vunpack.c.h.b16 %v2127
        %v2173 = vunpack.c.l.b16 %v2128
        %v2174 = vunpack.c.h.b16 %v2128
        %v2175 = vpack.c.b16 %v2161, %v2159
        %v2176 = vpack.c.b16 %v2162, %v2160
        %v2177 = vpack.c.b16 %v2165, %v2163
        %v2178 = vpack.c.b16 %v2166, %v2164
        %v2179 = vpack.c.b16 %v2169, %v2167
        %v2180 = vpack.c.b16 %v2170, %v2168
        %v2181 = vpack.c.b16 %v2173, %v2171
        %v2182 = vpack.c.b16 %v2174, %v2172
        %v2205 = vunpack.c.l.b16 %v2129
        %v2206 = vunpack.c.l.b16 %v2130
        %v2207 = vunpack.c.l.b16 %v2131
        %v2208 = vunpack.c.l.b16 %v2132
        %v2209 = vunpack.c.l.b16 %v2133
        %v2210 = vunpack.c.l.b16 %v2134
        %v2211 = vunpack.c.l.b16 %v2135
        %v2212 = vunpack.c.l.b16 %v2136
        %v2213 = vunpack.c.l.b16 %v2137
        %v2214 = vunpack.c.l.b16 %v2138
        %v2215 = vunpack.c.l.b16 %v2139
        %v2216 = vunpack.c.l.b16 %v2140
        %v2217 = vunpack.c.l.b16 %v2141
        %v2218 = vunpack.c.l.b16 %v2142
        %v2219 = vunpack.c.l.b16 %v2143
        %v2220 = vunpack.c.l.b16 %v2144
        %v2221 = vunpack.c.l.b16 %v2145
        %v2222 = vunpack.c.l.b16 %v2146
        %v2223 = vpack.c.b16 %v2206, %v2205
        %v2224 = vpack.c.b16 %v2208, %v2207
        %v2225 = vpack.c.b16 %v2210, %v2209
        %v2226 = vpack.c.b16 %v2212, %v2211
        %v2227 = vpack.c.b16 %v2214, %v2213
        %v2228 = vpack.c.b16 %v2216, %v2215
        %v2229 = vpack.c.b16 %v2218, %v2217
        %v2230 = vpack.c.b16 %v2220, %v2219
        %v2231 = vpack.c.b16 %v2222, %v2221
        %v2242 = vsel %vm1031, %v2176, 0
        %v2245 = vsel %vm1031, %v2178, 0
        %v2248 = vsel %vm1031, %v2180, 0
        %v2251 = vsel %vm1031, %v2182, 0
        %2253 = vmatpush.bf16.msra.mxu0 %v2230
        %2254 = vmatpush.bf16.msra.mxu0 %v2229
        %2255 = vmatpush.bf16.msra.mxu0 %v2228
        %2256 = vmatpush.bf16.msra.mxu0 %v2227
        %2257 = vmatpush.bf16.msra.mxu0 %v2226
        %2258 = vmatpush.bf16.msra.mxu0 %v2225
        %2259 = vmatpush.bf16.msra.mxu0 %v2224
        %2260 = vmatpush.bf16.msra.mxu0 %v2223
        %2261 = vmatmul.bf16.gmra.mxu0 %v2175
        %v2262 = vpop.f32.mrf.mxu0
        %v2263 = vadd.f32 %v2149, %v2262
        %v2264 = vpop.f32.mrf.mxu0
        %v2265 = vadd.f32 %v2149, %v2264
        %2266 = vmatmul.bf16.gmra.mxu0 %v2177
        %v2267 = vpop.f32.mrf.mxu0
        %v2268 = vadd.f32 %v2149, %v2267
        %v2269 = vpop.f32.mrf.mxu0
        %v2270 = vadd.f32 %v2149, %v2269
        %2271 = vmatmul.bf16.gmra.mxu0 %v2179
        %v2272 = vpop.f32.mrf.mxu0
        %v2273 = vadd.f32 %v2149, %v2272
        %v2274 = vpop.f32.mrf.mxu0
        %v2275 = vadd.f32 %v2149, %v2274
        %2276 = vmatmul.bf16.gmra.mxu0 %v2181
        %v2277 = vpop.f32.mrf.mxu0
        %v2278 = vadd.f32 %v2149, %v2277
        %v2279 = vpop.f32.mrf.mxu0
        %v2280 = vadd.f32 %v2149, %v2279
        %2281 = vdwg.mxu0
        %2282 = vmatpush.bf16.msra.mxu0 0
        %2283 = vmatpush.bf16.msra.mxu0 0
        %2284 = vmatpush.bf16.msra.mxu0 0
        %2285 = vmatpush.bf16.msra.mxu0 0
        %2286 = vmatpush.bf16.msra.mxu0 0
        %2287 = vmatpush.bf16.msra.mxu0 0
        %2288 = vmatpush.bf16.msra.mxu0 0
        %2289 = vmatpush.bf16.msra.mxu0 %v2231
        %2290 = vmatmul.bf16.gmra.mxu0 %v2242
        %v2291 = vpop.f32.mrf.mxu0
        %v2292 = vadd.f32 %v2263, %v2291
        %v2293 = vpop.f32.mrf.mxu0
        %v2294 = vadd.f32 %v2265, %v2293
        %2295 = vmatmul.bf16.gmra.mxu0 %v2245
        %v2296 = vpop.f32.mrf.mxu0
        %v2297 = vadd.f32 %v2268, %v2296
        %v2298 = vpop.f32.mrf.mxu0
        %v2299 = vadd.f32 %v2270, %v2298
        %2300 = vmatmul.bf16.gmra.mxu0 %v2248
        %v2301 = vpop.f32.mrf.mxu0
        %v2302 = vadd.f32 %v2273, %v2301
        %v2303 = vpop.f32.mrf.mxu0
        %v2304 = vadd.f32 %v2275, %v2303
        %2305 = vmatmul.bf16.gmra.mxu0 %v2251
        %v2306 = vpop.f32.mrf.mxu0
        %v2307 = vadd.f32 %v2278, %v2306
        %v2308 = vpop.f32.mrf.mxu0
        %v2309 = vadd.f32 %v2280, %v2308
        %2310 = vdwg.mxu0
        %v2311 = vmax.f32 %v2292, 0.0
        %v2312 = vmax.f32 %v2294, 0.0
        %v2313 = vmax.f32 %v2297, 0.0
        %v2314 = vmax.f32 %v2299, 0.0
        %v2315 = vmax.f32 %v2302, 0.0
        %v2316 = vmax.f32 %v2304, 0.0
        %v2317 = vmax.f32 %v2307, 0.0
        %v2318 = vmax.f32 %v2309, 0.0
        %v2321 = vrot.slane %v1636, 4
        %v2322 = vrot.slane %v1637, 4
        %v2323 = vrot.slane %v1636, 3
        %v2324 = vrot.slane %v2321, 3
        %v2325 = vrot.slane %v1637, 3
        %v2326 = vrot.slane %v2322, 3
        %v2327 = vsel %vm769, %v1636, %v2323
        %v2328 = vsel %vm1599, %v1636, %v2323
        %v2329 = vrot.slane %v2328, 1
        %v2330 = vsel %vm1596, %v1636, %v2323
        %v2331 = vrot.slane %v2330, 2
        %v2332 = vsel %vm1601, %v1636, %v2323
        %v2333 = vrot.slane %v2332, 3
        %v2334 = vsel %vm769, %v2321, %v2324
        %v2335 = vsel %vm1599, %v2321, %v2324
        %v2336 = vrot.slane %v2335, 1
        %v2337 = vsel %vm1596, %v2321, %v2324
        %v2338 = vrot.slane %v2337, 2
        %v2339 = vsel %vm1601, %v2321, %v2324
        %v2340 = vrot.slane %v2339, 3
        %v2341 = vsel %vm769, %v1637, %v2325
        %v2342 = vsel %vm1599, %v1637, %v2325
        %v2343 = vrot.slane %v2342, 1
        %v2344 = vsel %vm1596, %v1637, %v2325
        %v2345 = vrot.slane %v2344, 2
        %v2346 = vsel %vm1601, %v1637, %v2325
        %v2347 = vrot.slane %v2346, 3
        %v2348 = vsel %vm769, %v2322, %v2326
        %v2349 = vsel %vm1599, %v2322, %v2326
        %v2350 = vrot.slane %v2349, 1
        %v2351 = vsel %vm1596, %v2322, %v2326
        %v2352 = vrot.slane %v2351, 2
        %v2353 = vsel %vm1601, %v2322, %v2326
        %v2354 = vrot.slane %v2353, 3
        %v2355 = vperm.slane %v2327, 0
        %v2356 = vperm.slane %v2329, 0
        %v2357 = vperm.slane %v2331, 0
        %v2358 = vperm.slane %v2333, 0
        %v2359 = vperm.slane %v2334, 0
        %v2360 = vperm.slane %v2336, 0
        %v2361 = vperm.slane %v2338, 0
        %v2362 = vperm.slane %v2340, 0
        %v2363 = vperm.slane %v2341, 0
        %v2364 = vperm.slane %v2343, 0
        %v2365 = vperm.slane %v2345, 0
        %v2366 = vperm.slane %v2347, 0
        %v2367 = vperm.slane %v2348, 0
        %v2368 = vperm.slane %v2350, 0
        %v2369 = vperm.slane %v2352, 0
        %v2370 = vperm.slane %v2354, 0
        %2371 = vst [vmem:[#allocation1] ss:$4 sm:$0xff] %v2355
        %s2372 = scalar_lea.vmem [#allocation1], 1
        %2373 = vst [vmem:[%s2372] ss:$4 sm:$0xff] %v2356
        %s2374 = scalar_lea.vmem [#allocation1], 2
        %2375 = vst [vmem:[%s2374] ss:$4 sm:$0xff] %v2357
        %s2376 = scalar_lea.vmem [#allocation1], 3
        %2377 = vst [vmem:[%s2376] ss:$4 sm:$0xff] %v2358
        %s2378 = scalar_lea.vmem [#allocation1], 32
        %2379 = vst [vmem:[%s2378] ss:$4 sm:$0xff] %v2355
        %s2380 = scalar_lea.vmem [#allocation1], 33
        %2381 = vst [vmem:[%s2380] ss:$4 sm:$0xff] %v2356
        %s2382 = scalar_lea.vmem [#allocation1], 34
        %2383 = vst [vmem:[%s2382] ss:$4 sm:$0xff] %v2357
        %s2384 = scalar_lea.vmem [#allocation1], 35
        %2385 = vst [vmem:[%s2384] ss:$4 sm:$0xff] %v2358
        %v2386 = vld.sshfl [vmem:[#allocation1] sm:$0xff pattern:$0x73625140]
        %v2387 = vld.sshfl [vmem:[#allocation1 + $0x20] sm:$0xff pattern:$0x73625140]
        %2388 = vst [vmem:[#allocation1] ss:$4 sm:$0xff] %v2359
        %2389 = vst [vmem:[%s2372] ss:$4 sm:$0xff] %v2360
        %2390 = vst [vmem:[%s2374] ss:$4 sm:$0xff] %v2361
        %2391 = vst [vmem:[%s2376] ss:$4 sm:$0xff] %v2362
        %2392 = vst [vmem:[%s2378] ss:$4 sm:$0xff] %v2359
        %2393 = vst [vmem:[%s2380] ss:$4 sm:$0xff] %v2360
        %2394 = vst [vmem:[%s2382] ss:$4 sm:$0xff] %v2361
        %2395 = vst [vmem:[%s2384] ss:$4 sm:$0xff] %v2362
        %v2396 = vld.sshfl [vmem:[#allocation1] sm:$0xff pattern:$0x73625140]
        %v2397 = vld.sshfl [vmem:[#allocation1 + $0x20] sm:$0xff pattern:$0x73625140]
        %2398 = vst [vmem:[#allocation1] ss:$4 sm:$0xff] %v2363
        %2399 = vst [vmem:[%s2372] ss:$4 sm:$0xff] %v2364
        %2400 = vst [vmem:[%s2374] ss:$4 sm:$0xff] %v2365
        %2401 = vst [vmem:[%s2376] ss:$4 sm:$0xff] %v2366
        %2402 = vst [vmem:[%s2378] ss:$4 sm:$0xff] %v2363
        %2403 = vst [vmem:[%s2380] ss:$4 sm:$0xff] %v2364
        %2404 = vst [vmem:[%s2382] ss:$4 sm:$0xff] %v2365
        %2405 = vst [vmem:[%s2384] ss:$4 sm:$0xff] %v2366
        %v2406 = vld.sshfl [vmem:[#allocation1] sm:$0xff pattern:$0x73625140]
        %v2407 = vld.sshfl [vmem:[#allocation1 + $0x20] sm:$0xff pattern:$0x73625140]
        %2408 = vst [vmem:[#allocation1] ss:$4 sm:$0xff] %v2367
        %2409 = vst [vmem:[%s2372] ss:$4 sm:$0xff] %v2368
        %2410 = vst [vmem:[%s2374] ss:$4 sm:$0xff] %v2369
        %2411 = vst [vmem:[%s2376] ss:$4 sm:$0xff] %v2370
        %2412 = vst [vmem:[%s2378] ss:$4 sm:$0xff] %v2367
        %2413 = vst [vmem:[%s2380] ss:$4 sm:$0xff] %v2368
        %2414 = vst [vmem:[%s2382] ss:$4 sm:$0xff] %v2369
        %2415 = vst [vmem:[%s2384] ss:$4 sm:$0xff] %v2370
        %v2416 = vld.sshfl [vmem:[#allocation1] sm:$0xff pattern:$0x73625140]
        %v2417 = vld.sshfl [vmem:[#allocation1 + $0x20] sm:$0xff pattern:$0x73625140]
        %v2426 = vadd.f32 %v2311, %v2386
        %v2427 = vadd.f32 %v2312, %v2387
        %v2428 = vadd.f32 %v2313, %v2396
        %v2429 = vadd.f32 %v2314, %v2397
        %v2430 = vadd.f32 %v2315, %v2406
        %v2431 = vadd.f32 %v2316, %v2407
        %v2432 = vadd.f32 %v2317, %v2416
        %v2433 = vadd.f32 %v2318, %v2417
        %v2434 = vpack.c.bf16 %v2427, %v2426
        %v2435 = vpack.c.bf16 %v2429, %v2428
        %v2436 = vpack.c.bf16 %v2431, %v2430
        %v2437 = vpack.c.bf16 %v2433, %v2432
        %v2438 = vld [vmem:[%s15] sm:$0xf]
        %v2439 = vld [vmem:[%s15 + $0x4] sm:$0xf]
        %v2440 = vld [vmem:[%s16] sm:$0x1]
        %v2442 = vperm.slane %v2440, 0
        %v2446 = vunpack.c.l.b16 %v2438
        %v2447 = vunpack.c.l.b16 %v2439
        %v2448 = vpack.c.b16 %v2447, %v2446
        %v2451 = vsel %vm1031, %v2434, 0
        %v2454 = vsel %vm1031, %v2435, 0
        %v2457 = vsel %vm1031, %v2436, 0
        %v2460 = vsel %vm1031, %v2437, 0
        %2462 = vmatpush.bf16.msra.mxu0 0
        %2463 = vmatpush.bf16.msra.mxu0 0
        %2464 = vmatpush.bf16.msra.mxu0 0
        %2465 = vmatpush.bf16.msra.mxu0 0
        %2466 = vmatpush.bf16.msra.mxu0 0
        %2467 = vmatpush.bf16.msra.mxu0 0
        %2468 = vmatpush.bf16.msra.mxu0 0
        %2469 = vmatpush.bf16.msra.mxu0 %v2448
        %2470 = vmatmul.bf16.gmra.mxu0 %v2451
        %v2471 = vpop.f32.mrf.mxu0
        %v2472 = vadd.f32 %v2442, %v2471
        %v2473 = vpop.f32.mrf.mxu0
        %v2474 = vadd.f32 %v2442, %v2473
        %2475 = vmatmul.bf16.gmra.mxu0 %v2454
        %v2476 = vpop.f32.mrf.mxu0
        %v2477 = vadd.f32 %v2442, %v2476
        %v2478 = vpop.f32.mrf.mxu0
        %v2479 = vadd.f32 %v2442, %v2478
        %2480 = vmatmul.bf16.gmra.mxu0 %v2457
        %v2481 = vpop.f32.mrf.mxu0
        %v2482 = vadd.f32 %v2442, %v2481
        %v2483 = vpop.f32.mrf.mxu0
        %v2484 = vadd.f32 %v2442, %v2483
        %2485 = vmatmul.bf16.gmra.mxu0 %v2460
        %v2486 = vpop.f32.mrf.mxu0
        %v2487 = vadd.f32 %v2442, %v2486
        %v2488 = vpop.f32.mrf.mxu0
        %v2489 = vadd.f32 %v2442, %v2488
        %2490 = vdwg.mxu0
        %v2491 = vmax.f32 %v2472, 0.0
        %v2492 = vmax.f32 %v2474, 0.0
        %v2493 = vmax.f32 %v2477, 0.0
        %v2494 = vmax.f32 %v2479, 0.0
        %v2495 = vmax.f32 %v2482, 0.0
        %v2496 = vmax.f32 %v2484, 0.0
        %v2497 = vmax.f32 %v2487, 0.0
        %v2498 = vmax.f32 %v2489, 0.0
        %2499 = vst.msk [vmem:[%s724] sm:$0xff] %vm1031, %v2491
        %2500 = vst.msk [vmem:[%s724 + $0x8] sm:$0xff] %vm1031, %v2492
        %2501 = vst.msk [vmem:[%s724 + $0x10] sm:$0xff] %vm1031, %v2493
        %2502 = vst.msk [vmem:[%s724 + $0x18] sm:$0xff] %vm1031, %v2494
        %2503 = vst.msk [vmem:[%s724 + $0x20] sm:$0xff] %vm1031, %v2495
        %2504 = vst.msk [vmem:[%s724 + $0x28] sm:$0xff] %vm1031, %v2496
        %2505 = vst.msk [vmem:[%s724 + $0x30] sm:$0xff] %vm1031, %v2497
        %2506 = vst.msk [vmem:[%s724 + $0x38] sm:$0xff] %vm1031, %v2498
        %v2507 = vld [vmem:[%s746] sm:$0xff]
        %v2508 = vld [vmem:[%s746 + $0x8] sm:$0xff]
        %v2509 = vld [vmem:[%s746 + $0x18] sm:$0xff]
        %v2510 = vld [vmem:[%s746 + $0x20] sm:$0xff]
        %v2511 = vld [vmem:[%s746 + $0x30] sm:$0xff]
        %v2512 = vld [vmem:[%s746 + $0x38] sm:$0xff]
        %v2513 = vld [vmem:[%s746 + $0x48] sm:$0xff]
        %v2514 = vld [vmem:[%s746 + $0x50] sm:$0xff]
        %v2515 = vld [vmem:[%s746 + $0x60] sm:$0xff]
        %v2516 = vld [vmem:[%s746 + $0x68] sm:$0xff]
        %v2517 = vld [vmem:[%s746 + $0x78] sm:$0xff]
        %v2518 = vld [vmem:[%s746 + $0x80] sm:$0xff]
        %v2519 = vld [vmem:[%s746 + $0x90] sm:$0xff]
        %v2520 = vld [vmem:[%s746 + $0x98] sm:$0xff]
        %v2521 = vld [vmem:[%s746 + $0xa8] sm:$0xff]
        %v2522 = vld [vmem:[%s746 + $0xb0] sm:$0xff]
        %v2523 = vld [vmem:[%s746 + $0xc0] sm:$0xff]
        %v2524 = vld [vmem:[%s746 + $0xc8] sm:$0xff]
        %v2525 = vld [vmem:[%s746 + $0xd8] sm:$0xff]
        %v2526 = vld [vmem:[%s746 + $0xe0] sm:$0xff]
        %v2527 = vld [vmem:[%s746 + $0xf0] sm:$0xff]
        %v2528 = vld [vmem:[%s746 + $0xf8] sm:$0xff]
        %v2529 = vld [vmem:[%s746 + $0x108] sm:$0xff]
        %v2530 = vld [vmem:[%s746 + $0x110] sm:$0xff]
        %v2531 = vld [vmem:[%s746 + $0x120] sm:$0xff]
        %v2532 = vld [vmem:[%s746 + $0x128] sm:$0xff]
        %v2533 = vld [vmem:[%s746 + $0x138] sm:$0xff]
        %v2534 = vld [vmem:[%s746 + $0x140] sm:$0xff]
        %v2535 = vld [vmem:[%s746 + $0x150] sm:$0xff]
        %v2536 = vld [vmem:[%s746 + $0x158] sm:$0xff]
        %v2537 = vld [vmem:[%s746 + $0x168] sm:$0xff]
        %v2538 = vld [vmem:[%s746 + $0x170] sm:$0xff]
        %v2539 = vpack.c.bf16 %v2507, %v2507
        %v2540 = vpack.c.bf16 %v2508, %v2508
        %v2541 = vpack.c.bf16 %v2509, %v2509
        %v2542 = vpack.c.bf16 %v2510, %v2510
        %v2543 = vpack.c.bf16 %v2511, %v2511
        %v2544 = vpack.c.bf16 %v2512, %v2512
        %v2545 = vpack.c.bf16 %v2513, %v2513
        %v2546 = vpack.c.bf16 %v2514, %v2514
        %v2547 = vpack.c.bf16 %v2515, %v2515
        %v2548 = vpack.c.bf16 %v2516, %v2516
        %v2549 = vpack.c.bf16 %v2517, %v2517
        %v2550 = vpack.c.bf16 %v2518, %v2518
        %v2551 = vpack.c.bf16 %v2519, %v2519
        %v2552 = vpack.c.bf16 %v2520, %v2520
        %v2553 = vpack.c.bf16 %v2521, %v2521
        %v2554 = vpack.c.bf16 %v2522, %v2522
        %v2555 = vpack.c.bf16 %v2523, %v2523
        %v2556 = vpack.c.bf16 %v2524, %v2524
        %v2557 = vpack.c.bf16 %v2525, %v2525
        %v2558 = vpack.c.bf16 %v2526, %v2526
        %v2559 = vpack.c.bf16 %v2527, %v2527
        %v2560 = vpack.c.bf16 %v2528, %v2528
        %v2561 = vpack.c.bf16 %v2529, %v2529
        %v2562 = vpack.c.bf16 %v2530, %v2530
        %v2563 = vpack.c.bf16 %v2531, %v2531
        %v2564 = vpack.c.bf16 %v2532, %v2532
        %v2565 = vpack.c.bf16 %v2533, %v2533
        %v2566 = vpack.c.bf16 %v2534, %v2534
        %v2567 = vpack.c.bf16 %v2535, %v2535
        %v2568 = vpack.c.bf16 %v2536, %v2536
        %v2569 = vpack.c.bf16 %v2537, %v2537
        %v2570 = vpack.c.bf16 %v2538, %v2538
        %2571 = vst.msk [vmem:[#allocation5] sm:$0xf] %vm1091, %v2539
        %2572 = vst.msk [vmem:[#allocation5 + $0x8] sm:$0xf] %vm1091, %v2540
        %2573 = vst.msk [vmem:[#allocation5 + $0x10] sm:$0xf] %vm1091, %v2541
        %2574 = vst.msk [vmem:[#allocation5 + $0x18] sm:$0xf] %vm1091, %v2542
        %2575 = vst.msk [vmem:[#allocation5 + $0x20] sm:$0xf] %vm1091, %v2543
        %2576 = vst.msk [vmem:[#allocation5 + $0x28] sm:$0xf] %vm1091, %v2544
        %2577 = vst.msk [vmem:[#allocation5 + $0x30] sm:$0xf] %vm1091, %v2545
        %2578 = vst.msk [vmem:[#allocation5 + $0x38] sm:$0xf] %vm1091, %v2546
        %2579 = vst.msk [vmem:[#allocation5 + $0x40] sm:$0xf] %vm1091, %v2547
        %2580 = vst.msk [vmem:[#allocation5 + $0x48] sm:$0xf] %vm1091, %v2548
        %2581 = vst.msk [vmem:[#allocation5 + $0x50] sm:$0xf] %vm1091, %v2549
        %2582 = vst.msk [vmem:[#allocation5 + $0x58] sm:$0xf] %vm1091, %v2550
        %2583 = vst.msk [vmem:[#allocation5 + $0x60] sm:$0xf] %vm1091, %v2551
        %2584 = vst.msk [vmem:[#allocation5 + $0x68] sm:$0xf] %vm1091, %v2552
        %2585 = vst.msk [vmem:[#allocation5 + $0x70] sm:$0xf] %vm1091, %v2553
        %2586 = vst.msk [vmem:[#allocation5 + $0x78] sm:$0xf] %vm1091, %v2554
        %2587 = vst.msk [vmem:[#allocation5 + $0x80] sm:$0xf] %vm1091, %v2555
        %2588 = vst.msk [vmem:[#allocation5 + $0x88] sm:$0xf] %vm1091, %v2556
        %2589 = vst.msk [vmem:[#allocation5 + $0x90] sm:$0xf] %vm1091, %v2557
        %2590 = vst.msk [vmem:[#allocation5 + $0x98] sm:$0xf] %vm1091, %v2558
        %2591 = vst.msk [vmem:[#allocation5 + $0xa0] sm:$0xf] %vm1091, %v2559
        %2592 = vst.msk [vmem:[#allocation5 + $0xa8] sm:$0xf] %vm1091, %v2560
        %2593 = vst.msk [vmem:[#allocation5 + $0xb0] sm:$0xf] %vm1091, %v2561
        %2594 = vst.msk [vmem:[#allocation5 + $0xb8] sm:$0xf] %vm1091, %v2562
        %2595 = vst.msk [vmem:[#allocation5 + $0xc0] sm:$0xf] %vm1091, %v2563
        %2596 = vst.msk [vmem:[#allocation5 + $0xc8] sm:$0xf] %vm1091, %v2564
        %2597 = vst.msk [vmem:[#allocation5 + $0xd0] sm:$0xf] %vm1091, %v2565
        %2598 = vst.msk [vmem:[#allocation5 + $0xd8] sm:$0xf] %vm1091, %v2566
        %2599 = vst.msk [vmem:[#allocation5 + $0xe0] sm:$0xf] %vm1091, %v2567
        %2600 = vst.msk [vmem:[#allocation5 + $0xe8] sm:$0xf] %vm1091, %v2568
        %2601 = vst.msk [vmem:[#allocation5 + $0xf0] sm:$0xf] %vm1091, %v2569
        %2602 = vst.msk [vmem:[#allocation5 + $0xf8] sm:$0xf] %vm1091, %v2570
        %v2603 = vld [vmem:[%s746 + $0x1] sm:$0xff]
        %v2604 = vld [vmem:[%s746 + $0x9] sm:$0xff]
        %v2605 = vld [vmem:[%s746 + $0x19] sm:$0xff]
        %v2606 = vld [vmem:[%s746 + $0x21] sm:$0xff]
        %v2607 = vld [vmem:[%s746 + $0x31] sm:$0xff]
        %v2608 = vld [vmem:[%s746 + $0x39] sm:$0xff]
        %v2609 = vld [vmem:[%s746 + $0x49] sm:$0xff]
        %v2610 = vld [vmem:[%s746 + $0x51] sm:$0xff]
        %v2611 = vld [vmem:[%s746 + $0x61] sm:$0xff]
        %v2612 = vld [vmem:[%s746 + $0x69] sm:$0xff]
        %v2613 = vld [vmem:[%s746 + $0x79] sm:$0xff]
        %v2614 = vld [vmem:[%s746 + $0x81] sm:$0xff]
        %v2615 = vld [vmem:[%s746 + $0x91] sm:$0xff]
        %v2616 = vld [vmem:[%s746 + $0x99] sm:$0xff]
        %v2617 = vld [vmem:[%s746 + $0xa9] sm:$0xff]
        %v2618 = vld [vmem:[%s746 + $0xb1] sm:$0xff]
        %v2619 = vld [vmem:[%s746 + $0xc1] sm:$0xff]
        %v2620 = vld [vmem:[%s746 + $0xc9] sm:$0xff]
        %v2621 = vld [vmem:[%s746 + $0xd9] sm:$0xff]
        %v2622 = vld [vmem:[%s746 + $0xe1] sm:$0xff]
        %v2623 = vld [vmem:[%s746 + $0xf1] sm:$0xff]
        %v2624 = vld [vmem:[%s746 + $0xf9] sm:$0xff]
        %v2625 = vld [vmem:[%s746 + $0x109] sm:$0xff]
        %v2626 = vld [vmem:[%s746 + $0x111] sm:$0xff]
        %v2627 = vld [vmem:[%s746 + $0x121] sm:$0xff]
        %v2628 = vld [vmem:[%s746 + $0x129] sm:$0xff]
        %v2629 = vld [vmem:[%s746 + $0x139] sm:$0xff]
        %v2630 = vld [vmem:[%s746 + $0x141] sm:$0xff]
        %v2631 = vld [vmem:[%s746 + $0x151] sm:$0xff]
        %v2632 = vld [vmem:[%s746 + $0x159] sm:$0xff]
        %v2633 = vld [vmem:[%s746 + $0x169] sm:$0xff]
        %v2634 = vld [vmem:[%s746 + $0x171] sm:$0xff]
        %v2635 = vpack.c.bf16 %v2603, %v2603
        %v2636 = vpack.c.bf16 %v2604, %v2604
        %v2637 = vpack.c.bf16 %v2605, %v2605
        %v2638 = vpack.c.bf16 %v2606, %v2606
        %v2639 = vpack.c.bf16 %v2607, %v2607
        %v2640 = vpack.c.bf16 %v2608, %v2608
        %v2641 = vpack.c.bf16 %v2609, %v2609
        %v2642 = vpack.c.bf16 %v2610, %v2610
        %v2643 = vpack.c.bf16 %v2611, %v2611
        %v2644 = vpack.c.bf16 %v2612, %v2612
        %v2645 = vpack.c.bf16 %v2613, %v2613
        %v2646 = vpack.c.bf16 %v2614, %v2614
        %v2647 = vpack.c.bf16 %v2615, %v2615
        %v2648 = vpack.c.bf16 %v2616, %v2616
        %v2649 = vpack.c.bf16 %v2617, %v2617
        %v2650 = vpack.c.bf16 %v2618, %v2618
        %v2651 = vpack.c.bf16 %v2619, %v2619
        %v2652 = vpack.c.bf16 %v2620, %v2620
        %v2653 = vpack.c.bf16 %v2621, %v2621
        %v2654 = vpack.c.bf16 %v2622, %v2622
        %v2655 = vpack.c.bf16 %v2623, %v2623
        %v2656 = vpack.c.bf16 %v2624, %v2624
        %v2657 = vpack.c.bf16 %v2625, %v2625
        %v2658 = vpack.c.bf16 %v2626, %v2626
        %v2659 = vpack.c.bf16 %v2627, %v2627
        %v2660 = vpack.c.bf16 %v2628, %v2628
        %v2661 = vpack.c.bf16 %v2629, %v2629
        %v2662 = vpack.c.bf16 %v2630, %v2630
        %v2663 = vpack.c.bf16 %v2631, %v2631
        %v2664 = vpack.c.bf16 %v2632, %v2632
        %v2665 = vpack.c.bf16 %v2633, %v2633
        %v2666 = vpack.c.bf16 %v2634, %v2634
        %2699 = vrot.lane.b32.xlu0 %v2635, 16
        %v2700 = vpop.permute.xlu0 %2699
        %2701 = vrot.lane.b32.xlu0 %v2636, 16
        %v2702 = vpop.permute.xlu0 %2701
        %2703 = vrot.lane.b32.xlu0 %v2637, 16
        %v2704 = vpop.permute.xlu0 %2703
        %2705 = vrot.lane.b32.xlu0 %v2638, 16
        %v2706 = vpop.permute.xlu0 %2705
        %2707 = vrot.lane.b32.xlu0 %v2639, 16
        %v2708 = vpop.permute.xlu0 %2707
        %2709 = vrot.lane.b32.xlu0 %v2640, 16
        %v2710 = vpop.permute.xlu0 %2709
        %2711 = vrot.lane.b32.xlu0 %v2641, 16
        %v2712 = vpop.permute.xlu0 %2711
        %2713 = vrot.lane.b32.xlu0 %v2642, 16
        %v2714 = vpop.permute.xlu0 %2713
        %2715 = vrot.lane.b32.xlu0 %v2643, 16
        %v2716 = vpop.permute.xlu0 %2715
        %2717 = vrot.lane.b32.xlu0 %v2644, 16
        %v2718 = vpop.permute.xlu0 %2717
        %2719 = vrot.lane.b32.xlu0 %v2645, 16
        %v2720 = vpop.permute.xlu0 %2719
        %2721 = vrot.lane.b32.xlu0 %v2646, 16
        %v2722 = vpop.permute.xlu0 %2721
        %2723 = vrot.lane.b32.xlu0 %v2647, 16
        %v2724 = vpop.permute.xlu0 %2723
        %2725 = vrot.lane.b32.xlu0 %v2648, 16
        %v2726 = vpop.permute.xlu0 %2725
        %2727 = vrot.lane.b32.xlu0 %v2649, 16
        %v2728 = vpop.permute.xlu0 %2727
        %2729 = vrot.lane.b32.xlu0 %v2650, 16
        %v2730 = vpop.permute.xlu0 %2729
        %2731 = vrot.lane.b32.xlu0 %v2651, 16
        %v2732 = vpop.permute.xlu0 %2731
        %2733 = vrot.lane.b32.xlu0 %v2652, 16
        %v2734 = vpop.permute.xlu0 %2733
        %2735 = vrot.lane.b32.xlu0 %v2653, 16
        %v2736 = vpop.permute.xlu0 %2735
        %2737 = vrot.lane.b32.xlu0 %v2654, 16
        %v2738 = vpop.permute.xlu0 %2737
        %2739 = vrot.lane.b32.xlu0 %v2655, 16
        %v2740 = vpop.permute.xlu0 %2739
        %2741 = vrot.lane.b32.xlu0 %v2656, 16
        %v2742 = vpop.permute.xlu0 %2741
        %2743 = vrot.lane.b32.xlu0 %v2657, 16
        %v2744 = vpop.permute.xlu0 %2743
        %2745 = vrot.lane.b32.xlu0 %v2658, 16
        %v2746 = vpop.permute.xlu0 %2745
        %2747 = vrot.lane.b32.xlu0 %v2659, 16
        %v2748 = vpop.permute.xlu0 %2747
        %2749 = vrot.lane.b32.xlu0 %v2660, 16
        %v2750 = vpop.permute.xlu0 %2749
        %2751 = vrot.lane.b32.xlu0 %v2661, 16
        %v2752 = vpop.permute.xlu0 %2751
        %2753 = vrot.lane.b32.xlu0 %v2662, 16
        %v2754 = vpop.permute.xlu0 %2753
        %2755 = vrot.lane.b32.xlu0 %v2663, 16
        %v2756 = vpop.permute.xlu0 %2755
        %2757 = vrot.lane.b32.xlu0 %v2664, 16
        %v2758 = vpop.permute.xlu0 %2757
        %2759 = vrot.lane.b32.xlu0 %v2665, 16
        %v2760 = vpop.permute.xlu0 %2759
        %2761 = vrot.lane.b32.xlu0 %v2666, 16
        %v2762 = vpop.permute.xlu0 %2761
        %2795 = vst.msk [vmem:[#allocation5] sm:$0xf] %vm1744, %v2700
        %2796 = vst.msk [vmem:[#allocation5 + $0x8] sm:$0xf] %vm1744, %v2702
        %2797 = vst.msk [vmem:[#allocation5 + $0x10] sm:$0xf] %vm1744, %v2704
        %2798 = vst.msk [vmem:[#allocation5 + $0x18] sm:$0xf] %vm1744, %v2706
        %2799 = vst.msk [vmem:[#allocation5 + $0x20] sm:$0xf] %vm1744, %v2708
        %2800 = vst.msk [vmem:[#allocation5 + $0x28] sm:$0xf] %vm1744, %v2710
        %2801 = vst.msk [vmem:[#allocation5 + $0x30] sm:$0xf] %vm1744, %v2712
        %2802 = vst.msk [vmem:[#allocation5 + $0x38] sm:$0xf] %vm1744, %v2714
        %2803 = vst.msk [vmem:[#allocation5 + $0x40] sm:$0xf] %vm1744, %v2716
        %2804 = vst.msk [vmem:[#allocation5 + $0x48] sm:$0xf] %vm1744, %v2718
        %2805 = vst.msk [vmem:[#allocation5 + $0x50] sm:$0xf] %vm1744, %v2720
        %2806 = vst.msk [vmem:[#allocation5 + $0x58] sm:$0xf] %vm1744, %v2722
        %2807 = vst.msk [vmem:[#allocation5 + $0x60] sm:$0xf] %vm1744, %v2724
        %2808 = vst.msk [vmem:[#allocation5 + $0x68] sm:$0xf] %vm1744, %v2726
        %2809 = vst.msk [vmem:[#allocation5 + $0x70] sm:$0xf] %vm1744, %v2728
        %2810 = vst.msk [vmem:[#allocation5 + $0x78] sm:$0xf] %vm1744, %v2730
        %2811 = vst.msk [vmem:[#allocation5 + $0x80] sm:$0xf] %vm1744, %v2732
        %2812 = vst.msk [vmem:[#allocation5 + $0x88] sm:$0xf] %vm1744, %v2734
        %2813 = vst.msk [vmem:[#allocation5 + $0x90] sm:$0xf] %vm1744, %v2736
        %2814 = vst.msk [vmem:[#allocation5 + $0x98] sm:$0xf] %vm1744, %v2738
        %2815 = vst.msk [vmem:[#allocation5 + $0xa0] sm:$0xf] %vm1744, %v2740
        %2816 = vst.msk [vmem:[#allocation5 + $0xa8] sm:$0xf] %vm1744, %v2742
        %2817 = vst.msk [vmem:[#allocation5 + $0xb0] sm:$0xf] %vm1744, %v2744
        %2818 = vst.msk [vmem:[#allocation5 + $0xb8] sm:$0xf] %vm1744, %v2746
        %2819 = vst.msk [vmem:[#allocation5 + $0xc0] sm:$0xf] %vm1744, %v2748
        %2820 = vst.msk [vmem:[#allocation5 + $0xc8] sm:$0xf] %vm1744, %v2750
        %2821 = vst.msk [vmem:[#allocation5 + $0xd0] sm:$0xf] %vm1744, %v2752
        %2822 = vst.msk [vmem:[#allocation5 + $0xd8] sm:$0xf] %vm1744, %v2754
        %2823 = vst.msk [vmem:[#allocation5 + $0xe0] sm:$0xf] %vm1744, %v2756
        %2824 = vst.msk [vmem:[#allocation5 + $0xe8] sm:$0xf] %vm1744, %v2758
        %2825 = vst.msk [vmem:[#allocation5 + $0xf0] sm:$0xf] %vm1744, %v2760
        %2826 = vst.msk [vmem:[#allocation5 + $0xf8] sm:$0xf] %vm1744, %v2762
        %v2827 = vld [vmem:[%s746 + $0x2] sm:$0xff]
        %v2828 = vld [vmem:[%s746 + $0xa] sm:$0xff]
        %v2829 = vld [vmem:[%s746 + $0x1a] sm:$0xff]
        %v2830 = vld [vmem:[%s746 + $0x22] sm:$0xff]
        %v2831 = vld [vmem:[%s746 + $0x32] sm:$0xff]
        %v2832 = vld [vmem:[%s746 + $0x3a] sm:$0xff]
        %v2833 = vld [vmem:[%s746 + $0x4a] sm:$0xff]
        %v2834 = vld [vmem:[%s746 + $0x52] sm:$0xff]
        %v2835 = vld [vmem:[%s746 + $0x62] sm:$0xff]
        %v2836 = vld [vmem:[%s746 + $0x6a] sm:$0xff]
        %v2837 = vld [vmem:[%s746 + $0x7a] sm:$0xff]
        %v2838 = vld [vmem:[%s746 + $0x82] sm:$0xff]
        %v2839 = vld [vmem:[%s746 + $0x92] sm:$0xff]
        %v2840 = vld [vmem:[%s746 + $0x9a] sm:$0xff]
        %v2841 = vld [vmem:[%s746 + $0xaa] sm:$0xff]
        %v2842 = vld [vmem:[%s746 + $0xb2] sm:$0xff]
        %v2843 = vld [vmem:[%s746 + $0xc2] sm:$0xff]
        %v2844 = vld [vmem:[%s746 + $0xca] sm:$0xff]
        %v2845 = vld [vmem:[%s746 + $0xda] sm:$0xff]
        %v2846 = vld [vmem:[%s746 + $0xe2] sm:$0xff]
        %v2847 = vld [vmem:[%s746 + $0xf2] sm:$0xff]
        %v2848 = vld [vmem:[%s746 + $0xfa] sm:$0xff]
        %v2849 = vld [vmem:[%s746 + $0x10a] sm:$0xff]
        %v2850 = vld [vmem:[%s746 + $0x112] sm:$0xff]
        %v2851 = vld [vmem:[%s746 + $0x122] sm:$0xff]
        %v2852 = vld [vmem:[%s746 + $0x12a] sm:$0xff]
        %v2853 = vld [vmem:[%s746 + $0x13a] sm:$0xff]
        %v2854 = vld [vmem:[%s746 + $0x142] sm:$0xff]
        %v2855 = vld [vmem:[%s746 + $0x152] sm:$0xff]
        %v2856 = vld [vmem:[%s746 + $0x15a] sm:$0xff]
        %v2857 = vld [vmem:[%s746 + $0x16a] sm:$0xff]
        %v2858 = vld [vmem:[%s746 + $0x172] sm:$0xff]
        %v2859 = vpack.c.bf16 %v2827, %v2827
        %v2860 = vpack.c.bf16 %v2828, %v2828
        %v2861 = vpack.c.bf16 %v2829, %v2829
        %v2862 = vpack.c.bf16 %v2830, %v2830
        %v2863 = vpack.c.bf16 %v2831, %v2831
        %v2864 = vpack.c.bf16 %v2832, %v2832
        %v2865 = vpack.c.bf16 %v2833, %v2833
        %v2866 = vpack.c.bf16 %v2834, %v2834
        %v2867 = vpack.c.bf16 %v2835, %v2835
        %v2868 = vpack.c.bf16 %v2836, %v2836
        %v2869 = vpack.c.bf16 %v2837, %v2837
        %v2870 = vpack.c.bf16 %v2838, %v2838
        %v2871 = vpack.c.bf16 %v2839, %v2839
        %v2872 = vpack.c.bf16 %v2840, %v2840
        %v2873 = vpack.c.bf16 %v2841, %v2841
        %v2874 = vpack.c.bf16 %v2842, %v2842
        %v2875 = vpack.c.bf16 %v2843, %v2843
        %v2876 = vpack.c.bf16 %v2844, %v2844
        %v2877 = vpack.c.bf16 %v2845, %v2845
        %v2878 = vpack.c.bf16 %v2846, %v2846
        %v2879 = vpack.c.bf16 %v2847, %v2847
        %v2880 = vpack.c.bf16 %v2848, %v2848
        %v2881 = vpack.c.bf16 %v2849, %v2849
        %v2882 = vpack.c.bf16 %v2850, %v2850
        %v2883 = vpack.c.bf16 %v2851, %v2851
        %v2884 = vpack.c.bf16 %v2852, %v2852
        %v2885 = vpack.c.bf16 %v2853, %v2853
        %v2886 = vpack.c.bf16 %v2854, %v2854
        %v2887 = vpack.c.bf16 %v2855, %v2855
        %v2888 = vpack.c.bf16 %v2856, %v2856
        %v2889 = vpack.c.bf16 %v2857, %v2857
        %v2890 = vpack.c.bf16 %v2858, %v2858
        %2923 = vrot.lane.b32.xlu0 %v2859, 32
        %v2924 = vpop.permute.xlu0 %2923
        %2925 = vrot.lane.b32.xlu0 %v2860, 32
        %v2926 = vpop.permute.xlu0 %2925
        %2927 = vrot.lane.b32.xlu0 %v2861, 32
        %v2928 = vpop.permute.xlu0 %2927
        %2929 = vrot.lane.b32.xlu0 %v2862, 32
        %v2930 = vpop.permute.xlu0 %2929
        %2931 = vrot.lane.b32.xlu0 %v2863, 32
        %v2932 = vpop.permute.xlu0 %2931
        %2933 = vrot.lane.b32.xlu0 %v2864, 32
        %v2934 = vpop.permute.xlu0 %2933
        %2935 = vrot.lane.b32.xlu0 %v2865, 32
        %v2936 = vpop.permute.xlu0 %2935
        %2937 = vrot.lane.b32.xlu0 %v2866, 32
        %v2938 = vpop.permute.xlu0 %2937
        %2939 = vrot.lane.b32.xlu0 %v2867, 32
        %v2940 = vpop.permute.xlu0 %2939
        %2941 = vrot.lane.b32.xlu0 %v2868, 32
        %v2942 = vpop.permute.xlu0 %2941
        %2943 = vrot.lane.b32.xlu0 %v2869, 32
        %v2944 = vpop.permute.xlu0 %2943
        %2945 = vrot.lane.b32.xlu0 %v2870, 32
        %v2946 = vpop.permute.xlu0 %2945
        %2947 = vrot.lane.b32.xlu0 %v2871, 32
        %v2948 = vpop.permute.xlu0 %2947
        %2949 = vrot.lane.b32.xlu0 %v2872, 32
        %v2950 = vpop.permute.xlu0 %2949
        %2951 = vrot.lane.b32.xlu0 %v2873, 32
        %v2952 = vpop.permute.xlu0 %2951
        %2953 = vrot.lane.b32.xlu0 %v2874, 32
        %v2954 = vpop.permute.xlu0 %2953
        %2955 = vrot.lane.b32.xlu0 %v2875, 32
        %v2956 = vpop.permute.xlu0 %2955
        %2957 = vrot.lane.b32.xlu0 %v2876, 32
        %v2958 = vpop.permute.xlu0 %2957
        %2959 = vrot.lane.b32.xlu0 %v2877, 32
        %v2960 = vpop.permute.xlu0 %2959
        %2961 = vrot.lane.b32.xlu0 %v2878, 32
        %v2962 = vpop.permute.xlu0 %2961
        %2963 = vrot.lane.b32.xlu0 %v2879, 32
        %v2964 = vpop.permute.xlu0 %2963
        %2965 = vrot.lane.b32.xlu0 %v2880, 32
        %v2966 = vpop.permute.xlu0 %2965
        %2967 = vrot.lane.b32.xlu0 %v2881, 32
        %v2968 = vpop.permute.xlu0 %2967
        %2969 = vrot.lane.b32.xlu0 %v2882, 32
        %v2970 = vpop.permute.xlu0 %2969
        %2971 = vrot.lane.b32.xlu0 %v2883, 32
        %v2972 = vpop.permute.xlu0 %2971
        %2973 = vrot.lane.b32.xlu0 %v2884, 32
        %v2974 = vpop.permute.xlu0 %2973
        %2975 = vrot.lane.b32.xlu0 %v2885, 32
        %v2976 = vpop.permute.xlu0 %2975
        %2977 = vrot.lane.b32.xlu0 %v2886, 32
        %v2978 = vpop.permute.xlu0 %2977
        %2979 = vrot.lane.b32.xlu0 %v2887, 32
        %v2980 = vpop.permute.xlu0 %2979
        %2981 = vrot.lane.b32.xlu0 %v2888, 32
        %v2982 = vpop.permute.xlu0 %2981
        %2983 = vrot.lane.b32.xlu0 %v2889, 32
        %v2984 = vpop.permute.xlu0 %2983
        %2985 = vrot.lane.b32.xlu0 %v2890, 32
        %v2986 = vpop.permute.xlu0 %2985
        %3019 = vst.msk [vmem:[#allocation5] sm:$0xf] %vm1801, %v2924
        %3020 = vst.msk [vmem:[#allocation5 + $0x8] sm:$0xf] %vm1801, %v2926
        %3021 = vst.msk [vmem:[#allocation5 + $0x10] sm:$0xf] %vm1801, %v2928
        %3022 = vst.msk [vmem:[#allocation5 + $0x18] sm:$0xf] %vm1801, %v2930
        %3023 = vst.msk [vmem:[#allocation5 + $0x20] sm:$0xf] %vm1801, %v2932
        %3024 = vst.msk [vmem:[#allocation5 + $0x28] sm:$0xf] %vm1801, %v2934
        %3025 = vst.msk [vmem:[#allocation5 + $0x30] sm:$0xf] %vm1801, %v2936
        %3026 = vst.msk [vmem:[#allocation5 + $0x38] sm:$0xf] %vm1801, %v2938
        %3027 = vst.msk [vmem:[#allocation5 + $0x40] sm:$0xf] %vm1801, %v2940
        %3028 = vst.msk [vmem:[#allocation5 + $0x48] sm:$0xf] %vm1801, %v2942
        %3029 = vst.msk [vmem:[#allocation5 + $0x50] sm:$0xf] %vm1801, %v2944
        %3030 = vst.msk [vmem:[#allocation5 + $0x58] sm:$0xf] %vm1801, %v2946
        %3031 = vst.msk [vmem:[#allocation5 + $0x60] sm:$0xf] %vm1801, %v2948
        %3032 = vst.msk [vmem:[#allocation5 + $0x68] sm:$0xf] %vm1801, %v2950
        %3033 = vst.msk [vmem:[#allocation5 + $0x70] sm:$0xf] %vm1801, %v2952
        %3034 = vst.msk [vmem:[#allocation5 + $0x78] sm:$0xf] %vm1801, %v2954
        %3035 = vst.msk [vmem:[#allocation5 + $0x80] sm:$0xf] %vm1801, %v2956
        %3036 = vst.msk [vmem:[#allocation5 + $0x88] sm:$0xf] %vm1801, %v2958
        %3037 = vst.msk [vmem:[#allocation5 + $0x90] sm:$0xf] %vm1801, %v2960
        %3038 = vst.msk [vmem:[#allocation5 + $0x98] sm:$0xf] %vm1801, %v2962
        %3039 = vst.msk [vmem:[#allocation5 + $0xa0] sm:$0xf] %vm1801, %v2964
        %3040 = vst.msk [vmem:[#allocation5 + $0xa8] sm:$0xf] %vm1801, %v2966
        %3041 = vst.msk [vmem:[#allocation5 + $0xb0] sm:$0xf] %vm1801, %v2968
        %3042 = vst.msk [vmem:[#allocation5 + $0xb8] sm:$0xf] %vm1801, %v2970
        %3043 = vst.msk [vmem:[#allocation5 + $0xc0] sm:$0xf] %vm1801, %v2972
        %3044 = vst.msk [vmem:[#allocation5 + $0xc8] sm:$0xf] %vm1801, %v2974
        %3045 = vst.msk [vmem:[#allocation5 + $0xd0] sm:$0xf] %vm1801, %v2976
        %3046 = vst.msk [vmem:[#allocation5 + $0xd8] sm:$0xf] %vm1801, %v2978
        %3047 = vst.msk [vmem:[#allocation5 + $0xe0] sm:$0xf] %vm1801, %v2980
        %3048 = vst.msk [vmem:[#allocation5 + $0xe8] sm:$0xf] %vm1801, %v2982
        %3049 = vst.msk [vmem:[#allocation5 + $0xf0] sm:$0xf] %vm1801, %v2984
        %3050 = vst.msk [vmem:[#allocation5 + $0xf8] sm:$0xf] %vm1801, %v2986
        %s3051 = scalar_lea.vmem %s746, 24
        %v3052 = vld [vmem:[%s3051] sm:$0xff]
        %v3053 = vld [vmem:[%s3051 + $0x8] sm:$0xff]
        %v3054 = vld [vmem:[%s3051 + $0x18] sm:$0xff]
        %v3055 = vld [vmem:[%s3051 + $0x20] sm:$0xff]
        %v3056 = vld [vmem:[%s3051 + $0x30] sm:$0xff]
        %v3057 = vld [vmem:[%s3051 + $0x38] sm:$0xff]
        %v3058 = vld [vmem:[%s3051 + $0x48] sm:$0xff]
        %v3059 = vld [vmem:[%s3051 + $0x50] sm:$0xff]
        %v3060 = vld [vmem:[%s3051 + $0x60] sm:$0xff]
        %v3061 = vld [vmem:[%s3051 + $0x68] sm:$0xff]
        %v3062 = vld [vmem:[%s3051 + $0x78] sm:$0xff]
        %v3063 = vld [vmem:[%s3051 + $0x80] sm:$0xff]
        %v3064 = vld [vmem:[%s3051 + $0x90] sm:$0xff]
        %v3065 = vld [vmem:[%s3051 + $0x98] sm:$0xff]
        %v3066 = vld [vmem:[%s3051 + $0xa8] sm:$0xff]
        %v3067 = vld [vmem:[%s3051 + $0xb0] sm:$0xff]
        %v3068 = vld [vmem:[%s3051 + $0xc0] sm:$0xff]
        %v3069 = vld [vmem:[%s3051 + $0xc8] sm:$0xff]
        %v3070 = vld [vmem:[%s3051 + $0xd8] sm:$0xff]
        %v3071 = vld [vmem:[%s3051 + $0xe0] sm:$0xff]
        %v3072 = vld [vmem:[%s3051 + $0xf0] sm:$0xff]
        %v3073 = vld [vmem:[%s3051 + $0xf8] sm:$0xff]
        %v3074 = vld [vmem:[%s3051 + $0x108] sm:$0xff]
        %v3075 = vld [vmem:[%s3051 + $0x110] sm:$0xff]
        %v3076 = vld [vmem:[%s3051 + $0x120] sm:$0xff]
        %v3077 = vld [vmem:[%s3051 + $0x128] sm:$0xff]
        %v3078 = vld [vmem:[%s3051 + $0x138] sm:$0xff]
        %v3079 = vld [vmem:[%s3051 + $0x140] sm:$0xff]
        %v3080 = vld [vmem:[%s3051 + $0x150] sm:$0xff]
        %v3081 = vld [vmem:[%s3051 + $0x158] sm:$0xff]
        %v3082 = vld [vmem:[%s3051 + $0x168] sm:$0xff]
        %v3083 = vld [vmem:[%s3051 + $0x170] sm:$0xff]
        %v3084 = vpack.c.bf16 %v3052, %v3052
        %v3085 = vpack.c.bf16 %v3053, %v3053
        %v3086 = vpack.c.bf16 %v3054, %v3054
        %v3087 = vpack.c.bf16 %v3055, %v3055
        %v3088 = vpack.c.bf16 %v3056, %v3056
        %v3089 = vpack.c.bf16 %v3057, %v3057
        %v3090 = vpack.c.bf16 %v3058, %v3058
        %v3091 = vpack.c.bf16 %v3059, %v3059
        %v3092 = vpack.c.bf16 %v3060, %v3060
        %v3093 = vpack.c.bf16 %v3061, %v3061
        %v3094 = vpack.c.bf16 %v3062, %v3062
        %v3095 = vpack.c.bf16 %v3063, %v3063
        %v3096 = vpack.c.bf16 %v3064, %v3064
        %v3097 = vpack.c.bf16 %v3065, %v3065
        %v3098 = vpack.c.bf16 %v3066, %v3066
        %v3099 = vpack.c.bf16 %v3067, %v3067
        %v3100 = vpack.c.bf16 %v3068, %v3068
        %v3101 = vpack.c.bf16 %v3069, %v3069
        %v3102 = vpack.c.bf16 %v3070, %v3070
        %v3103 = vpack.c.bf16 %v3071, %v3071
        %v3104 = vpack.c.bf16 %v3072, %v3072
        %v3105 = vpack.c.bf16 %v3073, %v3073
        %v3106 = vpack.c.bf16 %v3074, %v3074
        %v3107 = vpack.c.bf16 %v3075, %v3075
        %v3108 = vpack.c.bf16 %v3076, %v3076
        %v3109 = vpack.c.bf16 %v3077, %v3077
        %v3110 = vpack.c.bf16 %v3078, %v3078
        %v3111 = vpack.c.bf16 %v3079, %v3079
        %v3112 = vpack.c.bf16 %v3080, %v3080
        %v3113 = vpack.c.bf16 %v3081, %v3081
        %v3114 = vpack.c.bf16 %v3082, %v3082
        %v3115 = vpack.c.bf16 %v3083, %v3083
        %3148 = vrot.lane.b32.xlu0 %v3084, 48
        %v3149 = vpop.permute.xlu0 %3148
        %3150 = vrot.lane.b32.xlu0 %v3085, 48
        %v3151 = vpop.permute.xlu0 %3150
        %3152 = vrot.lane.b32.xlu0 %v3086, 48
        %v3153 = vpop.permute.xlu0 %3152
        %3154 = vrot.lane.b32.xlu0 %v3087, 48
        %v3155 = vpop.permute.xlu0 %3154
        %3156 = vrot.lane.b32.xlu0 %v3088, 48
        %v3157 = vpop.permute.xlu0 %3156
        %3158 = vrot.lane.b32.xlu0 %v3089, 48
        %v3159 = vpop.permute.xlu0 %3158
        %3160 = vrot.lane.b32.xlu0 %v3090, 48
        %v3161 = vpop.permute.xlu0 %3160
        %3162 = vrot.lane.b32.xlu0 %v3091, 48
        %v3163 = vpop.permute.xlu0 %3162
        %3164 = vrot.lane.b32.xlu0 %v3092, 48
        %v3165 = vpop.permute.xlu0 %3164
        %3166 = vrot.lane.b32.xlu0 %v3093, 48
        %v3167 = vpop.permute.xlu0 %3166
        %3168 = vrot.lane.b32.xlu0 %v3094, 48
        %v3169 = vpop.permute.xlu0 %3168
        %3170 = vrot.lane.b32.xlu0 %v3095, 48
        %v3171 = vpop.permute.xlu0 %3170
        %3172 = vrot.lane.b32.xlu0 %v3096, 48
        %v3173 = vpop.permute.xlu0 %3172
        %3174 = vrot.lane.b32.xlu0 %v3097, 48
        %v3175 = vpop.permute.xlu0 %3174
        %3176 = vrot.lane.b32.xlu0 %v3098, 48
        %v3177 = vpop.permute.xlu0 %3176
        %3178 = vrot.lane.b32.xlu0 %v3099, 48
        %v3179 = vpop.permute.xlu0 %3178
        %3180 = vrot.lane.b32.xlu0 %v3100, 48
        %v3181 = vpop.permute.xlu0 %3180
        %3182 = vrot.lane.b32.xlu0 %v3101, 48
        %v3183 = vpop.permute.xlu0 %3182
        %3184 = vrot.lane.b32.xlu0 %v3102, 48
        %v3185 = vpop.permute.xlu0 %3184
        %3186 = vrot.lane.b32.xlu0 %v3103, 48
        %v3187 = vpop.permute.xlu0 %3186
        %3188 = vrot.lane.b32.xlu0 %v3104, 48
        %v3189 = vpop.permute.xlu0 %3188
        %3190 = vrot.lane.b32.xlu0 %v3105, 48
        %v3191 = vpop.permute.xlu0 %3190
        %3192 = vrot.lane.b32.xlu0 %v3106, 48
        %v3193 = vpop.permute.xlu0 %3192
        %3194 = vrot.lane.b32.xlu0 %v3107, 48
        %v3195 = vpop.permute.xlu0 %3194
        %3196 = vrot.lane.b32.xlu0 %v3108, 48
        %v3197 = vpop.permute.xlu0 %3196
        %3198 = vrot.lane.b32.xlu0 %v3109, 48
        %v3199 = vpop.permute.xlu0 %3198
        %3200 = vrot.lane.b32.xlu0 %v3110, 48
        %v3201 = vpop.permute.xlu0 %3200
        %3202 = vrot.lane.b32.xlu0 %v3111, 48
        %v3203 = vpop.permute.xlu0 %3202
        %3204 = vrot.lane.b32.xlu0 %v3112, 48
        %v3205 = vpop.permute.xlu0 %3204
        %3206 = vrot.lane.b32.xlu0 %v3113, 48
        %v3207 = vpop.permute.xlu0 %3206
        %3208 = vrot.lane.b32.xlu0 %v3114, 48
        %v3209 = vpop.permute.xlu0 %3208
        %3210 = vrot.lane.b32.xlu0 %v3115, 48
        %v3211 = vpop.permute.xlu0 %3210
        %3244 = vst.msk [vmem:[#allocation5] sm:$0xf] %vm1859, %v3149
        %3245 = vst.msk [vmem:[#allocation5 + $0x8] sm:$0xf] %vm1859, %v3151
        %3246 = vst.msk [vmem:[#allocation5 + $0x10] sm:$0xf] %vm1859, %v3153
        %3247 = vst.msk [vmem:[#allocation5 + $0x18] sm:$0xf] %vm1859, %v3155
        %3248 = vst.msk [vmem:[#allocation5 + $0x20] sm:$0xf] %vm1859, %v3157
        %3249 = vst.msk [vmem:[#allocation5 + $0x28] sm:$0xf] %vm1859, %v3159
        %3250 = vst.msk [vmem:[#allocation5 + $0x30] sm:$0xf] %vm1859, %v3161
        %3251 = vst.msk [vmem:[#allocation5 + $0x38] sm:$0xf] %vm1859, %v3163
        %3252 = vst.msk [vmem:[#allocation5 + $0x40] sm:$0xf] %vm1859, %v3165
        %3253 = vst.msk [vmem:[#allocation5 + $0x48] sm:$0xf] %vm1859, %v3167
        %3254 = vst.msk [vmem:[#allocation5 + $0x50] sm:$0xf] %vm1859, %v3169
        %3255 = vst.msk [vmem:[#allocation5 + $0x58] sm:$0xf] %vm1859, %v3171
        %3256 = vst.msk [vmem:[#allocation5 + $0x60] sm:$0xf] %vm1859, %v3173
        %3257 = vst.msk [vmem:[#allocation5 + $0x68] sm:$0xf] %vm1859, %v3175
        %3258 = vst.msk [vmem:[#allocation5 + $0x70] sm:$0xf] %vm1859, %v3177
        %3259 = vst.msk [vmem:[#allocation5 + $0x78] sm:$0xf] %vm1859, %v3179
        %3260 = vst.msk [vmem:[#allocation5 + $0x80] sm:$0xf] %vm1859, %v3181
        %3261 = vst.msk [vmem:[#allocation5 + $0x88] sm:$0xf] %vm1859, %v3183
        %3262 = vst.msk [vmem:[#allocation5 + $0x90] sm:$0xf] %vm1859, %v3185
        %3263 = vst.msk [vmem:[#allocation5 + $0x98] sm:$0xf] %vm1859, %v3187
        %3264 = vst.msk [vmem:[#allocation5 + $0xa0] sm:$0xf] %vm1859, %v3189
        %3265 = vst.msk [vmem:[#allocation5 + $0xa8] sm:$0xf] %vm1859, %v3191
        %3266 = vst.msk [vmem:[#allocation5 + $0xb0] sm:$0xf] %vm1859, %v3193
        %3267 = vst.msk [vmem:[#allocation5 + $0xb8] sm:$0xf] %vm1859, %v3195
        %3268 = vst.msk [vmem:[#allocation5 + $0xc0] sm:$0xf] %vm1859, %v3197
        %3269 = vst.msk [vmem:[#allocation5 + $0xc8] sm:$0xf] %vm1859, %v3199
        %3270 = vst.msk [vmem:[#allocation5 + $0xd0] sm:$0xf] %vm1859, %v3201
        %3271 = vst.msk [vmem:[#allocation5 + $0xd8] sm:$0xf] %vm1859, %v3203
        %3272 = vst.msk [vmem:[#allocation5 + $0xe0] sm:$0xf] %vm1859, %v3205
        %3273 = vst.msk [vmem:[#allocation5 + $0xe8] sm:$0xf] %vm1859, %v3207
        %3274 = vst.msk [vmem:[#allocation5 + $0xf0] sm:$0xf] %vm1859, %v3209
        %3275 = vst.msk [vmem:[#allocation5 + $0xf8] sm:$0xf] %vm1859, %v3211
        %v3276 = vld [vmem:[%s3051 + $0x1] sm:$0xff]
        %v3277 = vld [vmem:[%s3051 + $0x9] sm:$0xff]
        %v3278 = vld [vmem:[%s3051 + $0x19] sm:$0xff]
        %v3279 = vld [vmem:[%s3051 + $0x21] sm:$0xff]
        %v3280 = vld [vmem:[%s3051 + $0x31] sm:$0xff]
        %v3281 = vld [vmem:[%s3051 + $0x39] sm:$0xff]
        %v3282 = vld [vmem:[%s3051 + $0x49] sm:$0xff]
        %v3283 = vld [vmem:[%s3051 + $0x51] sm:$0xff]
        %v3284 = vld [vmem:[%s3051 + $0x61] sm:$0xff]
        %v3285 = vld [vmem:[%s3051 + $0x69] sm:$0xff]
        %v3286 = vld [vmem:[%s3051 + $0x79] sm:$0xff]
        %v3287 = vld [vmem:[%s3051 + $0x81] sm:$0xff]
        %v3288 = vld [vmem:[%s3051 + $0x91] sm:$0xff]
        %v3289 = vld [vmem:[%s3051 + $0x99] sm:$0xff]
        %v3290 = vld [vmem:[%s3051 + $0xa9] sm:$0xff]
        %v3291 = vld [vmem:[%s3051 + $0xb1] sm:$0xff]
        %v3292 = vld [vmem:[%s3051 + $0xc1] sm:$0xff]
        %v3293 = vld [vmem:[%s3051 + $0xc9] sm:$0xff]
        %v3294 = vld [vmem:[%s3051 + $0xd9] sm:$0xff]
        %v3295 = vld [vmem:[%s3051 + $0xe1] sm:$0xff]
        %v3296 = vld [vmem:[%s3051 + $0xf1] sm:$0xff]
        %v3297 = vld [vmem:[%s3051 + $0xf9] sm:$0xff]
        %v3298 = vld [vmem:[%s3051 + $0x109] sm:$0xff]
        %v3299 = vld [vmem:[%s3051 + $0x111] sm:$0xff]
        %v3300 = vld [vmem:[%s3051 + $0x121] sm:$0xff]
        %v3301 = vld [vmem:[%s3051 + $0x129] sm:$0xff]
        %v3302 = vld [vmem:[%s3051 + $0x139] sm:$0xff]
        %v3303 = vld [vmem:[%s3051 + $0x141] sm:$0xff]
        %v3304 = vld [vmem:[%s3051 + $0x151] sm:$0xff]
        %v3305 = vld [vmem:[%s3051 + $0x159] sm:$0xff]
        %v3306 = vld [vmem:[%s3051 + $0x169] sm:$0xff]
        %v3307 = vld [vmem:[%s3051 + $0x171] sm:$0xff]
        %v3308 = vpack.c.bf16 %v3276, %v3276
        %v3309 = vpack.c.bf16 %v3277, %v3277
        %v3310 = vpack.c.bf16 %v3278, %v3278
        %v3311 = vpack.c.bf16 %v3279, %v3279
        %v3312 = vpack.c.bf16 %v3280, %v3280
        %v3313 = vpack.c.bf16 %v3281, %v3281
        %v3314 = vpack.c.bf16 %v3282, %v3282
        %v3315 = vpack.c.bf16 %v3283, %v3283
        %v3316 = vpack.c.bf16 %v3284, %v3284
        %v3317 = vpack.c.bf16 %v3285, %v3285
        %v3318 = vpack.c.bf16 %v3286, %v3286
        %v3319 = vpack.c.bf16 %v3287, %v3287
        %v3320 = vpack.c.bf16 %v3288, %v3288
        %v3321 = vpack.c.bf16 %v3289, %v3289
        %v3322 = vpack.c.bf16 %v3290, %v3290
        %v3323 = vpack.c.bf16 %v3291, %v3291
        %v3324 = vpack.c.bf16 %v3292, %v3292
        %v3325 = vpack.c.bf16 %v3293, %v3293
        %v3326 = vpack.c.bf16 %v3294, %v3294
        %v3327 = vpack.c.bf16 %v3295, %v3295
        %v3328 = vpack.c.bf16 %v3296, %v3296
        %v3329 = vpack.c.bf16 %v3297, %v3297
        %v3330 = vpack.c.bf16 %v3298, %v3298
        %v3331 = vpack.c.bf16 %v3299, %v3299
        %v3332 = vpack.c.bf16 %v3300, %v3300
        %v3333 = vpack.c.bf16 %v3301, %v3301
        %v3334 = vpack.c.bf16 %v3302, %v3302
        %v3335 = vpack.c.bf16 %v3303, %v3303
        %v3336 = vpack.c.bf16 %v3304, %v3304
        %v3337 = vpack.c.bf16 %v3305, %v3305
        %v3338 = vpack.c.bf16 %v3306, %v3306
        %v3339 = vpack.c.bf16 %v3307, %v3307
        %3372 = vrot.lane.b32.xlu0 %v3308, 64
        %v3373 = vpop.permute.xlu0 %3372
        %3374 = vrot.lane.b32.xlu0 %v3309, 64
        %v3375 = vpop.permute.xlu0 %3374
        %3376 = vrot.lane.b32.xlu0 %v3310, 64
        %v3377 = vpop.permute.xlu0 %3376
        %3378 = vrot.lane.b32.xlu0 %v3311, 64
        %v3379 = vpop.permute.xlu0 %3378
        %3380 = vrot.lane.b32.xlu0 %v3312, 64
        %v3381 = vpop.permute.xlu0 %3380
        %3382 = vrot.lane.b32.xlu0 %v3313, 64
        %v3383 = vpop.permute.xlu0 %3382
        %3384 = vrot.lane.b32.xlu0 %v3314, 64
        %v3385 = vpop.permute.xlu0 %3384
        %3386 = vrot.lane.b32.xlu0 %v3315, 64
        %v3387 = vpop.permute.xlu0 %3386
        %3388 = vrot.lane.b32.xlu0 %v3316, 64
        %v3389 = vpop.permute.xlu0 %3388
        %3390 = vrot.lane.b32.xlu0 %v3317, 64
        %v3391 = vpop.permute.xlu0 %3390
        %3392 = vrot.lane.b32.xlu0 %v3318, 64
        %v3393 = vpop.permute.xlu0 %3392
        %3394 = vrot.lane.b32.xlu0 %v3319, 64
        %v3395 = vpop.permute.xlu0 %3394
        %3396 = vrot.lane.b32.xlu0 %v3320, 64
        %v3397 = vpop.permute.xlu0 %3396
        %3398 = vrot.lane.b32.xlu0 %v3321, 64
        %v3399 = vpop.permute.xlu0 %3398
        %3400 = vrot.lane.b32.xlu0 %v3322, 64
        %v3401 = vpop.permute.xlu0 %3400
        %3402 = vrot.lane.b32.xlu0 %v3323, 64
        %v3403 = vpop.permute.xlu0 %3402
        %3404 = vrot.lane.b32.xlu0 %v3324, 64
        %v3405 = vpop.permute.xlu0 %3404
        %3406 = vrot.lane.b32.xlu0 %v3325, 64
        %v3407 = vpop.permute.xlu0 %3406
        %3408 = vrot.lane.b32.xlu0 %v3326, 64
        %v3409 = vpop.permute.xlu0 %3408
        %3410 = vrot.lane.b32.xlu0 %v3327, 64
        %v3411 = vpop.permute.xlu0 %3410
        %3412 = vrot.lane.b32.xlu0 %v3328, 64
        %v3413 = vpop.permute.xlu0 %3412
        %3414 = vrot.lane.b32.xlu0 %v3329, 64
        %v3415 = vpop.permute.xlu0 %3414
        %3416 = vrot.lane.b32.xlu0 %v3330, 64
        %v3417 = vpop.permute.xlu0 %3416
        %3418 = vrot.lane.b32.xlu0 %v3331, 64
        %v3419 = vpop.permute.xlu0 %3418
        %3420 = vrot.lane.b32.xlu0 %v3332, 64
        %v3421 = vpop.permute.xlu0 %3420
        %3422 = vrot.lane.b32.xlu0 %v3333, 64
        %v3423 = vpop.permute.xlu0 %3422
        %3424 = vrot.lane.b32.xlu0 %v3334, 64
        %v3425 = vpop.permute.xlu0 %3424
        %3426 = vrot.lane.b32.xlu0 %v3335, 64
        %v3427 = vpop.permute.xlu0 %3426
        %3428 = vrot.lane.b32.xlu0 %v3336, 64
        %v3429 = vpop.permute.xlu0 %3428
        %3430 = vrot.lane.b32.xlu0 %v3337, 64
        %v3431 = vpop.permute.xlu0 %3430
        %3432 = vrot.lane.b32.xlu0 %v3338, 64
        %v3433 = vpop.permute.xlu0 %3432
        %3434 = vrot.lane.b32.xlu0 %v3339, 64
        %v3435 = vpop.permute.xlu0 %3434
        %3468 = vst.msk [vmem:[#allocation5] sm:$0xf] %vm1916, %v3373
        %3469 = vst.msk [vmem:[#allocation5 + $0x8] sm:$0xf] %vm1916, %v3375
        %3470 = vst.msk [vmem:[#allocation5 + $0x10] sm:$0xf] %vm1916, %v3377
        %3471 = vst.msk [vmem:[#allocation5 + $0x18] sm:$0xf] %vm1916, %v3379
        %3472 = vst.msk [vmem:[#allocation5 + $0x20] sm:$0xf] %vm1916, %v3381
        %3473 = vst.msk [vmem:[#allocation5 + $0x28] sm:$0xf] %vm1916, %v3383
        %3474 = vst.msk [vmem:[#allocation5 + $0x30] sm:$0xf] %vm1916, %v3385
        %3475 = vst.msk [vmem:[#allocation5 + $0x38] sm:$0xf] %vm1916, %v3387
        %3476 = vst.msk [vmem:[#allocation5 + $0x40] sm:$0xf] %vm1916, %v3389
        %3477 = vst.msk [vmem:[#allocation5 + $0x48] sm:$0xf] %vm1916, %v3391
        %3478 = vst.msk [vmem:[#allocation5 + $0x50] sm:$0xf] %vm1916, %v3393
        %3479 = vst.msk [vmem:[#allocation5 + $0x58] sm:$0xf] %vm1916, %v3395
        %3480 = vst.msk [vmem:[#allocation5 + $0x60] sm:$0xf] %vm1916, %v3397
        %3481 = vst.msk [vmem:[#allocation5 + $0x68] sm:$0xf] %vm1916, %v3399
        %3482 = vst.msk [vmem:[#allocation5 + $0x70] sm:$0xf] %vm1916, %v3401
        %3483 = vst.msk [vmem:[#allocation5 + $0x78] sm:$0xf] %vm1916, %v3403
        %3484 = vst.msk [vmem:[#allocation5 + $0x80] sm:$0xf] %vm1916, %v3405
        %3485 = vst.msk [vmem:[#allocation5 + $0x88] sm:$0xf] %vm1916, %v3407
        %3486 = vst.msk [vmem:[#allocation5 + $0x90] sm:$0xf] %vm1916, %v3409
        %3487 = vst.msk [vmem:[#allocation5 + $0x98] sm:$0xf] %vm1916, %v3411
        %3488 = vst.msk [vmem:[#allocation5 + $0xa0] sm:$0xf] %vm1916, %v3413
        %3489 = vst.msk [vmem:[#allocation5 + $0xa8] sm:$0xf] %vm1916, %v3415
        %3490 = vst.msk [vmem:[#allocation5 + $0xb0] sm:$0xf] %vm1916, %v3417
        %3491 = vst.msk [vmem:[#allocation5 + $0xb8] sm:$0xf] %vm1916, %v3419
        %3492 = vst.msk [vmem:[#allocation5 + $0xc0] sm:$0xf] %vm1916, %v3421
        %3493 = vst.msk [vmem:[#allocation5 + $0xc8] sm:$0xf] %vm1916, %v3423
        %3494 = vst.msk [vmem:[#allocation5 + $0xd0] sm:$0xf] %vm1916, %v3425
        %3495 = vst.msk [vmem:[#allocation5 + $0xd8] sm:$0xf] %vm1916, %v3427
        %3496 = vst.msk [vmem:[#allocation5 + $0xe0] sm:$0xf] %vm1916, %v3429
        %3497 = vst.msk [vmem:[#allocation5 + $0xe8] sm:$0xf] %vm1916, %v3431
        %3498 = vst.msk [vmem:[#allocation5 + $0xf0] sm:$0xf] %vm1916, %v3433
        %3499 = vst.msk [vmem:[#allocation5 + $0xf8] sm:$0xf] %vm1916, %v3435
        %v3500 = vld [vmem:[%s3051 + $0x2] sm:$0xff]
        %v3501 = vld [vmem:[%s3051 + $0xa] sm:$0xff]
        %v3502 = vld [vmem:[%s3051 + $0x1a] sm:$0xff]
        %v3503 = vld [vmem:[%s3051 + $0x22] sm:$0xff]
        %v3504 = vld [vmem:[%s3051 + $0x32] sm:$0xff]
        %v3505 = vld [vmem:[%s3051 + $0x3a] sm:$0xff]
        %v3506 = vld [vmem:[%s3051 + $0x4a] sm:$0xff]
        %v3507 = vld [vmem:[%s3051 + $0x52] sm:$0xff]
        %v3508 = vld [vmem:[%s3051 + $0x62] sm:$0xff]
        %v3509 = vld [vmem:[%s3051 + $0x6a] sm:$0xff]
        %v3510 = vld [vmem:[%s3051 + $0x7a] sm:$0xff]
        %v3511 = vld [vmem:[%s3051 + $0x82] sm:$0xff]
        %v3512 = vld [vmem:[%s3051 + $0x92] sm:$0xff]
        %v3513 = vld [vmem:[%s3051 + $0x9a] sm:$0xff]
        %v3514 = vld [vmem:[%s3051 + $0xaa] sm:$0xff]
        %v3515 = vld [vmem:[%s3051 + $0xb2] sm:$0xff]
        %v3516 = vld [vmem:[%s3051 + $0xc2] sm:$0xff]
        %v3517 = vld [vmem:[%s3051 + $0xca] sm:$0xff]
        %v3518 = vld [vmem:[%s3051 + $0xda] sm:$0xff]
        %v3519 = vld [vmem:[%s3051 + $0xe2] sm:$0xff]
        %v3520 = vld [vmem:[%s3051 + $0xf2] sm:$0xff]
        %v3521 = vld [vmem:[%s3051 + $0xfa] sm:$0xff]
        %v3522 = vld [vmem:[%s3051 + $0x10a] sm:$0xff]
        %v3523 = vld [vmem:[%s3051 + $0x112] sm:$0xff]
        %v3524 = vld [vmem:[%s3051 + $0x122] sm:$0xff]
        %v3525 = vld [vmem:[%s3051 + $0x12a] sm:$0xff]
        %v3526 = vld [vmem:[%s3051 + $0x13a] sm:$0xff]
        %v3527 = vld [vmem:[%s3051 + $0x142] sm:$0xff]
        %v3528 = vld [vmem:[%s3051 + $0x152] sm:$0xff]
        %v3529 = vld [vmem:[%s3051 + $0x15a] sm:$0xff]
        %v3530 = vld [vmem:[%s3051 + $0x16a] sm:$0xff]
        %v3531 = vld [vmem:[%s3051 + $0x172] sm:$0xff]
        %v3532 = vpack.c.bf16 %v3500, %v3500
        %v3533 = vpack.c.bf16 %v3501, %v3501
        %v3534 = vpack.c.bf16 %v3502, %v3502
        %v3535 = vpack.c.bf16 %v3503, %v3503
        %v3536 = vpack.c.bf16 %v3504, %v3504
        %v3537 = vpack.c.bf16 %v3505, %v3505
        %v3538 = vpack.c.bf16 %v3506, %v3506
        %v3539 = vpack.c.bf16 %v3507, %v3507
        %v3540 = vpack.c.bf16 %v3508, %v3508
        %v3541 = vpack.c.bf16 %v3509, %v3509
        %v3542 = vpack.c.bf16 %v3510, %v3510
        %v3543 = vpack.c.bf16 %v3511, %v3511
        %v3544 = vpack.c.bf16 %v3512, %v3512
        %v3545 = vpack.c.bf16 %v3513, %v3513
        %v3546 = vpack.c.bf16 %v3514, %v3514
        %v3547 = vpack.c.bf16 %v3515, %v3515
        %v3548 = vpack.c.bf16 %v3516, %v3516
        %v3549 = vpack.c.bf16 %v3517, %v3517
        %v3550 = vpack.c.bf16 %v3518, %v3518
        %v3551 = vpack.c.bf16 %v3519, %v3519
        %v3552 = vpack.c.bf16 %v3520, %v3520
        %v3553 = vpack.c.bf16 %v3521, %v3521
        %v3554 = vpack.c.bf16 %v3522, %v3522
        %v3555 = vpack.c.bf16 %v3523, %v3523
        %v3556 = vpack.c.bf16 %v3524, %v3524
        %v3557 = vpack.c.bf16 %v3525, %v3525
        %v3558 = vpack.c.bf16 %v3526, %v3526
        %v3559 = vpack.c.bf16 %v3527, %v3527
        %v3560 = vpack.c.bf16 %v3528, %v3528
        %v3561 = vpack.c.bf16 %v3529, %v3529
        %v3562 = vpack.c.bf16 %v3530, %v3530
        %v3563 = vpack.c.bf16 %v3531, %v3531
        %3596 = vrot.lane.b32.xlu0 %v3532, 80
        %v3597 = vpop.permute.xlu0 %3596
        %3598 = vrot.lane.b32.xlu0 %v3533, 80
        %v3599 = vpop.permute.xlu0 %3598
        %3600 = vrot.lane.b32.xlu0 %v3534, 80
        %v3601 = vpop.permute.xlu0 %3600
        %3602 = vrot.lane.b32.xlu0 %v3535, 80
        %v3603 = vpop.permute.xlu0 %3602
        %3604 = vrot.lane.b32.xlu0 %v3536, 80
        %v3605 = vpop.permute.xlu0 %3604
        %3606 = vrot.lane.b32.xlu0 %v3537, 80
        %v3607 = vpop.permute.xlu0 %3606
        %3608 = vrot.lane.b32.xlu0 %v3538, 80
        %v3609 = vpop.permute.xlu0 %3608
        %3610 = vrot.lane.b32.xlu0 %v3539, 80
        %v3611 = vpop.permute.xlu0 %3610
        %3612 = vrot.lane.b32.xlu0 %v3540, 80
        %v3613 = vpop.permute.xlu0 %3612
        %3614 = vrot.lane.b32.xlu0 %v3541, 80
        %v3615 = vpop.permute.xlu0 %3614
        %3616 = vrot.lane.b32.xlu0 %v3542, 80
        %v3617 = vpop.permute.xlu0 %3616
        %3618 = vrot.lane.b32.xlu0 %v3543, 80
        %v3619 = vpop.permute.xlu0 %3618
        %3620 = vrot.lane.b32.xlu0 %v3544, 80
        %v3621 = vpop.permute.xlu0 %3620
        %3622 = vrot.lane.b32.xlu0 %v3545, 80
        %v3623 = vpop.permute.xlu0 %3622
        %3624 = vrot.lane.b32.xlu0 %v3546, 80
        %v3625 = vpop.permute.xlu0 %3624
        %3626 = vrot.lane.b32.xlu0 %v3547, 80
        %v3627 = vpop.permute.xlu0 %3626
        %3628 = vrot.lane.b32.xlu0 %v3548, 80
        %v3629 = vpop.permute.xlu0 %3628
        %3630 = vrot.lane.b32.xlu0 %v3549, 80
        %v3631 = vpop.permute.xlu0 %3630
        %3632 = vrot.lane.b32.xlu0 %v3550, 80
        %v3633 = vpop.permute.xlu0 %3632
        %3634 = vrot.lane.b32.xlu0 %v3551, 80
        %v3635 = vpop.permute.xlu0 %3634
        %3636 = vrot.lane.b32.xlu0 %v3552, 80
        %v3637 = vpop.permute.xlu0 %3636
        %3638 = vrot.lane.b32.xlu0 %v3553, 80
        %v3639 = vpop.permute.xlu0 %3638
        %3640 = vrot.lane.b32.xlu0 %v3554, 80
        %v3641 = vpop.permute.xlu0 %3640
        %3642 = vrot.lane.b32.xlu0 %v3555, 80
        %v3643 = vpop.permute.xlu0 %3642
        %3644 = vrot.lane.b32.xlu0 %v3556, 80
        %v3645 = vpop.permute.xlu0 %3644
        %3646 = vrot.lane.b32.xlu0 %v3557, 80
        %v3647 = vpop.permute.xlu0 %3646
        %3648 = vrot.lane.b32.xlu0 %v3558, 80
        %v3649 = vpop.permute.xlu0 %3648
        %3650 = vrot.lane.b32.xlu0 %v3559, 80
        %v3651 = vpop.permute.xlu0 %3650
        %3652 = vrot.lane.b32.xlu0 %v3560, 80
        %v3653 = vpop.permute.xlu0 %3652
        %3654 = vrot.lane.b32.xlu0 %v3561, 80
        %v3655 = vpop.permute.xlu0 %3654
        %3656 = vrot.lane.b32.xlu0 %v3562, 80
        %v3657 = vpop.permute.xlu0 %3656
        %3658 = vrot.lane.b32.xlu0 %v3563, 80
        %v3659 = vpop.permute.xlu0 %3658
        %3692 = vst.msk [vmem:[#allocation5] sm:$0xf] %vm1973, %v3597
        %3693 = vst.msk [vmem:[#allocation5 + $0x8] sm:$0xf] %vm1973, %v3599
        %3694 = vst.msk [vmem:[#allocation5 + $0x10] sm:$0xf] %vm1973, %v3601
        %3695 = vst.msk [vmem:[#allocation5 + $0x18] sm:$0xf] %vm1973, %v3603
        %3696 = vst.msk [vmem:[#allocation5 + $0x20] sm:$0xf] %vm1973, %v3605
        %3697 = vst.msk [vmem:[#allocation5 + $0x28] sm:$0xf] %vm1973, %v3607
        %3698 = vst.msk [vmem:[#allocation5 + $0x30] sm:$0xf] %vm1973, %v3609
        %3699 = vst.msk [vmem:[#allocation5 + $0x38] sm:$0xf] %vm1973, %v3611
        %3700 = vst.msk [vmem:[#allocation5 + $0x40] sm:$0xf] %vm1973, %v3613
        %3701 = vst.msk [vmem:[#allocation5 + $0x48] sm:$0xf] %vm1973, %v3615
        %3702 = vst.msk [vmem:[#allocation5 + $0x50] sm:$0xf] %vm1973, %v3617
        %3703 = vst.msk [vmem:[#allocation5 + $0x58] sm:$0xf] %vm1973, %v3619
        %3704 = vst.msk [vmem:[#allocation5 + $0x60] sm:$0xf] %vm1973, %v3621
        %3705 = vst.msk [vmem:[#allocation5 + $0x68] sm:$0xf] %vm1973, %v3623
        %3706 = vst.msk [vmem:[#allocation5 + $0x70] sm:$0xf] %vm1973, %v3625
        %3707 = vst.msk [vmem:[#allocation5 + $0x78] sm:$0xf] %vm1973, %v3627
        %3708 = vst.msk [vmem:[#allocation5 + $0x80] sm:$0xf] %vm1973, %v3629
        %3709 = vst.msk [vmem:[#allocation5 + $0x88] sm:$0xf] %vm1973, %v3631
        %3710 = vst.msk [vmem:[#allocation5 + $0x90] sm:$0xf] %vm1973, %v3633
        %3711 = vst.msk [vmem:[#allocation5 + $0x98] sm:$0xf] %vm1973, %v3635
        %3712 = vst.msk [vmem:[#allocation5 + $0xa0] sm:$0xf] %vm1973, %v3637
        %3713 = vst.msk [vmem:[#allocation5 + $0xa8] sm:$0xf] %vm1973, %v3639
        %3714 = vst.msk [vmem:[#allocation5 + $0xb0] sm:$0xf] %vm1973, %v3641
        %3715 = vst.msk [vmem:[#allocation5 + $0xb8] sm:$0xf] %vm1973, %v3643
        %3716 = vst.msk [vmem:[#allocation5 + $0xc0] sm:$0xf] %vm1973, %v3645
        %3717 = vst.msk [vmem:[#allocation5 + $0xc8] sm:$0xf] %vm1973, %v3647
        %3718 = vst.msk [vmem:[#allocation5 + $0xd0] sm:$0xf] %vm1973, %v3649
        %3719 = vst.msk [vmem:[#allocation5 + $0xd8] sm:$0xf] %vm1973, %v3651
        %3720 = vst.msk [vmem:[#allocation5 + $0xe0] sm:$0xf] %vm1973, %v3653
        %3721 = vst.msk [vmem:[#allocation5 + $0xe8] sm:$0xf] %vm1973, %v3655
        %3722 = vst.msk [vmem:[#allocation5 + $0xf0] sm:$0xf] %vm1973, %v3657
        %3723 = vst.msk [vmem:[#allocation5 + $0xf8] sm:$0xf] %vm1973, %v3659
        %s3724 = scalar_lea.vmem %s746, 48
        %v3725 = vld [vmem:[%s3724] sm:$0xff]
        %v3726 = vld [vmem:[%s3724 + $0x8] sm:$0xff]
        %v3727 = vld [vmem:[%s3724 + $0x18] sm:$0xff]
        %v3728 = vld [vmem:[%s3724 + $0x20] sm:$0xff]
        %v3729 = vld [vmem:[%s3724 + $0x30] sm:$0xff]
        %v3730 = vld [vmem:[%s3724 + $0x38] sm:$0xff]
        %v3731 = vld [vmem:[%s3724 + $0x48] sm:$0xff]
        %v3732 = vld [vmem:[%s3724 + $0x50] sm:$0xff]
        %v3733 = vld [vmem:[%s3724 + $0x60] sm:$0xff]
        %v3734 = vld [vmem:[%s3724 + $0x68] sm:$0xff]
        %v3735 = vld [vmem:[%s3724 + $0x78] sm:$0xff]
        %v3736 = vld [vmem:[%s3724 + $0x80] sm:$0xff]
        %v3737 = vld [vmem:[%s3724 + $0x90] sm:$0xff]
        %v3738 = vld [vmem:[%s3724 + $0x98] sm:$0xff]
        %v3739 = vld [vmem:[%s3724 + $0xa8] sm:$0xff]
        %v3740 = vld [vmem:[%s3724 + $0xb0] sm:$0xff]
        %v3741 = vld [vmem:[%s3724 + $0xc0] sm:$0xff]
        %v3742 = vld [vmem:[%s3724 + $0xc8] sm:$0xff]
        %v3743 = vld [vmem:[%s3724 + $0xd8] sm:$0xff]
        %v3744 = vld [vmem:[%s3724 + $0xe0] sm:$0xff]
        %v3745 = vld [vmem:[%s3724 + $0xf0] sm:$0xff]
        %v3746 = vld [vmem:[%s3724 + $0xf8] sm:$0xff]
        %v3747 = vld [vmem:[%s3724 + $0x108] sm:$0xff]
        %v3748 = vld [vmem:[%s3724 + $0x110] sm:$0xff]
        %v3749 = vld [vmem:[%s3724 + $0x120] sm:$0xff]
        %v3750 = vld [vmem:[%s3724 + $0x128] sm:$0xff]
        %v3751 = vld [vmem:[%s3724 + $0x138] sm:$0xff]
        %v3752 = vld [vmem:[%s3724 + $0x140] sm:$0xff]
        %v3753 = vld [vmem:[%s3724 + $0x150] sm:$0xff]
        %v3754 = vld [vmem:[%s3724 + $0x158] sm:$0xff]
        %v3755 = vld [vmem:[%s3724 + $0x168] sm:$0xff]
        %v3756 = vld [vmem:[%s3724 + $0x170] sm:$0xff]
        %v3757 = vpack.c.bf16 %v3725, %v3725
        %v3758 = vpack.c.bf16 %v3726, %v3726
        %v3759 = vpack.c.bf16 %v3727, %v3727
        %v3760 = vpack.c.bf16 %v3728, %v3728
        %v3761 = vpack.c.bf16 %v3729, %v3729
        %v3762 = vpack.c.bf16 %v3730, %v3730
        %v3763 = vpack.c.bf16 %v3731, %v3731
        %v3764 = vpack.c.bf16 %v3732, %v3732
        %v3765 = vpack.c.bf16 %v3733, %v3733
        %v3766 = vpack.c.bf16 %v3734, %v3734
        %v3767 = vpack.c.bf16 %v3735, %v3735
        %v3768 = vpack.c.bf16 %v3736, %v3736
        %v3769 = vpack.c.bf16 %v3737, %v3737
        %v3770 = vpack.c.bf16 %v3738, %v3738
        %v3771 = vpack.c.bf16 %v3739, %v3739
        %v3772 = vpack.c.bf16 %v3740, %v3740
        %v3773 = vpack.c.bf16 %v3741, %v3741
        %v3774 = vpack.c.bf16 %v3742, %v3742
        %v3775 = vpack.c.bf16 %v3743, %v3743
        %v3776 = vpack.c.bf16 %v3744, %v3744
        %v3777 = vpack.c.bf16 %v3745, %v3745
        %v3778 = vpack.c.bf16 %v3746, %v3746
        %v3779 = vpack.c.bf16 %v3747, %v3747
        %v3780 = vpack.c.bf16 %v3748, %v3748
        %v3781 = vpack.c.bf16 %v3749, %v3749
        %v3782 = vpack.c.bf16 %v3750, %v3750
        %v3783 = vpack.c.bf16 %v3751, %v3751
        %v3784 = vpack.c.bf16 %v3752, %v3752
        %v3785 = vpack.c.bf16 %v3753, %v3753
        %v3786 = vpack.c.bf16 %v3754, %v3754
        %v3787 = vpack.c.bf16 %v3755, %v3755
        %v3788 = vpack.c.bf16 %v3756, %v3756
        %3821 = vrot.lane.b32.xlu0 %v3757, 96
        %v3822 = vpop.permute.xlu0 %3821
        %3823 = vrot.lane.b32.xlu0 %v3758, 96
        %v3824 = vpop.permute.xlu0 %3823
        %3825 = vrot.lane.b32.xlu0 %v3759, 96
        %v3826 = vpop.permute.xlu0 %3825
        %3827 = vrot.lane.b32.xlu0 %v3760, 96
        %v3828 = vpop.permute.xlu0 %3827
        %3829 = vrot.lane.b32.xlu0 %v3761, 96
        %v3830 = vpop.permute.xlu0 %3829
        %3831 = vrot.lane.b32.xlu0 %v3762, 96
        %v3832 = vpop.permute.xlu0 %3831
        %3833 = vrot.lane.b32.xlu0 %v3763, 96
        %v3834 = vpop.permute.xlu0 %3833
        %3835 = vrot.lane.b32.xlu0 %v3764, 96
        %v3836 = vpop.permute.xlu0 %3835
        %3837 = vrot.lane.b32.xlu0 %v3765, 96
        %v3838 = vpop.permute.xlu0 %3837
        %3839 = vrot.lane.b32.xlu0 %v3766, 96
        %v3840 = vpop.permute.xlu0 %3839
        %3841 = vrot.lane.b32.xlu0 %v3767, 96
        %v3842 = vpop.permute.xlu0 %3841
        %3843 = vrot.lane.b32.xlu0 %v3768, 96
        %v3844 = vpop.permute.xlu0 %3843
        %3845 = vrot.lane.b32.xlu0 %v3769, 96
        %v3846 = vpop.permute.xlu0 %3845
        %3847 = vrot.lane.b32.xlu0 %v3770, 96
        %v3848 = vpop.permute.xlu0 %3847
        %3849 = vrot.lane.b32.xlu0 %v3771, 96
        %v3850 = vpop.permute.xlu0 %3849
        %3851 = vrot.lane.b32.xlu0 %v3772, 96
        %v3852 = vpop.permute.xlu0 %3851
        %3853 = vrot.lane.b32.xlu0 %v3773, 96
        %v3854 = vpop.permute.xlu0 %3853
        %3855 = vrot.lane.b32.xlu0 %v3774, 96
        %v3856 = vpop.permute.xlu0 %3855
        %3857 = vrot.lane.b32.xlu0 %v3775, 96
        %v3858 = vpop.permute.xlu0 %3857
        %3859 = vrot.lane.b32.xlu0 %v3776, 96
        %v3860 = vpop.permute.xlu0 %3859
        %3861 = vrot.lane.b32.xlu0 %v3777, 96
        %v3862 = vpop.permute.xlu0 %3861
        %3863 = vrot.lane.b32.xlu0 %v3778, 96
        %v3864 = vpop.permute.xlu0 %3863
        %3865 = vrot.lane.b32.xlu0 %v3779, 96
        %v3866 = vpop.permute.xlu0 %3865
        %3867 = vrot.lane.b32.xlu0 %v3780, 96
        %v3868 = vpop.permute.xlu0 %3867
        %3869 = vrot.lane.b32.xlu0 %v3781, 96
        %v3870 = vpop.permute.xlu0 %3869
        %3871 = vrot.lane.b32.xlu0 %v3782, 96
        %v3872 = vpop.permute.xlu0 %3871
        %3873 = vrot.lane.b32.xlu0 %v3783, 96
        %v3874 = vpop.permute.xlu0 %3873
        %3875 = vrot.lane.b32.xlu0 %v3784, 96
        %v3876 = vpop.permute.xlu0 %3875
        %3877 = vrot.lane.b32.xlu0 %v3785, 96
        %v3878 = vpop.permute.xlu0 %3877
        %3879 = vrot.lane.b32.xlu0 %v3786, 96
        %v3880 = vpop.permute.xlu0 %3879
        %3881 = vrot.lane.b32.xlu0 %v3787, 96
        %v3882 = vpop.permute.xlu0 %3881
        %3883 = vrot.lane.b32.xlu0 %v3788, 96
        %v3884 = vpop.permute.xlu0 %3883
        %3917 = vst.msk [vmem:[#allocation5] sm:$0xf] %vm2031, %v3822
        %3918 = vst.msk [vmem:[#allocation5 + $0x8] sm:$0xf] %vm2031, %v3824
        %3919 = vst.msk [vmem:[#allocation5 + $0x10] sm:$0xf] %vm2031, %v3826
        %3920 = vst.msk [vmem:[#allocation5 + $0x18] sm:$0xf] %vm2031, %v3828
        %3921 = vst.msk [vmem:[#allocation5 + $0x20] sm:$0xf] %vm2031, %v3830
        %3922 = vst.msk [vmem:[#allocation5 + $0x28] sm:$0xf] %vm2031, %v3832
        %3923 = vst.msk [vmem:[#allocation5 + $0x30] sm:$0xf] %vm2031, %v3834
        %3924 = vst.msk [vmem:[#allocation5 + $0x38] sm:$0xf] %vm2031, %v3836
        %3925 = vst.msk [vmem:[#allocation5 + $0x40] sm:$0xf] %vm2031, %v3838
        %3926 = vst.msk [vmem:[#allocation5 + $0x48] sm:$0xf] %vm2031, %v3840
        %3927 = vst.msk [vmem:[#allocation5 + $0x50] sm:$0xf] %vm2031, %v3842
        %3928 = vst.msk [vmem:[#allocation5 + $0x58] sm:$0xf] %vm2031, %v3844
        %3929 = vst.msk [vmem:[#allocation5 + $0x60] sm:$0xf] %vm2031, %v3846
        %3930 = vst.msk [vmem:[#allocation5 + $0x68] sm:$0xf] %vm2031, %v3848
        %3931 = vst.msk [vmem:[#allocation5 + $0x70] sm:$0xf] %vm2031, %v3850
        %3932 = vst.msk [vmem:[#allocation5 + $0x78] sm:$0xf] %vm2031, %v3852
        %3933 = vst.msk [vmem:[#allocation5 + $0x80] sm:$0xf] %vm2031, %v3854
        %3934 = vst.msk [vmem:[#allocation5 + $0x88] sm:$0xf] %vm2031, %v3856
        %3935 = vst.msk [vmem:[#allocation5 + $0x90] sm:$0xf] %vm2031, %v3858
        %3936 = vst.msk [vmem:[#allocation5 + $0x98] sm:$0xf] %vm2031, %v3860
        %3937 = vst.msk [vmem:[#allocation5 + $0xa0] sm:$0xf] %vm2031, %v3862
        %3938 = vst.msk [vmem:[#allocation5 + $0xa8] sm:$0xf] %vm2031, %v3864
        %3939 = vst.msk [vmem:[#allocation5 + $0xb0] sm:$0xf] %vm2031, %v3866
        %3940 = vst.msk [vmem:[#allocation5 + $0xb8] sm:$0xf] %vm2031, %v3868
        %3941 = vst.msk [vmem:[#allocation5 + $0xc0] sm:$0xf] %vm2031, %v3870
        %3942 = vst.msk [vmem:[#allocation5 + $0xc8] sm:$0xf] %vm2031, %v3872
        %3943 = vst.msk [vmem:[#allocation5 + $0xd0] sm:$0xf] %vm2031, %v3874
        %3944 = vst.msk [vmem:[#allocation5 + $0xd8] sm:$0xf] %vm2031, %v3876
        %3945 = vst.msk [vmem:[#allocation5 + $0xe0] sm:$0xf] %vm2031, %v3878
        %3946 = vst.msk [vmem:[#allocation5 + $0xe8] sm:$0xf] %vm2031, %v3880
        %3947 = vst.msk [vmem:[#allocation5 + $0xf0] sm:$0xf] %vm2031, %v3882
        %3948 = vst.msk [vmem:[#allocation5 + $0xf8] sm:$0xf] %vm2031, %v3884
        %v3949 = vld [vmem:[%s3724 + $0x1] sm:$0xff]
        %v3950 = vld [vmem:[%s3724 + $0x9] sm:$0xff]
        %v3951 = vld [vmem:[%s3724 + $0x19] sm:$0xff]
        %v3952 = vld [vmem:[%s3724 + $0x21] sm:$0xff]
        %v3953 = vld [vmem:[%s3724 + $0x31] sm:$0xff]
        %v3954 = vld [vmem:[%s3724 + $0x39] sm:$0xff]
        %v3955 = vld [vmem:[%s3724 + $0x49] sm:$0xff]
        %v3956 = vld [vmem:[%s3724 + $0x51] sm:$0xff]
        %v3957 = vld [vmem:[%s3724 + $0x61] sm:$0xff]
        %v3958 = vld [vmem:[%s3724 + $0x69] sm:$0xff]
        %v3959 = vld [vmem:[%s3724 + $0x79] sm:$0xff]
        %v3960 = vld [vmem:[%s3724 + $0x81] sm:$0xff]
        %v3961 = vld [vmem:[%s3724 + $0x91] sm:$0xff]
        %v3962 = vld [vmem:[%s3724 + $0x99] sm:$0xff]
        %v3963 = vld [vmem:[%s3724 + $0xa9] sm:$0xff]
        %v3964 = vld [vmem:[%s3724 + $0xb1] sm:$0xff]
        %v3965 = vld [vmem:[%s3724 + $0xc1] sm:$0xff]
        %v3966 = vld [vmem:[%s3724 + $0xc9] sm:$0xff]
        %v3967 = vld [vmem:[%s3724 + $0xd9] sm:$0xff]
        %v3968 = vld [vmem:[%s3724 + $0xe1] sm:$0xff]
        %v3969 = vld [vmem:[%s3724 + $0xf1] sm:$0xff]
        %v3970 = vld [vmem:[%s3724 + $0xf9] sm:$0xff]
        %v3971 = vld [vmem:[%s3724 + $0x109] sm:$0xff]
        %v3972 = vld [vmem:[%s3724 + $0x111] sm:$0xff]
        %v3973 = vld [vmem:[%s3724 + $0x121] sm:$0xff]
        %v3974 = vld [vmem:[%s3724 + $0x129] sm:$0xff]
        %v3975 = vld [vmem:[%s3724 + $0x139] sm:$0xff]
        %v3976 = vld [vmem:[%s3724 + $0x141] sm:$0xff]
        %v3977 = vld [vmem:[%s3724 + $0x151] sm:$0xff]
        %v3978 = vld [vmem:[%s3724 + $0x159] sm:$0xff]
        %v3979 = vld [vmem:[%s3724 + $0x169] sm:$0xff]
        %v3980 = vld [vmem:[%s3724 + $0x171] sm:$0xff]
        %v3981 = vpack.c.bf16 %v3949, %v3949
        %v3982 = vpack.c.bf16 %v3950, %v3950
        %v3983 = vpack.c.bf16 %v3951, %v3951
        %v3984 = vpack.c.bf16 %v3952, %v3952
        %v3985 = vpack.c.bf16 %v3953, %v3953
        %v3986 = vpack.c.bf16 %v3954, %v3954
        %v3987 = vpack.c.bf16 %v3955, %v3955
        %v3988 = vpack.c.bf16 %v3956, %v3956
        %v3989 = vpack.c.bf16 %v3957, %v3957
        %v3990 = vpack.c.bf16 %v3958, %v3958
        %v3991 = vpack.c.bf16 %v3959, %v3959
        %v3992 = vpack.c.bf16 %v3960, %v3960
        %v3993 = vpack.c.bf16 %v3961, %v3961
        %v3994 = vpack.c.bf16 %v3962, %v3962
        %v3995 = vpack.c.bf16 %v3963, %v3963
        %v3996 = vpack.c.bf16 %v3964, %v3964
        %v3997 = vpack.c.bf16 %v3965, %v3965
        %v3998 = vpack.c.bf16 %v3966, %v3966
        %v3999 = vpack.c.bf16 %v3967, %v3967
        %v4000 = vpack.c.bf16 %v3968, %v3968
        %v4001 = vpack.c.bf16 %v3969, %v3969
        %v4002 = vpack.c.bf16 %v3970, %v3970
        %v4003 = vpack.c.bf16 %v3971, %v3971
        %v4004 = vpack.c.bf16 %v3972, %v3972
        %v4005 = vpack.c.bf16 %v3973, %v3973
        %v4006 = vpack.c.bf16 %v3974, %v3974
        %v4007 = vpack.c.bf16 %v3975, %v3975
        %v4008 = vpack.c.bf16 %v3976, %v3976
        %v4009 = vpack.c.bf16 %v3977, %v3977
        %v4010 = vpack.c.bf16 %v3978, %v3978
        %v4011 = vpack.c.bf16 %v3979, %v3979
        %v4012 = vpack.c.bf16 %v3980, %v3980
        %4045 = vrot.lane.b32.xlu0 %v3981, 112
        %v4046 = vpop.permute.xlu0 %4045
        %4047 = vrot.lane.b32.xlu0 %v3982, 112
        %v4048 = vpop.permute.xlu0 %4047
        %4049 = vrot.lane.b32.xlu0 %v3983, 112
        %v4050 = vpop.permute.xlu0 %4049
        %4051 = vrot.lane.b32.xlu0 %v3984, 112
        %v4052 = vpop.permute.xlu0 %4051
        %4053 = vrot.lane.b32.xlu0 %v3985, 112
        %v4054 = vpop.permute.xlu0 %4053
        %4055 = vrot.lane.b32.xlu0 %v3986, 112
        %v4056 = vpop.permute.xlu0 %4055
        %4057 = vrot.lane.b32.xlu0 %v3987, 112
        %v4058 = vpop.permute.xlu0 %4057
        %4059 = vrot.lane.b32.xlu0 %v3988, 112
        %v4060 = vpop.permute.xlu0 %4059
        %4061 = vrot.lane.b32.xlu0 %v3989, 112
        %v4062 = vpop.permute.xlu0 %4061
        %4063 = vrot.lane.b32.xlu0 %v3990, 112
        %v4064 = vpop.permute.xlu0 %4063
        %4065 = vrot.lane.b32.xlu0 %v3991, 112
        %v4066 = vpop.permute.xlu0 %4065
        %4067 = vrot.lane.b32.xlu0 %v3992, 112
        %v4068 = vpop.permute.xlu0 %4067
        %4069 = vrot.lane.b32.xlu0 %v3993, 112
        %v4070 = vpop.permute.xlu0 %4069
        %4071 = vrot.lane.b32.xlu0 %v3994, 112
        %v4072 = vpop.permute.xlu0 %4071
        %4073 = vrot.lane.b32.xlu0 %v3995, 112
        %v4074 = vpop.permute.xlu0 %4073
        %4075 = vrot.lane.b32.xlu0 %v3996, 112
        %v4076 = vpop.permute.xlu0 %4075
        %4077 = vrot.lane.b32.xlu0 %v3997, 112
        %v4078 = vpop.permute.xlu0 %4077
        %4079 = vrot.lane.b32.xlu0 %v3998, 112
        %v4080 = vpop.permute.xlu0 %4079
        %4081 = vrot.lane.b32.xlu0 %v3999, 112
        %v4082 = vpop.permute.xlu0 %4081
        %4083 = vrot.lane.b32.xlu0 %v4000, 112
        %v4084 = vpop.permute.xlu0 %4083
        %4085 = vrot.lane.b32.xlu0 %v4001, 112
        %v4086 = vpop.permute.xlu0 %4085
        %4087 = vrot.lane.b32.xlu0 %v4002, 112
        %v4088 = vpop.permute.xlu0 %4087
        %4089 = vrot.lane.b32.xlu0 %v4003, 112
        %v4090 = vpop.permute.xlu0 %4089
        %4091 = vrot.lane.b32.xlu0 %v4004, 112
        %v4092 = vpop.permute.xlu0 %4091
        %4093 = vrot.lane.b32.xlu0 %v4005, 112
        %v4094 = vpop.permute.xlu0 %4093
        %4095 = vrot.lane.b32.xlu0 %v4006, 112
        %v4096 = vpop.permute.xlu0 %4095
        %4097 = vrot.lane.b32.xlu0 %v4007, 112
        %v4098 = vpop.permute.xlu0 %4097
        %4099 = vrot.lane.b32.xlu0 %v4008, 112
        %v4100 = vpop.permute.xlu0 %4099
        %4101 = vrot.lane.b32.xlu0 %v4009, 112
        %v4102 = vpop.permute.xlu0 %4101
        %4103 = vrot.lane.b32.xlu0 %v4010, 112
        %v4104 = vpop.permute.xlu0 %4103
        %4105 = vrot.lane.b32.xlu0 %v4011, 112
        %v4106 = vpop.permute.xlu0 %4105
        %4107 = vrot.lane.b32.xlu0 %v4012, 112
        %v4108 = vpop.permute.xlu0 %4107
        %4141 = vst.msk [vmem:[#allocation5] sm:$0xf] %vm2088, %v4046
        %4142 = vst.msk [vmem:[#allocation5 + $0x8] sm:$0xf] %vm2088, %v4048
        %4143 = vst.msk [vmem:[#allocation5 + $0x10] sm:$0xf] %vm2088, %v4050
        %4144 = vst.msk [vmem:[#allocation5 + $0x18] sm:$0xf] %vm2088, %v4052
        %4145 = vst.msk [vmem:[#allocation5 + $0x20] sm:$0xf] %vm2088, %v4054
        %4146 = vst.msk [vmem:[#allocation5 + $0x28] sm:$0xf] %vm2088, %v4056
        %4147 = vst.msk [vmem:[#allocation5 + $0x30] sm:$0xf] %vm2088, %v4058
        %4148 = vst.msk [vmem:[#allocation5 + $0x38] sm:$0xf] %vm2088, %v4060
        %4149 = vst.msk [vmem:[#allocation5 + $0x40] sm:$0xf] %vm2088, %v4062
        %4150 = vst.msk [vmem:[#allocation5 + $0x48] sm:$0xf] %vm2088, %v4064
        %4151 = vst.msk [vmem:[#allocation5 + $0x50] sm:$0xf] %vm2088, %v4066
        %4152 = vst.msk [vmem:[#allocation5 + $0x58] sm:$0xf] %vm2088, %v4068
        %4153 = vst.msk [vmem:[#allocation5 + $0x60] sm:$0xf] %vm2088, %v4070
        %4154 = vst.msk [vmem:[#allocation5 + $0x68] sm:$0xf] %vm2088, %v4072
        %4155 = vst.msk [vmem:[#allocation5 + $0x70] sm:$0xf] %vm2088, %v4074
        %4156 = vst.msk [vmem:[#allocation5 + $0x78] sm:$0xf] %vm2088, %v4076
        %4157 = vst.msk [vmem:[#allocation5 + $0x80] sm:$0xf] %vm2088, %v4078
        %4158 = vst.msk [vmem:[#allocation5 + $0x88] sm:$0xf] %vm2088, %v4080
        %4159 = vst.msk [vmem:[#allocation5 + $0x90] sm:$0xf] %vm2088, %v4082
        %4160 = vst.msk [vmem:[#allocation5 + $0x98] sm:$0xf] %vm2088, %v4084
        %4161 = vst.msk [vmem:[#allocation5 + $0xa0] sm:$0xf] %vm2088, %v4086
        %4162 = vst.msk [vmem:[#allocation5 + $0xa8] sm:$0xf] %vm2088, %v4088
        %4163 = vst.msk [vmem:[#allocation5 + $0xb0] sm:$0xf] %vm2088, %v4090
        %4164 = vst.msk [vmem:[#allocation5 + $0xb8] sm:$0xf] %vm2088, %v4092
        %4165 = vst.msk [vmem:[#allocation5 + $0xc0] sm:$0xf] %vm2088, %v4094
        %4166 = vst.msk [vmem:[#allocation5 + $0xc8] sm:$0xf] %vm2088, %v4096
        %4167 = vst.msk [vmem:[#allocation5 + $0xd0] sm:$0xf] %vm2088, %v4098
        %4168 = vst.msk [vmem:[#allocation5 + $0xd8] sm:$0xf] %vm2088, %v4100
        %4169 = vst.msk [vmem:[#allocation5 + $0xe0] sm:$0xf] %vm2088, %v4102
        %4170 = vst.msk [vmem:[#allocation5 + $0xe8] sm:$0xf] %vm2088, %v4104
        %4171 = vst.msk [vmem:[#allocation5 + $0xf0] sm:$0xf] %vm2088, %v4106
        %4172 = vst.msk [vmem:[#allocation5 + $0xf8] sm:$0xf] %vm2088, %v4108
        %v4173 = vld [vmem:[%s3724 + $0x2] sm:$0xff]
        %v4174 = vld [vmem:[%s3724 + $0xa] sm:$0xff]
        %v4175 = vld [vmem:[%s3724 + $0x1a] sm:$0xff]
        %v4176 = vld [vmem:[%s3724 + $0x22] sm:$0xff]
        %v4177 = vld [vmem:[%s3724 + $0x32] sm:$0xff]
        %v4178 = vld [vmem:[%s3724 + $0x3a] sm:$0xff]
        %v4179 = vld [vmem:[%s3724 + $0x4a] sm:$0xff]
        %v4180 = vld [vmem:[%s3724 + $0x52] sm:$0xff]
        %v4181 = vld [vmem:[%s3724 + $0x62] sm:$0xff]
        %v4182 = vld [vmem:[%s3724 + $0x6a] sm:$0xff]
        %v4183 = vld [vmem:[%s3724 + $0x7a] sm:$0xff]
        %v4184 = vld [vmem:[%s3724 + $0x82] sm:$0xff]
        %v4185 = vld [vmem:[%s3724 + $0x92] sm:$0xff]
        %v4186 = vld [vmem:[%s3724 + $0x9a] sm:$0xff]
        %v4187 = vld [vmem:[%s3724 + $0xaa] sm:$0xff]
        %v4188 = vld [vmem:[%s3724 + $0xb2] sm:$0xff]
        %v4189 = vld [vmem:[%s3724 + $0xc2] sm:$0xff]
        %v4190 = vld [vmem:[%s3724 + $0xca] sm:$0xff]
        %v4191 = vld [vmem:[%s3724 + $0xda] sm:$0xff]
        %v4192 = vld [vmem:[%s3724 + $0xe2] sm:$0xff]
        %v4193 = vld [vmem:[%s3724 + $0xf2] sm:$0xff]
        %v4194 = vld [vmem:[%s3724 + $0xfa] sm:$0xff]
        %v4195 = vld [vmem:[%s3724 + $0x10a] sm:$0xff]
        %v4196 = vld [vmem:[%s3724 + $0x112] sm:$0xff]
        %v4197 = vld [vmem:[%s3724 + $0x122] sm:$0xff]
        %v4198 = vld [vmem:[%s3724 + $0x12a] sm:$0xff]
        %v4199 = vld [vmem:[%s3724 + $0x13a] sm:$0xff]
        %v4200 = vld [vmem:[%s3724 + $0x142] sm:$0xff]
        %v4201 = vld [vmem:[%s3724 + $0x152] sm:$0xff]
        %v4202 = vld [vmem:[%s3724 + $0x15a] sm:$0xff]
        %v4203 = vld [vmem:[%s3724 + $0x16a] sm:$0xff]
        %v4204 = vld [vmem:[%s3724 + $0x172] sm:$0xff]
        %v4205 = vpack.c.bf16 %v4173, %v4173
        %v4206 = vpack.c.bf16 %v4174, %v4174
        %v4207 = vpack.c.bf16 %v4175, %v4175
        %v4208 = vpack.c.bf16 %v4176, %v4176
        %v4209 = vpack.c.bf16 %v4177, %v4177
        %v4210 = vpack.c.bf16 %v4178, %v4178
        %v4211 = vpack.c.bf16 %v4179, %v4179
        %v4212 = vpack.c.bf16 %v4180, %v4180
        %v4213 = vpack.c.bf16 %v4181, %v4181
        %v4214 = vpack.c.bf16 %v4182, %v4182
        %v4215 = vpack.c.bf16 %v4183, %v4183
        %v4216 = vpack.c.bf16 %v4184, %v4184
        %v4217 = vpack.c.bf16 %v4185, %v4185
        %v4218 = vpack.c.bf16 %v4186, %v4186
        %v4219 = vpack.c.bf16 %v4187, %v4187
        %v4220 = vpack.c.bf16 %v4188, %v4188
        %v4221 = vpack.c.bf16 %v4189, %v4189
        %v4222 = vpack.c.bf16 %v4190, %v4190
        %v4223 = vpack.c.bf16 %v4191, %v4191
        %v4224 = vpack.c.bf16 %v4192, %v4192
        %v4225 = vpack.c.bf16 %v4193, %v4193
        %v4226 = vpack.c.bf16 %v4194, %v4194
        %v4227 = vpack.c.bf16 %v4195, %v4195
        %v4228 = vpack.c.bf16 %v4196, %v4196
        %v4229 = vpack.c.bf16 %v4197, %v4197
        %v4230 = vpack.c.bf16 %v4198, %v4198
        %v4231 = vpack.c.bf16 %v4199, %v4199
        %v4232 = vpack.c.bf16 %v4200, %v4200
        %v4233 = vpack.c.bf16 %v4201, %v4201
        %v4234 = vpack.c.bf16 %v4202, %v4202
        %v4235 = vpack.c.bf16 %v4203, %v4203
        %v4236 = vpack.c.bf16 %v4204, %v4204
        %4237 = vst.msk [vmem:[#allocation5 + $0x4] sm:$0xf] %vm1091, %v4205
        %4238 = vst.msk [vmem:[#allocation5 + $0xc] sm:$0xf] %vm1091, %v4206
        %4239 = vst.msk [vmem:[#allocation5 + $0x14] sm:$0xf] %vm1091, %v4207
        %4240 = vst.msk [vmem:[#allocation5 + $0x1c] sm:$0xf] %vm1091, %v4208
        %4241 = vst.msk [vmem:[#allocation5 + $0x24] sm:$0xf] %vm1091, %v4209
        %4242 = vst.msk [vmem:[#allocation5 + $0x2c] sm:$0xf] %vm1091, %v4210
        %4243 = vst.msk [vmem:[#allocation5 + $0x34] sm:$0xf] %vm1091, %v4211
        %4244 = vst.msk [vmem:[#allocation5 + $0x3c] sm:$0xf] %vm1091, %v4212
        %4245 = vst.msk [vmem:[#allocation5 + $0x44] sm:$0xf] %vm1091, %v4213
        %4246 = vst.msk [vmem:[#allocation5 + $0x4c] sm:$0xf] %vm1091, %v4214
        %4247 = vst.msk [vmem:[#allocation5 + $0x54] sm:$0xf] %vm1091, %v4215
        %4248 = vst.msk [vmem:[#allocation5 + $0x5c] sm:$0xf] %vm1091, %v4216
        %4249 = vst.msk [vmem:[#allocation5 + $0x64] sm:$0xf] %vm1091, %v4217
        %4250 = vst.msk [vmem:[#allocation5 + $0x6c] sm:$0xf] %vm1091, %v4218
        %4251 = vst.msk [vmem:[#allocation5 + $0x74] sm:$0xf] %vm1091, %v4219
        %4252 = vst.msk [vmem:[#allocation5 + $0x7c] sm:$0xf] %vm1091, %v4220
        %4253 = vst.msk [vmem:[#allocation5 + $0x84] sm:$0xf] %vm1091, %v4221
        %4254 = vst.msk [vmem:[#allocation5 + $0x8c] sm:$0xf] %vm1091, %v4222
        %4255 = vst.msk [vmem:[#allocation5 + $0x94] sm:$0xf] %vm1091, %v4223
        %4256 = vst.msk [vmem:[#allocation5 + $0x9c] sm:$0xf] %vm1091, %v4224
        %4257 = vst.msk [vmem:[#allocation5 + $0xa4] sm:$0xf] %vm1091, %v4225
        %4258 = vst.msk [vmem:[#allocation5 + $0xac] sm:$0xf] %vm1091, %v4226
        %4259 = vst.msk [vmem:[#allocation5 + $0xb4] sm:$0xf] %vm1091, %v4227
        %4260 = vst.msk [vmem:[#allocation5 + $0xbc] sm:$0xf] %vm1091, %v4228
        %4261 = vst.msk [vmem:[#allocation5 + $0xc4] sm:$0xf] %vm1091, %v4229
        %4262 = vst.msk [vmem:[#allocation5 + $0xcc] sm:$0xf] %vm1091, %v4230
        %4263 = vst.msk [vmem:[#allocation5 + $0xd4] sm:$0xf] %vm1091, %v4231
        %4264 = vst.msk [vmem:[#allocation5 + $0xdc] sm:$0xf] %vm1091, %v4232
        %4265 = vst.msk [vmem:[#allocation5 + $0xe4] sm:$0xf] %vm1091, %v4233
        %4266 = vst.msk [vmem:[#allocation5 + $0xec] sm:$0xf] %vm1091, %v4234
        %4267 = vst.msk [vmem:[#allocation5 + $0xf4] sm:$0xf] %vm1091, %v4235
        %4268 = vst.msk [vmem:[#allocation5 + $0xfc] sm:$0xf] %vm1091, %v4236
        %v4269 = vld [vmem:[#allocation5] sm:$0xff]
        %v4270 = vld [vmem:[#allocation5 + $0x8] sm:$0xff]
        %v4271 = vld [vmem:[#allocation5 + $0x10] sm:$0xff]
        %v4272 = vld [vmem:[#allocation5 + $0x18] sm:$0xff]
        %v4273 = vld [vmem:[#allocation5 + $0x20] sm:$0xff]
        %v4274 = vld [vmem:[#allocation5 + $0x28] sm:$0xff]
        %v4275 = vld [vmem:[#allocation5 + $0x30] sm:$0xff]
        %v4276 = vld [vmem:[#allocation5 + $0x38] sm:$0xff]
        %v4277 = vld [vmem:[#allocation5 + $0x40] sm:$0xff]
        %v4278 = vld [vmem:[#allocation5 + $0x48] sm:$0xff]
        %v4279 = vld [vmem:[#allocation5 + $0x50] sm:$0xff]
        %v4280 = vld [vmem:[#allocation5 + $0x58] sm:$0xff]
        %v4281 = vld [vmem:[#allocation5 + $0x60] sm:$0xff]
        %v4282 = vld [vmem:[#allocation5 + $0x68] sm:$0xff]
        %v4283 = vld [vmem:[#allocation5 + $0x70] sm:$0xff]
        %v4284 = vld [vmem:[#allocation5 + $0x78] sm:$0xff]
        %v4285 = vld [vmem:[#allocation5 + $0x80] sm:$0xff]
        %v4286 = vld [vmem:[#allocation5 + $0x88] sm:$0xff]
        %v4287 = vld [vmem:[#allocation5 + $0x90] sm:$0xff]
        %v4288 = vld [vmem:[#allocation5 + $0x98] sm:$0xff]
        %v4289 = vld [vmem:[#allocation5 + $0xa0] sm:$0xff]
        %v4290 = vld [vmem:[#allocation5 + $0xa8] sm:$0xff]
        %v4291 = vld [vmem:[#allocation5 + $0xb0] sm:$0xff]
        %v4292 = vld [vmem:[#allocation5 + $0xb8] sm:$0xff]
        %v4293 = vld [vmem:[#allocation5 + $0xc0] sm:$0xff]
        %v4294 = vld [vmem:[#allocation5 + $0xc8] sm:$0xff]
        %v4295 = vld [vmem:[#allocation5 + $0xd0] sm:$0xff]
        %v4296 = vld [vmem:[#allocation5 + $0xd8] sm:$0xff]
        %v4297 = vld [vmem:[#allocation5 + $0xe0] sm:$0xff]
        %v4298 = vld [vmem:[#allocation5 + $0xe8] sm:$0xff]
        %v4299 = vld [vmem:[#allocation5 + $0xf0] sm:$0xff]
        %v4300 = vld [vmem:[#allocation5 + $0xf8] sm:$0xff]
        %v4301 = vld [vmem:[%s11] sm:$0xf]
        %v4302 = vld [vmem:[%s11 + $0x4] sm:$0xf]
        %v4303 = vld [vmem:[%s11 + $0x8] sm:$0xf]
        %v4304 = vld [vmem:[%s11 + $0xc] sm:$0xf]
        %v4305 = vld [vmem:[%s11 + $0x10] sm:$0xf]
        %v4306 = vld [vmem:[%s11 + $0x14] sm:$0xf]
        %v4307 = vld [vmem:[%s11 + $0x18] sm:$0xf]
        %v4308 = vld [vmem:[%s11 + $0x1c] sm:$0xf]
        %v4309 = vld [vmem:[%s11 + $0x20] sm:$0xf]
        %v4310 = vld [vmem:[%s11 + $0x24] sm:$0xf]
        %v4311 = vld [vmem:[%s11 + $0x28] sm:$0xf]
        %v4312 = vld [vmem:[%s11 + $0x2c] sm:$0xf]
        %v4313 = vld [vmem:[%s11 + $0x30] sm:$0xf]
        %v4314 = vld [vmem:[%s11 + $0x34] sm:$0xf]
        %v4315 = vld [vmem:[%s11 + $0x38] sm:$0xf]
        %v4316 = vld [vmem:[%s11 + $0x3c] sm:$0xf]
        %v4317 = vld [vmem:[%s11 + $0x40] sm:$0xf]
        %v4318 = vld [vmem:[%s11 + $0x44] sm:$0xf]
        %v4319 = vld [vmem:[%s12] sm:$0x1]
        %v4321 = vperm.slane %v4319, 0
        %v4355 = vunpack.c.l.b16 %v4269
        %v4356 = vunpack.c.h.b16 %v4269
        %v4357 = vunpack.c.l.b16 %v4270
        %v4358 = vunpack.c.h.b16 %v4270
        %v4359 = vunpack.c.l.b16 %v4271
        %v4360 = vunpack.c.h.b16 %v4271
        %v4361 = vunpack.c.l.b16 %v4272
        %v4362 = vunpack.c.h.b16 %v4272
        %v4363 = vunpack.c.l.b16 %v4273
        %v4364 = vunpack.c.h.b16 %v4273
        %v4365 = vunpack.c.l.b16 %v4274
        %v4366 = vunpack.c.h.b16 %v4274
        %v4367 = vunpack.c.l.b16 %v4275
        %v4368 = vunpack.c.h.b16 %v4275
        %v4369 = vunpack.c.l.b16 %v4276
        %v4370 = vunpack.c.h.b16 %v4276
        %v4371 = vunpack.c.l.b16 %v4277
        %v4372 = vunpack.c.h.b16 %v4277
        %v4373 = vunpack.c.l.b16 %v4278
        %v4374 = vunpack.c.h.b16 %v4278
        %v4375 = vunpack.c.l.b16 %v4279
        %v4376 = vunpack.c.h.b16 %v4279
        %v4377 = vunpack.c.l.b16 %v4280
        %v4378 = vunpack.c.h.b16 %v4280
        %v4379 = vunpack.c.l.b16 %v4281
        %v4380 = vunpack.c.h.b16 %v4281
        %v4381 = vunpack.c.l.b16 %v4282
        %v4382 = vunpack.c.h.b16 %v4282
        %v4383 = vunpack.c.l.b16 %v4283
        %v4384 = vunpack.c.h.b16 %v4283
        %v4385 = vunpack.c.l.b16 %v4284
        %v4386 = vunpack.c.h.b16 %v4284
        %v4387 = vunpack.c.l.b16 %v4285
        %v4388 = vunpack.c.h.b16 %v4285
        %v4389 = vunpack.c.l.b16 %v4286
        %v4390 = vunpack.c.h.b16 %v4286
        %v4391 = vunpack.c.l.b16 %v4287
        %v4392 = vunpack.c.h.b16 %v4287
        %v4393 = vunpack.c.l.b16 %v4288
        %v4394 = vunpack.c.h.b16 %v4288
        %v4395 = vunpack.c.l.b16 %v4289
        %v4396 = vunpack.c.h.b16 %v4289
        %v4397 = vunpack.c.l.b16 %v4290
        %v4398 = vunpack.c.h.b16 %v4290
        %v4399 = vunpack.c.l.b16 %v4291
        %v4400 = vunpack.c.h.b16 %v4291
        %v4401 = vunpack.c.l.b16 %v4292
        %v4402 = vunpack.c.h.b16 %v4292
        %v4403 = vunpack.c.l.b16 %v4293
        %v4404 = vunpack.c.h.b16 %v4293
        %v4405 = vunpack.c.l.b16 %v4294
        %v4406 = vunpack.c.h.b16 %v4294
        %v4407 = vunpack.c.l.b16 %v4295
        %v4408 = vunpack.c.h.b16 %v4295
        %v4409 = vunpack.c.l.b16 %v4296
        %v4410 = vunpack.c.h.b16 %v4296
        %v4411 = vunpack.c.l.b16 %v4297
        %v4412 = vunpack.c.h.b16 %v4297
        %v4413 = vunpack.c.l.b16 %v4298
        %v4414 = vunpack.c.h.b16 %v4298
        %v4415 = vunpack.c.l.b16 %v4299
        %v4416 = vunpack.c.h.b16 %v4299
        %v4417 = vunpack.c.l.b16 %v4300
        %v4418 = vunpack.c.h.b16 %v4300
        %v4419 = vpack.c.b16 %v4357, %v4355
        %v4420 = vpack.c.b16 %v4358, %v4356
        %v4421 = vpack.c.b16 %v4361, %v4359
        %v4422 = vpack.c.b16 %v4362, %v4360
        %v4423 = vpack.c.b16 %v4365, %v4363
        %v4424 = vpack.c.b16 %v4366, %v4364
        %v4425 = vpack.c.b16 %v4369, %v4367
        %v4426 = vpack.c.b16 %v4370, %v4368
        %v4427 = vpack.c.b16 %v4373, %v4371
        %v4428 = vpack.c.b16 %v4374, %v4372
        %v4429 = vpack.c.b16 %v4377, %v4375
        %v4430 = vpack.c.b16 %v4378, %v4376
        %v4431 = vpack.c.b16 %v4381, %v4379
        %v4432 = vpack.c.b16 %v4382, %v4380
        %v4433 = vpack.c.b16 %v4385, %v4383
        %v4434 = vpack.c.b16 %v4386, %v4384
        %v4435 = vpack.c.b16 %v4389, %v4387
        %v4436 = vpack.c.b16 %v4390, %v4388
        %v4437 = vpack.c.b16 %v4393, %v4391
        %v4438 = vpack.c.b16 %v4394, %v4392
        %v4439 = vpack.c.b16 %v4397, %v4395
        %v4440 = vpack.c.b16 %v4398, %v4396
        %v4441 = vpack.c.b16 %v4401, %v4399
        %v4442 = vpack.c.b16 %v4402, %v4400
        %v4443 = vpack.c.b16 %v4405, %v4403
        %v4444 = vpack.c.b16 %v4406, %v4404
        %v4445 = vpack.c.b16 %v4409, %v4407
        %v4446 = vpack.c.b16 %v4410, %v4408
        %v4447 = vpack.c.b16 %v4413, %v4411
        %v4448 = vpack.c.b16 %v4414, %v4412
        %v4449 = vpack.c.b16 %v4417, %v4415
        %v4450 = vpack.c.b16 %v4418, %v4416
        %v4485 = vunpack.c.l.b16 %v4301
        %v4486 = vunpack.c.l.b16 %v4302
        %v4487 = vunpack.c.l.b16 %v4303
        %v4488 = vunpack.c.l.b16 %v4304
        %v4489 = vunpack.c.l.b16 %v4305
        %v4490 = vunpack.c.l.b16 %v4306
        %v4491 = vunpack.c.l.b16 %v4307
        %v4492 = vunpack.c.l.b16 %v4308
        %v4493 = vunpack.c.l.b16 %v4309
        %v4494 = vunpack.c.l.b16 %v4310
        %v4495 = vunpack.c.l.b16 %v4311
        %v4496 = vunpack.c.l.b16 %v4312
        %v4497 = vunpack.c.l.b16 %v4313
        %v4498 = vunpack.c.l.b16 %v4314
        %v4499 = vunpack.c.l.b16 %v4315
        %v4500 = vunpack.c.l.b16 %v4316
        %v4501 = vunpack.c.l.b16 %v4317
        %v4502 = vunpack.c.l.b16 %v4318
        %v4503 = vpack.c.b16 %v4486, %v4485
        %v4504 = vpack.c.b16 %v4488, %v4487
        %v4505 = vpack.c.b16 %v4490, %v4489
        %v4506 = vpack.c.b16 %v4492, %v4491
        %v4507 = vpack.c.b16 %v4494, %v4493
        %v4508 = vpack.c.b16 %v4496, %v4495
        %v4509 = vpack.c.b16 %v4498, %v4497
        %v4510 = vpack.c.b16 %v4500, %v4499
        %v4511 = vpack.c.b16 %v4502, %v4501
        %v4522 = vsel %vm1031, %v4420, 0
        %v4525 = vsel %vm1031, %v4422, 0
        %v4528 = vsel %vm1031, %v4424, 0
        %v4531 = vsel %vm1031, %v4426, 0
        %v4534 = vsel %vm1031, %v4428, 0
        %v4537 = vsel %vm1031, %v4430, 0
        %v4540 = vsel %vm1031, %v4432, 0
        %v4543 = vsel %vm1031, %v4434, 0
        %v4546 = vsel %vm1031, %v4436, 0
        %v4549 = vsel %vm1031, %v4438, 0
        %v4552 = vsel %vm1031, %v4440, 0
        %v4555 = vsel %vm1031, %v4442, 0
        %v4558 = vsel %vm1031, %v4444, 0
        %v4561 = vsel %vm1031, %v4446, 0
        %v4564 = vsel %vm1031, %v4448, 0
        %v4567 = vsel %vm1031, %v4450, 0
        %4569 = vmatpush.bf16.msra.mxu0 %v4510
        %4570 = vmatpush.bf16.msra.mxu0 %v4509
        %4571 = vmatpush.bf16.msra.mxu0 %v4508
        %4572 = vmatpush.bf16.msra.mxu0 %v4507
        %4573 = vmatpush.bf16.msra.mxu0 %v4506
        %4574 = vmatpush.bf16.msra.mxu0 %v4505
        %4575 = vmatpush.bf16.msra.mxu0 %v4504
        %4576 = vmatpush.bf16.msra.mxu0 %v4503
        %4577 = vmatmul.bf16.gmra.mxu0 %v4419
        %v4578 = vpop.f32.mrf.mxu0
        %v4579 = vadd.f32 %v4321, %v4578
        %v4580 = vpop.f32.mrf.mxu0
        %v4581 = vadd.f32 %v4321, %v4580
        %4582 = vmatmul.bf16.gmra.mxu0 %v4421
        %v4583 = vpop.f32.mrf.mxu0
        %v4584 = vadd.f32 %v4321, %v4583
        %v4585 = vpop.f32.mrf.mxu0
        %v4586 = vadd.f32 %v4321, %v4585
        %4587 = vmatmul.bf16.gmra.mxu0 %v4423
        %v4588 = vpop.f32.mrf.mxu0
        %v4589 = vadd.f32 %v4321, %v4588
        %v4590 = vpop.f32.mrf.mxu0
        %v4591 = vadd.f32 %v4321, %v4590
        %4592 = vmatmul.bf16.gmra.mxu0 %v4425
        %v4593 = vpop.f32.mrf.mxu0
        %v4594 = vadd.f32 %v4321, %v4593
        %v4595 = vpop.f32.mrf.mxu0
        %v4596 = vadd.f32 %v4321, %v4595
        %4597 = vmatmul.bf16.gmra.mxu0 %v4427
        %v4598 = vpop.f32.mrf.mxu0
        %v4599 = vadd.f32 %v4321, %v4598
        %v4600 = vpop.f32.mrf.mxu0
        %v4601 = vadd.f32 %v4321, %v4600
        %4602 = vmatmul.bf16.gmra.mxu0 %v4429
        %v4603 = vpop.f32.mrf.mxu0
        %v4604 = vadd.f32 %v4321, %v4603
        %v4605 = vpop.f32.mrf.mxu0
        %v4606 = vadd.f32 %v4321, %v4605
        %4607 = vmatmul.bf16.gmra.mxu0 %v4431
        %v4608 = vpop.f32.mrf.mxu0
        %v4609 = vadd.f32 %v4321, %v4608
        %v4610 = vpop.f32.mrf.mxu0
        %v4611 = vadd.f32 %v4321, %v4610
        %4612 = vmatmul.bf16.gmra.mxu0 %v4433
        %v4613 = vpop.f32.mrf.mxu0
        %v4614 = vadd.f32 %v4321, %v4613
        %v4615 = vpop.f32.mrf.mxu0
        %v4616 = vadd.f32 %v4321, %v4615
        %4617 = vmatmul.bf16.gmra.mxu0 %v4435
        %v4618 = vpop.f32.mrf.mxu0
        %v4619 = vadd.f32 %v4321, %v4618
        %v4620 = vpop.f32.mrf.mxu0
        %v4621 = vadd.f32 %v4321, %v4620
        %4622 = vmatmul.bf16.gmra.mxu0 %v4437
        %v4623 = vpop.f32.mrf.mxu0
        %v4624 = vadd.f32 %v4321, %v4623
        %v4625 = vpop.f32.mrf.mxu0
        %v4626 = vadd.f32 %v4321, %v4625
        %4627 = vmatmul.bf16.gmra.mxu0 %v4439
        %v4628 = vpop.f32.mrf.mxu0
        %v4629 = vadd.f32 %v4321, %v4628
        %v4630 = vpop.f32.mrf.mxu0
        %v4631 = vadd.f32 %v4321, %v4630
        %4632 = vmatmul.bf16.gmra.mxu0 %v4441
        %v4633 = vpop.f32.mrf.mxu0
        %v4634 = vadd.f32 %v4321, %v4633
        %v4635 = vpop.f32.mrf.mxu0
        %v4636 = vadd.f32 %v4321, %v4635
        %4637 = vmatmul.bf16.gmra.mxu0 %v4443
        %v4638 = vpop.f32.mrf.mxu0
        %v4639 = vadd.f32 %v4321, %v4638
        %v4640 = vpop.f32.mrf.mxu0
        %v4641 = vadd.f32 %v4321, %v4640
        %4642 = vmatmul.bf16.gmra.mxu0 %v4445
        %v4643 = vpop.f32.mrf.mxu0
        %v4644 = vadd.f32 %v4321, %v4643
        %v4645 = vpop.f32.mrf.mxu0
        %v4646 = vadd.f32 %v4321, %v4645
        %4647 = vmatmul.bf16.gmra.mxu0 %v4447
        %v4648 = vpop.f32.mrf.mxu0
        %v4649 = vadd.f32 %v4321, %v4648
        %v4650 = vpop.f32.mrf.mxu0
        %v4651 = vadd.f32 %v4321, %v4650
        %4652 = vmatmul.bf16.gmra.mxu0 %v4449
        %v4653 = vpop.f32.mrf.mxu0
        %v4654 = vadd.f32 %v4321, %v4653
        %v4655 = vpop.f32.mrf.mxu0
        %v4656 = vadd.f32 %v4321, %v4655
        %4657 = vdwg.mxu0
        %4658 = vmatpush.bf16.msra.mxu0 0
        %4659 = vmatpush.bf16.msra.mxu0 0
        %4660 = vmatpush.bf16.msra.mxu0 0
        %4661 = vmatpush.bf16.msra.mxu0 0
        %4662 = vmatpush.bf16.msra.mxu0 0
        %4663 = vmatpush.bf16.msra.mxu0 0
        %4664 = vmatpush.bf16.msra.mxu0 0
        %4665 = vmatpush.bf16.msra.mxu0 %v4511
        %4666 = vmatmul.bf16.gmra.mxu0 %v4522
        %v4667 = vpop.f32.mrf.mxu0
        %v4668 = vadd.f32 %v4579, %v4667
        %v4669 = vpop.f32.mrf.mxu0
        %v4670 = vadd.f32 %v4581, %v4669
        %4671 = vmatmul.bf16.gmra.mxu0 %v4525
        %v4672 = vpop.f32.mrf.mxu0
        %v4673 = vadd.f32 %v4584, %v4672
        %v4674 = vpop.f32.mrf.mxu0
        %v4675 = vadd.f32 %v4586, %v4674
        %4676 = vmatmul.bf16.gmra.mxu0 %v4528
        %v4677 = vpop.f32.mrf.mxu0
        %v4678 = vadd.f32 %v4589, %v4677
        %v4679 = vpop.f32.mrf.mxu0
        %v4680 = vadd.f32 %v4591, %v4679
        %4681 = vmatmul.bf16.gmra.mxu0 %v4531
        %v4682 = vpop.f32.mrf.mxu0
        %v4683 = vadd.f32 %v4594, %v4682
        %v4684 = vpop.f32.mrf.mxu0
        %v4685 = vadd.f32 %v4596, %v4684
        %4686 = vmatmul.bf16.gmra.mxu0 %v4534
        %v4687 = vpop.f32.mrf.mxu0
        %v4688 = vadd.f32 %v4599, %v4687
        %v4689 = vpop.f32.mrf.mxu0
        %v4690 = vadd.f32 %v4601, %v4689
        %4691 = vmatmul.bf16.gmra.mxu0 %v4537
        %v4692 = vpop.f32.mrf.mxu0
        %v4693 = vadd.f32 %v4604, %v4692
        %v4694 = vpop.f32.mrf.mxu0
        %v4695 = vadd.f32 %v4606, %v4694
        %4696 = vmatmul.bf16.gmra.mxu0 %v4540
        %v4697 = vpop.f32.mrf.mxu0
        %v4698 = vadd.f32 %v4609, %v4697
        %v4699 = vpop.f32.mrf.mxu0
        %v4700 = vadd.f32 %v4611, %v4699
        %4701 = vmatmul.bf16.gmra.mxu0 %v4543
        %v4702 = vpop.f32.mrf.mxu0
        %v4703 = vadd.f32 %v4614, %v4702
        %v4704 = vpop.f32.mrf.mxu0
        %v4705 = vadd.f32 %v4616, %v4704
        %4706 = vmatmul.bf16.gmra.mxu0 %v4546
        %v4707 = vpop.f32.mrf.mxu0
        %v4708 = vadd.f32 %v4619, %v4707
        %v4709 = vpop.f32.mrf.mxu0
        %v4710 = vadd.f32 %v4621, %v4709
        %4711 = vmatmul.bf16.gmra.mxu0 %v4549
        %v4712 = vpop.f32.mrf.mxu0
        %v4713 = vadd.f32 %v4624, %v4712
        %v4714 = vpop.f32.mrf.mxu0
        %v4715 = vadd.f32 %v4626, %v4714
        %4716 = vmatmul.bf16.gmra.mxu0 %v4552
        %v4717 = vpop.f32.mrf.mxu0
        %v4718 = vadd.f32 %v4629, %v4717
        %v4719 = vpop.f32.mrf.mxu0
        %v4720 = vadd.f32 %v4631, %v4719
        %4721 = vmatmul.bf16.gmra.mxu0 %v4555
        %v4722 = vpop.f32.mrf.mxu0
        %v4723 = vadd.f32 %v4634, %v4722
        %v4724 = vpop.f32.mrf.mxu0
        %v4725 = vadd.f32 %v4636, %v4724
        %4726 = vmatmul.bf16.gmra.mxu0 %v4558
        %v4727 = vpop.f32.mrf.mxu0
        %v4728 = vadd.f32 %v4639, %v4727
        %v4729 = vpop.f32.mrf.mxu0
        %v4730 = vadd.f32 %v4641, %v4729
        %4731 = vmatmul.bf16.gmra.mxu0 %v4561
        %v4732 = vpop.f32.mrf.mxu0
        %v4733 = vadd.f32 %v4644, %v4732
        %v4734 = vpop.f32.mrf.mxu0
        %v4735 = vadd.f32 %v4646, %v4734
        %4736 = vmatmul.bf16.gmra.mxu0 %v4564
        %v4737 = vpop.f32.mrf.mxu0
        %v4738 = vadd.f32 %v4649, %v4737
        %v4739 = vpop.f32.mrf.mxu0
        %v4740 = vadd.f32 %v4651, %v4739
        %4741 = vmatmul.bf16.gmra.mxu0 %v4567
        %v4742 = vpop.f32.mrf.mxu0
        %v4743 = vadd.f32 %v4654, %v4742
        %v4744 = vpop.f32.mrf.mxu0
        %v4745 = vadd.f32 %v4656, %v4744
        %4746 = vdwg.mxu0
        %v4747 = vmax.f32 %v4668, 0.0
        %v4748 = vmax.f32 %v4670, 0.0
        %v4749 = vmax.f32 %v4673, 0.0
        %v4750 = vmax.f32 %v4675, 0.0
        %v4751 = vmax.f32 %v4678, 0.0
        %v4752 = vmax.f32 %v4680, 0.0
        %v4753 = vmax.f32 %v4683, 0.0
        %v4754 = vmax.f32 %v4685, 0.0
        %v4755 = vmax.f32 %v4688, 0.0
        %v4756 = vmax.f32 %v4690, 0.0
        %v4757 = vmax.f32 %v4693, 0.0
        %v4758 = vmax.f32 %v4695, 0.0
        %v4759 = vmax.f32 %v4698, 0.0
        %v4760 = vmax.f32 %v4700, 0.0
        %v4761 = vmax.f32 %v4703, 0.0
        %v4762 = vmax.f32 %v4705, 0.0
        %v4763 = vmax.f32 %v4708, 0.0
        %v4764 = vmax.f32 %v4710, 0.0
        %v4765 = vmax.f32 %v4713, 0.0
        %v4766 = vmax.f32 %v4715, 0.0
        %v4767 = vmax.f32 %v4718, 0.0
        %v4768 = vmax.f32 %v4720, 0.0
        %v4769 = vmax.f32 %v4723, 0.0
        %v4770 = vmax.f32 %v4725, 0.0
        %v4771 = vmax.f32 %v4728, 0.0
        %v4772 = vmax.f32 %v4730, 0.0
        %v4773 = vmax.f32 %v4733, 0.0
        %v4774 = vmax.f32 %v4735, 0.0
        %v4775 = vmax.f32 %v4738, 0.0
        %v4776 = vmax.f32 %v4740, 0.0
        %v4777 = vmax.f32 %v4743, 0.0
        %v4778 = vmax.f32 %v4745, 0.0
        %v4787 = vrot.slane %v2426, 1
        %v4788 = vrot.slane %v2426, 2
        %v4789 = vrot.slane %v2426, 3
        %v4790 = vrot.slane %v2426, 4
        %v4791 = vrot.slane %v2426, 5
        %v4792 = vrot.slane %v2426, 6
        %v4793 = vrot.slane %v2426, 7
        %v4794 = vrot.slane %v2427, 1
        %v4795 = vrot.slane %v2427, 2
        %v4796 = vrot.slane %v2427, 3
        %v4797 = vrot.slane %v2427, 4
        %v4798 = vrot.slane %v2427, 5
        %v4799 = vrot.slane %v2427, 6
        %v4800 = vrot.slane %v2427, 7
        %v4801 = vrot.slane %v2428, 1
        %v4802 = vrot.slane %v2428, 2
        %v4803 = vrot.slane %v2428, 3
        %v4804 = vrot.slane %v2428, 4
        %v4805 = vrot.slane %v2428, 5
        %v4806 = vrot.slane %v2428, 6
        %v4807 = vrot.slane %v2428, 7
        %v4808 = vrot.slane %v2429, 1
        %v4809 = vrot.slane %v2429, 2
        %v4810 = vrot.slane %v2429, 3
        %v4811 = vrot.slane %v2429, 4
        %v4812 = vrot.slane %v2429, 5
        %v4813 = vrot.slane %v2429, 6
        %v4814 = vrot.slane %v2429, 7
        %v4815 = vrot.slane %v2430, 1
        %v4816 = vrot.slane %v2430, 2
        %v4817 = vrot.slane %v2430, 3
        %v4818 = vrot.slane %v2430, 4
        %v4819 = vrot.slane %v2430, 5
        %v4820 = vrot.slane %v2430, 6
        %v4821 = vrot.slane %v2430, 7
        %v4822 = vrot.slane %v2431, 1
        %v4823 = vrot.slane %v2431, 2
        %v4824 = vrot.slane %v2431, 3
        %v4825 = vrot.slane %v2431, 4
        %v4826 = vrot.slane %v2431, 5
        %v4827 = vrot.slane %v2431, 6
        %v4828 = vrot.slane %v2431, 7
        %v4829 = vrot.slane %v2432, 1
        %v4830 = vrot.slane %v2432, 2
        %v4831 = vrot.slane %v2432, 3
        %v4832 = vrot.slane %v2432, 4
        %v4833 = vrot.slane %v2432, 5
        %v4834 = vrot.slane %v2432, 6
        %v4835 = vrot.slane %v2432, 7
        %v4836 = vrot.slane %v2433, 1
        %v4837 = vrot.slane %v2433, 2
        %v4838 = vrot.slane %v2433, 3
        %v4839 = vrot.slane %v2433, 4
        %v4840 = vrot.slane %v2433, 5
        %v4841 = vrot.slane %v2433, 6
        %v4842 = vrot.slane %v2433, 7
        %v4843 = vperm.slane %v2426, 0
        %v4844 = vperm.slane %v4787, 0
        %v4845 = vperm.slane %v4788, 0
        %v4846 = vperm.slane %v4789, 0
        %v4847 = vperm.slane %v4790, 0
        %v4848 = vperm.slane %v4791, 0
        %v4849 = vperm.slane %v4792, 0
        %v4850 = vperm.slane %v4793, 0
        %v4851 = vperm.slane %v2427, 0
        %v4852 = vperm.slane %v4794, 0
        %v4853 = vperm.slane %v4795, 0
        %v4854 = vperm.slane %v4796, 0
        %v4855 = vperm.slane %v4797, 0
        %v4856 = vperm.slane %v4798, 0
        %v4857 = vperm.slane %v4799, 0
        %v4858 = vperm.slane %v4800, 0
        %v4859 = vperm.slane %v2428, 0
        %v4860 = vperm.slane %v4801, 0
        %v4861 = vperm.slane %v4802, 0
        %v4862 = vperm.slane %v4803, 0
        %v4863 = vperm.slane %v4804, 0
        %v4864 = vperm.slane %v4805, 0
        %v4865 = vperm.slane %v4806, 0
        %v4866 = vperm.slane %v4807, 0
        %v4867 = vperm.slane %v2429, 0
        %v4868 = vperm.slane %v4808, 0
        %v4869 = vperm.slane %v4809, 0
        %v4870 = vperm.slane %v4810, 0
        %v4871 = vperm.slane %v4811, 0
        %v4872 = vperm.slane %v4812, 0
        %v4873 = vperm.slane %v4813, 0
        %v4874 = vperm.slane %v4814, 0
        %v4875 = vperm.slane %v2430, 0
        %v4876 = vperm.slane %v4815, 0
        %v4877 = vperm.slane %v4816, 0
        %v4878 = vperm.slane %v4817, 0
        %v4879 = vperm.slane %v4818, 0
        %v4880 = vperm.slane %v4819, 0
        %v4881 = vperm.slane %v4820, 0
        %v4882 = vperm.slane %v4821, 0
        %v4883 = vperm.slane %v2431, 0
        %v4884 = vperm.slane %v4822, 0
        %v4885 = vperm.slane %v4823, 0
        %v4886 = vperm.slane %v4824, 0
        %v4887 = vperm.slane %v4825, 0
        %v4888 = vperm.slane %v4826, 0
        %v4889 = vperm.slane %v4827, 0
        %v4890 = vperm.slane %v4828, 0
        %v4891 = vperm.slane %v2432, 0
        %v4892 = vperm.slane %v4829, 0
        %v4893 = vperm.slane %v4830, 0
        %v4894 = vperm.slane %v4831, 0
        %v4895 = vperm.slane %v4832, 0
        %v4896 = vperm.slane %v4833, 0
        %v4897 = vperm.slane %v4834, 0
        %v4898 = vperm.slane %v4835, 0
        %v4899 = vperm.slane %v2433, 0
        %v4900 = vperm.slane %v4836, 0
        %v4901 = vperm.slane %v4837, 0
        %v4902 = vperm.slane %v4838, 0
        %v4903 = vperm.slane %v4839, 0
        %v4904 = vperm.slane %v4840, 0
        %v4905 = vperm.slane %v4841, 0
        %v4906 = vperm.slane %v4842, 0
        %4907 = vst [vmem:[#allocation1] ss:$4 sm:$0xff] %v4843
        %s4908 = scalar_lea.vmem [#allocation1], 1
        %4909 = vst [vmem:[%s4908] ss:$4 sm:$0xff] %v4844
        %s4910 = scalar_lea.vmem [#allocation1], 2
        %4911 = vst [vmem:[%s4910] ss:$4 sm:$0xff] %v4845
        %s4912 = scalar_lea.vmem [#allocation1], 3
        %4913 = vst [vmem:[%s4912] ss:$4 sm:$0xff] %v4846
        %s4914 = scalar_lea.vmem [#allocation1], 32
        %4915 = vst [vmem:[%s4914] ss:$4 sm:$0xff] %v4847
        %s4916 = scalar_lea.vmem [#allocation1], 33
        %4917 = vst [vmem:[%s4916] ss:$4 sm:$0xff] %v4848
        %s4918 = scalar_lea.vmem [#allocation1], 34
        %4919 = vst [vmem:[%s4918] ss:$4 sm:$0xff] %v4849
        %s4920 = scalar_lea.vmem [#allocation1], 35
        %4921 = vst [vmem:[%s4920] ss:$4 sm:$0xff] %v4850
        %v4922 = vld.sshfl [vmem:[#allocation1] sm:$0xff pattern:$0x73625140]
        %v4923 = vld.sshfl [vmem:[#allocation1 + $0x20] sm:$0xff pattern:$0x73625140]
        %4924 = vst [vmem:[#allocation1] ss:$4 sm:$0xff] %v4843
        %4925 = vst [vmem:[%s4908] ss:$4 sm:$0xff] %v4844
        %4926 = vst [vmem:[%s4910] ss:$4 sm:$0xff] %v4845
        %4927 = vst [vmem:[%s4912] ss:$4 sm:$0xff] %v4846
        %4928 = vst [vmem:[%s4914] ss:$4 sm:$0xff] %v4847
        %4929 = vst [vmem:[%s4916] ss:$4 sm:$0xff] %v4848
        %4930 = vst [vmem:[%s4918] ss:$4 sm:$0xff] %v4849
        %4931 = vst [vmem:[%s4920] ss:$4 sm:$0xff] %v4850
        %v4932 = vld.sshfl [vmem:[#allocation1] sm:$0xff pattern:$0x73625140]
        %v4933 = vld.sshfl [vmem:[#allocation1 + $0x20] sm:$0xff pattern:$0x73625140]
        %4934 = vst [vmem:[#allocation1] ss:$4 sm:$0xff] %v4851
        %4935 = vst [vmem:[%s4908] ss:$4 sm:$0xff] %v4852
        %4936 = vst [vmem:[%s4910] ss:$4 sm:$0xff] %v4853
        %4937 = vst [vmem:[%s4912] ss:$4 sm:$0xff] %v4854
        %4938 = vst [vmem:[%s4914] ss:$4 sm:$0xff] %v4855
        %4939 = vst [vmem:[%s4916] ss:$4 sm:$0xff] %v4856
        %4940 = vst [vmem:[%s4918] ss:$4 sm:$0xff] %v4857
        %4941 = vst [vmem:[%s4920] ss:$4 sm:$0xff] %v4858
        %v4942 = vld.sshfl [vmem:[#allocation1] sm:$0xff pattern:$0x73625140]
        %v4943 = vld.sshfl [vmem:[#allocation1 + $0x20] sm:$0xff pattern:$0x73625140]
        %4944 = vst [vmem:[#allocation1] ss:$4 sm:$0xff] %v4851
        %4945 = vst [vmem:[%s4908] ss:$4 sm:$0xff] %v4852
        %4946 = vst [vmem:[%s4910] ss:$4 sm:$0xff] %v4853
        %4947 = vst [vmem:[%s4912] ss:$4 sm:$0xff] %v4854
        %4948 = vst [vmem:[%s4914] ss:$4 sm:$0xff] %v4855
        %4949 = vst [vmem:[%s4916] ss:$4 sm:$0xff] %v4856
        %4950 = vst [vmem:[%s4918] ss:$4 sm:$0xff] %v4857
        %4951 = vst [vmem:[%s4920] ss:$4 sm:$0xff] %v4858
        %v4952 = vld.sshfl [vmem:[#allocation1] sm:$0xff pattern:$0x73625140]
        %v4953 = vld.sshfl [vmem:[#allocation1 + $0x20] sm:$0xff pattern:$0x73625140]
        %4954 = vst [vmem:[#allocation1] ss:$4 sm:$0xff] %v4859
        %4955 = vst [vmem:[%s4908] ss:$4 sm:$0xff] %v4860
        %4956 = vst [vmem:[%s4910] ss:$4 sm:$0xff] %v4861
        %4957 = vst [vmem:[%s4912] ss:$4 sm:$0xff] %v4862
        %4958 = vst [vmem:[%s4914] ss:$4 sm:$0xff] %v4863
        %4959 = vst [vmem:[%s4916] ss:$4 sm:$0xff] %v4864
        %4960 = vst [vmem:[%s4918] ss:$4 sm:$0xff] %v4865
        %4961 = vst [vmem:[%s4920] ss:$4 sm:$0xff] %v4866
        %v4962 = vld.sshfl [vmem:[#allocation1] sm:$0xff pattern:$0x73625140]
        %v4963 = vld.sshfl [vmem:[#allocation1 + $0x20] sm:$0xff pattern:$0x73625140]
        %4964 = vst [vmem:[#allocation1] ss:$4 sm:$0xff] %v4859
        %4965 = vst [vmem:[%s4908] ss:$4 sm:$0xff] %v4860
        %4966 = vst [vmem:[%s4910] ss:$4 sm:$0xff] %v4861
        %4967 = vst [vmem:[%s4912] ss:$4 sm:$0xff] %v4862
        %4968 = vst [vmem:[%s4914] ss:$4 sm:$0xff] %v4863
        %4969 = vst [vmem:[%s4916] ss:$4 sm:$0xff] %v4864
        %4970 = vst [vmem:[%s4918] ss:$4 sm:$0xff] %v4865
        %4971 = vst [vmem:[%s4920] ss:$4 sm:$0xff] %v4866
        %v4972 = vld.sshfl [vmem:[#allocation1] sm:$0xff pattern:$0x73625140]
        %v4973 = vld.sshfl [vmem:[#allocation1 + $0x20] sm:$0xff pattern:$0x73625140]
        %4974 = vst [vmem:[#allocation1] ss:$4 sm:$0xff] %v4867
        %4975 = vst [vmem:[%s4908] ss:$4 sm:$0xff] %v4868
        %4976 = vst [vmem:[%s4910] ss:$4 sm:$0xff] %v4869
        %4977 = vst [vmem:[%s4912] ss:$4 sm:$0xff] %v4870
        %4978 = vst [vmem:[%s4914] ss:$4 sm:$0xff] %v4871
        %4979 = vst [vmem:[%s4916] ss:$4 sm:$0xff] %v4872
        %4980 = vst [vmem:[%s4918] ss:$4 sm:$0xff] %v4873
        %4981 = vst [vmem:[%s4920] ss:$4 sm:$0xff] %v4874
        %v4982 = vld.sshfl [vmem:[#allocation1] sm:$0xff pattern:$0x73625140]
        %v4983 = vld.sshfl [vmem:[#allocation1 + $0x20] sm:$0xff pattern:$0x73625140]
        %4984 = vst [vmem:[#allocation1] ss:$4 sm:$0xff] %v4867
        %4985 = vst [vmem:[%s4908] ss:$4 sm:$0xff] %v4868
        %4986 = vst [vmem:[%s4910] ss:$4 sm:$0xff] %v4869
        %4987 = vst [vmem:[%s4912] ss:$4 sm:$0xff] %v4870
        %4988 = vst [vmem:[%s4914] ss:$4 sm:$0xff] %v4871
        %4989 = vst [vmem:[%s4916] ss:$4 sm:$0xff] %v4872
        %4990 = vst [vmem:[%s4918] ss:$4 sm:$0xff] %v4873
        %4991 = vst [vmem:[%s4920] ss:$4 sm:$0xff] %v4874
        %v4992 = vld.sshfl [vmem:[#allocation1] sm:$0xff pattern:$0x73625140]
        %v4993 = vld.sshfl [vmem:[#allocation1 + $0x20] sm:$0xff pattern:$0x73625140]
        %4994 = vst [vmem:[#allocation1] ss:$4 sm:$0xff] %v4875
        %4995 = vst [vmem:[%s4908] ss:$4 sm:$0xff] %v4876
        %4996 = vst [vmem:[%s4910] ss:$4 sm:$0xff] %v4877
        %4997 = vst [vmem:[%s4912] ss:$4 sm:$0xff] %v4878
        %4998 = vst [vmem:[%s4914] ss:$4 sm:$0xff] %v4879
        %4999 = vst [vmem:[%s4916] ss:$4 sm:$0xff] %v4880
        %5000 = vst [vmem:[%s4918] ss:$4 sm:$0xff] %v4881
        %5001 = vst [vmem:[%s4920] ss:$4 sm:$0xff] %v4882
        %v5002 = vld.sshfl [vmem:[#allocation1] sm:$0xff pattern:$0x73625140]
        %v5003 = vld.sshfl [vmem:[#allocation1 + $0x20] sm:$0xff pattern:$0x73625140]
        %5004 = vst [vmem:[#allocation1] ss:$4 sm:$0xff] %v4875
        %5005 = vst [vmem:[%s4908] ss:$4 sm:$0xff] %v4876
        %5006 = vst [vmem:[%s4910] ss:$4 sm:$0xff] %v4877
        %5007 = vst [vmem:[%s4912] ss:$4 sm:$0xff] %v4878
        %5008 = vst [vmem:[%s4914] ss:$4 sm:$0xff] %v4879
        %5009 = vst [vmem:[%s4916] ss:$4 sm:$0xff] %v4880
        %5010 = vst [vmem:[%s4918] ss:$4 sm:$0xff] %v4881
        %5011 = vst [vmem:[%s4920] ss:$4 sm:$0xff] %v4882
        %v5012 = vld.sshfl [vmem:[#allocation1] sm:$0xff pattern:$0x73625140]
        %v5013 = vld.sshfl [vmem:[#allocation1 + $0x20] sm:$0xff pattern:$0x73625140]
        %5014 = vst [vmem:[#allocation1] ss:$4 sm:$0xff] %v4883
        %5015 = vst [vmem:[%s4908] ss:$4 sm:$0xff] %v4884
        %5016 = vst [vmem:[%s4910] ss:$4 sm:$0xff] %v4885
        %5017 = vst [vmem:[%s4912] ss:$4 sm:$0xff] %v4886
        %5018 = vst [vmem:[%s4914] ss:$4 sm:$0xff] %v4887
        %5019 = vst [vmem:[%s4916] ss:$4 sm:$0xff] %v4888
        %5020 = vst [vmem:[%s4918] ss:$4 sm:$0xff] %v4889
        %5021 = vst [vmem:[%s4920] ss:$4 sm:$0xff] %v4890
        %v5022 = vld.sshfl [vmem:[#allocation1] sm:$0xff pattern:$0x73625140]
        %v5023 = vld.sshfl [vmem:[#allocation1 + $0x20] sm:$0xff pattern:$0x73625140]
        %5024 = vst [vmem:[#allocation1] ss:$4 sm:$0xff] %v4883
        %5025 = vst [vmem:[%s4908] ss:$4 sm:$0xff] %v4884
        %5026 = vst [vmem:[%s4910] ss:$4 sm:$0xff] %v4885
        %5027 = vst [vmem:[%s4912] ss:$4 sm:$0xff] %v4886
        %5028 = vst [vmem:[%s4914] ss:$4 sm:$0xff] %v4887
        %5029 = vst [vmem:[%s4916] ss:$4 sm:$0xff] %v4888
        %5030 = vst [vmem:[%s4918] ss:$4 sm:$0xff] %v4889
        %5031 = vst [vmem:[%s4920] ss:$4 sm:$0xff] %v4890
        %v5032 = vld.sshfl [vmem:[#allocation1] sm:$0xff pattern:$0x73625140]
        %v5033 = vld.sshfl [vmem:[#allocation1 + $0x20] sm:$0xff pattern:$0x73625140]
        %5034 = vst [vmem:[#allocation1] ss:$4 sm:$0xff] %v4891
        %5035 = vst [vmem:[%s4908] ss:$4 sm:$0xff] %v4892
        %5036 = vst [vmem:[%s4910] ss:$4 sm:$0xff] %v4893
        %5037 = vst [vmem:[%s4912] ss:$4 sm:$0xff] %v4894
        %5038 = vst [vmem:[%s4914] ss:$4 sm:$0xff] %v4895
        %5039 = vst [vmem:[%s4916] ss:$4 sm:$0xff] %v4896
        %5040 = vst [vmem:[%s4918] ss:$4 sm:$0xff] %v4897
        %5041 = vst [vmem:[%s4920] ss:$4 sm:$0xff] %v4898
        %v5042 = vld.sshfl [vmem:[#allocation1] sm:$0xff pattern:$0x73625140]
        %v5043 = vld.sshfl [vmem:[#allocation1 + $0x20] sm:$0xff pattern:$0x73625140]
        %5044 = vst [vmem:[#allocation1] ss:$4 sm:$0xff] %v4891
        %5045 = vst [vmem:[%s4908] ss:$4 sm:$0xff] %v4892
        %5046 = vst [vmem:[%s4910] ss:$4 sm:$0xff] %v4893
        %5047 = vst [vmem:[%s4912] ss:$4 sm:$0xff] %v4894
        %5048 = vst [vmem:[%s4914] ss:$4 sm:$0xff] %v4895
        %5049 = vst [vmem:[%s4916] ss:$4 sm:$0xff] %v4896
        %5050 = vst [vmem:[%s4918] ss:$4 sm:$0xff] %v4897
        %5051 = vst [vmem:[%s4920] ss:$4 sm:$0xff] %v4898
        %v5052 = vld.sshfl [vmem:[#allocation1] sm:$0xff pattern:$0x73625140]
        %v5053 = vld.sshfl [vmem:[#allocation1 + $0x20] sm:$0xff pattern:$0x73625140]
        %5054 = vst [vmem:[#allocation1] ss:$4 sm:$0xff] %v4899
        %5055 = vst [vmem:[%s4908] ss:$4 sm:$0xff] %v4900
        %5056 = vst [vmem:[%s4910] ss:$4 sm:$0xff] %v4901
        %5057 = vst [vmem:[%s4912] ss:$4 sm:$0xff] %v4902
        %5058 = vst [vmem:[%s4914] ss:$4 sm:$0xff] %v4903
        %5059 = vst [vmem:[%s4916] ss:$4 sm:$0xff] %v4904
        %5060 = vst [vmem:[%s4918] ss:$4 sm:$0xff] %v4905
        %5061 = vst [vmem:[%s4920] ss:$4 sm:$0xff] %v4906
        %v5062 = vld.sshfl [vmem:[#allocation1] sm:$0xff pattern:$0x73625140]
        %v5063 = vld.sshfl [vmem:[#allocation1 + $0x20] sm:$0xff pattern:$0x73625140]
        %5064 = vst [vmem:[#allocation1] ss:$4 sm:$0xff] %v4899
        %5065 = vst [vmem:[%s4908] ss:$4 sm:$0xff] %v4900
        %5066 = vst [vmem:[%s4910] ss:$4 sm:$0xff] %v4901
        %5067 = vst [vmem:[%s4912] ss:$4 sm:$0xff] %v4902
        %5068 = vst [vmem:[%s4914] ss:$4 sm:$0xff] %v4903
        %5069 = vst [vmem:[%s4916] ss:$4 sm:$0xff] %v4904
        %5070 = vst [vmem:[%s4918] ss:$4 sm:$0xff] %v4905
        %5071 = vst [vmem:[%s4920] ss:$4 sm:$0xff] %v4906
        %v5072 = vld.sshfl [vmem:[#allocation1] sm:$0xff pattern:$0x73625140]
        %v5073 = vld.sshfl [vmem:[#allocation1 + $0x20] sm:$0xff pattern:$0x73625140]
        %v5106 = vadd.f32 %v4747, %v4922
        %v5107 = vadd.f32 %v4748, %v4923
        %v5108 = vadd.f32 %v4749, %v4932
        %v5109 = vadd.f32 %v4750, %v4933
        %v5110 = vadd.f32 %v4751, %v4942
        %v5111 = vadd.f32 %v4752, %v4943
        %v5112 = vadd.f32 %v4753, %v4952
        %v5113 = vadd.f32 %v4754, %v4953
        %v5114 = vadd.f32 %v4755, %v4962
        %v5115 = vadd.f32 %v4756, %v4963
        %v5116 = vadd.f32 %v4757, %v4972
        %v5117 = vadd.f32 %v4758, %v4973
        %v5118 = vadd.f32 %v4759, %v4982
        %v5119 = vadd.f32 %v4760, %v4983
        %v5120 = vadd.f32 %v4761, %v4992
        %v5121 = vadd.f32 %v4762, %v4993
        %v5122 = vadd.f32 %v4763, %v5002
        %v5123 = vadd.f32 %v4764, %v5003
        %v5124 = vadd.f32 %v4765, %v5012
        %v5125 = vadd.f32 %v4766, %v5013
        %v5126 = vadd.f32 %v4767, %v5022
        %v5127 = vadd.f32 %v4768, %v5023
        %v5128 = vadd.f32 %v4769, %v5032
        %v5129 = vadd.f32 %v4770, %v5033
        %v5130 = vadd.f32 %v4771, %v5042
        %v5131 = vadd.f32 %v4772, %v5043
        %v5132 = vadd.f32 %v4773, %v5052
        %v5133 = vadd.f32 %v4774, %v5053
        %v5134 = vadd.f32 %v4775, %v5062
        %v5135 = vadd.f32 %v4776, %v5063
        %v5136 = vadd.f32 %v4777, %v5072
        %v5137 = vadd.f32 %v4778, %v5073
        %v5138 = vpack.c.bf16 %v5107, %v5106
        %v5139 = vpack.c.bf16 %v5109, %v5108
        %v5140 = vpack.c.bf16 %v5111, %v5110
        %v5141 = vpack.c.bf16 %v5113, %v5112
        %v5142 = vpack.c.bf16 %v5115, %v5114
        %v5143 = vpack.c.bf16 %v5117, %v5116
        %v5144 = vpack.c.bf16 %v5119, %v5118
        %v5145 = vpack.c.bf16 %v5121, %v5120
        %v5146 = vpack.c.bf16 %v5123, %v5122
        %v5147 = vpack.c.bf16 %v5125, %v5124
        %v5148 = vpack.c.bf16 %v5127, %v5126
        %v5149 = vpack.c.bf16 %v5129, %v5128
        %v5150 = vpack.c.bf16 %v5131, %v5130
        %v5151 = vpack.c.bf16 %v5133, %v5132
        %v5152 = vpack.c.bf16 %v5135, %v5134
        %v5153 = vpack.c.bf16 %v5137, %v5136
        %v5154 = vld [vmem:[%s17] sm:$0xf]
        %v5155 = vld [vmem:[%s17 + $0x4] sm:$0xf]
        %v5156 = vld [vmem:[%s18] sm:$0x1]
        %v5158 = vperm.slane %v5156, 0
        %v5162 = vunpack.c.l.b16 %v5154
        %v5163 = vunpack.c.l.b16 %v5155
        %v5164 = vpack.c.b16 %v5163, %v5162
        %v5167 = vsel %vm1031, %v5138, 0
        %v5170 = vsel %vm1031, %v5139, 0
        %v5173 = vsel %vm1031, %v5140, 0
        %v5176 = vsel %vm1031, %v5141, 0
        %v5179 = vsel %vm1031, %v5142, 0
        %v5182 = vsel %vm1031, %v5143, 0
        %v5185 = vsel %vm1031, %v5144, 0
        %v5188 = vsel %vm1031, %v5145, 0
        %v5191 = vsel %vm1031, %v5146, 0
        %v5194 = vsel %vm1031, %v5147, 0
        %v5197 = vsel %vm1031, %v5148, 0
        %v5200 = vsel %vm1031, %v5149, 0
        %v5203 = vsel %vm1031, %v5150, 0
        %v5206 = vsel %vm1031, %v5151, 0
        %v5209 = vsel %vm1031, %v5152, 0
        %v5212 = vsel %vm1031, %v5153, 0
        %5214 = vmatpush.bf16.msra.mxu0 0
        %5215 = vmatpush.bf16.msra.mxu0 0
        %5216 = vmatpush.bf16.msra.mxu0 0
        %5217 = vmatpush.bf16.msra.mxu0 0
        %5218 = vmatpush.bf16.msra.mxu0 0
        %5219 = vmatpush.bf16.msra.mxu0 0
        %5220 = vmatpush.bf16.msra.mxu0 0
        %5221 = vmatpush.bf16.msra.mxu0 %v5164
        %5222 = vmatmul.bf16.gmra.mxu0 %v5167
        %v5223 = vpop.f32.mrf.mxu0
        %v5224 = vadd.f32 %v5158, %v5223
        %v5225 = vpop.f32.mrf.mxu0
        %v5226 = vadd.f32 %v5158, %v5225
        %5227 = vmatmul.bf16.gmra.mxu0 %v5170
        %v5228 = vpop.f32.mrf.mxu0
        %v5229 = vadd.f32 %v5158, %v5228
        %v5230 = vpop.f32.mrf.mxu0
        %v5231 = vadd.f32 %v5158, %v5230
        %5232 = vmatmul.bf16.gmra.mxu0 %v5173
        %v5233 = vpop.f32.mrf.mxu0
        %v5234 = vadd.f32 %v5158, %v5233
        %v5235 = vpop.f32.mrf.mxu0
        %v5236 = vadd.f32 %v5158, %v5235
        %5237 = vmatmul.bf16.gmra.mxu0 %v5176
        %v5238 = vpop.f32.mrf.mxu0
        %v5239 = vadd.f32 %v5158, %v5238
        %v5240 = vpop.f32.mrf.mxu0
        %v5241 = vadd.f32 %v5158, %v5240
        %5242 = vmatmul.bf16.gmra.mxu0 %v5179
        %v5243 = vpop.f32.mrf.mxu0
        %v5244 = vadd.f32 %v5158, %v5243
        %v5245 = vpop.f32.mrf.mxu0
        %v5246 = vadd.f32 %v5158, %v5245
        %5247 = vmatmul.bf16.gmra.mxu0 %v5182
        %v5248 = vpop.f32.mrf.mxu0
        %v5249 = vadd.f32 %v5158, %v5248
        %v5250 = vpop.f32.mrf.mxu0
        %v5251 = vadd.f32 %v5158, %v5250
        %5252 = vmatmul.bf16.gmra.mxu0 %v5185
        %v5253 = vpop.f32.mrf.mxu0
        %v5254 = vadd.f32 %v5158, %v5253
        %v5255 = vpop.f32.mrf.mxu0
        %v5256 = vadd.f32 %v5158, %v5255
        %5257 = vmatmul.bf16.gmra.mxu0 %v5188
        %v5258 = vpop.f32.mrf.mxu0
        %v5259 = vadd.f32 %v5158, %v5258
        %v5260 = vpop.f32.mrf.mxu0
        %v5261 = vadd.f32 %v5158, %v5260
        %5262 = vmatmul.bf16.gmra.mxu0 %v5191
        %v5263 = vpop.f32.mrf.mxu0
        %v5264 = vadd.f32 %v5158, %v5263
        %v5265 = vpop.f32.mrf.mxu0
        %v5266 = vadd.f32 %v5158, %v5265
        %5267 = vmatmul.bf16.gmra.mxu0 %v5194
        %v5268 = vpop.f32.mrf.mxu0
        %v5269 = vadd.f32 %v5158, %v5268
        %v5270 = vpop.f32.mrf.mxu0
        %v5271 = vadd.f32 %v5158, %v5270
        %5272 = vmatmul.bf16.gmra.mxu0 %v5197
        %v5273 = vpop.f32.mrf.mxu0
        %v5274 = vadd.f32 %v5158, %v5273
        %v5275 = vpop.f32.mrf.mxu0
        %v5276 = vadd.f32 %v5158, %v5275
        %5277 = vmatmul.bf16.gmra.mxu0 %v5200
        %v5278 = vpop.f32.mrf.mxu0
        %v5279 = vadd.f32 %v5158, %v5278
        %v5280 = vpop.f32.mrf.mxu0
        %v5281 = vadd.f32 %v5158, %v5280
        %5282 = vmatmul.bf16.gmra.mxu0 %v5203
        %v5283 = vpop.f32.mrf.mxu0
        %v5284 = vadd.f32 %v5158, %v5283
        %v5285 = vpop.f32.mrf.mxu0
        %v5286 = vadd.f32 %v5158, %v5285
        %5287 = vmatmul.bf16.gmra.mxu0 %v5206
        %v5288 = vpop.f32.mrf.mxu0
        %v5289 = vadd.f32 %v5158, %v5288
        %v5290 = vpop.f32.mrf.mxu0
        %v5291 = vadd.f32 %v5158, %v5290
        %5292 = vmatmul.bf16.gmra.mxu0 %v5209
        %v5293 = vpop.f32.mrf.mxu0
        %v5294 = vadd.f32 %v5158, %v5293
        %v5295 = vpop.f32.mrf.mxu0
        %v5296 = vadd.f32 %v5158, %v5295
        %5297 = vmatmul.bf16.gmra.mxu0 %v5212
        %v5298 = vpop.f32.mrf.mxu0
        %v5299 = vadd.f32 %v5158, %v5298
        %v5300 = vpop.f32.mrf.mxu0
        %v5301 = vadd.f32 %v5158, %v5300
        %5302 = vdwg.mxu0
        %v5303 = vmax.f32 %v5224, 0.0
        %v5304 = vmax.f32 %v5226, 0.0
        %v5305 = vmax.f32 %v5229, 0.0
        %v5306 = vmax.f32 %v5231, 0.0
        %v5307 = vmax.f32 %v5234, 0.0
        %v5308 = vmax.f32 %v5236, 0.0
        %v5309 = vmax.f32 %v5239, 0.0
        %v5310 = vmax.f32 %v5241, 0.0
        %v5311 = vmax.f32 %v5244, 0.0
        %v5312 = vmax.f32 %v5246, 0.0
        %v5313 = vmax.f32 %v5249, 0.0
        %v5314 = vmax.f32 %v5251, 0.0
        %v5315 = vmax.f32 %v5254, 0.0
        %v5316 = vmax.f32 %v5256, 0.0
        %v5317 = vmax.f32 %v5259, 0.0
        %v5318 = vmax.f32 %v5261, 0.0
        %v5319 = vmax.f32 %v5264, 0.0
        %v5320 = vmax.f32 %v5266, 0.0
        %v5321 = vmax.f32 %v5269, 0.0
        %v5322 = vmax.f32 %v5271, 0.0
        %v5323 = vmax.f32 %v5274, 0.0
        %v5324 = vmax.f32 %v5276, 0.0
        %v5325 = vmax.f32 %v5279, 0.0
        %v5326 = vmax.f32 %v5281, 0.0
        %v5327 = vmax.f32 %v5284, 0.0
        %v5328 = vmax.f32 %v5286, 0.0
        %v5329 = vmax.f32 %v5289, 0.0
        %v5330 = vmax.f32 %v5291, 0.0
        %v5331 = vmax.f32 %v5294, 0.0
        %v5332 = vmax.f32 %v5296, 0.0
        %v5333 = vmax.f32 %v5299, 0.0
        %v5334 = vmax.f32 %v5301, 0.0
        %5335 = vst.msk [vmem:[%s751] sm:$0xff] %vm1031, %v5303
        %5336 = vst.msk [vmem:[%s751 + $0x8] sm:$0xff] %vm1031, %v5304
        %5337 = vst.msk [vmem:[%s751 + $0x10] sm:$0xff] %vm1031, %v5305
        %5338 = vst.msk [vmem:[%s751 + $0x18] sm:$0xff] %vm1031, %v5306
        %5339 = vst.msk [vmem:[%s751 + $0x20] sm:$0xff] %vm1031, %v5307
        %5340 = vst.msk [vmem:[%s751 + $0x28] sm:$0xff] %vm1031, %v5308
        %5341 = vst.msk [vmem:[%s751 + $0x30] sm:$0xff] %vm1031, %v5309
        %5342 = vst.msk [vmem:[%s751 + $0x38] sm:$0xff] %vm1031, %v5310
        %5343 = vst.msk [vmem:[%s751 + $0x40] sm:$0xff] %vm1031, %v5311
        %5344 = vst.msk [vmem:[%s751 + $0x48] sm:$0xff] %vm1031, %v5312
        %5345 = vst.msk [vmem:[%s751 + $0x50] sm:$0xff] %vm1031, %v5313
        %5346 = vst.msk [vmem:[%s751 + $0x58] sm:$0xff] %vm1031, %v5314
        %5347 = vst.msk [vmem:[%s751 + $0x60] sm:$0xff] %vm1031, %v5315
        %5348 = vst.msk [vmem:[%s751 + $0x68] sm:$0xff] %vm1031, %v5316
        %5349 = vst.msk [vmem:[%s751 + $0x70] sm:$0xff] %vm1031, %v5317
        %5350 = vst.msk [vmem:[%s751 + $0x78] sm:$0xff] %vm1031, %v5318
        %5351 = vst.msk [vmem:[%s751 + $0x80] sm:$0xff] %vm1031, %v5319
        %5352 = vst.msk [vmem:[%s751 + $0x88] sm:$0xff] %vm1031, %v5320
        %5353 = vst.msk [vmem:[%s751 + $0x90] sm:$0xff] %vm1031, %v5321
        %5354 = vst.msk [vmem:[%s751 + $0x98] sm:$0xff] %vm1031, %v5322
        %5355 = vst.msk [vmem:[%s751 + $0xa0] sm:$0xff] %vm1031, %v5323
        %5356 = vst.msk [vmem:[%s751 + $0xa8] sm:$0xff] %vm1031, %v5324
        %5357 = vst.msk [vmem:[%s751 + $0xb0] sm:$0xff] %vm1031, %v5325
        %5358 = vst.msk [vmem:[%s751 + $0xb8] sm:$0xff] %vm1031, %v5326
        %5359 = vst.msk [vmem:[%s751 + $0xc0] sm:$0xff] %vm1031, %v5327
        %5360 = vst.msk [vmem:[%s751 + $0xc8] sm:$0xff] %vm1031, %v5328
        %5361 = vst.msk [vmem:[%s751 + $0xd0] sm:$0xff] %vm1031, %v5329
        %5362 = vst.msk [vmem:[%s751 + $0xd8] sm:$0xff] %vm1031, %v5330
        %5363 = vst.msk [vmem:[%s751 + $0xe0] sm:$0xff] %vm1031, %v5331
        %5364 = vst.msk [vmem:[%s751 + $0xe8] sm:$0xff] %vm1031, %v5332
        %5365 = vst.msk [vmem:[%s751 + $0xf0] sm:$0xff] %vm1031, %v5333
        %5366 = vst.msk [vmem:[%s751 + $0xf8] sm:$0xff] %vm1031, %v5334
        %s5367 = sand.u32 %s462, 1
        %s5368 = scalar_lea.sflag [#allocation7], %s5367
        %s5369 = sand.u32 %s462, 1
        %s5370 = smul.addr %s5369, 4
        %s5371 = scalar_lea.vmem [#allocation6], %s5370
        %s5372 = sand.u32 %s40, 1
        %s5373 = scalar_lea.sflag [#allocation9], %s5372
        %s5374 = sand.u32 %s488, 1
        %s5375 = smul.addr %s5374, 16
        %s5376 = scalar_lea.vmem [#allocation8], %s5375
        %s5377 = sand.u32 %s40, 1
        %s5378 = scalar_lea.sflag [#allocation9], %s5377
        %s5379 = sand.u32 %s514, 1
        %s5380 = smul.addr %s5379, 64
        %s5381 = scalar_lea.vmem [#allocation10], %s5380
        %p5382 = scmp.lt.s32.totalorder %s40, 1
        %s5383 = scalar_select %p5382, %s40, 1
        %s5384 = smul.addr %s5383, 32
        %s5385 = smul.addr %s5384, 8
        %s5386 = scalar_lea.vmem %s22, %s5385
        // Predicated region
        $region97: #{_lambda_.5} parent=95 // pred_check
          %p5387 = pneg %p472
        $region98: #{_lambda_.5} parent=95 // pred_check_branch
          %5389 = sbr.rel (%p5387) target = $region100
        $region99: #{_lambda_.5} parent=95 // pred_region
          %5391 = vsyncadd %s5368, 0
          %s5392 = smul.addr %s40, 4
          %s5393 = scalar_lea.hbm %s19, %s5392
          %s5395 = sshll.u32 %s5371, 4
          %s5396 = int_to_ptr.vmem [resolvable:$true] %s5395
          %s5397 = sshll.u32 %s5393, 4
          %s5398 = int_to_ptr.hbm [resolvable:$true] %s5397
          %5400 = dma.vmem_to_hbm [thread:$0]  %s5396, 64, %s5398, %s5368
        $region100: #{_lambda_.5} parent=95 // pred_fallthru
          _
        // Predicated region
        $region101: #{_lambda_.5} parent=95 // pred_check
          %p5401 = pneg %p498
        $region102: #{_lambda_.5} parent=95 // pred_check_branch
          %5403 = sbr.rel (%p5401) target = $region104
        $region103: #{_lambda_.5} parent=95 // pred_region
          %5405 = vsyncadd %s5373, 0
          %s5406 = smul.addr %s40, 2
          %s5407 = smul.addr %s5406, 8
          %s5408 = scalar_lea.hbm %s20, %s5407
          %s5409 = sshll.u32 %s5376, 4
          %s5410 = int_to_ptr.vmem [resolvable:$true] %s5409
          %s5411 = sshll.u32 %s5408, 4
          %s5412 = int_to_ptr.hbm [resolvable:$true] %s5411
          %5417 = dma.vmem_to_hbm [thread:$0]  %s5410, 256, %s5412, %s5373, 128, 128, 8
        $region104: #{_lambda_.5} parent=95 // pred_fallthru
          _
        // Predicated region
        $region105: #{_lambda_.5} parent=95 // pred_check
          %p5418 = pneg %p524
        $region106: #{_lambda_.5} parent=95 // pred_check_branch
          %5420 = sbr.rel (%p5418) target = $region108
        $region107: #{_lambda_.5} parent=95 // pred_region
          %5422 = vsyncadd %s5378, 0
          %s5423 = smul.addr %s40, 8
          %s5424 = smul.addr %s5423, 8
          %s5425 = scalar_lea.hbm %s21, %s5424
          %s5426 = sshll.u32 %s5381, 4
          %s5427 = int_to_ptr.vmem [resolvable:$true] %s5426
          %s5428 = sshll.u32 %s5425, 4
          %s5429 = int_to_ptr.hbm [resolvable:$true] %s5428
          %5434 = dma.vmem_to_hbm [thread:$0]  %s5427, 1024, %s5429, %s5378, 128, 128, 8
        $region108: #{_lambda_.5} parent=95 // pred_fallthru
          _
        // Predicated region
        $region109: #{_lambda_.5} parent=95 // pred_check
          %p5435 = pneg %p550
        $region110: #{_lambda_.5} parent=95 // pred_check_branch
          %5437 = sbr.rel (%p5435) target = $region112
        $region111: #{_lambda_.5} parent=95 // pred_region
          _
        $region112: #{_lambda_.5} parent=95 // pred_fallthru
          _
      $region96: #{_lambda_.5} parent=5 // pred_fallthru
        _
      %p5438 = scmp.le.s32.totalorder 2, %s35
      // Predicated region
      $region113: #{_lambda_.5} parent=5 // pred_check
        %p5439 = pneg %p5438
      $region114: #{_lambda_.5} parent=5 // pred_check_branch
        %5441 = sbr.rel (%p5439) target = $region116
      $region115: #{_lambda_.5} parent=5 // pred_region
        %s5442 = ssub.s32 %s35, 2
        // Predicated region
        $region117: #{_lambda_.5} parent=115 // pred_check
          %p5443 = pneg %p478
        $region118: #{_lambda_.5} parent=115 // pred_check_branch
          %5445 = sbr.rel (%p5443) target = $region120
        $region119: #{_lambda_.5} parent=115 // pred_region
          %s5446 = sand.u32 %s463, 1
          %s5447 = scalar_lea.sflag [#allocation7], %s5446
          %s5448 = sand.u32 %s463, 1
          %s5449 = smul.addr %s5448, 4
          %s5450 = scalar_lea.vmem [#allocation6], %s5449
          %5452 = dma.done %s5447, 64
        $region120: #{_lambda_.5} parent=115 // pred_fallthru
          _
        // Predicated region
        $region121: #{_lambda_.5} parent=115 // pred_check
          %p5453 = pneg %p504
        $region122: #{_lambda_.5} parent=115 // pred_check_branch
          %5455 = sbr.rel (%p5453) target = $region124
        $region123: #{_lambda_.5} parent=115 // pred_region
          %s5456 = sand.u32 %s41, 1
          %s5457 = scalar_lea.sflag [#allocation9], %s5456
          %s5458 = sand.u32 %s489, 1
          %s5459 = smul.addr %s5458, 16
          %s5460 = scalar_lea.vmem [#allocation8], %s5459
          %5462 = dma.done %s5457, 256
        $region124: #{_lambda_.5} parent=115 // pred_fallthru
          _
        // Predicated region
        $region125: #{_lambda_.5} parent=115 // pred_check
          %p5463 = pneg %p530
        $region126: #{_lambda_.5} parent=115 // pred_check_branch
          %5465 = sbr.rel (%p5463) target = $region128
        $region127: #{_lambda_.5} parent=115 // pred_region
          %s5466 = sand.u32 %s41, 1
          %s5467 = scalar_lea.sflag [#allocation9], %s5466
          %s5468 = sand.u32 %s515, 1
          %s5469 = smul.addr %s5468, 64
          %s5470 = scalar_lea.vmem [#allocation10], %s5469
          %5472 = dma.done %s5467, 1024
        $region128: #{_lambda_.5} parent=115 // pred_fallthru
          _
        // Predicated region
        $region129: #{_lambda_.5} parent=115 // pred_check
          %p5473 = pneg %p556
        $region130: #{_lambda_.5} parent=115 // pred_check_branch
          %5475 = sbr.rel (%p5473) target = $region132
        $region131: #{_lambda_.5} parent=115 // pred_region
          %p5476 = scmp.lt.s32.totalorder %s41, 1
          %s5477 = scalar_select %p5476, %s41, 1
          %s5478 = smul.addr %s5477, 32
          %s5479 = smul.addr %s5478, 8
          %s5480 = scalar_lea.vmem %s22, %s5479
        $region132: #{_lambda_.5} parent=115 // pred_fallthru
          _
      $region116: #{_lambda_.5} parent=5 // pred_fallthru
        _
    $region6: #{_lambda_.5} parent=1 // loop_footer
      %s39 = sadd.s32 1, %s35
    $region7: #{_lambda_.5} parent=1 // loop_footer_branch
      %34 = sbr.rel target = $region3
    $region8: #{_lambda_.5} parent=1 // loop_exit
      _
    %5481 = vsyncpa [#allocation7], 1
    %s5482 = scalar_lea.sflag [#allocation7], 1
    %5483 = vsyncpa %s5482, 1
    %5484 = vsyncpa [#allocation9], 1
    %s5485 = scalar_lea.sflag [#allocation9], 1
    %5486 = vsyncpa %s5485, 1

</llo_original>
